<compile_context>
chip_gen: v7x
topology: tpu7x:2x2x1
jax: 0.10.0
libtpu: 0.0.40
codegen_flags: <defaults>
</compile_context>

<pallas_src>
import numpy as np
import jax
import jax.numpy as jnp
from jax.experimental import pallas as pl
from jax.experimental.pallas import tpu as pltpu


BT = 256  # images per grid step == lane width of every in-kernel operand


# ------------------------------ Pallas kernel ------------------------------ #

def _convnet_kernel(x_ref, a1_ref, b1_ref, a2_ref, b2_ref, wf_ref, bf_ref,
                    o_ref, p1_ref):
    """Fused ConvNet forward for one block of BT images (batch in lanes).

    x_ref : [784, BT] bf16   pixels, row = h*28 + w, lane = image.
    a1_ref: [960, 224] bf16  conv1 weights for 4 output rows; row order encodes
                             the 2x2 pool quarters (see pack_params).
    b1_ref: [960, 1] f32
    a2_ref: [160, 720] bf16  conv2 weights for one pair of output rows, dense K
                             over 6 pooled slabs of 120 rows each.
    b2_ref: [160, 1] f32
    wf_ref: [10, 160] bf16   fc1 weights, col = ip*40 + wp*10 + c.
    bf_ref: [10, 1] f32
    o_ref : [10, BT] f32     logits (lane-dense store).
    p1_ref: [1440, BT] bf16  VMEM scratch: pooled conv1, row = 120*h + 10*w + c.
    """
    f32 = jnp.float32
    bf16 = jnp.bfloat16

    a1 = a1_ref[...]
    a2 = a2_ref[...]
    wf = wf_ref[...]
    # Hoisted bias lane-broadcasts (one per layer, not one per dot).
    b1 = jnp.broadcast_to(b1_ref[...], (960, BT))
    b2 = jnp.broadcast_to(b2_ref[...], (160, BT))

    # conv1 + ReLU + 2x2/2 max-pool: 6 MXU dots, 4 conv output rows each.
    for g in range(6):
        xs = x_ref[112 * g:112 * g + 224, :]                   # [224, BT] bf16
        y = jnp.maximum(jnp.dot(a1, xs, preferred_element_type=f32) + b1, 0.0)
        # Max over the four pool quarters -> dense pooled pair [240, BT]:
        # rows   0..119 = pooled H row 2g,   packed wp*10 + c
        # rows 120..239 = pooled H row 2g+1, packed wp*10 + c
        hp = jnp.maximum(jnp.maximum(y[0:240, :], y[240:480, :]),
                         jnp.maximum(y[480:720, :], y[720:960, :]))
        p1_ref[240 * g:240 * g + 240, :] = hp.astype(bf16)

    # conv2 + ReLU + 2x2/2 max-pool: 4 dots (one per pair of conv2 output rows).
    p2 = []
    for ip in range(4):
        win = p1_ref[240 * ip:240 * ip + 720, :]               # [720, BT] bf16
        y2 = jnp.maximum(jnp.dot(a2, win, preferred_element_type=f32) + b2, 0.0)
        # Max over the four pool quarters -> [40, BT], row = wp*10 + c.
        p2.append(jnp.maximum(jnp.maximum(y2[0:40, :], y2[40:80, :]),
                              jnp.maximum(y2[80:120, :], y2[120:160, :])))

    # fc1: single dot [10, 160] x [160, BT]; lane-dense logits store.
    feat = jnp.concatenate(p2, axis=0).astype(bf16)            # [160, BT]
    o_ref[...] = jnp.dot(wf, feat, preferred_element_type=f32) + bf_ref[...]


# ------------------- host-side weight repacking (runs once) ----------------- #

def pack_params(params):
    """Repack PyTorch-layout ConvNet params into banded bf16 matmul operands.

    Call once on concrete (non-traced) arrays, outside the jitted forward.
    """
    w1 = np.asarray(params["w1"], np.float32)   # [10, 1, 5, 5]
    b1 = np.asarray(params["b1"], np.float32)   # [10]
    w2 = np.asarray(params["w2"], np.float32)   # [10, 10, 5, 5]
    b2 = np.asarray(params["b2"], np.float32)   # [10]
    wf = np.asarray(params["wf"], np.float32)   # [10, 160]
    bf = np.asarray(params["bf"], np.float32)   # [10]

    # conv1 merged over 4 output rows (one x window of 8*28 = 224 rows).
    # Kernel result row = q*240 + s*120 + wp*10 + o with q = 2*d0 + par:
    #   conv1 output row  i = 4g + 2s + d0,  column j = 2*wp + par.
    # Max over q (the pool quarters) == the 2x2 max-pool; result is dense.
    a1m = np.zeros((960, 224), np.float32)
    for d0 in range(2):
        for par in range(2):
            q = 2 * d0 + par
            for s in range(2):
                for wp in range(12):
                    for o in range(10):
                        row = q * 240 + s * 120 + wp * 10 + o
                        for ki in range(5):
                            for kj in range(5):
                                col = (2 * s + d0 + ki) * 28 + (2 * wp + par) + kj
                                a1m[row, col] = w1[o, 0, ki, kj]
    b1m = np.tile(b1, 96).reshape(960, 1)

    # conv2 merged over one pair of output rows; reads 6 dense pooled slabs
    # (scratch rows = 120*h + 10*w + c).  Result row = dh*80 + par*40 + wp*10 + o2
    # -> conv2 output row 2*ip + dh, column 2*wp + par; max over (dh, par)
    # quarters == the second 2x2 max-pool.
    a2m = np.zeros((160, 720), np.float32)
    for dh in range(2):
        for par in range(2):
            for wp in range(4):
                for o2 in range(10):
                    row = dh * 80 + par * 40 + wp * 10 + o2
                    for ki in range(5):
                        for kj in range(5):
                            for c in range(10):
                                col = (dh + ki) * 120 + (2 * wp + par + kj) * 10 + c
                                a2m[row, col] = w2[o2, c, ki, kj]
    b2m = np.tile(b2, 16).reshape(160, 1)

    # fc1: pooled conv2 feature row = ip*40 + wp*10 + c;
    # PyTorch NCHW flatten index is c*16 + ip*4 + wp.
    wfm = np.zeros((10, 160), np.float32)
    for o in range(10):
        for ip in range(4):
            for wp in range(4):
                for c in range(10):
                    wfm[o, ip * 40 + wp * 10 + c] = wf[o, c * 16 + ip * 4 + wp]

    return {
        "a1": jnp.asarray(a1m, jnp.bfloat16),
        "b1": jnp.asarray(b1m, jnp.float32),
        "a2": jnp.asarray(a2m, jnp.bfloat16),
        "b2": jnp.asarray(b2m, jnp.float32),
        "wf": jnp.asarray(wfm, jnp.bfloat16),
        "bf": jnp.asarray(bf.reshape(10, 1), jnp.float32),
    }


# ------------------------------- forward pass ------------------------------- #

def convnet_forward(x_nchw, packed):
    """Pallas ConvNet.forward: x [N, 1, 28, 28] f32 -> logits [N, 10] f32."""
    n = x_nchw.shape[0]
    npad = (-n) % BT
    x2 = x_nchw.reshape(n, 28 * 28).astype(jnp.bfloat16)
    if npad:
        x2 = jnp.pad(x2, ((0, npad), (0, 0)))
    nt = n + npad
    xt = x2.T                                              # [784, nt], lane = image

    out_t = pl.pallas_call(
        _convnet_kernel,
        out_shape=jax.ShapeDtypeStruct((10, nt), jnp.float32),
        grid=(nt // BT,),
        in_specs=[
            pl.BlockSpec((28 * 28, BT), lambda b: (0, b)),
            pl.BlockSpec(packed["a1"].shape, lambda b: (0, 0)),
            pl.BlockSpec(packed["b1"].shape, lambda b: (0, 0)),
            pl.BlockSpec(packed["a2"].shape, lambda b: (0, 0)),
            pl.BlockSpec(packed["b2"].shape, lambda b: (0, 0)),
            pl.BlockSpec(packed["wf"].shape, lambda b: (0, 0)),
            pl.BlockSpec(packed["bf"].shape, lambda b: (0, 0)),
        ],
        out_specs=pl.BlockSpec((10, BT), lambda b: (0, b)),
        scratch_shapes=[pltpu.VMEM((1440, BT), jnp.bfloat16)],
        compiler_params=pltpu.CompilerParams(
            dimension_semantics=("parallel",),
            vmem_limit_bytes=32 * 1024 * 1024),
    )(xt, packed["a1"], packed["b1"], packed["a2"], packed["b2"],
      packed["wf"], packed["bf"])

    return out_t.T[:n]                                     # [N, 10]


# ------------------------- pure-JAX reference check ------------------------- #

def reference_forward(x, params):
    w1, b1, w2, b2, wf, bf = (params["w1"], params["b1"], params["w2"],
                              params["b2"], params["wf"], params["bf"])
    dn = ("NCHW", "OIHW", "NCHW")
    hp = jax.lax.Precision.HIGHEST

    def pool(y):
        return jax.lax.reduce_window(y, -jnp.inf, jax.lax.max,
                                     (1, 1, 2, 2), (1, 1, 2, 2), "VALID")

    y = jax.lax.conv_general_dilated(x, w1, (1, 1), "VALID",
                                     dimension_numbers=dn, precision=hp)
    y = jax.nn.relu(y + b1[None, :, None, None])
    y = pool(y)
    y = jax.lax.conv_general_dilated(y, w2, (1, 1), "VALID",
                                     dimension_numbers=dn, precision=hp)
    y = jax.nn.relu(y + b2[None, :, None, None])
    y = pool(y)
    y = y.reshape(y.shape[0], -1)
    return jnp.dot(y, wf.T, precision=hp) + bf


# ---------------------------------- main ------------------------------------ #

if __name__ == "__main__":
    key = jax.random.PRNGKey(0)
    k_x, k1, k2, k3, k4, k5, k6 = jax.random.split(key, 7)

    # Deterministic synthetic parameters (shapes from ConvNet.__init__).
    params = {
        "w1": jax.random.normal(k1, (10, 1, 5, 5), jnp.float32) * 0.1,
        "b1": jax.random.normal(k2, (10,), jnp.float32) * 0.1,
        "w2": jax.random.normal(k3, (10, 10, 5, 5), jnp.float32) * 0.1,
        "b2": jax.random.normal(k4, (10,), jnp.float32) * 0.1,
        "wf": jax.random.normal(k5, (10, 160), jnp.float32) * 0.1,
        "bf": jax.random.normal(k6, (10,), jnp.float32) * 0.1,
    }

    # Input must be [N, 1, 28, 28] so that flatten yields 160 features.
    x = jax.random.normal(k_x, (2, 1, 28, 28), jnp.float32)

    packed = pack_params(params)                    # host-side, once
    out = jax.jit(convnet_forward)(x, packed)
    out = jax.block_until_ready(out)

    ref = reference_forward(x, params)
    assert out.shape == (2, 10), out.shape
    err = jnp.max(jnp.abs(out - ref))
    # bf16 matmul operands with f32 accumulation -> relaxed tolerance.
    assert jnp.allclose(out, ref, atol=5e-2, rtol=5e-2), f"max abs err {err}"

    print("KERNEL_OK")
</pallas_src>

<mosaic_0001>
module attributes {stable_mosaic.version = 11 : i64} {
  func.func @_convnet_kernel(%arg0: i32, %arg1: memref<784x256xbf16, #tpu.memory_space<vmem>>, %arg2: memref<960x224xbf16, #tpu.memory_space<vmem>>, %arg3: memref<960x1xf32, #tpu.memory_space<vmem>>, %arg4: memref<160x720xbf16, #tpu.memory_space<vmem>>, %arg5: memref<160x1xf32, #tpu.memory_space<vmem>>, %arg6: memref<10x160xbf16, #tpu.memory_space<vmem>>, %arg7: memref<10x1xf32, #tpu.memory_space<vmem>>, %arg8: memref<10x256xf32, #tpu.memory_space<vmem>>, %arg9: memref<1440x256xbf16, #tpu.memory_space<vmem>>) attributes {dimension_semantics = [#tpu.dimension_semantics<parallel>], iteration_bounds = array<i64: 1>, scalar_prefetch = 0 : i64, scratch_operands = 1 : i64, tpu.core_type = #tpu.core_type<tc>, window_params = [{transform_indices = @transform_0, window_bounds = array<i64: 784, 256>}, {pipeline_mode = #tpu.pipeline_mode<synchronous>, transform_indices = @transform_1, window_bounds = array<i64: 960, 224>}, {pipeline_mode = #tpu.pipeline_mode<synchronous>, transform_indices = @transform_2, window_bounds = array<i64: 960, 1>}, {pipeline_mode = #tpu.pipeline_mode<synchronous>, transform_indices = @transform_3, window_bounds = array<i64: 160, 720>}, {pipeline_mode = #tpu.pipeline_mode<synchronous>, transform_indices = @transform_4, window_bounds = array<i64: 160, 1>}, {pipeline_mode = #tpu.pipeline_mode<synchronous>, transform_indices = @transform_5, window_bounds = array<i64: 10, 160>}, {pipeline_mode = #tpu.pipeline_mode<synchronous>, transform_indices = @transform_6, window_bounds = array<i64: 10, 1>}, {transform_indices = @transform_7, window_bounds = array<i64: 10, 256>}]} {
    %c0 = arith.constant 0 : index
    %c0_0 = arith.constant 0 : index
    %0 = vector.load %arg2[%c0, %c0_0] : memref<960x224xbf16, #tpu.memory_space<vmem>>, vector<960x224xbf16>
    %c0_1 = arith.constant 0 : index
    %c0_2 = arith.constant 0 : index
    %1 = vector.load %arg4[%c0_1, %c0_2] : memref<160x720xbf16, #tpu.memory_space<vmem>>, vector<160x720xbf16>
    %c0_3 = arith.constant 0 : index
    %c0_4 = arith.constant 0 : index
    %2 = vector.load %arg6[%c0_3, %c0_4] : memref<10x160xbf16, #tpu.memory_space<vmem>>, vector<10x160xbf16>
    %c0_5 = arith.constant 0 : index
    %c0_6 = arith.constant 0 : index
    %3 = vector.load %arg3[%c0_5, %c0_6] : memref<960x1xf32, #tpu.memory_space<vmem>>, vector<960x1xf32>
    %4 = vector.shape_cast %3 : vector<960x1xf32> to vector<960x1xf32>
    %5 = vector.broadcast %4 : vector<960x1xf32> to vector<960x256xf32>
    %c0_7 = arith.constant 0 : index
    %c0_8 = arith.constant 0 : index
    %6 = vector.load %arg5[%c0_7, %c0_8] : memref<160x1xf32, #tpu.memory_space<vmem>>, vector<160x1xf32>
    %7 = vector.shape_cast %6 : vector<160x1xf32> to vector<160x1xf32>
    %8 = vector.broadcast %7 : vector<160x1xf32> to vector<160x256xf32>
    %c0_9 = arith.constant 0 : index
    %c0_10 = arith.constant 0 : index
    %9 = vector.load %arg1[%c0_9, %c0_10] : memref<784x256xbf16, #tpu.memory_space<vmem>>, vector<224x256xbf16>
    %cst = arith.constant dense<0.000000e+00> : vector<960x256xf32>
    %10 = tpu.matmul %0, %9, %cst {dimension_numbers = #tpu.dot_dimension_numbers<[1], [0], [0], [1], [0, 0, 1, 1], [], []>} : vector<960x224xbf16>, vector<224x256xbf16>, vector<960x256xf32> -> vector<960x256xf32>
    %11 = arith.addf %10, %5 : vector<960x256xf32>
    %cst_11 = arith.constant 0.000000e+00 : f32
    %12 = vector.broadcast %cst_11 : f32 to vector<960x256xf32>
    %13 = arith.maximumf %11, %12 : vector<960x256xf32>
    %14 = vector.extract_strided_slice %13 {offsets = [0, 0], sizes = [240, 256], strides = [1, 1]} : vector<960x256xf32> to vector<240x256xf32>
    %15 = vector.extract_strided_slice %13 {offsets = [240, 0], sizes = [240, 256], strides = [1, 1]} : vector<960x256xf32> to vector<240x256xf32>
    %16 = arith.maximumf %14, %15 : vector<240x256xf32>
    %17 = vector.extract_strided_slice %13 {offsets = [480, 0], sizes = [240, 256], strides = [1, 1]} : vector<960x256xf32> to vector<240x256xf32>
    %18 = vector.extract_strided_slice %13 {offsets = [720, 0], sizes = [240, 256], strides = [1, 1]} : vector<960x256xf32> to vector<240x256xf32>
    %19 = arith.maximumf %17, %18 : vector<240x256xf32>
    %20 = arith.maximumf %16, %19 : vector<240x256xf32>
    %21 = arith.truncf %20 : vector<240x256xf32> to vector<240x256xbf16>
    %c0_12 = arith.constant 0 : index
    %c0_13 = arith.constant 0 : index
    %22 = vector.load %arg9[%c0_12, %c0_13] : memref<1440x256xbf16, #tpu.memory_space<vmem>>, vector<240x256xbf16>
    tpu.vector_store %arg9[%c0_12, %c0_13], %21 {strides = array<i32>} : memref<1440x256xbf16, #tpu.memory_space<vmem>>, vector<240x256xbf16>,
    %c112 = arith.constant 112 : index
    %c0_14 = arith.constant 0 : index
    %23 = vector.load %arg1[%c112, %c0_14] : memref<784x256xbf16, #tpu.memory_space<vmem>>, vector<224x256xbf16>
    %cst_15 = arith.constant dense<0.000000e+00> : vector<960x256xf32>
    %24 = tpu.matmul %0, %23, %cst_15 {dimension_numbers = #tpu.dot_dimension_numbers<[1], [0], [0], [1], [0, 0, 1, 1], [], []>} : vector<960x224xbf16>, vector<224x256xbf16>, vector<960x256xf32> -> vector<960x256xf32>
    %25 = arith.addf %24, %5 : vector<960x256xf32>
    %cst_16 = arith.constant 0.000000e+00 : f32
    %26 = vector.broadcast %cst_16 : f32 to vector<960x256xf32>
    %27 = arith.maximumf %25, %26 : vector<960x256xf32>
    %28 = vector.extract_strided_slice %27 {offsets = [0, 0], sizes = [240, 256], strides = [1, 1]} : vector<960x256xf32> to vector<240x256xf32>
    %29 = vector.extract_strided_slice %27 {offsets = [240, 0], sizes = [240, 256], strides = [1, 1]} : vector<960x256xf32> to vector<240x256xf32>
    %30 = arith.maximumf %28, %29 : vector<240x256xf32>
    %31 = vector.extract_strided_slice %27 {offsets = [480, 0], sizes = [240, 256], strides = [1, 1]} : vector<960x256xf32> to vector<240x256xf32>
    %32 = vector.extract_strided_slice %27 {offsets = [720, 0], sizes = [240, 256], strides = [1, 1]} : vector<960x256xf32> to vector<240x256xf32>
    %33 = arith.maximumf %31, %32 : vector<240x256xf32>
    %34 = arith.maximumf %30, %33 : vector<240x256xf32>
    %35 = arith.truncf %34 : vector<240x256xf32> to vector<240x256xbf16>
    %c240 = arith.constant 240 : index
    %c0_17 = arith.constant 0 : index
    %36 = vector.load %arg9[%c240, %c0_17] : memref<1440x256xbf16, #tpu.memory_space<vmem>>, vector<240x256xbf16>
    tpu.vector_store %arg9[%c240, %c0_17], %35 {strides = array<i32>} : memref<1440x256xbf16, #tpu.memory_space<vmem>>, vector<240x256xbf16>,
    %c224 = arith.constant 224 : index
    %c0_18 = arith.constant 0 : index
    %37 = vector.load %arg1[%c224, %c0_18] : memref<784x256xbf16, #tpu.memory_space<vmem>>, vector<224x256xbf16>
    %cst_19 = arith.constant dense<0.000000e+00> : vector<960x256xf32>
    %38 = tpu.matmul %0, %37, %cst_19 {dimension_numbers = #tpu.dot_dimension_numbers<[1], [0], [0], [1], [0, 0, 1, 1], [], []>} : vector<960x224xbf16>, vector<224x256xbf16>, vector<960x256xf32> -> vector<960x256xf32>
    %39 = arith.addf %38, %5 : vector<960x256xf32>
    %cst_20 = arith.constant 0.000000e+00 : f32
    %40 = vector.broadcast %cst_20 : f32 to vector<960x256xf32>
    %41 = arith.maximumf %39, %40 : vector<960x256xf32>
    %42 = vector.extract_strided_slice %41 {offsets = [0, 0], sizes = [240, 256], strides = [1, 1]} : vector<960x256xf32> to vector<240x256xf32>
    %43 = vector.extract_strided_slice %41 {offsets = [240, 0], sizes = [240, 256], strides = [1, 1]} : vector<960x256xf32> to vector<240x256xf32>
    %44 = arith.maximumf %42, %43 : vector<240x256xf32>
    %45 = vector.extract_strided_slice %41 {offsets = [480, 0], sizes = [240, 256], strides = [1, 1]} : vector<960x256xf32> to vector<240x256xf32>
    %46 = vector.extract_strided_slice %41 {offsets = [720, 0], sizes = [240, 256], strides = [1, 1]} : vector<960x256xf32> to vector<240x256xf32>
    %47 = arith.maximumf %45, %46 : vector<240x256xf32>
    %48 = arith.maximumf %44, %47 : vector<240x256xf32>
    %49 = arith.truncf %48 : vector<240x256xf32> to vector<240x256xbf16>
    %c480 = arith.constant 480 : index
    %c0_21 = arith.constant 0 : index
    %50 = vector.load %arg9[%c480, %c0_21] : memref<1440x256xbf16, #tpu.memory_space<vmem>>, vector<240x256xbf16>
    tpu.vector_store %arg9[%c480, %c0_21], %49 {strides = array<i32>} : memref<1440x256xbf16, #tpu.memory_space<vmem>>, vector<240x256xbf16>,
    %c336 = arith.constant 336 : index
    %c0_22 = arith.constant 0 : index
    %51 = vector.load %arg1[%c336, %c0_22] : memref<784x256xbf16, #tpu.memory_space<vmem>>, vector<224x256xbf16>
    %cst_23 = arith.constant dense<0.000000e+00> : vector<960x256xf32>
    %52 = tpu.matmul %0, %51, %cst_23 {dimension_numbers = #tpu.dot_dimension_numbers<[1], [0], [0], [1], [0, 0, 1, 1], [], []>} : vector<960x224xbf16>, vector<224x256xbf16>, vector<960x256xf32> -> vector<960x256xf32>
    %53 = arith.addf %52, %5 : vector<960x256xf32>
    %cst_24 = arith.constant 0.000000e+00 : f32
    %54 = vector.broadcast %cst_24 : f32 to vector<960x256xf32>
    %55 = arith.maximumf %53, %54 : vector<960x256xf32>
    %56 = vector.extract_strided_slice %55 {offsets = [0, 0], sizes = [240, 256], strides = [1, 1]} : vector<960x256xf32> to vector<240x256xf32>
    %57 = vector.extract_strided_slice %55 {offsets = [240, 0], sizes = [240, 256], strides = [1, 1]} : vector<960x256xf32> to vector<240x256xf32>
    %58 = arith.maximumf %56, %57 : vector<240x256xf32>
    %59 = vector.extract_strided_slice %55 {offsets = [480, 0], sizes = [240, 256], strides = [1, 1]} : vector<960x256xf32> to vector<240x256xf32>
    %60 = vector.extract_strided_slice %55 {offsets = [720, 0], sizes = [240, 256], strides = [1, 1]} : vector<960x256xf32> to vector<240x256xf32>
    %61 = arith.maximumf %59, %60 : vector<240x256xf32>
    %62 = arith.maximumf %58, %61 : vector<240x256xf32>
    %63 = arith.truncf %62 : vector<240x256xf32> to vector<240x256xbf16>
    %c720 = arith.constant 720 : index
    %c0_25 = arith.constant 0 : index
    %64 = vector.load %arg9[%c720, %c0_25] : memref<1440x256xbf16, #tpu.memory_space<vmem>>, vector<240x256xbf16>
    tpu.vector_store %arg9[%c720, %c0_25], %63 {strides = array<i32>} : memref<1440x256xbf16, #tpu.memory_space<vmem>>, vector<240x256xbf16>,
    %c448 = arith.constant 448 : index
    %c0_26 = arith.constant 0 : index
    %65 = vector.load %arg1[%c448, %c0_26] : memref<784x256xbf16, #tpu.memory_space<vmem>>, vector<224x256xbf16>
    %cst_27 = arith.constant dense<0.000000e+00> : vector<960x256xf32>
    %66 = tpu.matmul %0, %65, %cst_27 {dimension_numbers = #tpu.dot_dimension_numbers<[1], [0], [0], [1], [0, 0, 1, 1], [], []>} : vector<960x224xbf16>, vector<224x256xbf16>, vector<960x256xf32> -> vector<960x256xf32>
    %67 = arith.addf %66, %5 : vector<960x256xf32>
    %cst_28 = arith.constant 0.000000e+00 : f32
    %68 = vector.broadcast %cst_28 : f32 to vector<960x256xf32>
    %69 = arith.maximumf %67, %68 : vector<960x256xf32>
    %70 = vector.extract_strided_slice %69 {offsets = [0, 0], sizes = [240, 256], strides = [1, 1]} : vector<960x256xf32> to vector<240x256xf32>
    %71 = vector.extract_strided_slice %69 {offsets = [240, 0], sizes = [240, 256], strides = [1, 1]} : vector<960x256xf32> to vector<240x256xf32>
    %72 = arith.maximumf %70, %71 : vector<240x256xf32>
    %73 = vector.extract_strided_slice %69 {offsets = [480, 0], sizes = [240, 256], strides = [1, 1]} : vector<960x256xf32> to vector<240x256xf32>
    %74 = vector.extract_strided_slice %69 {offsets = [720, 0], sizes = [240, 256], strides = [1, 1]} : vector<960x256xf32> to vector<240x256xf32>
    %75 = arith.maximumf %73, %74 : vector<240x256xf32>
    %76 = arith.maximumf %72, %75 : vector<240x256xf32>
    %77 = arith.truncf %76 : vector<240x256xf32> to vector<240x256xbf16>
    %c960 = arith.constant 960 : index
    %c0_29 = arith.constant 0 : index
    %78 = vector.load %arg9[%c960, %c0_29] : memref<1440x256xbf16, #tpu.memory_space<vmem>>, vector<240x256xbf16>
    tpu.vector_store %arg9[%c960, %c0_29], %77 {strides = array<i32>} : memref<1440x256xbf16, #tpu.memory_space<vmem>>, vector<240x256xbf16>,
    %c560 = arith.constant 560 : index
    %c0_30 = arith.constant 0 : index
    %79 = vector.load %arg1[%c560, %c0_30] : memref<784x256xbf16, #tpu.memory_space<vmem>>, vector<224x256xbf16>
    %cst_31 = arith.constant dense<0.000000e+00> : vector<960x256xf32>
    %80 = tpu.matmul %0, %79, %cst_31 {dimension_numbers = #tpu.dot_dimension_numbers<[1], [0], [0], [1], [0, 0, 1, 1], [], []>} : vector<960x224xbf16>, vector<224x256xbf16>, vector<960x256xf32> -> vector<960x256xf32>
    %81 = arith.addf %80, %5 : vector<960x256xf32>
    %cst_32 = arith.constant 0.000000e+00 : f32
    %82 = vector.broadcast %cst_32 : f32 to vector<960x256xf32>
    %83 = arith.maximumf %81, %82 : vector<960x256xf32>
    %84 = vector.extract_strided_slice %83 {offsets = [0, 0], sizes = [240, 256], strides = [1, 1]} : vector<960x256xf32> to vector<240x256xf32>
    %85 = vector.extract_strided_slice %83 {offsets = [240, 0], sizes = [240, 256], strides = [1, 1]} : vector<960x256xf32> to vector<240x256xf32>
    %86 = arith.maximumf %84, %85 : vector<240x256xf32>
    %87 = vector.extract_strided_slice %83 {offsets = [480, 0], sizes = [240, 256], strides = [1, 1]} : vector<960x256xf32> to vector<240x256xf32>
    %88 = vector.extract_strided_slice %83 {offsets = [720, 0], sizes = [240, 256], strides = [1, 1]} : vector<960x256xf32> to vector<240x256xf32>
    %89 = arith.maximumf %87, %88 : vector<240x256xf32>
    %90 = arith.maximumf %86, %89 : vector<240x256xf32>
    %91 = arith.truncf %90 : vector<240x256xf32> to vector<240x256xbf16>
    %c1200 = arith.constant 1200 : index
    %c0_33 = arith.constant 0 : index
    %92 = vector.load %arg9[%c1200, %c0_33] : memref<1440x256xbf16, #tpu.memory_space<vmem>>, vector<240x256xbf16>
    tpu.vector_store %arg9[%c1200, %c0_33], %91 {strides = array<i32>} : memref<1440x256xbf16, #tpu.memory_space<vmem>>, vector<240x256xbf16>,
    %c0_34 = arith.constant 0 : index
    %c0_35 = arith.constant 0 : index
    %93 = vector.load %arg9[%c0_34, %c0_35] : memref<1440x256xbf16, #tpu.memory_space<vmem>>, vector<720x256xbf16>
    %cst_36 = arith.constant dense<0.000000e+00> : vector<160x256xf32>
    %94 = tpu.matmul %1, %93, %cst_36 {dimension_numbers = #tpu.dot_dimension_numbers<[1], [0], [0], [1], [0, 0, 1, 1], [], []>} : vector<160x720xbf16>, vector<720x256xbf16>, vector<160x256xf32> -> vector<160x256xf32>
    %95 = arith.addf %94, %8 : vector<160x256xf32>
    %cst_37 = arith.constant 0.000000e+00 : f32
    %96 = vector.broadcast %cst_37 : f32 to vector<160x256xf32>
    %97 = arith.maximumf %95, %96 : vector<160x256xf32>
    %98 = vector.extract_strided_slice %97 {offsets = [0, 0], sizes = [40, 256], strides = [1, 1]} : vector<160x256xf32> to vector<40x256xf32>
    %99 = vector.extract_strided_slice %97 {offsets = [40, 0], sizes = [40, 256], strides = [1, 1]} : vector<160x256xf32> to vector<40x256xf32>
    %100 = arith.maximumf %98, %99 : vector<40x256xf32>
    %101 = vector.extract_strided_slice %97 {offsets = [80, 0], sizes = [40, 256], strides = [1, 1]} : vector<160x256xf32> to vector<40x256xf32>
    %102 = vector.extract_strided_slice %97 {offsets = [120, 0], sizes = [40, 256], strides = [1, 1]} : vector<160x256xf32> to vector<40x256xf32>
    %103 = arith.maximumf %101, %102 : vector<40x256xf32>
    %104 = arith.maximumf %100, %103 : vector<40x256xf32>
    %c240_38 = arith.constant 240 : index
    %c0_39 = arith.constant 0 : index
    %105 = vector.load %arg9[%c240_38, %c0_39] : memref<1440x256xbf16, #tpu.memory_space<vmem>>, vector<720x256xbf16>
    %cst_40 = arith.constant dense<0.000000e+00> : vector<160x256xf32>
    %106 = tpu.matmul %1, %105, %cst_40 {dimension_numbers = #tpu.dot_dimension_numbers<[1], [0], [0], [1], [0, 0, 1, 1], [], []>} : vector<160x720xbf16>, vector<720x256xbf16>, vector<160x256xf32> -> vector<160x256xf32>
    %107 = arith.addf %106, %8 : vector<160x256xf32>
    %cst_41 = arith.constant 0.000000e+00 : f32
    %108 = vector.broadcast %cst_41 : f32 to vector<160x256xf32>
    %109 = arith.maximumf %107, %108 : vector<160x256xf32>
    %110 = vector.extract_strided_slice %109 {offsets = [0, 0], sizes = [40, 256], strides = [1, 1]} : vector<160x256xf32> to vector<40x256xf32>
    %111 = vector.extract_strided_slice %109 {offsets = [40, 0], sizes = [40, 256], strides = [1, 1]} : vector<160x256xf32> to vector<40x256xf32>
    %112 = arith.maximumf %110, %111 : vector<40x256xf32>
    %113 = vector.extract_strided_slice %109 {offsets = [80, 0], sizes = [40, 256], strides = [1, 1]} : vector<160x256xf32> to vector<40x256xf32>
    %114 = vector.extract_strided_slice %109 {offsets = [120, 0], sizes = [40, 256], strides = [1, 1]} : vector<160x256xf32> to vector<40x256xf32>
    %115 = arith.maximumf %113, %114 : vector<40x256xf32>
    %116 = arith.maximumf %112, %115 : vector<40x256xf32>
    %c480_42 = arith.constant 480 : index
    %c0_43 = arith.constant 0 : index
    %117 = vector.load %arg9[%c480_42, %c0_43] : memref<1440x256xbf16, #tpu.memory_space<vmem>>, vector<720x256xbf16>
    %cst_44 = arith.constant dense<0.000000e+00> : vector<160x256xf32>
    %118 = tpu.matmul %1, %117, %cst_44 {dimension_numbers = #tpu.dot_dimension_numbers<[1], [0], [0], [1], [0, 0, 1, 1], [], []>} : vector<160x720xbf16>, vector<720x256xbf16>, vector<160x256xf32> -> vector<160x256xf32>
    %119 = arith.addf %118, %8 : vector<160x256xf32>
    %cst_45 = arith.constant 0.000000e+00 : f32
    %120 = vector.broadcast %cst_45 : f32 to vector<160x256xf32>
    %121 = arith.maximumf %119, %120 : vector<160x256xf32>
    %122 = vector.extract_strided_slice %121 {offsets = [0, 0], sizes = [40, 256], strides = [1, 1]} : vector<160x256xf32> to vector<40x256xf32>
    %123 = vector.extract_strided_slice %121 {offsets = [40, 0], sizes = [40, 256], strides = [1, 1]} : vector<160x256xf32> to vector<40x256xf32>
    %124 = arith.maximumf %122, %123 : vector<40x256xf32>
    %125 = vector.extract_strided_slice %121 {offsets = [80, 0], sizes = [40, 256], strides = [1, 1]} : vector<160x256xf32> to vector<40x256xf32>
    %126 = vector.extract_strided_slice %121 {offsets = [120, 0], sizes = [40, 256], strides = [1, 1]} : vector<160x256xf32> to vector<40x256xf32>
    %127 = arith.maximumf %125, %126 : vector<40x256xf32>
    %128 = arith.maximumf %124, %127 : vector<40x256xf32>
    %c720_46 = arith.constant 720 : index
    %c0_47 = arith.constant 0 : index
    %129 = vector.load %arg9[%c720_46, %c0_47] : memref<1440x256xbf16, #tpu.memory_space<vmem>>, vector<720x256xbf16>
    %cst_48 = arith.constant dense<0.000000e+00> : vector<160x256xf32>
    %130 = tpu.matmul %1, %129, %cst_48 {dimension_numbers = #tpu.dot_dimension_numbers<[1], [0], [0], [1], [0, 0, 1, 1], [], []>} : vector<160x720xbf16>, vector<720x256xbf16>, vector<160x256xf32> -> vector<160x256xf32>
    %131 = arith.addf %130, %8 : vector<160x256xf32>
    %cst_49 = arith.constant 0.000000e+00 : f32
    %132 = vector.broadcast %cst_49 : f32 to vector<160x256xf32>
    %133 = arith.maximumf %131, %132 : vector<160x256xf32>
    %134 = vector.extract_strided_slice %133 {offsets = [0, 0], sizes = [40, 256], strides = [1, 1]} : vector<160x256xf32> to vector<40x256xf32>
    %135 = vector.extract_strided_slice %133 {offsets = [40, 0], sizes = [40, 256], strides = [1, 1]} : vector<160x256xf32> to vector<40x256xf32>
    %136 = arith.maximumf %134, %135 : vector<40x256xf32>
    %137 = vector.extract_strided_slice %133 {offsets = [80, 0], sizes = [40, 256], strides = [1, 1]} : vector<160x256xf32> to vector<40x256xf32>
    %138 = vector.extract_strided_slice %133 {offsets = [120, 0], sizes = [40, 256], strides = [1, 1]} : vector<160x256xf32> to vector<40x256xf32>
    %139 = arith.maximumf %137, %138 : vector<40x256xf32>
    %140 = arith.maximumf %136, %139 : vector<40x256xf32>
    %141 = tpu.concatenate %104, %116, %128, %140 in 0 : vector<40x256xf32>, vector<40x256xf32>, vector<40x256xf32>, vector<40x256xf32> -> vector<160x256xf32>
    %142 = arith.truncf %141 : vector<160x256xf32> to vector<160x256xbf16>
    %cst_50 = arith.constant dense<0.000000e+00> : vector<10x256xf32>
    %143 = tpu.matmul %2, %142, %cst_50 {dimension_numbers = #tpu.dot_dimension_numbers<[1], [0], [0], [1], [0, 0, 1, 1], [], []>} : vector<10x160xbf16>, vector<160x256xbf16>, vector<10x256xf32> -> vector<10x256xf32>
    %c0_51 = arith.constant 0 : index
    %c0_52 = arith.constant 0 : index
    %144 = vector.load %arg7[%c0_51, %c0_52] : memref<10x1xf32, #tpu.memory_space<vmem>>, vector<10x1xf32>
    %145 = vector.broadcast %144 : vector<10x1xf32> to vector<10x256xf32>
    %146 = arith.addf %143, %145 : vector<10x256xf32>
    %c0_53 = arith.constant 0 : index
    %c0_54 = arith.constant 0 : index
    %147 = vector.load %arg8[%c0_53, %c0_54] : memref<10x256xf32, #tpu.memory_space<vmem>>, vector<10x256xf32>
    tpu.vector_store %arg8[%c0_53, %c0_54], %146 {strides = array<i32>} : memref<10x256xf32, #tpu.memory_space<vmem>>, vector<10x256xf32>,
    return
  }
  func.func @transform_0(%arg0: i32) -> (i32, i32) {
    %c0_i32 = arith.constant 0 : i32
    %c0_i32_0 = arith.constant 0 : i32
    return %c0_i32, %arg0 : i32, i32
  }
  func.func @transform_1(%arg0: i32) -> (i32, i32) {
    %c0_i32 = arith.constant 0 : i32
    %c0_i32_0 = arith.constant 0 : i32
    %c0_i32_1 = arith.constant 0 : i32
    return %c0_i32, %c0_i32_0 : i32, i32
  }
  func.func @transform_2(%arg0: i32) -> (i32, i32) {
    %c0_i32 = arith.constant 0 : i32
    %c0_i32_0 = arith.constant 0 : i32
    %c0_i32_1 = arith.constant 0 : i32
    return %c0_i32, %c0_i32_0 : i32, i32
  }
  func.func @transform_3(%arg0: i32) -> (i32, i32) {
    %c0_i32 = arith.constant 0 : i32
    %c0_i32_0 = arith.constant 0 : i32
    %c0_i32_1 = arith.constant 0 : i32
    return %c0_i32, %c0_i32_0 : i32, i32
  }
  func.func @transform_4(%arg0: i32) -> (i32, i32) {
    %c0_i32 = arith.constant 0 : i32
    %c0_i32_0 = arith.constant 0 : i32
    %c0_i32_1 = arith.constant 0 : i32
    return %c0_i32, %c0_i32_0 : i32, i32
  }
  func.func @transform_5(%arg0: i32) -> (i32, i32) {
    %c0_i32 = arith.constant 0 : i32
    %c0_i32_0 = arith.constant 0 : i32
    %c0_i32_1 = arith.constant 0 : i32
    return %c0_i32, %c0_i32_0 : i32, i32
  }
  func.func @transform_6(%arg0: i32) -> (i32, i32) {
    %c0_i32 = arith.constant 0 : i32
    %c0_i32_0 = arith.constant 0 : i32
    %c0_i32_1 = arith.constant 0 : i32
    return %c0_i32, %c0_i32_0 : i32, i32
  }
  func.func @transform_7(%arg0: i32) -> (i32, i32) {
    %c0_i32 = arith.constant 0 : i32
    %c0_i32_0 = arith.constant 0 : i32
    return %c0_i32, %arg0 : i32, i32
  }
}

</mosaic_0001>

<llo_original>
// kernel: convnet_forward.1
$region0: #{convnet_forward.1}
  #allocation0 [shape = 'u32[]', space=smem, size = 0x4, offset = 0x4, fixed_abs, tag = 'smem constant byte address 0x4 - core index']
  #allocation1 [shape = 'u32[144,128]{1,0:T(1,128)}', space=vmem, size = 0x12000, scoped, tag = 'internal scratch']
  #allocation2 [shape = 'bf16[1440,256]{1,0:T(16,128)(2,1)}', space=vmem, size = 0xb4000, scoped, tag = 'scratch operand']
  %s0 = inlined_call_operand.vmem [shape: bf16[784,256], index: 0, kind: input, shape index: {}]
  %s1 = inlined_call_operand.vmem [shape: bf16[960,224], index: 1, kind: input, shape index: {}]
  %s2 = inlined_call_operand.vmem [shape: f32[960,1], index: 2, kind: input, shape index: {}]
  %s3 = inlined_call_operand.vmem [shape: bf16[160,720], index: 3, kind: input, shape index: {}]
  %s4 = inlined_call_operand.vmem [shape: f32[160,1], index: 4, kind: input, shape index: {}]
  %s5 = inlined_call_operand.vmem [shape: bf16[10,160], index: 5, kind: input, shape index: {}]
  %s6 = inlined_call_operand.vmem [shape: f32[10,1], index: 6, kind: input, shape index: {}]
  %s7 = inlined_call_operand.vmem [shape: f32[10,256], index: 7, kind: output, shape index: {}]
  %s8 = sld [smem:[#allocation0]]
  $region38: #{convnet_forward.1} parent=0
    _
  %s10 = ssub.s32 1, %s8
  %s11 = scalar_select 0, %s10, %s8
  // Predicated region
  $region2: #{convnet_forward.1} parent=0 // pred_check
    _
  $region3: #{convnet_forward.1} parent=0 // pred_check_branch
    %13 = sbr.rel (0) target = $region5
  $region4: #{convnet_forward.1} parent=0 // pred_region
    _
  $region5: #{convnet_forward.1} parent=0 // pred_fallthru
    _
  // Predicated region
  $region6: #{convnet_forward.1} parent=0 // pred_check
    _
  $region7: #{convnet_forward.1} parent=0 // pred_check_branch
    %15 = sbr.rel (0) target = $region9
  $region8: #{convnet_forward.1} parent=0 // pred_region
    _
  $region9: #{convnet_forward.1} parent=0 // pred_fallthru
    _
  // Predicated region
  $region10: #{convnet_forward.1} parent=0 // pred_check
    _
  $region11: #{convnet_forward.1} parent=0 // pred_check_branch
    %17 = sbr.rel (0) target = $region13
  $region12: #{convnet_forward.1} parent=0 // pred_region
    _
  $region13: #{convnet_forward.1} parent=0 // pred_fallthru
    _
  // Predicated region
  $region14: #{convnet_forward.1} parent=0 // pred_check
    _
  $region15: #{convnet_forward.1} parent=0 // pred_check_branch
    %19 = sbr.rel (0) target = $region17
  $region16: #{convnet_forward.1} parent=0 // pred_region
    _
  $region17: #{convnet_forward.1} parent=0 // pred_fallthru
    _
  // Predicated region
  $region18: #{convnet_forward.1} parent=0 // pred_check
    _
  $region19: #{convnet_forward.1} parent=0 // pred_check_branch
    %21 = sbr.rel (0) target = $region21
  $region20: #{convnet_forward.1} parent=0 // pred_region
    _
  $region21: #{convnet_forward.1} parent=0 // pred_fallthru
    _
  // Predicated region
  $region22: #{convnet_forward.1} parent=0 // pred_check
    _
  $region23: #{convnet_forward.1} parent=0 // pred_check_branch
    %23 = sbr.rel (0) target = $region25
  $region24: #{convnet_forward.1} parent=0 // pred_region
    _
  $region25: #{convnet_forward.1} parent=0 // pred_fallthru
    _
  // Predicated region
  $region26: #{convnet_forward.1} parent=0 // pred_check
    _
  $region27: #{convnet_forward.1} parent=0 // pred_check_branch
    %25 = sbr.rel (0) target = $region29
  $region28: #{convnet_forward.1} parent=0 // pred_region
    _
  $region29: #{convnet_forward.1} parent=0 // pred_fallthru
    _
  %v27 = vld [vmem:[%s1] sm:$0xff]
  %v28 = vld [vmem:[%s1 + $0x8] sm:$0xff]
  %v29 = vld [vmem:[%s1 + $0x10] sm:$0xff]
  %v30 = vld [vmem:[%s1 + $0x18] sm:$0xff]
  %v31 = vld [vmem:[%s1 + $0x20] sm:$0xff]
  %v32 = vld [vmem:[%s1 + $0x28] sm:$0xff]
  %v33 = vld [vmem:[%s1 + $0x30] sm:$0xff]
  %v34 = vld [vmem:[%s1 + $0x38] sm:$0xff]
  %v35 = vld [vmem:[%s1 + $0x40] sm:$0xff]
  %v36 = vld [vmem:[%s1 + $0x48] sm:$0xff]
  %v37 = vld [vmem:[%s1 + $0x50] sm:$0xff]
  %v38 = vld [vmem:[%s1 + $0x58] sm:$0xff]
  %v39 = vld [vmem:[%s1 + $0x60] sm:$0xff]
  %v40 = vld [vmem:[%s1 + $0x68] sm:$0xff]
  %v41 = vld [vmem:[%s1 + $0x70] sm:$0xff]
  %v42 = vld [vmem:[%s1 + $0x78] sm:$0xff]
  %v43 = vld [vmem:[%s1 + $0x80] sm:$0xff]
  %v44 = vld [vmem:[%s1 + $0x88] sm:$0xff]
  %v45 = vld [vmem:[%s1 + $0x90] sm:$0xff]
  %v46 = vld [vmem:[%s1 + $0x98] sm:$0xff]
  %v47 = vld [vmem:[%s1 + $0xa0] sm:$0xff]
  %v48 = vld [vmem:[%s1 + $0xa8] sm:$0xff]
  %v49 = vld [vmem:[%s1 + $0xb0] sm:$0xff]
  %v50 = vld [vmem:[%s1 + $0xb8] sm:$0xff]
  %v51 = vld [vmem:[%s1 + $0xc0] sm:$0xff]
  %v52 = vld [vmem:[%s1 + $0xc8] sm:$0xff]
  %v53 = vld [vmem:[%s1 + $0xd0] sm:$0xff]
  %v54 = vld [vmem:[%s1 + $0xd8] sm:$0xff]
  %v55 = vld [vmem:[%s1 + $0xe0] sm:$0xff]
  %v56 = vld [vmem:[%s1 + $0xe8] sm:$0xff]
  %v57 = vld [vmem:[%s1 + $0xf0] sm:$0xff]
  %v58 = vld [vmem:[%s1 + $0xf8] sm:$0xff]
  %v59 = vld [vmem:[%s1 + $0x100] sm:$0xff]
  %v60 = vld [vmem:[%s1 + $0x108] sm:$0xff]
  %v61 = vld [vmem:[%s1 + $0x110] sm:$0xff]
  %v62 = vld [vmem:[%s1 + $0x118] sm:$0xff]
  %v63 = vld [vmem:[%s1 + $0x120] sm:$0xff]
  %v64 = vld [vmem:[%s1 + $0x128] sm:$0xff]
  %v65 = vld [vmem:[%s1 + $0x130] sm:$0xff]
  %v66 = vld [vmem:[%s1 + $0x138] sm:$0xff]
  %v67 = vld [vmem:[%s1 + $0x140] sm:$0xff]
  %v68 = vld [vmem:[%s1 + $0x148] sm:$0xff]
  %v69 = vld [vmem:[%s1 + $0x150] sm:$0xff]
  %v70 = vld [vmem:[%s1 + $0x158] sm:$0xff]
  %v71 = vld [vmem:[%s1 + $0x160] sm:$0xff]
  %v72 = vld [vmem:[%s1 + $0x168] sm:$0xff]
  %v73 = vld [vmem:[%s1 + $0x170] sm:$0xff]
  %v74 = vld [vmem:[%s1 + $0x178] sm:$0xff]
  %v75 = vld [vmem:[%s1 + $0x180] sm:$0xff]
  %v76 = vld [vmem:[%s1 + $0x188] sm:$0xff]
  %v77 = vld [vmem:[%s1 + $0x190] sm:$0xff]
  %v78 = vld [vmem:[%s1 + $0x198] sm:$0xff]
  %v79 = vld [vmem:[%s1 + $0x1a0] sm:$0xff]
  %v80 = vld [vmem:[%s1 + $0x1a8] sm:$0xff]
  %v81 = vld [vmem:[%s1 + $0x1b0] sm:$0xff]
  %v82 = vld [vmem:[%s1 + $0x1b8] sm:$0xff]
  %v83 = vld [vmem:[%s1 + $0x1c0] sm:$0xff]
  %v84 = vld [vmem:[%s1 + $0x1c8] sm:$0xff]
  %v85 = vld [vmem:[%s1 + $0x1d0] sm:$0xff]
  %v86 = vld [vmem:[%s1 + $0x1d8] sm:$0xff]
  %v87 = vld [vmem:[%s1 + $0x1e0] sm:$0xff]
  %v88 = vld [vmem:[%s1 + $0x1e8] sm:$0xff]
  %v89 = vld [vmem:[%s1 + $0x1f0] sm:$0xff]
  %v90 = vld [vmem:[%s1 + $0x1f8] sm:$0xff]
  %v91 = vld [vmem:[%s1 + $0x200] sm:$0xff]
  %v92 = vld [vmem:[%s1 + $0x208] sm:$0xff]
  %v93 = vld [vmem:[%s1 + $0x210] sm:$0xff]
  %v94 = vld [vmem:[%s1 + $0x218] sm:$0xff]
  %v95 = vld [vmem:[%s1 + $0x220] sm:$0xff]
  %v96 = vld [vmem:[%s1 + $0x228] sm:$0xff]
  %v97 = vld [vmem:[%s1 + $0x230] sm:$0xff]
  %v98 = vld [vmem:[%s1 + $0x238] sm:$0xff]
  %v99 = vld [vmem:[%s1 + $0x240] sm:$0xff]
  %v100 = vld [vmem:[%s1 + $0x248] sm:$0xff]
  %v101 = vld [vmem:[%s1 + $0x250] sm:$0xff]
  %v102 = vld [vmem:[%s1 + $0x258] sm:$0xff]
  %v103 = vld [vmem:[%s1 + $0x260] sm:$0xff]
  %v104 = vld [vmem:[%s1 + $0x268] sm:$0xff]
  %v105 = vld [vmem:[%s1 + $0x270] sm:$0xff]
  %v106 = vld [vmem:[%s1 + $0x278] sm:$0xff]
  %v107 = vld [vmem:[%s1 + $0x280] sm:$0xff]
  %v108 = vld [vmem:[%s1 + $0x288] sm:$0xff]
  %v109 = vld [vmem:[%s1 + $0x290] sm:$0xff]
  %v110 = vld [vmem:[%s1 + $0x298] sm:$0xff]
  %v111 = vld [vmem:[%s1 + $0x2a0] sm:$0xff]
  %v112 = vld [vmem:[%s1 + $0x2a8] sm:$0xff]
  %v113 = vld [vmem:[%s1 + $0x2b0] sm:$0xff]
  %v114 = vld [vmem:[%s1 + $0x2b8] sm:$0xff]
  %v115 = vld [vmem:[%s1 + $0x2c0] sm:$0xff]
  %v116 = vld [vmem:[%s1 + $0x2c8] sm:$0xff]
  %v117 = vld [vmem:[%s1 + $0x2d0] sm:$0xff]
  %v118 = vld [vmem:[%s1 + $0x2d8] sm:$0xff]
  %v119 = vld [vmem:[%s1 + $0x2e0] sm:$0xff]
  %v120 = vld [vmem:[%s1 + $0x2e8] sm:$0xff]
  %v121 = vld [vmem:[%s1 + $0x2f0] sm:$0xff]
  %v122 = vld [vmem:[%s1 + $0x2f8] sm:$0xff]
  %v123 = vld [vmem:[%s1 + $0x300] sm:$0xff]
  %v124 = vld [vmem:[%s1 + $0x308] sm:$0xff]
  %v125 = vld [vmem:[%s1 + $0x310] sm:$0xff]
  %v126 = vld [vmem:[%s1 + $0x318] sm:$0xff]
  %v127 = vld [vmem:[%s1 + $0x320] sm:$0xff]
  %v128 = vld [vmem:[%s1 + $0x328] sm:$0xff]
  %v129 = vld [vmem:[%s1 + $0x330] sm:$0xff]
  %v130 = vld [vmem:[%s1 + $0x338] sm:$0xff]
  %v131 = vld [vmem:[%s1 + $0x340] sm:$0xff]
  %v132 = vld [vmem:[%s1 + $0x348] sm:$0xff]
  %v133 = vld [vmem:[%s1 + $0x350] sm:$0xff]
  %v134 = vld [vmem:[%s1 + $0x358] sm:$0xff]
  %v135 = vld [vmem:[%s1 + $0x360] sm:$0xff]
  %v136 = vld [vmem:[%s1 + $0x368] sm:$0xff]
  %v137 = vld [vmem:[%s1 + $0x370] sm:$0xff]
  %v138 = vld [vmem:[%s1 + $0x378] sm:$0xff]
  %v139 = vld [vmem:[%s1 + $0x380] sm:$0xff]
  %v140 = vld [vmem:[%s1 + $0x388] sm:$0xff]
  %v141 = vld [vmem:[%s1 + $0x390] sm:$0xff]
  %v142 = vld [vmem:[%s1 + $0x398] sm:$0xff]
  %v143 = vld [vmem:[%s1 + $0x3a0] sm:$0xff]
  %v144 = vld [vmem:[%s1 + $0x3a8] sm:$0xff]
  %v145 = vld [vmem:[%s1 + $0x3b0] sm:$0xff]
  %v146 = vld [vmem:[%s1 + $0x3b8] sm:$0xff]
  %v147 = vld [vmem:[%s3] sm:$0xff]
  %v148 = vld [vmem:[%s3 + $0x8] sm:$0xff]
  %v149 = vld [vmem:[%s3 + $0x10] sm:$0xff]
  %v150 = vld [vmem:[%s3 + $0x18] sm:$0xff]
  %v151 = vld [vmem:[%s3 + $0x20] sm:$0xff]
  %v152 = vld [vmem:[%s3 + $0x28] sm:$0xff]
  %v153 = vld [vmem:[%s3 + $0x30] sm:$0xff]
  %v154 = vld [vmem:[%s3 + $0x38] sm:$0xff]
  %v155 = vld [vmem:[%s3 + $0x40] sm:$0xff]
  %v156 = vld [vmem:[%s3 + $0x48] sm:$0xff]
  %v157 = vld [vmem:[%s3 + $0x50] sm:$0xff]
  %v158 = vld [vmem:[%s3 + $0x58] sm:$0xff]
  %v159 = vld [vmem:[%s3 + $0x60] sm:$0xff]
  %v160 = vld [vmem:[%s3 + $0x68] sm:$0xff]
  %v161 = vld [vmem:[%s3 + $0x70] sm:$0xff]
  %v162 = vld [vmem:[%s3 + $0x78] sm:$0xff]
  %v163 = vld [vmem:[%s3 + $0x80] sm:$0xff]
  %v164 = vld [vmem:[%s3 + $0x88] sm:$0xff]
  %v165 = vld [vmem:[%s3 + $0x90] sm:$0xff]
  %v166 = vld [vmem:[%s3 + $0x98] sm:$0xff]
  %v167 = vld [vmem:[%s3 + $0xa0] sm:$0xff]
  %v168 = vld [vmem:[%s3 + $0xa8] sm:$0xff]
  %v169 = vld [vmem:[%s3 + $0xb0] sm:$0xff]
  %v170 = vld [vmem:[%s3 + $0xb8] sm:$0xff]
  %v171 = vld [vmem:[%s3 + $0xc0] sm:$0xff]
  %v172 = vld [vmem:[%s3 + $0xc8] sm:$0xff]
  %v173 = vld [vmem:[%s3 + $0xd0] sm:$0xff]
  %v174 = vld [vmem:[%s3 + $0xd8] sm:$0xff]
  %v175 = vld [vmem:[%s3 + $0xe0] sm:$0xff]
  %v176 = vld [vmem:[%s3 + $0xe8] sm:$0xff]
  %v177 = vld [vmem:[%s3 + $0xf0] sm:$0xff]
  %v178 = vld [vmem:[%s3 + $0xf8] sm:$0xff]
  %v179 = vld [vmem:[%s3 + $0x100] sm:$0xff]
  %v180 = vld [vmem:[%s3 + $0x108] sm:$0xff]
  %v181 = vld [vmem:[%s3 + $0x110] sm:$0xff]
  %v182 = vld [vmem:[%s3 + $0x118] sm:$0xff]
  %v183 = vld [vmem:[%s3 + $0x120] sm:$0xff]
  %v184 = vld [vmem:[%s3 + $0x128] sm:$0xff]
  %v185 = vld [vmem:[%s3 + $0x130] sm:$0xff]
  %v186 = vld [vmem:[%s3 + $0x138] sm:$0xff]
  %v187 = vld [vmem:[%s3 + $0x140] sm:$0xff]
  %v188 = vld [vmem:[%s3 + $0x148] sm:$0xff]
  %v189 = vld [vmem:[%s3 + $0x150] sm:$0xff]
  %v190 = vld [vmem:[%s3 + $0x158] sm:$0xff]
  %v191 = vld [vmem:[%s3 + $0x160] sm:$0xff]
  %v192 = vld [vmem:[%s3 + $0x168] sm:$0xff]
  %v193 = vld [vmem:[%s3 + $0x170] sm:$0xff]
  %v194 = vld [vmem:[%s3 + $0x178] sm:$0xff]
  %v195 = vld [vmem:[%s3 + $0x180] sm:$0xff]
  %v196 = vld [vmem:[%s3 + $0x188] sm:$0xff]
  %v197 = vld [vmem:[%s3 + $0x190] sm:$0xff]
  %v198 = vld [vmem:[%s3 + $0x198] sm:$0xff]
  %v199 = vld [vmem:[%s3 + $0x1a0] sm:$0xff]
  %v200 = vld [vmem:[%s3 + $0x1a8] sm:$0xff]
  %v201 = vld [vmem:[%s3 + $0x1b0] sm:$0xff]
  %v202 = vld [vmem:[%s3 + $0x1b8] sm:$0xff]
  %v203 = vld [vmem:[%s3 + $0x1c0] sm:$0xff]
  %v204 = vld [vmem:[%s3 + $0x1c8] sm:$0xff]
  %v205 = vld [vmem:[%s3 + $0x1d0] sm:$0xff]
  %v206 = vld [vmem:[%s3 + $0x1d8] sm:$0xff]
  %v207 = vld [vmem:[%s5] sm:$0xff]
  %v208 = vld [vmem:[%s5 + $0x8] sm:$0x11]
  %v209 = vld [vmem:[%s2] sm:$0xff]
  %v210 = vld [vmem:[%s2 + $0x8] sm:$0xff]
  %v211 = vld [vmem:[%s2 + $0x10] sm:$0xff]
  %v212 = vld [vmem:[%s2 + $0x18] sm:$0xff]
  %v213 = vld [vmem:[%s2 + $0x20] sm:$0xff]
  %v214 = vld [vmem:[%s2 + $0x28] sm:$0xff]
  %v215 = vld [vmem:[%s2 + $0x30] sm:$0xff]
  %v216 = vld [vmem:[%s2 + $0x38] sm:$0xff]
  %v217 = vld [vmem:[%s2 + $0x40] sm:$0xff]
  %v218 = vld [vmem:[%s2 + $0x48] sm:$0xff]
  %v219 = vld [vmem:[%s2 + $0x50] sm:$0xff]
  %v220 = vld [vmem:[%s2 + $0x58] sm:$0xff]
  %v221 = vld [vmem:[%s2 + $0x60] sm:$0xff]
  %v222 = vld [vmem:[%s2 + $0x68] sm:$0xff]
  %v223 = vld [vmem:[%s2 + $0x70] sm:$0xff]
  %v224 = vld [vmem:[%s2 + $0x78] sm:$0xff]
  %v225 = vld [vmem:[%s2 + $0x80] sm:$0xff]
  %v226 = vld [vmem:[%s2 + $0x88] sm:$0xff]
  %v227 = vld [vmem:[%s2 + $0x90] sm:$0xff]
  %v228 = vld [vmem:[%s2 + $0x98] sm:$0xff]
  %v229 = vld [vmem:[%s2 + $0xa0] sm:$0xff]
  %v230 = vld [vmem:[%s2 + $0xa8] sm:$0xff]
  %v231 = vld [vmem:[%s2 + $0xb0] sm:$0xff]
  %v232 = vld [vmem:[%s2 + $0xb8] sm:$0xff]
  %v233 = vld [vmem:[%s2 + $0xc0] sm:$0xff]
  %v234 = vld [vmem:[%s2 + $0xc8] sm:$0xff]
  %v235 = vld [vmem:[%s2 + $0xd0] sm:$0xff]
  %v236 = vld [vmem:[%s2 + $0xd8] sm:$0xff]
  %v237 = vld [vmem:[%s2 + $0xe0] sm:$0xff]
  %v238 = vld [vmem:[%s2 + $0xe8] sm:$0xff]
  %v239 = vld [vmem:[%s2 + $0xf0] sm:$0xff]
  %v240 = vld [vmem:[%s2 + $0xf8] sm:$0xff]
  %v241 = vld [vmem:[%s2 + $0x100] sm:$0xff]
  %v242 = vld [vmem:[%s2 + $0x108] sm:$0xff]
  %v243 = vld [vmem:[%s2 + $0x110] sm:$0xff]
  %v244 = vld [vmem:[%s2 + $0x118] sm:$0xff]
  %v245 = vld [vmem:[%s2 + $0x120] sm:$0xff]
  %v246 = vld [vmem:[%s2 + $0x128] sm:$0xff]
  %v247 = vld [vmem:[%s2 + $0x130] sm:$0xff]
  %v248 = vld [vmem:[%s2 + $0x138] sm:$0xff]
  %v249 = vld [vmem:[%s2 + $0x140] sm:$0xff]
  %v250 = vld [vmem:[%s2 + $0x148] sm:$0xff]
  %v251 = vld [vmem:[%s2 + $0x150] sm:$0xff]
  %v252 = vld [vmem:[%s2 + $0x158] sm:$0xff]
  %v253 = vld [vmem:[%s2 + $0x160] sm:$0xff]
  %v254 = vld [vmem:[%s2 + $0x168] sm:$0xff]
  %v255 = vld [vmem:[%s2 + $0x170] sm:$0xff]
  %v256 = vld [vmem:[%s2 + $0x178] sm:$0xff]
  %v257 = vld [vmem:[%s2 + $0x180] sm:$0xff]
  %v258 = vld [vmem:[%s2 + $0x188] sm:$0xff]
  %v259 = vld [vmem:[%s2 + $0x190] sm:$0xff]
  %v260 = vld [vmem:[%s2 + $0x198] sm:$0xff]
  %v261 = vld [vmem:[%s2 + $0x1a0] sm:$0xff]
  %v262 = vld [vmem:[%s2 + $0x1a8] sm:$0xff]
  %v263 = vld [vmem:[%s2 + $0x1b0] sm:$0xff]
  %v264 = vld [vmem:[%s2 + $0x1b8] sm:$0xff]
  %v265 = vld [vmem:[%s2 + $0x1c0] sm:$0xff]
  %v266 = vld [vmem:[%s2 + $0x1c8] sm:$0xff]
  %v267 = vld [vmem:[%s2 + $0x1d0] sm:$0xff]
  %v268 = vld [vmem:[%s2 + $0x1d8] sm:$0xff]
  %v269 = vld [vmem:[%s2 + $0x1e0] sm:$0xff]
  %v270 = vld [vmem:[%s2 + $0x1e8] sm:$0xff]
  %v271 = vld [vmem:[%s2 + $0x1f0] sm:$0xff]
  %v272 = vld [vmem:[%s2 + $0x1f8] sm:$0xff]
  %v273 = vld [vmem:[%s2 + $0x200] sm:$0xff]
  %v274 = vld [vmem:[%s2 + $0x208] sm:$0xff]
  %v275 = vld [vmem:[%s2 + $0x210] sm:$0xff]
  %v276 = vld [vmem:[%s2 + $0x218] sm:$0xff]
  %v277 = vld [vmem:[%s2 + $0x220] sm:$0xff]
  %v278 = vld [vmem:[%s2 + $0x228] sm:$0xff]
  %v279 = vld [vmem:[%s2 + $0x230] sm:$0xff]
  %v280 = vld [vmem:[%s2 + $0x238] sm:$0xff]
  %v281 = vld [vmem:[%s2 + $0x240] sm:$0xff]
  %v282 = vld [vmem:[%s2 + $0x248] sm:$0xff]
  %v283 = vld [vmem:[%s2 + $0x250] sm:$0xff]
  %v284 = vld [vmem:[%s2 + $0x258] sm:$0xff]
  %v285 = vld [vmem:[%s2 + $0x260] sm:$0xff]
  %v286 = vld [vmem:[%s2 + $0x268] sm:$0xff]
  %v287 = vld [vmem:[%s2 + $0x270] sm:$0xff]
  %v288 = vld [vmem:[%s2 + $0x278] sm:$0xff]
  %v289 = vld [vmem:[%s2 + $0x280] sm:$0xff]
  %v290 = vld [vmem:[%s2 + $0x288] sm:$0xff]
  %v291 = vld [vmem:[%s2 + $0x290] sm:$0xff]
  %v292 = vld [vmem:[%s2 + $0x298] sm:$0xff]
  %v293 = vld [vmem:[%s2 + $0x2a0] sm:$0xff]
  %v294 = vld [vmem:[%s2 + $0x2a8] sm:$0xff]
  %v295 = vld [vmem:[%s2 + $0x2b0] sm:$0xff]
  %v296 = vld [vmem:[%s2 + $0x2b8] sm:$0xff]
  %v297 = vld [vmem:[%s2 + $0x2c0] sm:$0xff]
  %v298 = vld [vmem:[%s2 + $0x2c8] sm:$0xff]
  %v299 = vld [vmem:[%s2 + $0x2d0] sm:$0xff]
  %v300 = vld [vmem:[%s2 + $0x2d8] sm:$0xff]
  %v301 = vld [vmem:[%s2 + $0x2e0] sm:$0xff]
  %v302 = vld [vmem:[%s2 + $0x2e8] sm:$0xff]
  %v303 = vld [vmem:[%s2 + $0x2f0] sm:$0xff]
  %v304 = vld [vmem:[%s2 + $0x2f8] sm:$0xff]
  %v305 = vld [vmem:[%s2 + $0x300] sm:$0xff]
  %v306 = vld [vmem:[%s2 + $0x308] sm:$0xff]
  %v307 = vld [vmem:[%s2 + $0x310] sm:$0xff]
  %v308 = vld [vmem:[%s2 + $0x318] sm:$0xff]
  %v309 = vld [vmem:[%s2 + $0x320] sm:$0xff]
  %v310 = vld [vmem:[%s2 + $0x328] sm:$0xff]
  %v311 = vld [vmem:[%s2 + $0x330] sm:$0xff]
  %v312 = vld [vmem:[%s2 + $0x338] sm:$0xff]
  %v313 = vld [vmem:[%s2 + $0x340] sm:$0xff]
  %v314 = vld [vmem:[%s2 + $0x348] sm:$0xff]
  %v315 = vld [vmem:[%s2 + $0x350] sm:$0xff]
  %v316 = vld [vmem:[%s2 + $0x358] sm:$0xff]
  %v317 = vld [vmem:[%s2 + $0x360] sm:$0xff]
  %v318 = vld [vmem:[%s2 + $0x368] sm:$0xff]
  %v319 = vld [vmem:[%s2 + $0x370] sm:$0xff]
  %v320 = vld [vmem:[%s2 + $0x378] sm:$0xff]
  %v321 = vld [vmem:[%s2 + $0x380] sm:$0xff]
  %v322 = vld [vmem:[%s2 + $0x388] sm:$0xff]
  %v323 = vld [vmem:[%s2 + $0x390] sm:$0xff]
  %v324 = vld [vmem:[%s2 + $0x398] sm:$0xff]
  %v325 = vld [vmem:[%s2 + $0x3a0] sm:$0xff]
  %v326 = vld [vmem:[%s2 + $0x3a8] sm:$0xff]
  %v327 = vld [vmem:[%s2 + $0x3b0] sm:$0xff]
  %v328 = vld [vmem:[%s2 + $0x3b8] sm:$0xff]
  %330 = vset.pattern.permute.xlu0 0
  %331 = vperm.xlu0 %330, %v209
  %v332 = vpop.permute.xlu0 %331
  %335 = vset.pattern.permute.xlu0 0
  %336 = vperm.xlu0 %335, %v210
  %v337 = vpop.permute.xlu0 %336
  %340 = vset.pattern.permute.xlu0 0
  %341 = vperm.xlu0 %340, %v211
  %v342 = vpop.permute.xlu0 %341
  %345 = vset.pattern.permute.xlu0 0
  %346 = vperm.xlu0 %345, %v212
  %v347 = vpop.permute.xlu0 %346
  %350 = vset.pattern.permute.xlu0 0
  %351 = vperm.xlu0 %350, %v213
  %v352 = vpop.permute.xlu0 %351
  %355 = vset.pattern.permute.xlu0 0
  %356 = vperm.xlu0 %355, %v214
  %v357 = vpop.permute.xlu0 %356
  %360 = vset.pattern.permute.xlu0 0
  %361 = vperm.xlu0 %360, %v215
  %v362 = vpop.permute.xlu0 %361
  %365 = vset.pattern.permute.xlu0 0
  %366 = vperm.xlu0 %365, %v216
  %v367 = vpop.permute.xlu0 %366
  %370 = vset.pattern.permute.xlu0 0
  %371 = vperm.xlu0 %370, %v217
  %v372 = vpop.permute.xlu0 %371
  %375 = vset.pattern.permute.xlu0 0
  %376 = vperm.xlu0 %375, %v218
  %v377 = vpop.permute.xlu0 %376
  %380 = vset.pattern.permute.xlu0 0
  %381 = vperm.xlu0 %380, %v219
  %v382 = vpop.permute.xlu0 %381
  %385 = vset.pattern.permute.xlu0 0
  %386 = vperm.xlu0 %385, %v220
  %v387 = vpop.permute.xlu0 %386
  %390 = vset.pattern.permute.xlu0 0
  %391 = vperm.xlu0 %390, %v221
  %v392 = vpop.permute.xlu0 %391
  %395 = vset.pattern.permute.xlu0 0
  %396 = vperm.xlu0 %395, %v222
  %v397 = vpop.permute.xlu0 %396
  %400 = vset.pattern.permute.xlu0 0
  %401 = vperm.xlu0 %400, %v223
  %v402 = vpop.permute.xlu0 %401
  %405 = vset.pattern.permute.xlu0 0
  %406 = vperm.xlu0 %405, %v224
  %v407 = vpop.permute.xlu0 %406
  %410 = vset.pattern.permute.xlu0 0
  %411 = vperm.xlu0 %410, %v225
  %v412 = vpop.permute.xlu0 %411
  %415 = vset.pattern.permute.xlu0 0
  %416 = vperm.xlu0 %415, %v226
  %v417 = vpop.permute.xlu0 %416
  %420 = vset.pattern.permute.xlu0 0
  %421 = vperm.xlu0 %420, %v227
  %v422 = vpop.permute.xlu0 %421
  %425 = vset.pattern.permute.xlu0 0
  %426 = vperm.xlu0 %425, %v228
  %v427 = vpop.permute.xlu0 %426
  %430 = vset.pattern.permute.xlu0 0
  %431 = vperm.xlu0 %430, %v229
  %v432 = vpop.permute.xlu0 %431
  %435 = vset.pattern.permute.xlu0 0
  %436 = vperm.xlu0 %435, %v230
  %v437 = vpop.permute.xlu0 %436
  %440 = vset.pattern.permute.xlu0 0
  %441 = vperm.xlu0 %440, %v231
  %v442 = vpop.permute.xlu0 %441
  %445 = vset.pattern.permute.xlu0 0
  %446 = vperm.xlu0 %445, %v232
  %v447 = vpop.permute.xlu0 %446
  %450 = vset.pattern.permute.xlu0 0
  %451 = vperm.xlu0 %450, %v233
  %v452 = vpop.permute.xlu0 %451
  %455 = vset.pattern.permute.xlu0 0
  %456 = vperm.xlu0 %455, %v234
  %v457 = vpop.permute.xlu0 %456
  %460 = vset.pattern.permute.xlu0 0
  %461 = vperm.xlu0 %460, %v235
  %v462 = vpop.permute.xlu0 %461
  %465 = vset.pattern.permute.xlu0 0
  %466 = vperm.xlu0 %465, %v236
  %v467 = vpop.permute.xlu0 %466
  %470 = vset.pattern.permute.xlu0 0
  %471 = vperm.xlu0 %470, %v237
  %v472 = vpop.permute.xlu0 %471
  %475 = vset.pattern.permute.xlu0 0
  %476 = vperm.xlu0 %475, %v238
  %v477 = vpop.permute.xlu0 %476
  %480 = vset.pattern.permute.xlu0 0
  %481 = vperm.xlu0 %480, %v239
  %v482 = vpop.permute.xlu0 %481
  %485 = vset.pattern.permute.xlu0 0
  %486 = vperm.xlu0 %485, %v240
  %v487 = vpop.permute.xlu0 %486
  %490 = vset.pattern.permute.xlu0 0
  %491 = vperm.xlu0 %490, %v241
  %v492 = vpop.permute.xlu0 %491
  %495 = vset.pattern.permute.xlu0 0
  %496 = vperm.xlu0 %495, %v242
  %v497 = vpop.permute.xlu0 %496
  %500 = vset.pattern.permute.xlu0 0
  %501 = vperm.xlu0 %500, %v243
  %v502 = vpop.permute.xlu0 %501
  %505 = vset.pattern.permute.xlu0 0
  %506 = vperm.xlu0 %505, %v244
  %v507 = vpop.permute.xlu0 %506
  %510 = vset.pattern.permute.xlu0 0
  %511 = vperm.xlu0 %510, %v245
  %v512 = vpop.permute.xlu0 %511
  %515 = vset.pattern.permute.xlu0 0
  %516 = vperm.xlu0 %515, %v246
  %v517 = vpop.permute.xlu0 %516
  %520 = vset.pattern.permute.xlu0 0
  %521 = vperm.xlu0 %520, %v247
  %v522 = vpop.permute.xlu0 %521
  %525 = vset.pattern.permute.xlu0 0
  %526 = vperm.xlu0 %525, %v248
  %v527 = vpop.permute.xlu0 %526
  %530 = vset.pattern.permute.xlu0 0
  %531 = vperm.xlu0 %530, %v249
  %v532 = vpop.permute.xlu0 %531
  %535 = vset.pattern.permute.xlu0 0
  %536 = vperm.xlu0 %535, %v250
  %v537 = vpop.permute.xlu0 %536
  %540 = vset.pattern.permute.xlu0 0
  %541 = vperm.xlu0 %540, %v251
  %v542 = vpop.permute.xlu0 %541
  %545 = vset.pattern.permute.xlu0 0
  %546 = vperm.xlu0 %545, %v252
  %v547 = vpop.permute.xlu0 %546
  %550 = vset.pattern.permute.xlu0 0
  %551 = vperm.xlu0 %550, %v253
  %v552 = vpop.permute.xlu0 %551
  %555 = vset.pattern.permute.xlu0 0
  %556 = vperm.xlu0 %555, %v254
  %v557 = vpop.permute.xlu0 %556
  %560 = vset.pattern.permute.xlu0 0
  %561 = vperm.xlu0 %560, %v255
  %v562 = vpop.permute.xlu0 %561
  %565 = vset.pattern.permute.xlu0 0
  %566 = vperm.xlu0 %565, %v256
  %v567 = vpop.permute.xlu0 %566
  %570 = vset.pattern.permute.xlu0 0
  %571 = vperm.xlu0 %570, %v257
  %v572 = vpop.permute.xlu0 %571
  %575 = vset.pattern.permute.xlu0 0
  %576 = vperm.xlu0 %575, %v258
  %v577 = vpop.permute.xlu0 %576
  %580 = vset.pattern.permute.xlu0 0
  %581 = vperm.xlu0 %580, %v259
  %v582 = vpop.permute.xlu0 %581
  %585 = vset.pattern.permute.xlu0 0
  %586 = vperm.xlu0 %585, %v260
  %v587 = vpop.permute.xlu0 %586
  %590 = vset.pattern.permute.xlu0 0
  %591 = vperm.xlu0 %590, %v261
  %v592 = vpop.permute.xlu0 %591
  %595 = vset.pattern.permute.xlu0 0
  %596 = vperm.xlu0 %595, %v262
  %v597 = vpop.permute.xlu0 %596
  %600 = vset.pattern.permute.xlu0 0
  %601 = vperm.xlu0 %600, %v263
  %v602 = vpop.permute.xlu0 %601
  %605 = vset.pattern.permute.xlu0 0
  %606 = vperm.xlu0 %605, %v264
  %v607 = vpop.permute.xlu0 %606
  %610 = vset.pattern.permute.xlu0 0
  %611 = vperm.xlu0 %610, %v265
  %v612 = vpop.permute.xlu0 %611
  %615 = vset.pattern.permute.xlu0 0
  %616 = vperm.xlu0 %615, %v266
  %v617 = vpop.permute.xlu0 %616
  %620 = vset.pattern.permute.xlu0 0
  %621 = vperm.xlu0 %620, %v267
  %v622 = vpop.permute.xlu0 %621
  %625 = vset.pattern.permute.xlu0 0
  %626 = vperm.xlu0 %625, %v268
  %v627 = vpop.permute.xlu0 %626
  %630 = vset.pattern.permute.xlu0 0
  %631 = vperm.xlu0 %630, %v269
  %v632 = vpop.permute.xlu0 %631
  %635 = vset.pattern.permute.xlu0 0
  %636 = vperm.xlu0 %635, %v270
  %v637 = vpop.permute.xlu0 %636
  %640 = vset.pattern.permute.xlu0 0
  %641 = vperm.xlu0 %640, %v271
  %v642 = vpop.permute.xlu0 %641
  %645 = vset.pattern.permute.xlu0 0
  %646 = vperm.xlu0 %645, %v272
  %v647 = vpop.permute.xlu0 %646
  %650 = vset.pattern.permute.xlu0 0
  %651 = vperm.xlu0 %650, %v273
  %v652 = vpop.permute.xlu0 %651
  %655 = vset.pattern.permute.xlu0 0
  %656 = vperm.xlu0 %655, %v274
  %v657 = vpop.permute.xlu0 %656
  %660 = vset.pattern.permute.xlu0 0
  %661 = vperm.xlu0 %660, %v275
  %v662 = vpop.permute.xlu0 %661
  %665 = vset.pattern.permute.xlu0 0
  %666 = vperm.xlu0 %665, %v276
  %v667 = vpop.permute.xlu0 %666
  %670 = vset.pattern.permute.xlu0 0
  %671 = vperm.xlu0 %670, %v277
  %v672 = vpop.permute.xlu0 %671
  %675 = vset.pattern.permute.xlu0 0
  %676 = vperm.xlu0 %675, %v278
  %v677 = vpop.permute.xlu0 %676
  %680 = vset.pattern.permute.xlu0 0
  %681 = vperm.xlu0 %680, %v279
  %v682 = vpop.permute.xlu0 %681
  %685 = vset.pattern.permute.xlu0 0
  %686 = vperm.xlu0 %685, %v280
  %v687 = vpop.permute.xlu0 %686
  %690 = vset.pattern.permute.xlu0 0
  %691 = vperm.xlu0 %690, %v281
  %v692 = vpop.permute.xlu0 %691
  %695 = vset.pattern.permute.xlu0 0
  %696 = vperm.xlu0 %695, %v282
  %v697 = vpop.permute.xlu0 %696
  %700 = vset.pattern.permute.xlu0 0
  %701 = vperm.xlu0 %700, %v283
  %v702 = vpop.permute.xlu0 %701
  %705 = vset.pattern.permute.xlu0 0
  %706 = vperm.xlu0 %705, %v284
  %v707 = vpop.permute.xlu0 %706
  %710 = vset.pattern.permute.xlu0 0
  %711 = vperm.xlu0 %710, %v285
  %v712 = vpop.permute.xlu0 %711
  %715 = vset.pattern.permute.xlu0 0
  %716 = vperm.xlu0 %715, %v286
  %v717 = vpop.permute.xlu0 %716
  %720 = vset.pattern.permute.xlu0 0
  %721 = vperm.xlu0 %720, %v287
  %v722 = vpop.permute.xlu0 %721
  %725 = vset.pattern.permute.xlu0 0
  %726 = vperm.xlu0 %725, %v288
  %v727 = vpop.permute.xlu0 %726
  %730 = vset.pattern.permute.xlu0 0
  %731 = vperm.xlu0 %730, %v289
  %v732 = vpop.permute.xlu0 %731
  %735 = vset.pattern.permute.xlu0 0
  %736 = vperm.xlu0 %735, %v290
  %v737 = vpop.permute.xlu0 %736
  %740 = vset.pattern.permute.xlu0 0
  %741 = vperm.xlu0 %740, %v291
  %v742 = vpop.permute.xlu0 %741
  %745 = vset.pattern.permute.xlu0 0
  %746 = vperm.xlu0 %745, %v292
  %v747 = vpop.permute.xlu0 %746
  %750 = vset.pattern.permute.xlu0 0
  %751 = vperm.xlu0 %750, %v293
  %v752 = vpop.permute.xlu0 %751
  %755 = vset.pattern.permute.xlu0 0
  %756 = vperm.xlu0 %755, %v294
  %v757 = vpop.permute.xlu0 %756
  %760 = vset.pattern.permute.xlu0 0
  %761 = vperm.xlu0 %760, %v295
  %v762 = vpop.permute.xlu0 %761
  %765 = vset.pattern.permute.xlu0 0
  %766 = vperm.xlu0 %765, %v296
  %v767 = vpop.permute.xlu0 %766
  %770 = vset.pattern.permute.xlu0 0
  %771 = vperm.xlu0 %770, %v297
  %v772 = vpop.permute.xlu0 %771
  %775 = vset.pattern.permute.xlu0 0
  %776 = vperm.xlu0 %775, %v298
  %v777 = vpop.permute.xlu0 %776
  %780 = vset.pattern.permute.xlu0 0
  %781 = vperm.xlu0 %780, %v299
  %v782 = vpop.permute.xlu0 %781
  %785 = vset.pattern.permute.xlu0 0
  %786 = vperm.xlu0 %785, %v300
  %v787 = vpop.permute.xlu0 %786
  %790 = vset.pattern.permute.xlu0 0
  %791 = vperm.xlu0 %790, %v301
  %v792 = vpop.permute.xlu0 %791
  %795 = vset.pattern.permute.xlu0 0
  %796 = vperm.xlu0 %795, %v302
  %v797 = vpop.permute.xlu0 %796
  %800 = vset.pattern.permute.xlu0 0
  %801 = vperm.xlu0 %800, %v303
  %v802 = vpop.permute.xlu0 %801
  %805 = vset.pattern.permute.xlu0 0
  %806 = vperm.xlu0 %805, %v304
  %v807 = vpop.permute.xlu0 %806
  %810 = vset.pattern.permute.xlu0 0
  %811 = vperm.xlu0 %810, %v305
  %v812 = vpop.permute.xlu0 %811
  %815 = vset.pattern.permute.xlu0 0
  %816 = vperm.xlu0 %815, %v306
  %v817 = vpop.permute.xlu0 %816
  %820 = vset.pattern.permute.xlu0 0
  %821 = vperm.xlu0 %820, %v307
  %v822 = vpop.permute.xlu0 %821
  %825 = vset.pattern.permute.xlu0 0
  %826 = vperm.xlu0 %825, %v308
  %v827 = vpop.permute.xlu0 %826
  %830 = vset.pattern.permute.xlu0 0
  %831 = vperm.xlu0 %830, %v309
  %v832 = vpop.permute.xlu0 %831
  %835 = vset.pattern.permute.xlu0 0
  %836 = vperm.xlu0 %835, %v310
  %v837 = vpop.permute.xlu0 %836
  %840 = vset.pattern.permute.xlu0 0
  %841 = vperm.xlu0 %840, %v311
  %v842 = vpop.permute.xlu0 %841
  %845 = vset.pattern.permute.xlu0 0
  %846 = vperm.xlu0 %845, %v312
  %v847 = vpop.permute.xlu0 %846
  %850 = vset.pattern.permute.xlu0 0
  %851 = vperm.xlu0 %850, %v313
  %v852 = vpop.permute.xlu0 %851
  %855 = vset.pattern.permute.xlu0 0
  %856 = vperm.xlu0 %855, %v314
  %v857 = vpop.permute.xlu0 %856
  %860 = vset.pattern.permute.xlu0 0
  %861 = vperm.xlu0 %860, %v315
  %v862 = vpop.permute.xlu0 %861
  %865 = vset.pattern.permute.xlu0 0
  %866 = vperm.xlu0 %865, %v316
  %v867 = vpop.permute.xlu0 %866
  %870 = vset.pattern.permute.xlu0 0
  %871 = vperm.xlu0 %870, %v317
  %v872 = vpop.permute.xlu0 %871
  %875 = vset.pattern.permute.xlu0 0
  %876 = vperm.xlu0 %875, %v318
  %v877 = vpop.permute.xlu0 %876
  %880 = vset.pattern.permute.xlu0 0
  %881 = vperm.xlu0 %880, %v319
  %v882 = vpop.permute.xlu0 %881
  %885 = vset.pattern.permute.xlu0 0
  %886 = vperm.xlu0 %885, %v320
  %v887 = vpop.permute.xlu0 %886
  %890 = vset.pattern.permute.xlu0 0
  %891 = vperm.xlu0 %890, %v321
  %v892 = vpop.permute.xlu0 %891
  %895 = vset.pattern.permute.xlu0 0
  %896 = vperm.xlu0 %895, %v322
  %v897 = vpop.permute.xlu0 %896
  %900 = vset.pattern.permute.xlu0 0
  %901 = vperm.xlu0 %900, %v323
  %v902 = vpop.permute.xlu0 %901
  %905 = vset.pattern.permute.xlu0 0
  %906 = vperm.xlu0 %905, %v324
  %v907 = vpop.permute.xlu0 %906
  %910 = vset.pattern.permute.xlu0 0
  %911 = vperm.xlu0 %910, %v325
  %v912 = vpop.permute.xlu0 %911
  %915 = vset.pattern.permute.xlu0 0
  %916 = vperm.xlu0 %915, %v326
  %v917 = vpop.permute.xlu0 %916
  %920 = vset.pattern.permute.xlu0 0
  %921 = vperm.xlu0 %920, %v327
  %v922 = vpop.permute.xlu0 %921
  %925 = vset.pattern.permute.xlu0 0
  %926 = vperm.xlu0 %925, %v328
  %v927 = vpop.permute.xlu0 %926
  %v929 = vld [vmem:[%s4] sm:$0xff]
  %v930 = vld [vmem:[%s4 + $0x8] sm:$0xff]
  %v931 = vld [vmem:[%s4 + $0x10] sm:$0xff]
  %v932 = vld [vmem:[%s4 + $0x18] sm:$0xff]
  %v933 = vld [vmem:[%s4 + $0x20] sm:$0xff]
  %v934 = vld [vmem:[%s4 + $0x28] sm:$0xff]
  %v935 = vld [vmem:[%s4 + $0x30] sm:$0xff]
  %v936 = vld [vmem:[%s4 + $0x38] sm:$0xff]
  %v937 = vld [vmem:[%s4 + $0x40] sm:$0xff]
  %v938 = vld [vmem:[%s4 + $0x48] sm:$0xff]
  %v939 = vld [vmem:[%s4 + $0x50] sm:$0xff]
  %v940 = vld [vmem:[%s4 + $0x58] sm:$0xff]
  %v941 = vld [vmem:[%s4 + $0x60] sm:$0xff]
  %v942 = vld [vmem:[%s4 + $0x68] sm:$0xff]
  %v943 = vld [vmem:[%s4 + $0x70] sm:$0xff]
  %v944 = vld [vmem:[%s4 + $0x78] sm:$0xff]
  %v945 = vld [vmem:[%s4 + $0x80] sm:$0xff]
  %v946 = vld [vmem:[%s4 + $0x88] sm:$0xff]
  %v947 = vld [vmem:[%s4 + $0x90] sm:$0xff]
  %v948 = vld [vmem:[%s4 + $0x98] sm:$0xff]
  %950 = vset.pattern.permute.xlu0 0
  %951 = vperm.xlu0 %950, %v929
  %v952 = vpop.permute.xlu0 %951
  %955 = vset.pattern.permute.xlu0 0
  %956 = vperm.xlu0 %955, %v930
  %v957 = vpop.permute.xlu0 %956
  %960 = vset.pattern.permute.xlu0 0
  %961 = vperm.xlu0 %960, %v931
  %v962 = vpop.permute.xlu0 %961
  %965 = vset.pattern.permute.xlu0 0
  %966 = vperm.xlu0 %965, %v932
  %v967 = vpop.permute.xlu0 %966
  %970 = vset.pattern.permute.xlu0 0
  %971 = vperm.xlu0 %970, %v933
  %v972 = vpop.permute.xlu0 %971
  %975 = vset.pattern.permute.xlu0 0
  %976 = vperm.xlu0 %975, %v934
  %v977 = vpop.permute.xlu0 %976
  %980 = vset.pattern.permute.xlu0 0
  %981 = vperm.xlu0 %980, %v935
  %v982 = vpop.permute.xlu0 %981
  %985 = vset.pattern.permute.xlu0 0
  %986 = vperm.xlu0 %985, %v936
  %v987 = vpop.permute.xlu0 %986
  %990 = vset.pattern.permute.xlu0 0
  %991 = vperm.xlu0 %990, %v937
  %v992 = vpop.permute.xlu0 %991
  %995 = vset.pattern.permute.xlu0 0
  %996 = vperm.xlu0 %995, %v938
  %v997 = vpop.permute.xlu0 %996
  %1000 = vset.pattern.permute.xlu0 0
  %1001 = vperm.xlu0 %1000, %v939
  %v1002 = vpop.permute.xlu0 %1001
  %1005 = vset.pattern.permute.xlu0 0
  %1006 = vperm.xlu0 %1005, %v940
  %v1007 = vpop.permute.xlu0 %1006
  %1010 = vset.pattern.permute.xlu0 0
  %1011 = vperm.xlu0 %1010, %v941
  %v1012 = vpop.permute.xlu0 %1011
  %1015 = vset.pattern.permute.xlu0 0
  %1016 = vperm.xlu0 %1015, %v942
  %v1017 = vpop.permute.xlu0 %1016
  %1020 = vset.pattern.permute.xlu0 0
  %1021 = vperm.xlu0 %1020, %v943
  %v1022 = vpop.permute.xlu0 %1021
  %1025 = vset.pattern.permute.xlu0 0
  %1026 = vperm.xlu0 %1025, %v944
  %v1027 = vpop.permute.xlu0 %1026
  %1030 = vset.pattern.permute.xlu0 0
  %1031 = vperm.xlu0 %1030, %v945
  %v1032 = vpop.permute.xlu0 %1031
  %1035 = vset.pattern.permute.xlu0 0
  %1036 = vperm.xlu0 %1035, %v946
  %v1037 = vpop.permute.xlu0 %1036
  %1040 = vset.pattern.permute.xlu0 0
  %1041 = vperm.xlu0 %1040, %v947
  %v1042 = vpop.permute.xlu0 %1041
  %1045 = vset.pattern.permute.xlu0 0
  %1046 = vperm.xlu0 %1045, %v948
  %v1047 = vpop.permute.xlu0 %1046
  %v1049 = vld [vmem:[%s0] sm:$0xff]
  %v1050 = vld [vmem:[%s0 + $0x8] sm:$0xff]
  %v1051 = vld [vmem:[%s0 + $0x10] sm:$0xff]
  %v1052 = vld [vmem:[%s0 + $0x18] sm:$0xff]
  %v1053 = vld [vmem:[%s0 + $0x20] sm:$0xff]
  %v1054 = vld [vmem:[%s0 + $0x28] sm:$0xff]
  %v1055 = vld [vmem:[%s0 + $0x30] sm:$0xff]
  %v1056 = vld [vmem:[%s0 + $0x38] sm:$0xff]
  %v1057 = vld [vmem:[%s0 + $0x40] sm:$0xff]
  %v1058 = vld [vmem:[%s0 + $0x48] sm:$0xff]
  %v1059 = vld [vmem:[%s0 + $0x50] sm:$0xff]
  %v1060 = vld [vmem:[%s0 + $0x58] sm:$0xff]
  %v1061 = vld [vmem:[%s0 + $0x60] sm:$0xff]
  %v1062 = vld [vmem:[%s0 + $0x68] sm:$0xff]
  %v1063 = vld [vmem:[%s0 + $0x70] sm:$0xff]
  %v1064 = vld [vmem:[%s0 + $0x78] sm:$0xff]
  %v1065 = vld [vmem:[%s0 + $0x80] sm:$0xff]
  %v1066 = vld [vmem:[%s0 + $0x88] sm:$0xff]
  %v1067 = vld [vmem:[%s0 + $0x90] sm:$0xff]
  %v1068 = vld [vmem:[%s0 + $0x98] sm:$0xff]
  %v1069 = vld [vmem:[%s0 + $0xa0] sm:$0xff]
  %v1070 = vld [vmem:[%s0 + $0xa8] sm:$0xff]
  %v1071 = vld [vmem:[%s0 + $0xb0] sm:$0xff]
  %v1072 = vld [vmem:[%s0 + $0xb8] sm:$0xff]
  %v1073 = vld [vmem:[%s0 + $0xc0] sm:$0xff]
  %v1074 = vld [vmem:[%s0 + $0xc8] sm:$0xff]
  %v1075 = vld [vmem:[%s0 + $0xd0] sm:$0xff]
  %v1076 = vld [vmem:[%s0 + $0xd8] sm:$0xff]
  %v1197 = vunpack.c.l.b16 %v27
  %v1198 = vunpack.c.h.b16 %v27
  %v1199 = vunpack.c.l.b16 %v28
  %v1200 = vunpack.c.h.b16 %v28
  %v1201 = vunpack.c.l.b16 %v29
  %v1202 = vunpack.c.h.b16 %v29
  %v1203 = vunpack.c.l.b16 %v30
  %v1204 = vunpack.c.h.b16 %v30
  %v1205 = vunpack.c.l.b16 %v31
  %v1206 = vunpack.c.h.b16 %v31
  %v1207 = vunpack.c.l.b16 %v32
  %v1208 = vunpack.c.h.b16 %v32
  %v1209 = vunpack.c.l.b16 %v33
  %v1210 = vunpack.c.h.b16 %v33
  %v1211 = vunpack.c.l.b16 %v34
  %v1212 = vunpack.c.h.b16 %v34
  %v1213 = vunpack.c.l.b16 %v35
  %v1214 = vunpack.c.h.b16 %v35
  %v1215 = vunpack.c.l.b16 %v36
  %v1216 = vunpack.c.h.b16 %v36
  %v1217 = vunpack.c.l.b16 %v37
  %v1218 = vunpack.c.h.b16 %v37
  %v1219 = vunpack.c.l.b16 %v38
  %v1220 = vunpack.c.h.b16 %v38
  %v1221 = vunpack.c.l.b16 %v39
  %v1222 = vunpack.c.h.b16 %v39
  %v1223 = vunpack.c.l.b16 %v40
  %v1224 = vunpack.c.h.b16 %v40
  %v1225 = vunpack.c.l.b16 %v41
  %v1226 = vunpack.c.h.b16 %v41
  %v1227 = vunpack.c.l.b16 %v42
  %v1228 = vunpack.c.h.b16 %v42
  %v1229 = vunpack.c.l.b16 %v43
  %v1230 = vunpack.c.h.b16 %v43
  %v1231 = vunpack.c.l.b16 %v44
  %v1232 = vunpack.c.h.b16 %v44
  %v1233 = vunpack.c.l.b16 %v45
  %v1234 = vunpack.c.h.b16 %v45
  %v1235 = vunpack.c.l.b16 %v46
  %v1236 = vunpack.c.h.b16 %v46
  %v1237 = vunpack.c.l.b16 %v47
  %v1238 = vunpack.c.h.b16 %v47
  %v1239 = vunpack.c.l.b16 %v48
  %v1240 = vunpack.c.h.b16 %v48
  %v1241 = vunpack.c.l.b16 %v49
  %v1242 = vunpack.c.h.b16 %v49
  %v1243 = vunpack.c.l.b16 %v50
  %v1244 = vunpack.c.h.b16 %v50
  %v1245 = vunpack.c.l.b16 %v51
  %v1246 = vunpack.c.h.b16 %v51
  %v1247 = vunpack.c.l.b16 %v52
  %v1248 = vunpack.c.h.b16 %v52
  %v1249 = vunpack.c.l.b16 %v53
  %v1250 = vunpack.c.h.b16 %v53
  %v1251 = vunpack.c.l.b16 %v54
  %v1252 = vunpack.c.h.b16 %v54
  %v1253 = vunpack.c.l.b16 %v55
  %v1254 = vunpack.c.h.b16 %v55
  %v1255 = vunpack.c.l.b16 %v56
  %v1256 = vunpack.c.h.b16 %v56
  %v1257 = vunpack.c.l.b16 %v57
  %v1258 = vunpack.c.h.b16 %v57
  %v1259 = vunpack.c.l.b16 %v58
  %v1260 = vunpack.c.h.b16 %v58
  %v1261 = vunpack.c.l.b16 %v59
  %v1262 = vunpack.c.h.b16 %v59
  %v1263 = vunpack.c.l.b16 %v60
  %v1264 = vunpack.c.h.b16 %v60
  %v1265 = vunpack.c.l.b16 %v61
  %v1266 = vunpack.c.h.b16 %v61
  %v1267 = vunpack.c.l.b16 %v62
  %v1268 = vunpack.c.h.b16 %v62
  %v1269 = vunpack.c.l.b16 %v63
  %v1270 = vunpack.c.h.b16 %v63
  %v1271 = vunpack.c.l.b16 %v64
  %v1272 = vunpack.c.h.b16 %v64
  %v1273 = vunpack.c.l.b16 %v65
  %v1274 = vunpack.c.h.b16 %v65
  %v1275 = vunpack.c.l.b16 %v66
  %v1276 = vunpack.c.h.b16 %v66
  %v1277 = vunpack.c.l.b16 %v67
  %v1278 = vunpack.c.h.b16 %v67
  %v1279 = vunpack.c.l.b16 %v68
  %v1280 = vunpack.c.h.b16 %v68
  %v1281 = vunpack.c.l.b16 %v69
  %v1282 = vunpack.c.h.b16 %v69
  %v1283 = vunpack.c.l.b16 %v70
  %v1284 = vunpack.c.h.b16 %v70
  %v1285 = vunpack.c.l.b16 %v71
  %v1286 = vunpack.c.h.b16 %v71
  %v1287 = vunpack.c.l.b16 %v72
  %v1288 = vunpack.c.h.b16 %v72
  %v1289 = vunpack.c.l.b16 %v73
  %v1290 = vunpack.c.h.b16 %v73
  %v1291 = vunpack.c.l.b16 %v74
  %v1292 = vunpack.c.h.b16 %v74
  %v1293 = vunpack.c.l.b16 %v75
  %v1294 = vunpack.c.h.b16 %v75
  %v1295 = vunpack.c.l.b16 %v76
  %v1296 = vunpack.c.h.b16 %v76
  %v1297 = vunpack.c.l.b16 %v77
  %v1298 = vunpack.c.h.b16 %v77
  %v1299 = vunpack.c.l.b16 %v78
  %v1300 = vunpack.c.h.b16 %v78
  %v1301 = vunpack.c.l.b16 %v79
  %v1302 = vunpack.c.h.b16 %v79
  %v1303 = vunpack.c.l.b16 %v80
  %v1304 = vunpack.c.h.b16 %v80
  %v1305 = vunpack.c.l.b16 %v81
  %v1306 = vunpack.c.h.b16 %v81
  %v1307 = vunpack.c.l.b16 %v82
  %v1308 = vunpack.c.h.b16 %v82
  %v1309 = vunpack.c.l.b16 %v83
  %v1310 = vunpack.c.h.b16 %v83
  %v1311 = vunpack.c.l.b16 %v84
  %v1312 = vunpack.c.h.b16 %v84
  %v1313 = vunpack.c.l.b16 %v85
  %v1314 = vunpack.c.h.b16 %v85
  %v1315 = vunpack.c.l.b16 %v86
  %v1316 = vunpack.c.h.b16 %v86
  %v1317 = vunpack.c.l.b16 %v87
  %v1318 = vunpack.c.h.b16 %v87
  %v1319 = vunpack.c.l.b16 %v88
  %v1320 = vunpack.c.h.b16 %v88
  %v1321 = vunpack.c.l.b16 %v89
  %v1322 = vunpack.c.h.b16 %v89
  %v1323 = vunpack.c.l.b16 %v90
  %v1324 = vunpack.c.h.b16 %v90
  %v1325 = vunpack.c.l.b16 %v91
  %v1326 = vunpack.c.h.b16 %v91
  %v1327 = vunpack.c.l.b16 %v92
  %v1328 = vunpack.c.h.b16 %v92
  %v1329 = vunpack.c.l.b16 %v93
  %v1330 = vunpack.c.h.b16 %v93
  %v1331 = vunpack.c.l.b16 %v94
  %v1332 = vunpack.c.h.b16 %v94
  %v1333 = vunpack.c.l.b16 %v95
  %v1334 = vunpack.c.h.b16 %v95
  %v1335 = vunpack.c.l.b16 %v96
  %v1336 = vunpack.c.h.b16 %v96
  %v1337 = vunpack.c.l.b16 %v97
  %v1338 = vunpack.c.h.b16 %v97
  %v1339 = vunpack.c.l.b16 %v98
  %v1340 = vunpack.c.h.b16 %v98
  %v1341 = vunpack.c.l.b16 %v99
  %v1342 = vunpack.c.h.b16 %v99
  %v1343 = vunpack.c.l.b16 %v100
  %v1344 = vunpack.c.h.b16 %v100
  %v1345 = vunpack.c.l.b16 %v101
  %v1346 = vunpack.c.h.b16 %v101
  %v1347 = vunpack.c.l.b16 %v102
  %v1348 = vunpack.c.h.b16 %v102
  %v1349 = vunpack.c.l.b16 %v103
  %v1350 = vunpack.c.h.b16 %v103
  %v1351 = vunpack.c.l.b16 %v104
  %v1352 = vunpack.c.h.b16 %v104
  %v1353 = vunpack.c.l.b16 %v105
  %v1354 = vunpack.c.h.b16 %v105
  %v1355 = vunpack.c.l.b16 %v106
  %v1356 = vunpack.c.h.b16 %v106
  %v1357 = vunpack.c.l.b16 %v107
  %v1358 = vunpack.c.h.b16 %v107
  %v1359 = vunpack.c.l.b16 %v108
  %v1360 = vunpack.c.h.b16 %v108
  %v1361 = vunpack.c.l.b16 %v109
  %v1362 = vunpack.c.h.b16 %v109
  %v1363 = vunpack.c.l.b16 %v110
  %v1364 = vunpack.c.h.b16 %v110
  %v1365 = vunpack.c.l.b16 %v111
  %v1366 = vunpack.c.h.b16 %v111
  %v1367 = vunpack.c.l.b16 %v112
  %v1368 = vunpack.c.h.b16 %v112
  %v1369 = vunpack.c.l.b16 %v113
  %v1370 = vunpack.c.h.b16 %v113
  %v1371 = vunpack.c.l.b16 %v114
  %v1372 = vunpack.c.h.b16 %v114
  %v1373 = vunpack.c.l.b16 %v115
  %v1374 = vunpack.c.h.b16 %v115
  %v1375 = vunpack.c.l.b16 %v116
  %v1376 = vunpack.c.h.b16 %v116
  %v1377 = vunpack.c.l.b16 %v117
  %v1378 = vunpack.c.h.b16 %v117
  %v1379 = vunpack.c.l.b16 %v118
  %v1380 = vunpack.c.h.b16 %v118
  %v1381 = vunpack.c.l.b16 %v119
  %v1382 = vunpack.c.h.b16 %v119
  %v1383 = vunpack.c.l.b16 %v120
  %v1384 = vunpack.c.h.b16 %v120
  %v1385 = vunpack.c.l.b16 %v121
  %v1386 = vunpack.c.h.b16 %v121
  %v1387 = vunpack.c.l.b16 %v122
  %v1388 = vunpack.c.h.b16 %v122
  %v1389 = vunpack.c.l.b16 %v123
  %v1390 = vunpack.c.h.b16 %v123
  %v1391 = vunpack.c.l.b16 %v124
  %v1392 = vunpack.c.h.b16 %v124
  %v1393 = vunpack.c.l.b16 %v125
  %v1394 = vunpack.c.h.b16 %v125
  %v1395 = vunpack.c.l.b16 %v126
  %v1396 = vunpack.c.h.b16 %v126
  %v1397 = vunpack.c.l.b16 %v127
  %v1398 = vunpack.c.h.b16 %v127
  %v1399 = vunpack.c.l.b16 %v128
  %v1400 = vunpack.c.h.b16 %v128
  %v1401 = vunpack.c.l.b16 %v129
  %v1402 = vunpack.c.h.b16 %v129
  %v1403 = vunpack.c.l.b16 %v130
  %v1404 = vunpack.c.h.b16 %v130
  %v1405 = vunpack.c.l.b16 %v131
  %v1406 = vunpack.c.h.b16 %v131
  %v1407 = vunpack.c.l.b16 %v132
  %v1408 = vunpack.c.h.b16 %v132
  %v1409 = vunpack.c.l.b16 %v133
  %v1410 = vunpack.c.h.b16 %v133
  %v1411 = vunpack.c.l.b16 %v134
  %v1412 = vunpack.c.h.b16 %v134
  %v1413 = vunpack.c.l.b16 %v135
  %v1414 = vunpack.c.h.b16 %v135
  %v1415 = vunpack.c.l.b16 %v136
  %v1416 = vunpack.c.h.b16 %v136
  %v1417 = vunpack.c.l.b16 %v137
  %v1418 = vunpack.c.h.b16 %v137
  %v1419 = vunpack.c.l.b16 %v138
  %v1420 = vunpack.c.h.b16 %v138
  %v1421 = vunpack.c.l.b16 %v139
  %v1422 = vunpack.c.h.b16 %v139
  %v1423 = vunpack.c.l.b16 %v140
  %v1424 = vunpack.c.h.b16 %v140
  %v1425 = vunpack.c.l.b16 %v141
  %v1426 = vunpack.c.h.b16 %v141
  %v1427 = vunpack.c.l.b16 %v142
  %v1428 = vunpack.c.h.b16 %v142
  %v1429 = vunpack.c.l.b16 %v143
  %v1430 = vunpack.c.h.b16 %v143
  %v1431 = vunpack.c.l.b16 %v144
  %v1432 = vunpack.c.h.b16 %v144
  %v1433 = vunpack.c.l.b16 %v145
  %v1434 = vunpack.c.h.b16 %v145
  %v1435 = vunpack.c.l.b16 %v146
  %v1436 = vunpack.c.h.b16 %v146
  %v1437 = vpack.c.b16 %v1199, %v1197
  %v1438 = vpack.c.b16 %v1200, %v1198
  %v1439 = vpack.c.b16 %v1203, %v1201
  %v1440 = vpack.c.b16 %v1204, %v1202
  %v1441 = vpack.c.b16 %v1207, %v1205
  %v1442 = vpack.c.b16 %v1208, %v1206
  %v1443 = vpack.c.b16 %v1211, %v1209
  %v1444 = vpack.c.b16 %v1212, %v1210
  %v1445 = vpack.c.b16 %v1215, %v1213
  %v1446 = vpack.c.b16 %v1216, %v1214
  %v1447 = vpack.c.b16 %v1219, %v1217
  %v1448 = vpack.c.b16 %v1220, %v1218
  %v1449 = vpack.c.b16 %v1223, %v1221
  %v1450 = vpack.c.b16 %v1224, %v1222
  %v1451 = vpack.c.b16 %v1227, %v1225
  %v1452 = vpack.c.b16 %v1228, %v1226
  %v1453 = vpack.c.b16 %v1231, %v1229
  %v1454 = vpack.c.b16 %v1232, %v1230
  %v1455 = vpack.c.b16 %v1235, %v1233
  %v1456 = vpack.c.b16 %v1236, %v1234
  %v1457 = vpack.c.b16 %v1239, %v1237
  %v1458 = vpack.c.b16 %v1240, %v1238
  %v1459 = vpack.c.b16 %v1243, %v1241
  %v1460 = vpack.c.b16 %v1244, %v1242
  %v1461 = vpack.c.b16 %v1247, %v1245
  %v1462 = vpack.c.b16 %v1248, %v1246
  %v1463 = vpack.c.b16 %v1251, %v1249
  %v1464 = vpack.c.b16 %v1252, %v1250
  %v1465 = vpack.c.b16 %v1255, %v1253
  %v1466 = vpack.c.b16 %v1256, %v1254
  %v1467 = vpack.c.b16 %v1259, %v1257
  %v1468 = vpack.c.b16 %v1260, %v1258
  %v1469 = vpack.c.b16 %v1263, %v1261
  %v1470 = vpack.c.b16 %v1264, %v1262
  %v1471 = vpack.c.b16 %v1267, %v1265
  %v1472 = vpack.c.b16 %v1268, %v1266
  %v1473 = vpack.c.b16 %v1271, %v1269
  %v1474 = vpack.c.b16 %v1272, %v1270
  %v1475 = vpack.c.b16 %v1275, %v1273
  %v1476 = vpack.c.b16 %v1276, %v1274
  %v1477 = vpack.c.b16 %v1279, %v1277
  %v1478 = vpack.c.b16 %v1280, %v1278
  %v1479 = vpack.c.b16 %v1283, %v1281
  %v1480 = vpack.c.b16 %v1284, %v1282
  %v1481 = vpack.c.b16 %v1287, %v1285
  %v1482 = vpack.c.b16 %v1288, %v1286
  %v1483 = vpack.c.b16 %v1291, %v1289
  %v1484 = vpack.c.b16 %v1292, %v1290
  %v1485 = vpack.c.b16 %v1295, %v1293
  %v1486 = vpack.c.b16 %v1296, %v1294
  %v1487 = vpack.c.b16 %v1299, %v1297
  %v1488 = vpack.c.b16 %v1300, %v1298
  %v1489 = vpack.c.b16 %v1303, %v1301
  %v1490 = vpack.c.b16 %v1304, %v1302
  %v1491 = vpack.c.b16 %v1307, %v1305
  %v1492 = vpack.c.b16 %v1308, %v1306
  %v1493 = vpack.c.b16 %v1311, %v1309
  %v1494 = vpack.c.b16 %v1312, %v1310
  %v1495 = vpack.c.b16 %v1315, %v1313
  %v1496 = vpack.c.b16 %v1316, %v1314
  %v1497 = vpack.c.b16 %v1319, %v1317
  %v1498 = vpack.c.b16 %v1320, %v1318
  %v1499 = vpack.c.b16 %v1323, %v1321
  %v1500 = vpack.c.b16 %v1324, %v1322
  %v1501 = vpack.c.b16 %v1327, %v1325
  %v1502 = vpack.c.b16 %v1328, %v1326
  %v1503 = vpack.c.b16 %v1331, %v1329
  %v1504 = vpack.c.b16 %v1332, %v1330
  %v1505 = vpack.c.b16 %v1335, %v1333
  %v1506 = vpack.c.b16 %v1336, %v1334
  %v1507 = vpack.c.b16 %v1339, %v1337
  %v1508 = vpack.c.b16 %v1340, %v1338
  %v1509 = vpack.c.b16 %v1343, %v1341
  %v1510 = vpack.c.b16 %v1344, %v1342
  %v1511 = vpack.c.b16 %v1347, %v1345
  %v1512 = vpack.c.b16 %v1348, %v1346
  %v1513 = vpack.c.b16 %v1351, %v1349
  %v1514 = vpack.c.b16 %v1352, %v1350
  %v1515 = vpack.c.b16 %v1355, %v1353
  %v1516 = vpack.c.b16 %v1356, %v1354
  %v1517 = vpack.c.b16 %v1359, %v1357
  %v1518 = vpack.c.b16 %v1360, %v1358
  %v1519 = vpack.c.b16 %v1363, %v1361
  %v1520 = vpack.c.b16 %v1364, %v1362
  %v1521 = vpack.c.b16 %v1367, %v1365
  %v1522 = vpack.c.b16 %v1368, %v1366
  %v1523 = vpack.c.b16 %v1371, %v1369
  %v1524 = vpack.c.b16 %v1372, %v1370
  %v1525 = vpack.c.b16 %v1375, %v1373
  %v1526 = vpack.c.b16 %v1376, %v1374
  %v1527 = vpack.c.b16 %v1379, %v1377
  %v1528 = vpack.c.b16 %v1380, %v1378
  %v1529 = vpack.c.b16 %v1383, %v1381
  %v1530 = vpack.c.b16 %v1384, %v1382
  %v1531 = vpack.c.b16 %v1387, %v1385
  %v1532 = vpack.c.b16 %v1388, %v1386
  %v1533 = vpack.c.b16 %v1391, %v1389
  %v1534 = vpack.c.b16 %v1392, %v1390
  %v1535 = vpack.c.b16 %v1395, %v1393
  %v1536 = vpack.c.b16 %v1396, %v1394
  %v1537 = vpack.c.b16 %v1399, %v1397
  %v1538 = vpack.c.b16 %v1400, %v1398
  %v1539 = vpack.c.b16 %v1403, %v1401
  %v1540 = vpack.c.b16 %v1404, %v1402
  %v1541 = vpack.c.b16 %v1407, %v1405
  %v1542 = vpack.c.b16 %v1408, %v1406
  %v1543 = vpack.c.b16 %v1411, %v1409
  %v1544 = vpack.c.b16 %v1412, %v1410
  %v1545 = vpack.c.b16 %v1415, %v1413
  %v1546 = vpack.c.b16 %v1416, %v1414
  %v1547 = vpack.c.b16 %v1419, %v1417
  %v1548 = vpack.c.b16 %v1420, %v1418
  %v1549 = vpack.c.b16 %v1423, %v1421
  %v1550 = vpack.c.b16 %v1424, %v1422
  %v1551 = vpack.c.b16 %v1427, %v1425
  %v1552 = vpack.c.b16 %v1428, %v1426
  %v1553 = vpack.c.b16 %v1431, %v1429
  %v1554 = vpack.c.b16 %v1432, %v1430
  %v1555 = vpack.c.b16 %v1435, %v1433
  %v1556 = vpack.c.b16 %v1436, %v1434
  %v1645 = vunpack.c.l.b16 %v1049
  %v1646 = vunpack.c.h.b16 %v1049
  %v1647 = vunpack.c.l.b16 %v1050
  %v1648 = vunpack.c.h.b16 %v1050
  %v1649 = vunpack.c.l.b16 %v1051
  %v1650 = vunpack.c.h.b16 %v1051
  %v1651 = vunpack.c.l.b16 %v1052
  %v1652 = vunpack.c.h.b16 %v1052
  %v1653 = vunpack.c.l.b16 %v1053
  %v1654 = vunpack.c.h.b16 %v1053
  %v1655 = vunpack.c.l.b16 %v1054
  %v1656 = vunpack.c.h.b16 %v1054
  %v1657 = vunpack.c.l.b16 %v1055
  %v1658 = vunpack.c.h.b16 %v1055
  %v1659 = vunpack.c.l.b16 %v1056
  %v1660 = vunpack.c.h.b16 %v1056
  %v1661 = vunpack.c.l.b16 %v1057
  %v1662 = vunpack.c.h.b16 %v1057
  %v1663 = vunpack.c.l.b16 %v1058
  %v1664 = vunpack.c.h.b16 %v1058
  %v1665 = vunpack.c.l.b16 %v1059
  %v1666 = vunpack.c.h.b16 %v1059
  %v1667 = vunpack.c.l.b16 %v1060
  %v1668 = vunpack.c.h.b16 %v1060
  %v1669 = vunpack.c.l.b16 %v1061
  %v1670 = vunpack.c.h.b16 %v1061
  %v1671 = vunpack.c.l.b16 %v1062
  %v1672 = vunpack.c.h.b16 %v1062
  %v1673 = vunpack.c.l.b16 %v1063
  %v1674 = vunpack.c.h.b16 %v1063
  %v1675 = vunpack.c.l.b16 %v1064
  %v1676 = vunpack.c.h.b16 %v1064
  %v1677 = vunpack.c.l.b16 %v1065
  %v1678 = vunpack.c.h.b16 %v1065
  %v1679 = vunpack.c.l.b16 %v1066
  %v1680 = vunpack.c.h.b16 %v1066
  %v1681 = vunpack.c.l.b16 %v1067
  %v1682 = vunpack.c.h.b16 %v1067
  %v1683 = vunpack.c.l.b16 %v1068
  %v1684 = vunpack.c.h.b16 %v1068
  %v1685 = vunpack.c.l.b16 %v1069
  %v1686 = vunpack.c.h.b16 %v1069
  %v1687 = vunpack.c.l.b16 %v1070
  %v1688 = vunpack.c.h.b16 %v1070
  %v1689 = vunpack.c.l.b16 %v1071
  %v1690 = vunpack.c.h.b16 %v1071
  %v1691 = vunpack.c.l.b16 %v1072
  %v1692 = vunpack.c.h.b16 %v1072
  %v1693 = vunpack.c.l.b16 %v1073
  %v1694 = vunpack.c.h.b16 %v1073
  %v1695 = vunpack.c.l.b16 %v1074
  %v1696 = vunpack.c.h.b16 %v1074
  %v1697 = vunpack.c.l.b16 %v1075
  %v1698 = vunpack.c.h.b16 %v1075
  %v1699 = vunpack.c.l.b16 %v1076
  %v1700 = vunpack.c.h.b16 %v1076
  %v1701 = vpack.c.b16 %v1647, %v1645
  %v1702 = vpack.c.b16 %v1648, %v1646
  %v1703 = vpack.c.b16 %v1651, %v1649
  %v1704 = vpack.c.b16 %v1652, %v1650
  %v1705 = vpack.c.b16 %v1655, %v1653
  %v1706 = vpack.c.b16 %v1656, %v1654
  %v1707 = vpack.c.b16 %v1659, %v1657
  %v1708 = vpack.c.b16 %v1660, %v1658
  %v1709 = vpack.c.b16 %v1663, %v1661
  %v1710 = vpack.c.b16 %v1664, %v1662
  %v1711 = vpack.c.b16 %v1667, %v1665
  %v1712 = vpack.c.b16 %v1668, %v1666
  %v1713 = vpack.c.b16 %v1671, %v1669
  %v1714 = vpack.c.b16 %v1672, %v1670
  %v1715 = vpack.c.b16 %v1675, %v1673
  %v1716 = vpack.c.b16 %v1676, %v1674
  %v1717 = vpack.c.b16 %v1679, %v1677
  %v1718 = vpack.c.b16 %v1680, %v1678
  %v1719 = vpack.c.b16 %v1683, %v1681
  %v1720 = vpack.c.b16 %v1684, %v1682
  %v1721 = vpack.c.b16 %v1687, %v1685
  %v1722 = vpack.c.b16 %v1688, %v1686
  %v1723 = vpack.c.b16 %v1691, %v1689
  %v1724 = vpack.c.b16 %v1692, %v1690
  %v1725 = vpack.c.b16 %v1695, %v1693
  %v1726 = vpack.c.b16 %v1696, %v1694
  %v1727 = vpack.c.b16 %v1699, %v1697
  %v1728 = vpack.c.b16 %v1700, %v1698
  %vm1757 = vcmask 785408
  %v1759 = vsel %vm1757, %v1438, 0
  %v1762 = vsel %vm1757, %v1440, 0
  %v1765 = vsel %vm1757, %v1442, 0
  %v1768 = vsel %vm1757, %v1444, 0
  %v1771 = vsel %vm1757, %v1446, 0
  %v1774 = vsel %vm1757, %v1448, 0
  %v1777 = vsel %vm1757, %v1450, 0
  %v1780 = vsel %vm1757, %v1452, 0
  %v1783 = vsel %vm1757, %v1454, 0
  %v1786 = vsel %vm1757, %v1456, 0
  %v1789 = vsel %vm1757, %v1458, 0
  %v1792 = vsel %vm1757, %v1460, 0
  %v1795 = vsel %vm1757, %v1462, 0
  %v1798 = vsel %vm1757, %v1464, 0
  %v1801 = vsel %vm1757, %v1466, 0
  %v1804 = vsel %vm1757, %v1468, 0
  %v1807 = vsel %vm1757, %v1470, 0
  %v1810 = vsel %vm1757, %v1472, 0
  %v1813 = vsel %vm1757, %v1474, 0
  %v1816 = vsel %vm1757, %v1476, 0
  %v1819 = vsel %vm1757, %v1478, 0
  %v1822 = vsel %vm1757, %v1480, 0
  %v1825 = vsel %vm1757, %v1482, 0
  %v1828 = vsel %vm1757, %v1484, 0
  %v1831 = vsel %vm1757, %v1486, 0
  %v1834 = vsel %vm1757, %v1488, 0
  %v1837 = vsel %vm1757, %v1490, 0
  %v1840 = vsel %vm1757, %v1492, 0
  %v1843 = vsel %vm1757, %v1494, 0
  %v1846 = vsel %vm1757, %v1496, 0
  %v1849 = vsel %vm1757, %v1498, 0
  %v1852 = vsel %vm1757, %v1500, 0
  %v1855 = vsel %vm1757, %v1502, 0
  %v1858 = vsel %vm1757, %v1504, 0
  %v1861 = vsel %vm1757, %v1506, 0
  %v1864 = vsel %vm1757, %v1508, 0
  %v1867 = vsel %vm1757, %v1510, 0
  %v1870 = vsel %vm1757, %v1512, 0
  %v1873 = vsel %vm1757, %v1514, 0
  %v1876 = vsel %vm1757, %v1516, 0
  %v1879 = vsel %vm1757, %v1518, 0
  %v1882 = vsel %vm1757, %v1520, 0
  %v1885 = vsel %vm1757, %v1522, 0
  %v1888 = vsel %vm1757, %v1524, 0
  %v1891 = vsel %vm1757, %v1526, 0
  %v1894 = vsel %vm1757, %v1528, 0
  %v1897 = vsel %vm1757, %v1530, 0
  %v1900 = vsel %vm1757, %v1532, 0
  %v1903 = vsel %vm1757, %v1534, 0
  %v1906 = vsel %vm1757, %v1536, 0
  %v1909 = vsel %vm1757, %v1538, 0
  %v1912 = vsel %vm1757, %v1540, 0
  %v1915 = vsel %vm1757, %v1542, 0
  %v1918 = vsel %vm1757, %v1544, 0
  %v1921 = vsel %vm1757, %v1546, 0
  %v1924 = vsel %vm1757, %v1548, 0
  %v1927 = vsel %vm1757, %v1550, 0
  %v1930 = vsel %vm1757, %v1552, 0
  %v1933 = vsel %vm1757, %v1554, 0
  %v1936 = vsel %vm1757, %v1556, 0
  %1938 = vmatprep.subr.bf16.mxu0 %v1702
  %1939 = vmatpush1.bf16.msra.mxu0 %v1701
  %1940 = vmatprep.subr.bf16.mxu0 %v1704
  %1941 = vmatpush1.bf16.msra.mxu0 %v1703
  %1942 = vmatprep.subr.bf16.mxu0 %v1706
  %1943 = vmatpush1.bf16.msra.mxu0 %v1705
  %1944 = vmatprep.subr.bf16.mxu0 %v1708
  %1945 = vmatpush1.bf16.msra.mxu0 %v1707
  %1946 = vmatprep.subr.bf16.mxu0 %v1710
  %1947 = vmatpush1.bf16.msra.mxu0 %v1709
  %1948 = vmatprep.subr.bf16.mxu0 %v1712
  %1949 = vmatpush1.bf16.msra.mxu0 %v1711
  %1950 = vmatprep.subr.bf16.mxu0 %v1714
  %1951 = vmatpush1.bf16.msra.mxu0 %v1713
  %1952 = vmatprep.subr.bf16.mxu0 %v1716
  %1953 = vmatpush1.bf16.msra.mxu0 %v1715
  %1954 = vmatprep.subr.bf16.mxu0 %v1718
  %1955 = vmatpush1.bf16.msra.mxu0 %v1717
  %1956 = vmatprep.subr.bf16.mxu0 %v1720
  %1957 = vmatpush1.bf16.msra.mxu0 %v1719
  %1958 = vmatprep.subr.bf16.mxu0 %v1722
  %1959 = vmatpush1.bf16.msra.mxu0 %v1721
  %1960 = vmatprep.subr.bf16.mxu0 %v1724
  %1961 = vmatpush1.bf16.msra.mxu0 %v1723
  %1962 = vmatprep.subr.bf16.mxu0 %v1726
  %1963 = vmatpush1.bf16.msra.mxu0 %v1725
  %1964 = vmatprep.subr.bf16.mxu0 %v1728
  %1965 = vmatpush1.bf16.msra.mxu0 %v1727
  %1966 = vmatprep.subr.bf16.mxu0 0
  %1967 = vmatpush1.bf16.msra.mxu0 0
  %1968 = vmatprep.subr.bf16.mxu0 0
  %1969 = vmatpush1.bf16.msra.mxu0 0
  %1970 = vmatprep.mubr.bf16.mxu0 %v1759
  %1971 = vmatmul.mubr.bf16.gmra.mrb[0].mxu0 %v1437
  %v1972 = vpop.f32.mrb[0].mxu0
  %v1973 = vadd.f32 %v332, %v1972
  %v1974 = vpop.f32.mrb[0].mxu0
  %v1975 = vadd.f32 %v332, %v1974
  %v1976 = vpop.f32.mrb[0].mxu0
  %v1977 = vadd.f32 %v337, %v1976
  %v1978 = vpop.f32.mrb[0].mxu0
  %v1979 = vadd.f32 %v337, %v1978
  %1980 = vmatprep.mubr.bf16.mxu0 %v1762
  %1981 = vmatmul.mubr.bf16.gmra.mrb[0].mxu0 %v1439
  %v1982 = vpop.f32.mrb[0].mxu0
  %v1983 = vadd.f32 %v342, %v1982
  %v1984 = vpop.f32.mrb[0].mxu0
  %v1985 = vadd.f32 %v342, %v1984
  %v1986 = vpop.f32.mrb[0].mxu0
  %v1987 = vadd.f32 %v347, %v1986
  %v1988 = vpop.f32.mrb[0].mxu0
  %v1989 = vadd.f32 %v347, %v1988
  %1990 = vmatprep.mubr.bf16.mxu0 %v1765
  %1991 = vmatmul.mubr.bf16.gmra.mrb[0].mxu0 %v1441
  %v1992 = vpop.f32.mrb[0].mxu0
  %v1993 = vadd.f32 %v352, %v1992
  %v1994 = vpop.f32.mrb[0].mxu0
  %v1995 = vadd.f32 %v352, %v1994
  %v1996 = vpop.f32.mrb[0].mxu0
  %v1997 = vadd.f32 %v357, %v1996
  %v1998 = vpop.f32.mrb[0].mxu0
  %v1999 = vadd.f32 %v357, %v1998
  %2000 = vmatprep.mubr.bf16.mxu0 %v1768
  %2001 = vmatmul.mubr.bf16.gmra.mrb[0].mxu0 %v1443
  %v2002 = vpop.f32.mrb[0].mxu0
  %v2003 = vadd.f32 %v362, %v2002
  %v2004 = vpop.f32.mrb[0].mxu0
  %v2005 = vadd.f32 %v362, %v2004
  %v2006 = vpop.f32.mrb[0].mxu0
  %v2007 = vadd.f32 %v367, %v2006
  %v2008 = vpop.f32.mrb[0].mxu0
  %v2009 = vadd.f32 %v367, %v2008
  %2010 = vmatprep.mubr.bf16.mxu0 %v1771
  %2011 = vmatmul.mubr.bf16.gmra.mrb[0].mxu0 %v1445
  %v2012 = vpop.f32.mrb[0].mxu0
  %v2013 = vadd.f32 %v372, %v2012
  %v2014 = vpop.f32.mrb[0].mxu0
  %v2015 = vadd.f32 %v372, %v2014
  %v2016 = vpop.f32.mrb[0].mxu0
  %v2017 = vadd.f32 %v377, %v2016
  %v2018 = vpop.f32.mrb[0].mxu0
  %v2019 = vadd.f32 %v377, %v2018
  %2020 = vmatprep.mubr.bf16.mxu0 %v1774
  %2021 = vmatmul.mubr.bf16.gmra.mrb[0].mxu0 %v1447
  %v2022 = vpop.f32.mrb[0].mxu0
  %v2023 = vadd.f32 %v382, %v2022
  %v2024 = vpop.f32.mrb[0].mxu0
  %v2025 = vadd.f32 %v382, %v2024
  %v2026 = vpop.f32.mrb[0].mxu0
  %v2027 = vadd.f32 %v387, %v2026
  %v2028 = vpop.f32.mrb[0].mxu0
  %v2029 = vadd.f32 %v387, %v2028
  %2030 = vmatprep.mubr.bf16.mxu0 %v1777
  %2031 = vmatmul.mubr.bf16.gmra.mrb[0].mxu0 %v1449
  %v2032 = vpop.f32.mrb[0].mxu0
  %v2033 = vadd.f32 %v392, %v2032
  %v2034 = vpop.f32.mrb[0].mxu0
  %v2035 = vadd.f32 %v392, %v2034
  %v2036 = vpop.f32.mrb[0].mxu0
  %v2037 = vadd.f32 %v397, %v2036
  %v2038 = vpop.f32.mrb[0].mxu0
  %v2039 = vadd.f32 %v397, %v2038
  %2040 = vmatprep.mubr.bf16.mxu0 %v1780
  %2041 = vmatmul.mubr.bf16.gmra.mrb[0].mxu0 %v1451
  %v2042 = vpop.f32.mrb[0].mxu0
  %v2043 = vadd.f32 %v402, %v2042
  %v2044 = vpop.f32.mrb[0].mxu0
  %v2045 = vadd.f32 %v402, %v2044
  %v2046 = vpop.f32.mrb[0].mxu0
  %v2047 = vadd.f32 %v407, %v2046
  %v2048 = vpop.f32.mrb[0].mxu0
  %v2049 = vadd.f32 %v407, %v2048
  %2050 = vmatprep.mubr.bf16.mxu0 %v1783
  %2051 = vmatmul.mubr.bf16.gmra.mrb[0].mxu0 %v1453
  %v2052 = vpop.f32.mrb[0].mxu0
  %v2053 = vadd.f32 %v412, %v2052
  %v2054 = vpop.f32.mrb[0].mxu0
  %v2055 = vadd.f32 %v412, %v2054
  %v2056 = vpop.f32.mrb[0].mxu0
  %v2057 = vadd.f32 %v417, %v2056
  %v2058 = vpop.f32.mrb[0].mxu0
  %v2059 = vadd.f32 %v417, %v2058
  %2060 = vmatprep.mubr.bf16.mxu0 %v1786
  %2061 = vmatmul.mubr.bf16.gmra.mrb[0].mxu0 %v1455
  %v2062 = vpop.f32.mrb[0].mxu0
  %v2063 = vadd.f32 %v422, %v2062
  %v2064 = vpop.f32.mrb[0].mxu0
  %v2065 = vadd.f32 %v422, %v2064
  %v2066 = vpop.f32.mrb[0].mxu0
  %v2067 = vadd.f32 %v427, %v2066
  %v2068 = vpop.f32.mrb[0].mxu0
  %v2069 = vadd.f32 %v427, %v2068
  %2070 = vmatprep.mubr.bf16.mxu0 %v1789
  %2071 = vmatmul.mubr.bf16.gmra.mrb[0].mxu0 %v1457
  %v2072 = vpop.f32.mrb[0].mxu0
  %v2073 = vadd.f32 %v432, %v2072
  %v2074 = vpop.f32.mrb[0].mxu0
  %v2075 = vadd.f32 %v432, %v2074
  %v2076 = vpop.f32.mrb[0].mxu0
  %v2077 = vadd.f32 %v437, %v2076
  %v2078 = vpop.f32.mrb[0].mxu0
  %v2079 = vadd.f32 %v437, %v2078
  %2080 = vmatprep.mubr.bf16.mxu0 %v1792
  %2081 = vmatmul.mubr.bf16.gmra.mrb[0].mxu0 %v1459
  %v2082 = vpop.f32.mrb[0].mxu0
  %v2083 = vadd.f32 %v442, %v2082
  %v2084 = vpop.f32.mrb[0].mxu0
  %v2085 = vadd.f32 %v442, %v2084
  %v2086 = vpop.f32.mrb[0].mxu0
  %v2087 = vadd.f32 %v447, %v2086
  %v2088 = vpop.f32.mrb[0].mxu0
  %v2089 = vadd.f32 %v447, %v2088
  %2090 = vmatprep.mubr.bf16.mxu0 %v1795
  %2091 = vmatmul.mubr.bf16.gmra.mrb[0].mxu0 %v1461
  %v2092 = vpop.f32.mrb[0].mxu0
  %v2093 = vadd.f32 %v452, %v2092
  %v2094 = vpop.f32.mrb[0].mxu0
  %v2095 = vadd.f32 %v452, %v2094
  %v2096 = vpop.f32.mrb[0].mxu0
  %v2097 = vadd.f32 %v457, %v2096
  %v2098 = vpop.f32.mrb[0].mxu0
  %v2099 = vadd.f32 %v457, %v2098
  %2100 = vmatprep.mubr.bf16.mxu0 %v1798
  %2101 = vmatmul.mubr.bf16.gmra.mrb[0].mxu0 %v1463
  %v2102 = vpop.f32.mrb[0].mxu0
  %v2103 = vadd.f32 %v462, %v2102
  %v2104 = vpop.f32.mrb[0].mxu0
  %v2105 = vadd.f32 %v462, %v2104
  %v2106 = vpop.f32.mrb[0].mxu0
  %v2107 = vadd.f32 %v467, %v2106
  %v2108 = vpop.f32.mrb[0].mxu0
  %v2109 = vadd.f32 %v467, %v2108
  %2110 = vmatprep.mubr.bf16.mxu0 %v1801
  %2111 = vmatmul.mubr.bf16.gmra.mrb[0].mxu0 %v1465
  %v2112 = vpop.f32.mrb[0].mxu0
  %v2113 = vadd.f32 %v472, %v2112
  %v2114 = vpop.f32.mrb[0].mxu0
  %v2115 = vadd.f32 %v472, %v2114
  %v2116 = vpop.f32.mrb[0].mxu0
  %v2117 = vadd.f32 %v477, %v2116
  %v2118 = vpop.f32.mrb[0].mxu0
  %v2119 = vadd.f32 %v477, %v2118
  %2120 = vmatprep.mubr.bf16.mxu0 %v1804
  %2121 = vmatmul.mubr.bf16.gmra.mrb[0].mxu0 %v1467
  %v2122 = vpop.f32.mrb[0].mxu0
  %v2123 = vadd.f32 %v482, %v2122
  %v2124 = vpop.f32.mrb[0].mxu0
  %v2125 = vadd.f32 %v482, %v2124
  %v2126 = vpop.f32.mrb[0].mxu0
  %v2127 = vadd.f32 %v487, %v2126
  %v2128 = vpop.f32.mrb[0].mxu0
  %v2129 = vadd.f32 %v487, %v2128
  %2130 = vmatprep.mubr.bf16.mxu0 %v1807
  %2131 = vmatmul.mubr.bf16.gmra.mrb[0].mxu0 %v1469
  %v2132 = vpop.f32.mrb[0].mxu0
  %v2133 = vadd.f32 %v492, %v2132
  %v2134 = vpop.f32.mrb[0].mxu0
  %v2135 = vadd.f32 %v492, %v2134
  %v2136 = vpop.f32.mrb[0].mxu0
  %v2137 = vadd.f32 %v497, %v2136
  %v2138 = vpop.f32.mrb[0].mxu0
  %v2139 = vadd.f32 %v497, %v2138
  %2140 = vmatprep.mubr.bf16.mxu0 %v1810
  %2141 = vmatmul.mubr.bf16.gmra.mrb[0].mxu0 %v1471
  %v2142 = vpop.f32.mrb[0].mxu0
  %v2143 = vadd.f32 %v502, %v2142
  %v2144 = vpop.f32.mrb[0].mxu0
  %v2145 = vadd.f32 %v502, %v2144
  %v2146 = vpop.f32.mrb[0].mxu0
  %v2147 = vadd.f32 %v507, %v2146
  %v2148 = vpop.f32.mrb[0].mxu0
  %v2149 = vadd.f32 %v507, %v2148
  %2150 = vmatprep.mubr.bf16.mxu0 %v1813
  %2151 = vmatmul.mubr.bf16.gmra.mrb[0].mxu0 %v1473
  %v2152 = vpop.f32.mrb[0].mxu0
  %v2153 = vadd.f32 %v512, %v2152
  %v2154 = vpop.f32.mrb[0].mxu0
  %v2155 = vadd.f32 %v512, %v2154
  %v2156 = vpop.f32.mrb[0].mxu0
  %v2157 = vadd.f32 %v517, %v2156
  %v2158 = vpop.f32.mrb[0].mxu0
  %v2159 = vadd.f32 %v517, %v2158
  %2160 = vmatprep.mubr.bf16.mxu0 %v1816
  %2161 = vmatmul.mubr.bf16.gmra.mrb[0].mxu0 %v1475
  %v2162 = vpop.f32.mrb[0].mxu0
  %v2163 = vadd.f32 %v522, %v2162
  %v2164 = vpop.f32.mrb[0].mxu0
  %v2165 = vadd.f32 %v522, %v2164
  %v2166 = vpop.f32.mrb[0].mxu0
  %v2167 = vadd.f32 %v527, %v2166
  %v2168 = vpop.f32.mrb[0].mxu0
  %v2169 = vadd.f32 %v527, %v2168
  %2170 = vmatprep.mubr.bf16.mxu0 %v1819
  %2171 = vmatmul.mubr.bf16.gmra.mrb[0].mxu0 %v1477
  %v2172 = vpop.f32.mrb[0].mxu0
  %v2173 = vadd.f32 %v532, %v2172
  %v2174 = vpop.f32.mrb[0].mxu0
  %v2175 = vadd.f32 %v532, %v2174
  %v2176 = vpop.f32.mrb[0].mxu0
  %v2177 = vadd.f32 %v537, %v2176
  %v2178 = vpop.f32.mrb[0].mxu0
  %v2179 = vadd.f32 %v537, %v2178
  %2180 = vmatprep.mubr.bf16.mxu0 %v1822
  %2181 = vmatmul.mubr.bf16.gmra.mrb[0].mxu0 %v1479
  %v2182 = vpop.f32.mrb[0].mxu0
  %v2183 = vadd.f32 %v542, %v2182
  %v2184 = vpop.f32.mrb[0].mxu0
  %v2185 = vadd.f32 %v542, %v2184
  %v2186 = vpop.f32.mrb[0].mxu0
  %v2187 = vadd.f32 %v547, %v2186
  %v2188 = vpop.f32.mrb[0].mxu0
  %v2189 = vadd.f32 %v547, %v2188
  %2190 = vmatprep.mubr.bf16.mxu0 %v1825
  %2191 = vmatmul.mubr.bf16.gmra.mrb[0].mxu0 %v1481
  %v2192 = vpop.f32.mrb[0].mxu0
  %v2193 = vadd.f32 %v552, %v2192
  %v2194 = vpop.f32.mrb[0].mxu0
  %v2195 = vadd.f32 %v552, %v2194
  %v2196 = vpop.f32.mrb[0].mxu0
  %v2197 = vadd.f32 %v557, %v2196
  %v2198 = vpop.f32.mrb[0].mxu0
  %v2199 = vadd.f32 %v557, %v2198
  %2200 = vmatprep.mubr.bf16.mxu0 %v1828
  %2201 = vmatmul.mubr.bf16.gmra.mrb[0].mxu0 %v1483
  %v2202 = vpop.f32.mrb[0].mxu0
  %v2203 = vadd.f32 %v562, %v2202
  %v2204 = vpop.f32.mrb[0].mxu0
  %v2205 = vadd.f32 %v562, %v2204
  %v2206 = vpop.f32.mrb[0].mxu0
  %v2207 = vadd.f32 %v567, %v2206
  %v2208 = vpop.f32.mrb[0].mxu0
  %v2209 = vadd.f32 %v567, %v2208
  %2210 = vmatprep.mubr.bf16.mxu0 %v1831
  %2211 = vmatmul.mubr.bf16.gmra.mrb[0].mxu0 %v1485
  %v2212 = vpop.f32.mrb[0].mxu0
  %v2213 = vadd.f32 %v572, %v2212
  %v2214 = vpop.f32.mrb[0].mxu0
  %v2215 = vadd.f32 %v572, %v2214
  %v2216 = vpop.f32.mrb[0].mxu0
  %v2217 = vadd.f32 %v577, %v2216
  %v2218 = vpop.f32.mrb[0].mxu0
  %v2219 = vadd.f32 %v577, %v2218
  %2220 = vmatprep.mubr.bf16.mxu0 %v1834
  %2221 = vmatmul.mubr.bf16.gmra.mrb[0].mxu0 %v1487
  %v2222 = vpop.f32.mrb[0].mxu0
  %v2223 = vadd.f32 %v582, %v2222
  %v2224 = vpop.f32.mrb[0].mxu0
  %v2225 = vadd.f32 %v582, %v2224
  %v2226 = vpop.f32.mrb[0].mxu0
  %v2227 = vadd.f32 %v587, %v2226
  %v2228 = vpop.f32.mrb[0].mxu0
  %v2229 = vadd.f32 %v587, %v2228
  %2230 = vmatprep.mubr.bf16.mxu0 %v1837
  %2231 = vmatmul.mubr.bf16.gmra.mrb[0].mxu0 %v1489
  %v2232 = vpop.f32.mrb[0].mxu0
  %v2233 = vadd.f32 %v592, %v2232
  %v2234 = vpop.f32.mrb[0].mxu0
  %v2235 = vadd.f32 %v592, %v2234
  %v2236 = vpop.f32.mrb[0].mxu0
  %v2237 = vadd.f32 %v597, %v2236
  %v2238 = vpop.f32.mrb[0].mxu0
  %v2239 = vadd.f32 %v597, %v2238
  %2240 = vmatprep.mubr.bf16.mxu0 %v1840
  %2241 = vmatmul.mubr.bf16.gmra.mrb[0].mxu0 %v1491
  %v2242 = vpop.f32.mrb[0].mxu0
  %v2243 = vadd.f32 %v602, %v2242
  %v2244 = vpop.f32.mrb[0].mxu0
  %v2245 = vadd.f32 %v602, %v2244
  %v2246 = vpop.f32.mrb[0].mxu0
  %v2247 = vadd.f32 %v607, %v2246
  %v2248 = vpop.f32.mrb[0].mxu0
  %v2249 = vadd.f32 %v607, %v2248
  %2250 = vmatprep.mubr.bf16.mxu0 %v1843
  %2251 = vmatmul.mubr.bf16.gmra.mrb[0].mxu0 %v1493
  %v2252 = vpop.f32.mrb[0].mxu0
  %v2253 = vadd.f32 %v612, %v2252
  %v2254 = vpop.f32.mrb[0].mxu0
  %v2255 = vadd.f32 %v612, %v2254
  %v2256 = vpop.f32.mrb[0].mxu0
  %v2257 = vadd.f32 %v617, %v2256
  %v2258 = vpop.f32.mrb[0].mxu0
  %v2259 = vadd.f32 %v617, %v2258
  %2260 = vmatprep.mubr.bf16.mxu0 %v1846
  %2261 = vmatmul.mubr.bf16.gmra.mrb[0].mxu0 %v1495
  %v2262 = vpop.f32.mrb[0].mxu0
  %v2263 = vadd.f32 %v622, %v2262
  %v2264 = vpop.f32.mrb[0].mxu0
  %v2265 = vadd.f32 %v622, %v2264
  %v2266 = vpop.f32.mrb[0].mxu0
  %v2267 = vadd.f32 %v627, %v2266
  %v2268 = vpop.f32.mrb[0].mxu0
  %v2269 = vadd.f32 %v627, %v2268
  %2270 = vmatprep.mubr.bf16.mxu0 %v1849
  %2271 = vmatmul.mubr.bf16.gmra.mrb[0].mxu0 %v1497
  %v2272 = vpop.f32.mrb[0].mxu0
  %v2273 = vadd.f32 %v632, %v2272
  %v2274 = vpop.f32.mrb[0].mxu0
  %v2275 = vadd.f32 %v632, %v2274
  %v2276 = vpop.f32.mrb[0].mxu0
  %v2277 = vadd.f32 %v637, %v2276
  %v2278 = vpop.f32.mrb[0].mxu0
  %v2279 = vadd.f32 %v637, %v2278
  %2280 = vmatprep.mubr.bf16.mxu0 %v1852
  %2281 = vmatmul.mubr.bf16.gmra.mrb[0].mxu0 %v1499
  %v2282 = vpop.f32.mrb[0].mxu0
  %v2283 = vadd.f32 %v642, %v2282
  %v2284 = vpop.f32.mrb[0].mxu0
  %v2285 = vadd.f32 %v642, %v2284
  %v2286 = vpop.f32.mrb[0].mxu0
  %v2287 = vadd.f32 %v647, %v2286
  %v2288 = vpop.f32.mrb[0].mxu0
  %v2289 = vadd.f32 %v647, %v2288
  %2290 = vmatprep.mubr.bf16.mxu0 %v1855
  %2291 = vmatmul.mubr.bf16.gmra.mrb[0].mxu0 %v1501
  %v2292 = vpop.f32.mrb[0].mxu0
  %v2293 = vadd.f32 %v652, %v2292
  %v2294 = vpop.f32.mrb[0].mxu0
  %v2295 = vadd.f32 %v652, %v2294
  %v2296 = vpop.f32.mrb[0].mxu0
  %v2297 = vadd.f32 %v657, %v2296
  %v2298 = vpop.f32.mrb[0].mxu0
  %v2299 = vadd.f32 %v657, %v2298
  %2300 = vmatprep.mubr.bf16.mxu0 %v1858
  %2301 = vmatmul.mubr.bf16.gmra.mrb[0].mxu0 %v1503
  %v2302 = vpop.f32.mrb[0].mxu0
  %v2303 = vadd.f32 %v662, %v2302
  %v2304 = vpop.f32.mrb[0].mxu0
  %v2305 = vadd.f32 %v662, %v2304
  %v2306 = vpop.f32.mrb[0].mxu0
  %v2307 = vadd.f32 %v667, %v2306
  %v2308 = vpop.f32.mrb[0].mxu0
  %v2309 = vadd.f32 %v667, %v2308
  %2310 = vmatprep.mubr.bf16.mxu0 %v1861
  %2311 = vmatmul.mubr.bf16.gmra.mrb[0].mxu0 %v1505
  %v2312 = vpop.f32.mrb[0].mxu0
  %v2313 = vadd.f32 %v672, %v2312
  %v2314 = vpop.f32.mrb[0].mxu0
  %v2315 = vadd.f32 %v672, %v2314
  %v2316 = vpop.f32.mrb[0].mxu0
  %v2317 = vadd.f32 %v677, %v2316
  %v2318 = vpop.f32.mrb[0].mxu0
  %v2319 = vadd.f32 %v677, %v2318
  %2320 = vmatprep.mubr.bf16.mxu0 %v1864
  %2321 = vmatmul.mubr.bf16.gmra.mrb[0].mxu0 %v1507
  %v2322 = vpop.f32.mrb[0].mxu0
  %v2323 = vadd.f32 %v682, %v2322
  %v2324 = vpop.f32.mrb[0].mxu0
  %v2325 = vadd.f32 %v682, %v2324
  %v2326 = vpop.f32.mrb[0].mxu0
  %v2327 = vadd.f32 %v687, %v2326
  %v2328 = vpop.f32.mrb[0].mxu0
  %v2329 = vadd.f32 %v687, %v2328
  %2330 = vmatprep.mubr.bf16.mxu0 %v1867
  %2331 = vmatmul.mubr.bf16.gmra.mrb[0].mxu0 %v1509
  %v2332 = vpop.f32.mrb[0].mxu0
  %v2333 = vadd.f32 %v692, %v2332
  %v2334 = vpop.f32.mrb[0].mxu0
  %v2335 = vadd.f32 %v692, %v2334
  %v2336 = vpop.f32.mrb[0].mxu0
  %v2337 = vadd.f32 %v697, %v2336
  %v2338 = vpop.f32.mrb[0].mxu0
  %v2339 = vadd.f32 %v697, %v2338
  %2340 = vmatprep.mubr.bf16.mxu0 %v1870
  %2341 = vmatmul.mubr.bf16.gmra.mrb[0].mxu0 %v1511
  %v2342 = vpop.f32.mrb[0].mxu0
  %v2343 = vadd.f32 %v702, %v2342
  %v2344 = vpop.f32.mrb[0].mxu0
  %v2345 = vadd.f32 %v702, %v2344
  %v2346 = vpop.f32.mrb[0].mxu0
  %v2347 = vadd.f32 %v707, %v2346
  %v2348 = vpop.f32.mrb[0].mxu0
  %v2349 = vadd.f32 %v707, %v2348
  %2350 = vmatprep.mubr.bf16.mxu0 %v1873
  %2351 = vmatmul.mubr.bf16.gmra.mrb[0].mxu0 %v1513
  %v2352 = vpop.f32.mrb[0].mxu0
  %v2353 = vadd.f32 %v712, %v2352
  %v2354 = vpop.f32.mrb[0].mxu0
  %v2355 = vadd.f32 %v712, %v2354
  %v2356 = vpop.f32.mrb[0].mxu0
  %v2357 = vadd.f32 %v717, %v2356
  %v2358 = vpop.f32.mrb[0].mxu0
  %v2359 = vadd.f32 %v717, %v2358
  %2360 = vmatprep.mubr.bf16.mxu0 %v1876
  %2361 = vmatmul.mubr.bf16.gmra.mrb[0].mxu0 %v1515
  %v2362 = vpop.f32.mrb[0].mxu0
  %v2363 = vadd.f32 %v722, %v2362
  %v2364 = vpop.f32.mrb[0].mxu0
  %v2365 = vadd.f32 %v722, %v2364
  %v2366 = vpop.f32.mrb[0].mxu0
  %v2367 = vadd.f32 %v727, %v2366
  %v2368 = vpop.f32.mrb[0].mxu0
  %v2369 = vadd.f32 %v727, %v2368
  %2370 = vmatprep.mubr.bf16.mxu0 %v1879
  %2371 = vmatmul.mubr.bf16.gmra.mrb[0].mxu0 %v1517
  %v2372 = vpop.f32.mrb[0].mxu0
  %v2373 = vadd.f32 %v732, %v2372
  %v2374 = vpop.f32.mrb[0].mxu0
  %v2375 = vadd.f32 %v732, %v2374
  %v2376 = vpop.f32.mrb[0].mxu0
  %v2377 = vadd.f32 %v737, %v2376
  %v2378 = vpop.f32.mrb[0].mxu0
  %v2379 = vadd.f32 %v737, %v2378
  %2380 = vmatprep.mubr.bf16.mxu0 %v1882
  %2381 = vmatmul.mubr.bf16.gmra.mrb[0].mxu0 %v1519
  %v2382 = vpop.f32.mrb[0].mxu0
  %v2383 = vadd.f32 %v742, %v2382
  %v2384 = vpop.f32.mrb[0].mxu0
  %v2385 = vadd.f32 %v742, %v2384
  %v2386 = vpop.f32.mrb[0].mxu0
  %v2387 = vadd.f32 %v747, %v2386
  %v2388 = vpop.f32.mrb[0].mxu0
  %v2389 = vadd.f32 %v747, %v2388
  %2390 = vmatprep.mubr.bf16.mxu0 %v1885
  %2391 = vmatmul.mubr.bf16.gmra.mrb[0].mxu0 %v1521
  %v2392 = vpop.f32.mrb[0].mxu0
  %v2393 = vadd.f32 %v752, %v2392
  %v2394 = vpop.f32.mrb[0].mxu0
  %v2395 = vadd.f32 %v752, %v2394
  %v2396 = vpop.f32.mrb[0].mxu0
  %v2397 = vadd.f32 %v757, %v2396
  %v2398 = vpop.f32.mrb[0].mxu0
  %v2399 = vadd.f32 %v757, %v2398
  %2400 = vmatprep.mubr.bf16.mxu0 %v1888
  %2401 = vmatmul.mubr.bf16.gmra.mrb[0].mxu0 %v1523
  %v2402 = vpop.f32.mrb[0].mxu0
  %v2403 = vadd.f32 %v762, %v2402
  %v2404 = vpop.f32.mrb[0].mxu0
  %v2405 = vadd.f32 %v762, %v2404
  %v2406 = vpop.f32.mrb[0].mxu0
  %v2407 = vadd.f32 %v767, %v2406
  %v2408 = vpop.f32.mrb[0].mxu0
  %v2409 = vadd.f32 %v767, %v2408
  %2410 = vmatprep.mubr.bf16.mxu0 %v1891
  %2411 = vmatmul.mubr.bf16.gmra.mrb[0].mxu0 %v1525
  %v2412 = vpop.f32.mrb[0].mxu0
  %v2413 = vadd.f32 %v772, %v2412
  %v2414 = vpop.f32.mrb[0].mxu0
  %v2415 = vadd.f32 %v772, %v2414
  %v2416 = vpop.f32.mrb[0].mxu0
  %v2417 = vadd.f32 %v777, %v2416
  %v2418 = vpop.f32.mrb[0].mxu0
  %v2419 = vadd.f32 %v777, %v2418
  %2420 = vmatprep.mubr.bf16.mxu0 %v1894
  %2421 = vmatmul.mubr.bf16.gmra.mrb[0].mxu0 %v1527
  %v2422 = vpop.f32.mrb[0].mxu0
  %v2423 = vadd.f32 %v782, %v2422
  %v2424 = vpop.f32.mrb[0].mxu0
  %v2425 = vadd.f32 %v782, %v2424
  %v2426 = vpop.f32.mrb[0].mxu0
  %v2427 = vadd.f32 %v787, %v2426
  %v2428 = vpop.f32.mrb[0].mxu0
  %v2429 = vadd.f32 %v787, %v2428
  %2430 = vmatprep.mubr.bf16.mxu0 %v1897
  %2431 = vmatmul.mubr.bf16.gmra.mrb[0].mxu0 %v1529
  %v2432 = vpop.f32.mrb[0].mxu0
  %v2433 = vadd.f32 %v792, %v2432
  %v2434 = vpop.f32.mrb[0].mxu0
  %v2435 = vadd.f32 %v792, %v2434
  %v2436 = vpop.f32.mrb[0].mxu0
  %v2437 = vadd.f32 %v797, %v2436
  %v2438 = vpop.f32.mrb[0].mxu0
  %v2439 = vadd.f32 %v797, %v2438
  %2440 = vmatprep.mubr.bf16.mxu0 %v1900
  %2441 = vmatmul.mubr.bf16.gmra.mrb[0].mxu0 %v1531
  %v2442 = vpop.f32.mrb[0].mxu0
  %v2443 = vadd.f32 %v802, %v2442
  %v2444 = vpop.f32.mrb[0].mxu0
  %v2445 = vadd.f32 %v802, %v2444
  %v2446 = vpop.f32.mrb[0].mxu0
  %v2447 = vadd.f32 %v807, %v2446
  %v2448 = vpop.f32.mrb[0].mxu0
  %v2449 = vadd.f32 %v807, %v2448
  %2450 = vmatprep.mubr.bf16.mxu0 %v1903
  %2451 = vmatmul.mubr.bf16.gmra.mrb[0].mxu0 %v1533
  %v2452 = vpop.f32.mrb[0].mxu0
  %v2453 = vadd.f32 %v812, %v2452
  %v2454 = vpop.f32.mrb[0].mxu0
  %v2455 = vadd.f32 %v812, %v2454
  %v2456 = vpop.f32.mrb[0].mxu0
  %v2457 = vadd.f32 %v817, %v2456
  %v2458 = vpop.f32.mrb[0].mxu0
  %v2459 = vadd.f32 %v817, %v2458
  %2460 = vmatprep.mubr.bf16.mxu0 %v1906
  %2461 = vmatmul.mubr.bf16.gmra.mrb[0].mxu0 %v1535
  %v2462 = vpop.f32.mrb[0].mxu0
  %v2463 = vadd.f32 %v822, %v2462
  %v2464 = vpop.f32.mrb[0].mxu0
  %v2465 = vadd.f32 %v822, %v2464
  %v2466 = vpop.f32.mrb[0].mxu0
  %v2467 = vadd.f32 %v827, %v2466
  %v2468 = vpop.f32.mrb[0].mxu0
  %v2469 = vadd.f32 %v827, %v2468
  %2470 = vmatprep.mubr.bf16.mxu0 %v1909
  %2471 = vmatmul.mubr.bf16.gmra.mrb[0].mxu0 %v1537
  %v2472 = vpop.f32.mrb[0].mxu0
  %v2473 = vadd.f32 %v832, %v2472
  %v2474 = vpop.f32.mrb[0].mxu0
  %v2475 = vadd.f32 %v832, %v2474
  %v2476 = vpop.f32.mrb[0].mxu0
  %v2477 = vadd.f32 %v837, %v2476
  %v2478 = vpop.f32.mrb[0].mxu0
  %v2479 = vadd.f32 %v837, %v2478
  %2480 = vmatprep.mubr.bf16.mxu0 %v1912
  %2481 = vmatmul.mubr.bf16.gmra.mrb[0].mxu0 %v1539
  %v2482 = vpop.f32.mrb[0].mxu0
  %v2483 = vadd.f32 %v842, %v2482
  %v2484 = vpop.f32.mrb[0].mxu0
  %v2485 = vadd.f32 %v842, %v2484
  %v2486 = vpop.f32.mrb[0].mxu0
  %v2487 = vadd.f32 %v847, %v2486
  %v2488 = vpop.f32.mrb[0].mxu0
  %v2489 = vadd.f32 %v847, %v2488
  %2490 = vmatprep.mubr.bf16.mxu0 %v1915
  %2491 = vmatmul.mubr.bf16.gmra.mrb[0].mxu0 %v1541
  %v2492 = vpop.f32.mrb[0].mxu0
  %v2493 = vadd.f32 %v852, %v2492
  %v2494 = vpop.f32.mrb[0].mxu0
  %v2495 = vadd.f32 %v852, %v2494
  %v2496 = vpop.f32.mrb[0].mxu0
  %v2497 = vadd.f32 %v857, %v2496
  %v2498 = vpop.f32.mrb[0].mxu0
  %v2499 = vadd.f32 %v857, %v2498
  %2500 = vmatprep.mubr.bf16.mxu0 %v1918
  %2501 = vmatmul.mubr.bf16.gmra.mrb[0].mxu0 %v1543
  %v2502 = vpop.f32.mrb[0].mxu0
  %v2503 = vadd.f32 %v862, %v2502
  %v2504 = vpop.f32.mrb[0].mxu0
  %v2505 = vadd.f32 %v862, %v2504
  %v2506 = vpop.f32.mrb[0].mxu0
  %v2507 = vadd.f32 %v867, %v2506
  %v2508 = vpop.f32.mrb[0].mxu0
  %v2509 = vadd.f32 %v867, %v2508
  %2510 = vmatprep.mubr.bf16.mxu0 %v1921
  %2511 = vmatmul.mubr.bf16.gmra.mrb[0].mxu0 %v1545
  %v2512 = vpop.f32.mrb[0].mxu0
  %v2513 = vadd.f32 %v872, %v2512
  %v2514 = vpop.f32.mrb[0].mxu0
  %v2515 = vadd.f32 %v872, %v2514
  %v2516 = vpop.f32.mrb[0].mxu0
  %v2517 = vadd.f32 %v877, %v2516
  %v2518 = vpop.f32.mrb[0].mxu0
  %v2519 = vadd.f32 %v877, %v2518
  %2520 = vmatprep.mubr.bf16.mxu0 %v1924
  %2521 = vmatmul.mubr.bf16.gmra.mrb[0].mxu0 %v1547
  %v2522 = vpop.f32.mrb[0].mxu0
  %v2523 = vadd.f32 %v882, %v2522
  %v2524 = vpop.f32.mrb[0].mxu0
  %v2525 = vadd.f32 %v882, %v2524
  %v2526 = vpop.f32.mrb[0].mxu0
  %v2527 = vadd.f32 %v887, %v2526
  %v2528 = vpop.f32.mrb[0].mxu0
  %v2529 = vadd.f32 %v887, %v2528
  %2530 = vmatprep.mubr.bf16.mxu0 %v1927
  %2531 = vmatmul.mubr.bf16.gmra.mrb[0].mxu0 %v1549
  %v2532 = vpop.f32.mrb[0].mxu0
  %v2533 = vadd.f32 %v892, %v2532
  %v2534 = vpop.f32.mrb[0].mxu0
  %v2535 = vadd.f32 %v892, %v2534
  %v2536 = vpop.f32.mrb[0].mxu0
  %v2537 = vadd.f32 %v897, %v2536
  %v2538 = vpop.f32.mrb[0].mxu0
  %v2539 = vadd.f32 %v897, %v2538
  %2540 = vmatprep.mubr.bf16.mxu0 %v1930
  %2541 = vmatmul.mubr.bf16.gmra.mrb[0].mxu0 %v1551
  %v2542 = vpop.f32.mrb[0].mxu0
  %v2543 = vadd.f32 %v902, %v2542
  %v2544 = vpop.f32.mrb[0].mxu0
  %v2545 = vadd.f32 %v902, %v2544
  %v2546 = vpop.f32.mrb[0].mxu0
  %v2547 = vadd.f32 %v907, %v2546
  %v2548 = vpop.f32.mrb[0].mxu0
  %v2549 = vadd.f32 %v907, %v2548
  %2550 = vmatprep.mubr.bf16.mxu0 %v1933
  %2551 = vmatmul.mubr.bf16.gmra.mrb[0].mxu0 %v1553
  %v2552 = vpop.f32.mrb[0].mxu0
  %v2553 = vadd.f32 %v912, %v2552
  %v2554 = vpop.f32.mrb[0].mxu0
  %v2555 = vadd.f32 %v912, %v2554
  %v2556 = vpop.f32.mrb[0].mxu0
  %v2557 = vadd.f32 %v917, %v2556
  %v2558 = vpop.f32.mrb[0].mxu0
  %v2559 = vadd.f32 %v917, %v2558
  %2560 = vmatprep.mubr.bf16.mxu0 %v1936
  %2561 = vmatmul.mubr.bf16.gmra.mrb[0].mxu0 %v1555
  %v2562 = vpop.f32.mrb[0].mxu0
  %v2563 = vadd.f32 %v922, %v2562
  %v2564 = vpop.f32.mrb[0].mxu0
  %v2565 = vadd.f32 %v922, %v2564
  %v2566 = vpop.f32.mrb[0].mxu0
  %v2567 = vadd.f32 %v927, %v2566
  %v2568 = vpop.f32.mrb[0].mxu0
  %v2569 = vadd.f32 %v927, %v2568
  %2570 = vdwg.mxu0
  %v2571 = vmax.f32 %v1973, 0.0
  %v2572 = vmax.f32 %v1975, 0.0
  %v2573 = vmax.f32 %v1977, 0.0
  %v2574 = vmax.f32 %v1979, 0.0
  %v2575 = vmax.f32 %v1983, 0.0
  %v2576 = vmax.f32 %v1985, 0.0
  %v2577 = vmax.f32 %v1987, 0.0
  %v2578 = vmax.f32 %v1989, 0.0
  %v2579 = vmax.f32 %v1993, 0.0
  %v2580 = vmax.f32 %v1995, 0.0
  %v2581 = vmax.f32 %v1997, 0.0
  %v2582 = vmax.f32 %v1999, 0.0
  %v2583 = vmax.f32 %v2003, 0.0
  %v2584 = vmax.f32 %v2005, 0.0
  %v2585 = vmax.f32 %v2007, 0.0
  %v2586 = vmax.f32 %v2009, 0.0
  %v2587 = vmax.f32 %v2013, 0.0
  %v2588 = vmax.f32 %v2015, 0.0
  %v2589 = vmax.f32 %v2017, 0.0
  %v2590 = vmax.f32 %v2019, 0.0
  %v2591 = vmax.f32 %v2023, 0.0
  %v2592 = vmax.f32 %v2025, 0.0
  %v2593 = vmax.f32 %v2027, 0.0
  %v2594 = vmax.f32 %v2029, 0.0
  %v2595 = vmax.f32 %v2033, 0.0
  %v2596 = vmax.f32 %v2035, 0.0
  %v2597 = vmax.f32 %v2037, 0.0
  %v2598 = vmax.f32 %v2039, 0.0
  %v2599 = vmax.f32 %v2043, 0.0
  %v2600 = vmax.f32 %v2045, 0.0
  %v2601 = vmax.f32 %v2047, 0.0
  %v2602 = vmax.f32 %v2049, 0.0
  %v2603 = vmax.f32 %v2053, 0.0
  %v2604 = vmax.f32 %v2055, 0.0
  %v2605 = vmax.f32 %v2057, 0.0
  %v2606 = vmax.f32 %v2059, 0.0
  %v2607 = vmax.f32 %v2063, 0.0
  %v2608 = vmax.f32 %v2065, 0.0
  %v2609 = vmax.f32 %v2067, 0.0
  %v2610 = vmax.f32 %v2069, 0.0
  %v2611 = vmax.f32 %v2073, 0.0
  %v2612 = vmax.f32 %v2075, 0.0
  %v2613 = vmax.f32 %v2077, 0.0
  %v2614 = vmax.f32 %v2079, 0.0
  %v2615 = vmax.f32 %v2083, 0.0
  %v2616 = vmax.f32 %v2085, 0.0
  %v2617 = vmax.f32 %v2087, 0.0
  %v2618 = vmax.f32 %v2089, 0.0
  %v2619 = vmax.f32 %v2093, 0.0
  %v2620 = vmax.f32 %v2095, 0.0
  %v2621 = vmax.f32 %v2097, 0.0
  %v2622 = vmax.f32 %v2099, 0.0
  %v2623 = vmax.f32 %v2103, 0.0
  %v2624 = vmax.f32 %v2105, 0.0
  %v2625 = vmax.f32 %v2107, 0.0
  %v2626 = vmax.f32 %v2109, 0.0
  %v2627 = vmax.f32 %v2113, 0.0
  %v2628 = vmax.f32 %v2115, 0.0
  %v2629 = vmax.f32 %v2117, 0.0
  %v2630 = vmax.f32 %v2119, 0.0
  %v2631 = vmax.f32 %v2123, 0.0
  %v2632 = vmax.f32 %v2125, 0.0
  %v2633 = vmax.f32 %v2127, 0.0
  %v2634 = vmax.f32 %v2129, 0.0
  %v2635 = vmax.f32 %v2133, 0.0
  %v2636 = vmax.f32 %v2135, 0.0
  %v2637 = vmax.f32 %v2137, 0.0
  %v2638 = vmax.f32 %v2139, 0.0
  %v2639 = vmax.f32 %v2143, 0.0
  %v2640 = vmax.f32 %v2145, 0.0
  %v2641 = vmax.f32 %v2147, 0.0
  %v2642 = vmax.f32 %v2149, 0.0
  %v2643 = vmax.f32 %v2153, 0.0
  %v2644 = vmax.f32 %v2155, 0.0
  %v2645 = vmax.f32 %v2157, 0.0
  %v2646 = vmax.f32 %v2159, 0.0
  %v2647 = vmax.f32 %v2163, 0.0
  %v2648 = vmax.f32 %v2165, 0.0
  %v2649 = vmax.f32 %v2167, 0.0
  %v2650 = vmax.f32 %v2169, 0.0
  %v2651 = vmax.f32 %v2173, 0.0
  %v2652 = vmax.f32 %v2175, 0.0
  %v2653 = vmax.f32 %v2177, 0.0
  %v2654 = vmax.f32 %v2179, 0.0
  %v2655 = vmax.f32 %v2183, 0.0
  %v2656 = vmax.f32 %v2185, 0.0
  %v2657 = vmax.f32 %v2187, 0.0
  %v2658 = vmax.f32 %v2189, 0.0
  %v2659 = vmax.f32 %v2193, 0.0
  %v2660 = vmax.f32 %v2195, 0.0
  %v2661 = vmax.f32 %v2197, 0.0
  %v2662 = vmax.f32 %v2199, 0.0
  %v2663 = vmax.f32 %v2203, 0.0
  %v2664 = vmax.f32 %v2205, 0.0
  %v2665 = vmax.f32 %v2207, 0.0
  %v2666 = vmax.f32 %v2209, 0.0
  %v2667 = vmax.f32 %v2213, 0.0
  %v2668 = vmax.f32 %v2215, 0.0
  %v2669 = vmax.f32 %v2217, 0.0
  %v2670 = vmax.f32 %v2219, 0.0
  %v2671 = vmax.f32 %v2223, 0.0
  %v2672 = vmax.f32 %v2225, 0.0
  %v2673 = vmax.f32 %v2227, 0.0
  %v2674 = vmax.f32 %v2229, 0.0
  %v2675 = vmax.f32 %v2233, 0.0
  %v2676 = vmax.f32 %v2235, 0.0
  %v2677 = vmax.f32 %v2237, 0.0
  %v2678 = vmax.f32 %v2239, 0.0
  %v2679 = vmax.f32 %v2243, 0.0
  %v2680 = vmax.f32 %v2245, 0.0
  %v2681 = vmax.f32 %v2247, 0.0
  %v2682 = vmax.f32 %v2249, 0.0
  %v2683 = vmax.f32 %v2253, 0.0
  %v2684 = vmax.f32 %v2255, 0.0
  %v2685 = vmax.f32 %v2257, 0.0
  %v2686 = vmax.f32 %v2259, 0.0
  %v2687 = vmax.f32 %v2263, 0.0
  %v2688 = vmax.f32 %v2265, 0.0
  %v2689 = vmax.f32 %v2267, 0.0
  %v2690 = vmax.f32 %v2269, 0.0
  %v2691 = vmax.f32 %v2273, 0.0
  %v2692 = vmax.f32 %v2275, 0.0
  %v2693 = vmax.f32 %v2277, 0.0
  %v2694 = vmax.f32 %v2279, 0.0
  %v2695 = vmax.f32 %v2283, 0.0
  %v2696 = vmax.f32 %v2285, 0.0
  %v2697 = vmax.f32 %v2287, 0.0
  %v2698 = vmax.f32 %v2289, 0.0
  %v2699 = vmax.f32 %v2293, 0.0
  %v2700 = vmax.f32 %v2295, 0.0
  %v2701 = vmax.f32 %v2297, 0.0
  %v2702 = vmax.f32 %v2299, 0.0
  %v2703 = vmax.f32 %v2303, 0.0
  %v2704 = vmax.f32 %v2305, 0.0
  %v2705 = vmax.f32 %v2307, 0.0
  %v2706 = vmax.f32 %v2309, 0.0
  %v2707 = vmax.f32 %v2313, 0.0
  %v2708 = vmax.f32 %v2315, 0.0
  %v2709 = vmax.f32 %v2317, 0.0
  %v2710 = vmax.f32 %v2319, 0.0
  %v2711 = vmax.f32 %v2323, 0.0
  %v2712 = vmax.f32 %v2325, 0.0
  %v2713 = vmax.f32 %v2327, 0.0
  %v2714 = vmax.f32 %v2329, 0.0
  %v2715 = vmax.f32 %v2333, 0.0
  %v2716 = vmax.f32 %v2335, 0.0
  %v2717 = vmax.f32 %v2337, 0.0
  %v2718 = vmax.f32 %v2339, 0.0
  %v2719 = vmax.f32 %v2343, 0.0
  %v2720 = vmax.f32 %v2345, 0.0
  %v2721 = vmax.f32 %v2347, 0.0
  %v2722 = vmax.f32 %v2349, 0.0
  %v2723 = vmax.f32 %v2353, 0.0
  %v2724 = vmax.f32 %v2355, 0.0
  %v2725 = vmax.f32 %v2357, 0.0
  %v2726 = vmax.f32 %v2359, 0.0
  %v2727 = vmax.f32 %v2363, 0.0
  %v2728 = vmax.f32 %v2365, 0.0
  %v2729 = vmax.f32 %v2367, 0.0
  %v2730 = vmax.f32 %v2369, 0.0
  %v2731 = vmax.f32 %v2373, 0.0
  %v2732 = vmax.f32 %v2375, 0.0
  %v2733 = vmax.f32 %v2377, 0.0
  %v2734 = vmax.f32 %v2379, 0.0
  %v2735 = vmax.f32 %v2383, 0.0
  %v2736 = vmax.f32 %v2385, 0.0
  %v2737 = vmax.f32 %v2387, 0.0
  %v2738 = vmax.f32 %v2389, 0.0
  %v2739 = vmax.f32 %v2393, 0.0
  %v2740 = vmax.f32 %v2395, 0.0
  %v2741 = vmax.f32 %v2397, 0.0
  %v2742 = vmax.f32 %v2399, 0.0
  %v2743 = vmax.f32 %v2403, 0.0
  %v2744 = vmax.f32 %v2405, 0.0
  %v2745 = vmax.f32 %v2407, 0.0
  %v2746 = vmax.f32 %v2409, 0.0
  %v2747 = vmax.f32 %v2413, 0.0
  %v2748 = vmax.f32 %v2415, 0.0
  %v2749 = vmax.f32 %v2417, 0.0
  %v2750 = vmax.f32 %v2419, 0.0
  %v2751 = vmax.f32 %v2423, 0.0
  %v2752 = vmax.f32 %v2425, 0.0
  %v2753 = vmax.f32 %v2427, 0.0
  %v2754 = vmax.f32 %v2429, 0.0
  %v2755 = vmax.f32 %v2433, 0.0
  %v2756 = vmax.f32 %v2435, 0.0
  %v2757 = vmax.f32 %v2437, 0.0
  %v2758 = vmax.f32 %v2439, 0.0
  %v2759 = vmax.f32 %v2443, 0.0
  %v2760 = vmax.f32 %v2445, 0.0
  %v2761 = vmax.f32 %v2447, 0.0
  %v2762 = vmax.f32 %v2449, 0.0
  %v2763 = vmax.f32 %v2453, 0.0
  %v2764 = vmax.f32 %v2455, 0.0
  %v2765 = vmax.f32 %v2457, 0.0
  %v2766 = vmax.f32 %v2459, 0.0
  %v2767 = vmax.f32 %v2463, 0.0
  %v2768 = vmax.f32 %v2465, 0.0
  %v2769 = vmax.f32 %v2467, 0.0
  %v2770 = vmax.f32 %v2469, 0.0
  %v2771 = vmax.f32 %v2473, 0.0
  %v2772 = vmax.f32 %v2475, 0.0
  %v2773 = vmax.f32 %v2477, 0.0
  %v2774 = vmax.f32 %v2479, 0.0
  %v2775 = vmax.f32 %v2483, 0.0
  %v2776 = vmax.f32 %v2485, 0.0
  %v2777 = vmax.f32 %v2487, 0.0
  %v2778 = vmax.f32 %v2489, 0.0
  %v2779 = vmax.f32 %v2493, 0.0
  %v2780 = vmax.f32 %v2495, 0.0
  %v2781 = vmax.f32 %v2497, 0.0
  %v2782 = vmax.f32 %v2499, 0.0
  %v2783 = vmax.f32 %v2503, 0.0
  %v2784 = vmax.f32 %v2505, 0.0
  %v2785 = vmax.f32 %v2507, 0.0
  %v2786 = vmax.f32 %v2509, 0.0
  %v2787 = vmax.f32 %v2513, 0.0
  %v2788 = vmax.f32 %v2515, 0.0
  %v2789 = vmax.f32 %v2517, 0.0
  %v2790 = vmax.f32 %v2519, 0.0
  %v2791 = vmax.f32 %v2523, 0.0
  %v2792 = vmax.f32 %v2525, 0.0
  %v2793 = vmax.f32 %v2527, 0.0
  %v2794 = vmax.f32 %v2529, 0.0
  %v2795 = vmax.f32 %v2533, 0.0
  %v2796 = vmax.f32 %v2535, 0.0
  %v2797 = vmax.f32 %v2537, 0.0
  %v2798 = vmax.f32 %v2539, 0.0
  %v2799 = vmax.f32 %v2543, 0.0
  %v2800 = vmax.f32 %v2545, 0.0
  %v2801 = vmax.f32 %v2547, 0.0
  %v2802 = vmax.f32 %v2549, 0.0
  %v2803 = vmax.f32 %v2553, 0.0
  %v2804 = vmax.f32 %v2555, 0.0
  %v2805 = vmax.f32 %v2557, 0.0
  %v2806 = vmax.f32 %v2559, 0.0
  %v2807 = vmax.f32 %v2563, 0.0
  %v2808 = vmax.f32 %v2565, 0.0
  %v2809 = vmax.f32 %v2567, 0.0
  %v2810 = vmax.f32 %v2569, 0.0
  %v2811 = vmax.f32 %v2571, %v2631
  %v2812 = vmax.f32 %v2572, %v2632
  %v2813 = vmax.f32 %v2573, %v2633
  %v2814 = vmax.f32 %v2574, %v2634
  %v2815 = vmax.f32 %v2575, %v2635
  %v2816 = vmax.f32 %v2576, %v2636
  %v2817 = vmax.f32 %v2577, %v2637
  %v2818 = vmax.f32 %v2578, %v2638
  %v2819 = vmax.f32 %v2579, %v2639
  %v2820 = vmax.f32 %v2580, %v2640
  %v2821 = vmax.f32 %v2581, %v2641
  %v2822 = vmax.f32 %v2582, %v2642
  %v2823 = vmax.f32 %v2583, %v2643
  %v2824 = vmax.f32 %v2584, %v2644
  %v2825 = vmax.f32 %v2585, %v2645
  %v2826 = vmax.f32 %v2586, %v2646
  %v2827 = vmax.f32 %v2587, %v2647
  %v2828 = vmax.f32 %v2588, %v2648
  %v2829 = vmax.f32 %v2589, %v2649
  %v2830 = vmax.f32 %v2590, %v2650
  %v2831 = vmax.f32 %v2591, %v2651
  %v2832 = vmax.f32 %v2592, %v2652
  %v2833 = vmax.f32 %v2593, %v2653
  %v2834 = vmax.f32 %v2594, %v2654
  %v2835 = vmax.f32 %v2595, %v2655
  %v2836 = vmax.f32 %v2596, %v2656
  %v2837 = vmax.f32 %v2597, %v2657
  %v2838 = vmax.f32 %v2598, %v2658
  %v2839 = vmax.f32 %v2599, %v2659
  %v2840 = vmax.f32 %v2600, %v2660
  %v2841 = vmax.f32 %v2601, %v2661
  %v2842 = vmax.f32 %v2602, %v2662
  %v2843 = vmax.f32 %v2603, %v2663
  %v2844 = vmax.f32 %v2604, %v2664
  %v2845 = vmax.f32 %v2605, %v2665
  %v2846 = vmax.f32 %v2606, %v2666
  %v2847 = vmax.f32 %v2607, %v2667
  %v2848 = vmax.f32 %v2608, %v2668
  %v2849 = vmax.f32 %v2609, %v2669
  %v2850 = vmax.f32 %v2610, %v2670
  %v2851 = vmax.f32 %v2611, %v2671
  %v2852 = vmax.f32 %v2612, %v2672
  %v2853 = vmax.f32 %v2613, %v2673
  %v2854 = vmax.f32 %v2614, %v2674
  %v2855 = vmax.f32 %v2615, %v2675
  %v2856 = vmax.f32 %v2616, %v2676
  %v2857 = vmax.f32 %v2617, %v2677
  %v2858 = vmax.f32 %v2618, %v2678
  %v2859 = vmax.f32 %v2619, %v2679
  %v2860 = vmax.f32 %v2620, %v2680
  %v2861 = vmax.f32 %v2621, %v2681
  %v2862 = vmax.f32 %v2622, %v2682
  %v2863 = vmax.f32 %v2623, %v2683
  %v2864 = vmax.f32 %v2624, %v2684
  %v2865 = vmax.f32 %v2625, %v2685
  %v2866 = vmax.f32 %v2626, %v2686
  %v2867 = vmax.f32 %v2627, %v2687
  %v2868 = vmax.f32 %v2628, %v2688
  %v2869 = vmax.f32 %v2629, %v2689
  %v2870 = vmax.f32 %v2630, %v2690
  %v2871 = vmax.f32 %v2691, %v2751
  %v2872 = vmax.f32 %v2692, %v2752
  %v2873 = vmax.f32 %v2693, %v2753
  %v2874 = vmax.f32 %v2694, %v2754
  %v2875 = vmax.f32 %v2695, %v2755
  %v2876 = vmax.f32 %v2696, %v2756
  %v2877 = vmax.f32 %v2697, %v2757
  %v2878 = vmax.f32 %v2698, %v2758
  %v2879 = vmax.f32 %v2699, %v2759
  %v2880 = vmax.f32 %v2700, %v2760
  %v2881 = vmax.f32 %v2701, %v2761
  %v2882 = vmax.f32 %v2702, %v2762
  %v2883 = vmax.f32 %v2703, %v2763
  %v2884 = vmax.f32 %v2704, %v2764
  %v2885 = vmax.f32 %v2705, %v2765
  %v2886 = vmax.f32 %v2706, %v2766
  %v2887 = vmax.f32 %v2707, %v2767
  %v2888 = vmax.f32 %v2708, %v2768
  %v2889 = vmax.f32 %v2709, %v2769
  %v2890 = vmax.f32 %v2710, %v2770
  %v2891 = vmax.f32 %v2711, %v2771
  %v2892 = vmax.f32 %v2712, %v2772
  %v2893 = vmax.f32 %v2713, %v2773
  %v2894 = vmax.f32 %v2714, %v2774
  %v2895 = vmax.f32 %v2715, %v2775
  %v2896 = vmax.f32 %v2716, %v2776
  %v2897 = vmax.f32 %v2717, %v2777
  %v2898 = vmax.f32 %v2718, %v2778
  %v2899 = vmax.f32 %v2719, %v2779
  %v2900 = vmax.f32 %v2720, %v2780
  %v2901 = vmax.f32 %v2721, %v2781
  %v2902 = vmax.f32 %v2722, %v2782
  %v2903 = vmax.f32 %v2723, %v2783
  %v2904 = vmax.f32 %v2724, %v2784
  %v2905 = vmax.f32 %v2725, %v2785
  %v2906 = vmax.f32 %v2726, %v2786
  %v2907 = vmax.f32 %v2727, %v2787
  %v2908 = vmax.f32 %v2728, %v2788
  %v2909 = vmax.f32 %v2729, %v2789
  %v2910 = vmax.f32 %v2730, %v2790
  %v2911 = vmax.f32 %v2731, %v2791
  %v2912 = vmax.f32 %v2732, %v2792
  %v2913 = vmax.f32 %v2733, %v2793
  %v2914 = vmax.f32 %v2734, %v2794
  %v2915 = vmax.f32 %v2735, %v2795
  %v2916 = vmax.f32 %v2736, %v2796
  %v2917 = vmax.f32 %v2737, %v2797
  %v2918 = vmax.f32 %v2738, %v2798
  %v2919 = vmax.f32 %v2739, %v2799
  %v2920 = vmax.f32 %v2740, %v2800
  %v2921 = vmax.f32 %v2741, %v2801
  %v2922 = vmax.f32 %v2742, %v2802
  %v2923 = vmax.f32 %v2743, %v2803
  %v2924 = vmax.f32 %v2744, %v2804
  %v2925 = vmax.f32 %v2745, %v2805
  %v2926 = vmax.f32 %v2746, %v2806
  %v2927 = vmax.f32 %v2747, %v2807
  %v2928 = vmax.f32 %v2748, %v2808
  %v2929 = vmax.f32 %v2749, %v2809
  %v2930 = vmax.f32 %v2750, %v2810
  %v2931 = vmax.f32 %v2811, %v2871
  %v2932 = vmax.f32 %v2812, %v2872
  %v2933 = vmax.f32 %v2813, %v2873
  %v2934 = vmax.f32 %v2814, %v2874
  %v2935 = vmax.f32 %v2815, %v2875
  %v2936 = vmax.f32 %v2816, %v2876
  %v2937 = vmax.f32 %v2817, %v2877
  %v2938 = vmax.f32 %v2818, %v2878
  %v2939 = vmax.f32 %v2819, %v2879
  %v2940 = vmax.f32 %v2820, %v2880
  %v2941 = vmax.f32 %v2821, %v2881
  %v2942 = vmax.f32 %v2822, %v2882
  %v2943 = vmax.f32 %v2823, %v2883
  %v2944 = vmax.f32 %v2824, %v2884
  %v2945 = vmax.f32 %v2825, %v2885
  %v2946 = vmax.f32 %v2826, %v2886
  %v2947 = vmax.f32 %v2827, %v2887
  %v2948 = vmax.f32 %v2828, %v2888
  %v2949 = vmax.f32 %v2829, %v2889
  %v2950 = vmax.f32 %v2830, %v2890
  %v2951 = vmax.f32 %v2831, %v2891
  %v2952 = vmax.f32 %v2832, %v2892
  %v2953 = vmax.f32 %v2833, %v2893
  %v2954 = vmax.f32 %v2834, %v2894
  %v2955 = vmax.f32 %v2835, %v2895
  %v2956 = vmax.f32 %v2836, %v2896
  %v2957 = vmax.f32 %v2837, %v2897
  %v2958 = vmax.f32 %v2838, %v2898
  %v2959 = vmax.f32 %v2839, %v2899
  %v2960 = vmax.f32 %v2840, %v2900
  %v2961 = vmax.f32 %v2841, %v2901
  %v2962 = vmax.f32 %v2842, %v2902
  %v2963 = vmax.f32 %v2843, %v2903
  %v2964 = vmax.f32 %v2844, %v2904
  %v2965 = vmax.f32 %v2845, %v2905
  %v2966 = vmax.f32 %v2846, %v2906
  %v2967 = vmax.f32 %v2847, %v2907
  %v2968 = vmax.f32 %v2848, %v2908
  %v2969 = vmax.f32 %v2849, %v2909
  %v2970 = vmax.f32 %v2850, %v2910
  %v2971 = vmax.f32 %v2851, %v2911
  %v2972 = vmax.f32 %v2852, %v2912
  %v2973 = vmax.f32 %v2853, %v2913
  %v2974 = vmax.f32 %v2854, %v2914
  %v2975 = vmax.f32 %v2855, %v2915
  %v2976 = vmax.f32 %v2856, %v2916
  %v2977 = vmax.f32 %v2857, %v2917
  %v2978 = vmax.f32 %v2858, %v2918
  %v2979 = vmax.f32 %v2859, %v2919
  %v2980 = vmax.f32 %v2860, %v2920
  %v2981 = vmax.f32 %v2861, %v2921
  %v2982 = vmax.f32 %v2862, %v2922
  %v2983 = vmax.f32 %v2863, %v2923
  %v2984 = vmax.f32 %v2864, %v2924
  %v2985 = vmax.f32 %v2865, %v2925
  %v2986 = vmax.f32 %v2866, %v2926
  %v2987 = vmax.f32 %v2867, %v2927
  %v2988 = vmax.f32 %v2868, %v2928
  %v2989 = vmax.f32 %v2869, %v2929
  %v2990 = vmax.f32 %v2870, %v2930
  %v2991 = vpack.c.bf16 %v2933, %v2931
  %v2992 = vpack.c.bf16 %v2934, %v2932
  %v2993 = vpack.c.bf16 %v2937, %v2935
  %v2994 = vpack.c.bf16 %v2938, %v2936
  %v2995 = vpack.c.bf16 %v2941, %v2939
  %v2996 = vpack.c.bf16 %v2942, %v2940
  %v2997 = vpack.c.bf16 %v2945, %v2943
  %v2998 = vpack.c.bf16 %v2946, %v2944
  %v2999 = vpack.c.bf16 %v2949, %v2947
  %v3000 = vpack.c.bf16 %v2950, %v2948
  %v3001 = vpack.c.bf16 %v2953, %v2951
  %v3002 = vpack.c.bf16 %v2954, %v2952
  %v3003 = vpack.c.bf16 %v2957, %v2955
  %v3004 = vpack.c.bf16 %v2958, %v2956
  %v3005 = vpack.c.bf16 %v2961, %v2959
  %v3006 = vpack.c.bf16 %v2962, %v2960
  %v3007 = vpack.c.bf16 %v2965, %v2963
  %v3008 = vpack.c.bf16 %v2966, %v2964
  %v3009 = vpack.c.bf16 %v2969, %v2967
  %v3010 = vpack.c.bf16 %v2970, %v2968
  %v3011 = vpack.c.bf16 %v2973, %v2971
  %v3012 = vpack.c.bf16 %v2974, %v2972
  %v3013 = vpack.c.bf16 %v2977, %v2975
  %v3014 = vpack.c.bf16 %v2978, %v2976
  %v3015 = vpack.c.bf16 %v2981, %v2979
  %v3016 = vpack.c.bf16 %v2982, %v2980
  %v3017 = vpack.c.bf16 %v2985, %v2983
  %v3018 = vpack.c.bf16 %v2986, %v2984
  %v3019 = vpack.c.bf16 %v2989, %v2987
  %v3020 = vpack.c.bf16 %v2990, %v2988
  %3021 = vst [vmem:[#allocation2] sm:$0xff] %v2991
  %3022 = vst [vmem:[#allocation2 + $0x8] sm:$0xff] %v2992
  %3023 = vst [vmem:[#allocation2 + $0x10] sm:$0xff] %v2993
  %3024 = vst [vmem:[#allocation2 + $0x18] sm:$0xff] %v2994
  %3025 = vst [vmem:[#allocation2 + $0x20] sm:$0xff] %v2995
  %3026 = vst [vmem:[#allocation2 + $0x28] sm:$0xff] %v2996
  %3027 = vst [vmem:[#allocation2 + $0x30] sm:$0xff] %v2997
  %3028 = vst [vmem:[#allocation2 + $0x38] sm:$0xff] %v2998
  %3029 = vst [vmem:[#allocation2 + $0x40] sm:$0xff] %v2999
  %3030 = vst [vmem:[#allocation2 + $0x48] sm:$0xff] %v3000
  %3031 = vst [vmem:[#allocation2 + $0x50] sm:$0xff] %v3001
  %3032 = vst [vmem:[#allocation2 + $0x58] sm:$0xff] %v3002
  %3033 = vst [vmem:[#allocation2 + $0x60] sm:$0xff] %v3003
  %3034 = vst [vmem:[#allocation2 + $0x68] sm:$0xff] %v3004
  %3035 = vst [vmem:[#allocation2 + $0x70] sm:$0xff] %v3005
  %3036 = vst [vmem:[#allocation2 + $0x78] sm:$0xff] %v3006
  %3037 = vst [vmem:[#allocation2 + $0x80] sm:$0xff] %v3007
  %3038 = vst [vmem:[#allocation2 + $0x88] sm:$0xff] %v3008
  %3039 = vst [vmem:[#allocation2 + $0x90] sm:$0xff] %v3009
  %3040 = vst [vmem:[#allocation2 + $0x98] sm:$0xff] %v3010
  %3041 = vst [vmem:[#allocation2 + $0xa0] sm:$0xff] %v3011
  %3042 = vst [vmem:[#allocation2 + $0xa8] sm:$0xff] %v3012
  %3043 = vst [vmem:[#allocation2 + $0xb0] sm:$0xff] %v3013
  %3044 = vst [vmem:[#allocation2 + $0xb8] sm:$0xff] %v3014
  %3045 = vst [vmem:[#allocation2 + $0xc0] sm:$0xff] %v3015
  %3046 = vst [vmem:[#allocation2 + $0xc8] sm:$0xff] %v3016
  %3047 = vst [vmem:[#allocation2 + $0xd0] sm:$0xff] %v3017
  %3048 = vst [vmem:[#allocation2 + $0xd8] sm:$0xff] %v3018
  %3049 = vst [vmem:[#allocation2 + $0xe0] sm:$0xff] %v3019
  %3050 = vst [vmem:[#allocation2 + $0xe8] sm:$0xff] %v3020
  %v3051 = vld [vmem:[%s0 + $0x70] sm:$0xff]
  %v3052 = vld [vmem:[%s0 + $0x78] sm:$0xff]
  %v3053 = vld [vmem:[%s0 + $0x80] sm:$0xff]
  %v3054 = vld [vmem:[%s0 + $0x88] sm:$0xff]
  %v3055 = vld [vmem:[%s0 + $0x90] sm:$0xff]
  %v3056 = vld [vmem:[%s0 + $0x98] sm:$0xff]
  %v3057 = vld [vmem:[%s0 + $0xa0] sm:$0xff]
  %v3058 = vld [vmem:[%s0 + $0xa8] sm:$0xff]
  %v3059 = vld [vmem:[%s0 + $0xb0] sm:$0xff]
  %v3060 = vld [vmem:[%s0 + $0xb8] sm:$0xff]
  %v3061 = vld [vmem:[%s0 + $0xc0] sm:$0xff]
  %v3062 = vld [vmem:[%s0 + $0xc8] sm:$0xff]
  %v3063 = vld [vmem:[%s0 + $0xd0] sm:$0xff]
  %v3064 = vld [vmem:[%s0 + $0xd8] sm:$0xff]
  %v3065 = vld [vmem:[%s0 + $0xe0] sm:$0xff]
  %v3066 = vld [vmem:[%s0 + $0xe8] sm:$0xff]
  %v3067 = vld [vmem:[%s0 + $0xf0] sm:$0xff]
  %v3068 = vld [vmem:[%s0 + $0xf8] sm:$0xff]
  %v3069 = vld [vmem:[%s0 + $0x100] sm:$0xff]
  %v3070 = vld [vmem:[%s0 + $0x108] sm:$0xff]
  %v3071 = vld [vmem:[%s0 + $0x110] sm:$0xff]
  %v3072 = vld [vmem:[%s0 + $0x118] sm:$0xff]
  %v3073 = vld [vmem:[%s0 + $0x120] sm:$0xff]
  %v3074 = vld [vmem:[%s0 + $0x128] sm:$0xff]
  %v3075 = vld [vmem:[%s0 + $0x130] sm:$0xff]
  %v3076 = vld [vmem:[%s0 + $0x138] sm:$0xff]
  %v3077 = vld [vmem:[%s0 + $0x140] sm:$0xff]
  %v3078 = vld [vmem:[%s0 + $0x148] sm:$0xff]
  %v3107 = vunpack.c.l.b16 %v3051
  %v3108 = vunpack.c.h.b16 %v3051
  %v3109 = vunpack.c.l.b16 %v3052
  %v3110 = vunpack.c.h.b16 %v3052
  %v3111 = vunpack.c.l.b16 %v3053
  %v3112 = vunpack.c.h.b16 %v3053
  %v3113 = vunpack.c.l.b16 %v3054
  %v3114 = vunpack.c.h.b16 %v3054
  %v3115 = vunpack.c.l.b16 %v3055
  %v3116 = vunpack.c.h.b16 %v3055
  %v3117 = vunpack.c.l.b16 %v3056
  %v3118 = vunpack.c.h.b16 %v3056
  %v3119 = vunpack.c.l.b16 %v3057
  %v3120 = vunpack.c.h.b16 %v3057
  %v3121 = vunpack.c.l.b16 %v3058
  %v3122 = vunpack.c.h.b16 %v3058
  %v3123 = vunpack.c.l.b16 %v3059
  %v3124 = vunpack.c.h.b16 %v3059
  %v3125 = vunpack.c.l.b16 %v3060
  %v3126 = vunpack.c.h.b16 %v3060
  %v3127 = vunpack.c.l.b16 %v3061
  %v3128 = vunpack.c.h.b16 %v3061
  %v3129 = vunpack.c.l.b16 %v3062
  %v3130 = vunpack.c.h.b16 %v3062
  %v3131 = vunpack.c.l.b16 %v3063
  %v3132 = vunpack.c.h.b16 %v3063
  %v3133 = vunpack.c.l.b16 %v3064
  %v3134 = vunpack.c.h.b16 %v3064
  %v3135 = vunpack.c.l.b16 %v3065
  %v3136 = vunpack.c.h.b16 %v3065
  %v3137 = vunpack.c.l.b16 %v3066
  %v3138 = vunpack.c.h.b16 %v3066
  %v3139 = vunpack.c.l.b16 %v3067
  %v3140 = vunpack.c.h.b16 %v3067
  %v3141 = vunpack.c.l.b16 %v3068
  %v3142 = vunpack.c.h.b16 %v3068
  %v3143 = vunpack.c.l.b16 %v3069
  %v3144 = vunpack.c.h.b16 %v3069
  %v3145 = vunpack.c.l.b16 %v3070
  %v3146 = vunpack.c.h.b16 %v3070
  %v3147 = vunpack.c.l.b16 %v3071
  %v3148 = vunpack.c.h.b16 %v3071
  %v3149 = vunpack.c.l.b16 %v3072
  %v3150 = vunpack.c.h.b16 %v3072
  %v3151 = vunpack.c.l.b16 %v3073
  %v3152 = vunpack.c.h.b16 %v3073
  %v3153 = vunpack.c.l.b16 %v3074
  %v3154 = vunpack.c.h.b16 %v3074
  %v3155 = vunpack.c.l.b16 %v3075
  %v3156 = vunpack.c.h.b16 %v3075
  %v3157 = vunpack.c.l.b16 %v3076
  %v3158 = vunpack.c.h.b16 %v3076
  %v3159 = vunpack.c.l.b16 %v3077
  %v3160 = vunpack.c.h.b16 %v3077
  %v3161 = vunpack.c.l.b16 %v3078
  %v3162 = vunpack.c.h.b16 %v3078
  %v3163 = vpack.c.b16 %v3109, %v3107
  %v3164 = vpack.c.b16 %v3110, %v3108
  %v3165 = vpack.c.b16 %v3113, %v3111
  %v3166 = vpack.c.b16 %v3114, %v3112
  %v3167 = vpack.c.b16 %v3117, %v3115
  %v3168 = vpack.c.b16 %v3118, %v3116
  %v3169 = vpack.c.b16 %v3121, %v3119
  %v3170 = vpack.c.b16 %v3122, %v3120
  %v3171 = vpack.c.b16 %v3125, %v3123
  %v3172 = vpack.c.b16 %v3126, %v3124
  %v3173 = vpack.c.b16 %v3129, %v3127
  %v3174 = vpack.c.b16 %v3130, %v3128
  %v3175 = vpack.c.b16 %v3133, %v3131
  %v3176 = vpack.c.b16 %v3134, %v3132
  %v3177 = vpack.c.b16 %v3137, %v3135
  %v3178 = vpack.c.b16 %v3138, %v3136
  %v3179 = vpack.c.b16 %v3141, %v3139
  %v3180 = vpack.c.b16 %v3142, %v3140
  %v3181 = vpack.c.b16 %v3145, %v3143
  %v3182 = vpack.c.b16 %v3146, %v3144
  %v3183 = vpack.c.b16 %v3149, %v3147
  %v3184 = vpack.c.b16 %v3150, %v3148
  %v3185 = vpack.c.b16 %v3153, %v3151
  %v3186 = vpack.c.b16 %v3154, %v3152
  %v3187 = vpack.c.b16 %v3157, %v3155
  %v3188 = vpack.c.b16 %v3158, %v3156
  %v3189 = vpack.c.b16 %v3161, %v3159
  %v3190 = vpack.c.b16 %v3162, %v3160
  %3219 = vmatprep.subr.bf16.mxu0 %v3164
  %3220 = vmatpush1.bf16.msra.mxu0 %v3163
  %3221 = vmatprep.subr.bf16.mxu0 %v3166
  %3222 = vmatpush1.bf16.msra.mxu0 %v3165
  %3223 = vmatprep.subr.bf16.mxu0 %v3168
  %3224 = vmatpush1.bf16.msra.mxu0 %v3167
  %3225 = vmatprep.subr.bf16.mxu0 %v3170
  %3226 = vmatpush1.bf16.msra.mxu0 %v3169
  %3227 = vmatprep.subr.bf16.mxu0 %v3172
  %3228 = vmatpush1.bf16.msra.mxu0 %v3171
  %3229 = vmatprep.subr.bf16.mxu0 %v3174
  %3230 = vmatpush1.bf16.msra.mxu0 %v3173
  %3231 = vmatprep.subr.bf16.mxu0 %v3176
  %3232 = vmatpush1.bf16.msra.mxu0 %v3175
  %3233 = vmatprep.subr.bf16.mxu0 %v3178
  %3234 = vmatpush1.bf16.msra.mxu0 %v3177
  %3235 = vmatprep.subr.bf16.mxu0 %v3180
  %3236 = vmatpush1.bf16.msra.mxu0 %v3179
  %3237 = vmatprep.subr.bf16.mxu0 %v3182
  %3238 = vmatpush1.bf16.msra.mxu0 %v3181
  %3239 = vmatprep.subr.bf16.mxu0 %v3184
  %3240 = vmatpush1.bf16.msra.mxu0 %v3183
  %3241 = vmatprep.subr.bf16.mxu0 %v3186
  %3242 = vmatpush1.bf16.msra.mxu0 %v3185
  %3243 = vmatprep.subr.bf16.mxu0 %v3188
  %3244 = vmatpush1.bf16.msra.mxu0 %v3187
  %3245 = vmatprep.subr.bf16.mxu0 %v3190
  %3246 = vmatpush1.bf16.msra.mxu0 %v3189
  %3247 = vmatprep.subr.bf16.mxu0 0
  %3248 = vmatpush1.bf16.msra.mxu0 0
  %3249 = vmatprep.subr.bf16.mxu0 0
  %3250 = vmatpush1.bf16.msra.mxu0 0
  %3251 = vmatprep.mubr.bf16.mxu0 %v1759
  %3252 = vmatmul.mubr.bf16.gmra.mrb[0].mxu0 %v1437
  %v3253 = vpop.f32.mrb[0].mxu0
  %v3254 = vadd.f32 %v332, %v3253
  %v3255 = vpop.f32.mrb[0].mxu0
  %v3256 = vadd.f32 %v332, %v3255
  %v3257 = vpop.f32.mrb[0].mxu0
  %v3258 = vadd.f32 %v337, %v3257
  %v3259 = vpop.f32.mrb[0].mxu0
  %v3260 = vadd.f32 %v337, %v3259
  %3261 = vmatprep.mubr.bf16.mxu0 %v1762
  %3262 = vmatmul.mubr.bf16.gmra.mrb[0].mxu0 %v1439
  %v3263 = vpop.f32.mrb[0].mxu0
  %v3264 = vadd.f32 %v342, %v3263
  %v3265 = vpop.f32.mrb[0].mxu0
  %v3266 = vadd.f32 %v342, %v3265
  %v3267 = vpop.f32.mrb[0].mxu0
  %v3268 = vadd.f32 %v347, %v3267
  %v3269 = vpop.f32.mrb[0].mxu0
  %v3270 = vadd.f32 %v347, %v3269
  %3271 = vmatprep.mubr.bf16.mxu0 %v1765
  %3272 = vmatmul.mubr.bf16.gmra.mrb[0].mxu0 %v1441
  %v3273 = vpop.f32.mrb[0].mxu0
  %v3274 = vadd.f32 %v352, %v3273
  %v3275 = vpop.f32.mrb[0].mxu0
  %v3276 = vadd.f32 %v352, %v3275
  %v3277 = vpop.f32.mrb[0].mxu0
  %v3278 = vadd.f32 %v357, %v3277
  %v3279 = vpop.f32.mrb[0].mxu0
  %v3280 = vadd.f32 %v357, %v3279
  %3281 = vmatprep.mubr.bf16.mxu0 %v1768
  %3282 = vmatmul.mubr.bf16.gmra.mrb[0].mxu0 %v1443
  %v3283 = vpop.f32.mrb[0].mxu0
  %v3284 = vadd.f32 %v362, %v3283
  %v3285 = vpop.f32.mrb[0].mxu0
  %v3286 = vadd.f32 %v362, %v3285
  %v3287 = vpop.f32.mrb[0].mxu0
  %v3288 = vadd.f32 %v367, %v3287
  %v3289 = vpop.f32.mrb[0].mxu0
  %v3290 = vadd.f32 %v367, %v3289
  %3291 = vmatprep.mubr.bf16.mxu0 %v1771
  %3292 = vmatmul.mubr.bf16.gmra.mrb[0].mxu0 %v1445
  %v3293 = vpop.f32.mrb[0].mxu0
  %v3294 = vadd.f32 %v372, %v3293
  %v3295 = vpop.f32.mrb[0].mxu0
  %v3296 = vadd.f32 %v372, %v3295
  %v3297 = vpop.f32.mrb[0].mxu0
  %v3298 = vadd.f32 %v377, %v3297
  %v3299 = vpop.f32.mrb[0].mxu0
  %v3300 = vadd.f32 %v377, %v3299
  %3301 = vmatprep.mubr.bf16.mxu0 %v1774
  %3302 = vmatmul.mubr.bf16.gmra.mrb[0].mxu0 %v1447
  %v3303 = vpop.f32.mrb[0].mxu0
  %v3304 = vadd.f32 %v382, %v3303
  %v3305 = vpop.f32.mrb[0].mxu0
  %v3306 = vadd.f32 %v382, %v3305
  %v3307 = vpop.f32.mrb[0].mxu0
  %v3308 = vadd.f32 %v387, %v3307
  %v3309 = vpop.f32.mrb[0].mxu0
  %v3310 = vadd.f32 %v387, %v3309
  %3311 = vmatprep.mubr.bf16.mxu0 %v1777
  %3312 = vmatmul.mubr.bf16.gmra.mrb[0].mxu0 %v1449
  %v3313 = vpop.f32.mrb[0].mxu0
  %v3314 = vadd.f32 %v392, %v3313
  %v3315 = vpop.f32.mrb[0].mxu0
  %v3316 = vadd.f32 %v392, %v3315
  %v3317 = vpop.f32.mrb[0].mxu0
  %v3318 = vadd.f32 %v397, %v3317
  %v3319 = vpop.f32.mrb[0].mxu0
  %v3320 = vadd.f32 %v397, %v3319
  %3321 = vmatprep.mubr.bf16.mxu0 %v1780
  %3322 = vmatmul.mubr.bf16.gmra.mrb[0].mxu0 %v1451
  %v3323 = vpop.f32.mrb[0].mxu0
  %v3324 = vadd.f32 %v402, %v3323
  %v3325 = vpop.f32.mrb[0].mxu0
  %v3326 = vadd.f32 %v402, %v3325
  %v3327 = vpop.f32.mrb[0].mxu0
  %v3328 = vadd.f32 %v407, %v3327
  %v3329 = vpop.f32.mrb[0].mxu0
  %v3330 = vadd.f32 %v407, %v3329
  %3331 = vmatprep.mubr.bf16.mxu0 %v1783
  %3332 = vmatmul.mubr.bf16.gmra.mrb[0].mxu0 %v1453
  %v3333 = vpop.f32.mrb[0].mxu0
  %v3334 = vadd.f32 %v412, %v3333
  %v3335 = vpop.f32.mrb[0].mxu0
  %v3336 = vadd.f32 %v412, %v3335
  %v3337 = vpop.f32.mrb[0].mxu0
  %v3338 = vadd.f32 %v417, %v3337
  %v3339 = vpop.f32.mrb[0].mxu0
  %v3340 = vadd.f32 %v417, %v3339
  %3341 = vmatprep.mubr.bf16.mxu0 %v1786
  %3342 = vmatmul.mubr.bf16.gmra.mrb[0].mxu0 %v1455
  %v3343 = vpop.f32.mrb[0].mxu0
  %v3344 = vadd.f32 %v422, %v3343
  %v3345 = vpop.f32.mrb[0].mxu0
  %v3346 = vadd.f32 %v422, %v3345
  %v3347 = vpop.f32.mrb[0].mxu0
  %v3348 = vadd.f32 %v427, %v3347
  %v3349 = vpop.f32.mrb[0].mxu0
  %v3350 = vadd.f32 %v427, %v3349
  %3351 = vmatprep.mubr.bf16.mxu0 %v1789
  %3352 = vmatmul.mubr.bf16.gmra.mrb[0].mxu0 %v1457
  %v3353 = vpop.f32.mrb[0].mxu0
  %v3354 = vadd.f32 %v432, %v3353
  %v3355 = vpop.f32.mrb[0].mxu0
  %v3356 = vadd.f32 %v432, %v3355
  %v3357 = vpop.f32.mrb[0].mxu0
  %v3358 = vadd.f32 %v437, %v3357
  %v3359 = vpop.f32.mrb[0].mxu0
  %v3360 = vadd.f32 %v437, %v3359
  %3361 = vmatprep.mubr.bf16.mxu0 %v1792
  %3362 = vmatmul.mubr.bf16.gmra.mrb[0].mxu0 %v1459
  %v3363 = vpop.f32.mrb[0].mxu0
  %v3364 = vadd.f32 %v442, %v3363
  %v3365 = vpop.f32.mrb[0].mxu0
  %v3366 = vadd.f32 %v442, %v3365
  %v3367 = vpop.f32.mrb[0].mxu0
  %v3368 = vadd.f32 %v447, %v3367
  %v3369 = vpop.f32.mrb[0].mxu0
  %v3370 = vadd.f32 %v447, %v3369
  %3371 = vmatprep.mubr.bf16.mxu0 %v1795
  %3372 = vmatmul.mubr.bf16.gmra.mrb[0].mxu0 %v1461
  %v3373 = vpop.f32.mrb[0].mxu0
  %v3374 = vadd.f32 %v452, %v3373
  %v3375 = vpop.f32.mrb[0].mxu0
  %v3376 = vadd.f32 %v452, %v3375
  %v3377 = vpop.f32.mrb[0].mxu0
  %v3378 = vadd.f32 %v457, %v3377
  %v3379 = vpop.f32.mrb[0].mxu0
  %v3380 = vadd.f32 %v457, %v3379
  %3381 = vmatprep.mubr.bf16.mxu0 %v1798
  %3382 = vmatmul.mubr.bf16.gmra.mrb[0].mxu0 %v1463
  %v3383 = vpop.f32.mrb[0].mxu0
  %v3384 = vadd.f32 %v462, %v3383
  %v3385 = vpop.f32.mrb[0].mxu0
  %v3386 = vadd.f32 %v462, %v3385
  %v3387 = vpop.f32.mrb[0].mxu0
  %v3388 = vadd.f32 %v467, %v3387
  %v3389 = vpop.f32.mrb[0].mxu0
  %v3390 = vadd.f32 %v467, %v3389
  %3391 = vmatprep.mubr.bf16.mxu0 %v1801
  %3392 = vmatmul.mubr.bf16.gmra.mrb[0].mxu0 %v1465
  %v3393 = vpop.f32.mrb[0].mxu0
  %v3394 = vadd.f32 %v472, %v3393
  %v3395 = vpop.f32.mrb[0].mxu0
  %v3396 = vadd.f32 %v472, %v3395
  %v3397 = vpop.f32.mrb[0].mxu0
  %v3398 = vadd.f32 %v477, %v3397
  %v3399 = vpop.f32.mrb[0].mxu0
  %v3400 = vadd.f32 %v477, %v3399
  %3401 = vmatprep.mubr.bf16.mxu0 %v1804
  %3402 = vmatmul.mubr.bf16.gmra.mrb[0].mxu0 %v1467
  %v3403 = vpop.f32.mrb[0].mxu0
  %v3404 = vadd.f32 %v482, %v3403
  %v3405 = vpop.f32.mrb[0].mxu0
  %v3406 = vadd.f32 %v482, %v3405
  %v3407 = vpop.f32.mrb[0].mxu0
  %v3408 = vadd.f32 %v487, %v3407
  %v3409 = vpop.f32.mrb[0].mxu0
  %v3410 = vadd.f32 %v487, %v3409
  %3411 = vmatprep.mubr.bf16.mxu0 %v1807
  %3412 = vmatmul.mubr.bf16.gmra.mrb[0].mxu0 %v1469
  %v3413 = vpop.f32.mrb[0].mxu0
  %v3414 = vadd.f32 %v492, %v3413
  %v3415 = vpop.f32.mrb[0].mxu0
  %v3416 = vadd.f32 %v492, %v3415
  %v3417 = vpop.f32.mrb[0].mxu0
  %v3418 = vadd.f32 %v497, %v3417
  %v3419 = vpop.f32.mrb[0].mxu0
  %v3420 = vadd.f32 %v497, %v3419
  %3421 = vmatprep.mubr.bf16.mxu0 %v1810
  %3422 = vmatmul.mubr.bf16.gmra.mrb[0].mxu0 %v1471
  %v3423 = vpop.f32.mrb[0].mxu0
  %v3424 = vadd.f32 %v502, %v3423
  %v3425 = vpop.f32.mrb[0].mxu0
  %v3426 = vadd.f32 %v502, %v3425
  %v3427 = vpop.f32.mrb[0].mxu0
  %v3428 = vadd.f32 %v507, %v3427
  %v3429 = vpop.f32.mrb[0].mxu0
  %v3430 = vadd.f32 %v507, %v3429
  %3431 = vmatprep.mubr.bf16.mxu0 %v1813
  %3432 = vmatmul.mubr.bf16.gmra.mrb[0].mxu0 %v1473
  %v3433 = vpop.f32.mrb[0].mxu0
  %v3434 = vadd.f32 %v512, %v3433
  %v3435 = vpop.f32.mrb[0].mxu0
  %v3436 = vadd.f32 %v512, %v3435
  %v3437 = vpop.f32.mrb[0].mxu0
  %v3438 = vadd.f32 %v517, %v3437
  %v3439 = vpop.f32.mrb[0].mxu0
  %v3440 = vadd.f32 %v517, %v3439
  %3441 = vmatprep.mubr.bf16.mxu0 %v1816
  %3442 = vmatmul.mubr.bf16.gmra.mrb[0].mxu0 %v1475
  %v3443 = vpop.f32.mrb[0].mxu0
  %v3444 = vadd.f32 %v522, %v3443
  %v3445 = vpop.f32.mrb[0].mxu0
  %v3446 = vadd.f32 %v522, %v3445
  %v3447 = vpop.f32.mrb[0].mxu0
  %v3448 = vadd.f32 %v527, %v3447
  %v3449 = vpop.f32.mrb[0].mxu0
  %v3450 = vadd.f32 %v527, %v3449
  %3451 = vmatprep.mubr.bf16.mxu0 %v1819
  %3452 = vmatmul.mubr.bf16.gmra.mrb[0].mxu0 %v1477
  %v3453 = vpop.f32.mrb[0].mxu0
  %v3454 = vadd.f32 %v532, %v3453
  %v3455 = vpop.f32.mrb[0].mxu0
  %v3456 = vadd.f32 %v532, %v3455
  %v3457 = vpop.f32.mrb[0].mxu0
  %v3458 = vadd.f32 %v537, %v3457
  %v3459 = vpop.f32.mrb[0].mxu0
  %v3460 = vadd.f32 %v537, %v3459
  %3461 = vmatprep.mubr.bf16.mxu0 %v1822
  %3462 = vmatmul.mubr.bf16.gmra.mrb[0].mxu0 %v1479
  %v3463 = vpop.f32.mrb[0].mxu0
  %v3464 = vadd.f32 %v542, %v3463
  %v3465 = vpop.f32.mrb[0].mxu0
  %v3466 = vadd.f32 %v542, %v3465
  %v3467 = vpop.f32.mrb[0].mxu0
  %v3468 = vadd.f32 %v547, %v3467
  %v3469 = vpop.f32.mrb[0].mxu0
  %v3470 = vadd.f32 %v547, %v3469
  %3471 = vmatprep.mubr.bf16.mxu0 %v1825
  %3472 = vmatmul.mubr.bf16.gmra.mrb[0].mxu0 %v1481
  %v3473 = vpop.f32.mrb[0].mxu0
  %v3474 = vadd.f32 %v552, %v3473
  %v3475 = vpop.f32.mrb[0].mxu0
  %v3476 = vadd.f32 %v552, %v3475
  %v3477 = vpop.f32.mrb[0].mxu0
  %v3478 = vadd.f32 %v557, %v3477
  %v3479 = vpop.f32.mrb[0].mxu0
  %v3480 = vadd.f32 %v557, %v3479
  %3481 = vmatprep.mubr.bf16.mxu0 %v1828
  %3482 = vmatmul.mubr.bf16.gmra.mrb[0].mxu0 %v1483
  %v3483 = vpop.f32.mrb[0].mxu0
  %v3484 = vadd.f32 %v562, %v3483
  %v3485 = vpop.f32.mrb[0].mxu0
  %v3486 = vadd.f32 %v562, %v3485
  %v3487 = vpop.f32.mrb[0].mxu0
  %v3488 = vadd.f32 %v567, %v3487
  %v3489 = vpop.f32.mrb[0].mxu0
  %v3490 = vadd.f32 %v567, %v3489
  %3491 = vmatprep.mubr.bf16.mxu0 %v1831
  %3492 = vmatmul.mubr.bf16.gmra.mrb[0].mxu0 %v1485
  %v3493 = vpop.f32.mrb[0].mxu0
  %v3494 = vadd.f32 %v572, %v3493
  %v3495 = vpop.f32.mrb[0].mxu0
  %v3496 = vadd.f32 %v572, %v3495
  %v3497 = vpop.f32.mrb[0].mxu0
  %v3498 = vadd.f32 %v577, %v3497
  %v3499 = vpop.f32.mrb[0].mxu0
  %v3500 = vadd.f32 %v577, %v3499
  %3501 = vmatprep.mubr.bf16.mxu0 %v1834
  %3502 = vmatmul.mubr.bf16.gmra.mrb[0].mxu0 %v1487
  %v3503 = vpop.f32.mrb[0].mxu0
  %v3504 = vadd.f32 %v582, %v3503
  %v3505 = vpop.f32.mrb[0].mxu0
  %v3506 = vadd.f32 %v582, %v3505
  %v3507 = vpop.f32.mrb[0].mxu0
  %v3508 = vadd.f32 %v587, %v3507
  %v3509 = vpop.f32.mrb[0].mxu0
  %v3510 = vadd.f32 %v587, %v3509
  %3511 = vmatprep.mubr.bf16.mxu0 %v1837
  %3512 = vmatmul.mubr.bf16.gmra.mrb[0].mxu0 %v1489
  %v3513 = vpop.f32.mrb[0].mxu0
  %v3514 = vadd.f32 %v592, %v3513
  %v3515 = vpop.f32.mrb[0].mxu0
  %v3516 = vadd.f32 %v592, %v3515
  %v3517 = vpop.f32.mrb[0].mxu0
  %v3518 = vadd.f32 %v597, %v3517
  %v3519 = vpop.f32.mrb[0].mxu0
  %v3520 = vadd.f32 %v597, %v3519
  %3521 = vmatprep.mubr.bf16.mxu0 %v1840
  %3522 = vmatmul.mubr.bf16.gmra.mrb[0].mxu0 %v1491
  %v3523 = vpop.f32.mrb[0].mxu0
  %v3524 = vadd.f32 %v602, %v3523
  %v3525 = vpop.f32.mrb[0].mxu0
  %v3526 = vadd.f32 %v602, %v3525
  %v3527 = vpop.f32.mrb[0].mxu0
  %v3528 = vadd.f32 %v607, %v3527
  %v3529 = vpop.f32.mrb[0].mxu0
  %v3530 = vadd.f32 %v607, %v3529
  %3531 = vmatprep.mubr.bf16.mxu0 %v1843
  %3532 = vmatmul.mubr.bf16.gmra.mrb[0].mxu0 %v1493
  %v3533 = vpop.f32.mrb[0].mxu0
  %v3534 = vadd.f32 %v612, %v3533
  %v3535 = vpop.f32.mrb[0].mxu0
  %v3536 = vadd.f32 %v612, %v3535
  %v3537 = vpop.f32.mrb[0].mxu0
  %v3538 = vadd.f32 %v617, %v3537
  %v3539 = vpop.f32.mrb[0].mxu0
  %v3540 = vadd.f32 %v617, %v3539
  %3541 = vmatprep.mubr.bf16.mxu0 %v1846
  %3542 = vmatmul.mubr.bf16.gmra.mrb[0].mxu0 %v1495
  %v3543 = vpop.f32.mrb[0].mxu0
  %v3544 = vadd.f32 %v622, %v3543
  %v3545 = vpop.f32.mrb[0].mxu0
  %v3546 = vadd.f32 %v622, %v3545
  %v3547 = vpop.f32.mrb[0].mxu0
  %v3548 = vadd.f32 %v627, %v3547
  %v3549 = vpop.f32.mrb[0].mxu0
  %v3550 = vadd.f32 %v627, %v3549
  %3551 = vmatprep.mubr.bf16.mxu0 %v1849
  %3552 = vmatmul.mubr.bf16.gmra.mrb[0].mxu0 %v1497
  %v3553 = vpop.f32.mrb[0].mxu0
  %v3554 = vadd.f32 %v632, %v3553
  %v3555 = vpop.f32.mrb[0].mxu0
  %v3556 = vadd.f32 %v632, %v3555
  %v3557 = vpop.f32.mrb[0].mxu0
  %v3558 = vadd.f32 %v637, %v3557
  %v3559 = vpop.f32.mrb[0].mxu0
  %v3560 = vadd.f32 %v637, %v3559
  %3561 = vmatprep.mubr.bf16.mxu0 %v1852
  %3562 = vmatmul.mubr.bf16.gmra.mrb[0].mxu0 %v1499
  %v3563 = vpop.f32.mrb[0].mxu0
  %v3564 = vadd.f32 %v642, %v3563
  %v3565 = vpop.f32.mrb[0].mxu0
  %v3566 = vadd.f32 %v642, %v3565
  %v3567 = vpop.f32.mrb[0].mxu0
  %v3568 = vadd.f32 %v647, %v3567
  %v3569 = vpop.f32.mrb[0].mxu0
  %v3570 = vadd.f32 %v647, %v3569
  %3571 = vmatprep.mubr.bf16.mxu0 %v1855
  %3572 = vmatmul.mubr.bf16.gmra.mrb[0].mxu0 %v1501
  %v3573 = vpop.f32.mrb[0].mxu0
  %v3574 = vadd.f32 %v652, %v3573
  %v3575 = vpop.f32.mrb[0].mxu0
  %v3576 = vadd.f32 %v652, %v3575
  %v3577 = vpop.f32.mrb[0].mxu0
  %v3578 = vadd.f32 %v657, %v3577
  %v3579 = vpop.f32.mrb[0].mxu0
  %v3580 = vadd.f32 %v657, %v3579
  %3581 = vmatprep.mubr.bf16.mxu0 %v1858
  %3582 = vmatmul.mubr.bf16.gmra.mrb[0].mxu0 %v1503
  %v3583 = vpop.f32.mrb[0].mxu0
  %v3584 = vadd.f32 %v662, %v3583
  %v3585 = vpop.f32.mrb[0].mxu0
  %v3586 = vadd.f32 %v662, %v3585
  %v3587 = vpop.f32.mrb[0].mxu0
  %v3588 = vadd.f32 %v667, %v3587
  %v3589 = vpop.f32.mrb[0].mxu0
  %v3590 = vadd.f32 %v667, %v3589
  %3591 = vmatprep.mubr.bf16.mxu0 %v1861
  %3592 = vmatmul.mubr.bf16.gmra.mrb[0].mxu0 %v1505
  %v3593 = vpop.f32.mrb[0].mxu0
  %v3594 = vadd.f32 %v672, %v3593
  %v3595 = vpop.f32.mrb[0].mxu0
  %v3596 = vadd.f32 %v672, %v3595
  %v3597 = vpop.f32.mrb[0].mxu0
  %v3598 = vadd.f32 %v677, %v3597
  %v3599 = vpop.f32.mrb[0].mxu0
  %v3600 = vadd.f32 %v677, %v3599
  %3601 = vmatprep.mubr.bf16.mxu0 %v1864
  %3602 = vmatmul.mubr.bf16.gmra.mrb[0].mxu0 %v1507
  %v3603 = vpop.f32.mrb[0].mxu0
  %v3604 = vadd.f32 %v682, %v3603
  %v3605 = vpop.f32.mrb[0].mxu0
  %v3606 = vadd.f32 %v682, %v3605
  %v3607 = vpop.f32.mrb[0].mxu0
  %v3608 = vadd.f32 %v687, %v3607
  %v3609 = vpop.f32.mrb[0].mxu0
  %v3610 = vadd.f32 %v687, %v3609
  %3611 = vmatprep.mubr.bf16.mxu0 %v1867
  %3612 = vmatmul.mubr.bf16.gmra.mrb[0].mxu0 %v1509
  %v3613 = vpop.f32.mrb[0].mxu0
  %v3614 = vadd.f32 %v692, %v3613
  %v3615 = vpop.f32.mrb[0].mxu0
  %v3616 = vadd.f32 %v692, %v3615
  %v3617 = vpop.f32.mrb[0].mxu0
  %v3618 = vadd.f32 %v697, %v3617
  %v3619 = vpop.f32.mrb[0].mxu0
  %v3620 = vadd.f32 %v697, %v3619
  %3621 = vmatprep.mubr.bf16.mxu0 %v1870
  %3622 = vmatmul.mubr.bf16.gmra.mrb[0].mxu0 %v1511
  %v3623 = vpop.f32.mrb[0].mxu0
  %v3624 = vadd.f32 %v702, %v3623
  %v3625 = vpop.f32.mrb[0].mxu0
  %v3626 = vadd.f32 %v702, %v3625
  %v3627 = vpop.f32.mrb[0].mxu0
  %v3628 = vadd.f32 %v707, %v3627
  %v3629 = vpop.f32.mrb[0].mxu0
  %v3630 = vadd.f32 %v707, %v3629
  %3631 = vmatprep.mubr.bf16.mxu0 %v1873
  %3632 = vmatmul.mubr.bf16.gmra.mrb[0].mxu0 %v1513
  %v3633 = vpop.f32.mrb[0].mxu0
  %v3634 = vadd.f32 %v712, %v3633
  %v3635 = vpop.f32.mrb[0].mxu0
  %v3636 = vadd.f32 %v712, %v3635
  %v3637 = vpop.f32.mrb[0].mxu0
  %v3638 = vadd.f32 %v717, %v3637
  %v3639 = vpop.f32.mrb[0].mxu0
  %v3640 = vadd.f32 %v717, %v3639
  %3641 = vmatprep.mubr.bf16.mxu0 %v1876
  %3642 = vmatmul.mubr.bf16.gmra.mrb[0].mxu0 %v1515
  %v3643 = vpop.f32.mrb[0].mxu0
  %v3644 = vadd.f32 %v722, %v3643
  %v3645 = vpop.f32.mrb[0].mxu0
  %v3646 = vadd.f32 %v722, %v3645
  %v3647 = vpop.f32.mrb[0].mxu0
  %v3648 = vadd.f32 %v727, %v3647
  %v3649 = vpop.f32.mrb[0].mxu0
  %v3650 = vadd.f32 %v727, %v3649
  %3651 = vmatprep.mubr.bf16.mxu0 %v1879
  %3652 = vmatmul.mubr.bf16.gmra.mrb[0].mxu0 %v1517
  %v3653 = vpop.f32.mrb[0].mxu0
  %v3654 = vadd.f32 %v732, %v3653
  %v3655 = vpop.f32.mrb[0].mxu0
  %v3656 = vadd.f32 %v732, %v3655
  %v3657 = vpop.f32.mrb[0].mxu0
  %v3658 = vadd.f32 %v737, %v3657
  %v3659 = vpop.f32.mrb[0].mxu0
  %v3660 = vadd.f32 %v737, %v3659
  %3661 = vmatprep.mubr.bf16.mxu0 %v1882
  %3662 = vmatmul.mubr.bf16.gmra.mrb[0].mxu0 %v1519
  %v3663 = vpop.f32.mrb[0].mxu0
  %v3664 = vadd.f32 %v742, %v3663
  %v3665 = vpop.f32.mrb[0].mxu0
  %v3666 = vadd.f32 %v742, %v3665
  %v3667 = vpop.f32.mrb[0].mxu0
  %v3668 = vadd.f32 %v747, %v3667
  %v3669 = vpop.f32.mrb[0].mxu0
  %v3670 = vadd.f32 %v747, %v3669
  %3671 = vmatprep.mubr.bf16.mxu0 %v1885
  %3672 = vmatmul.mubr.bf16.gmra.mrb[0].mxu0 %v1521
  %v3673 = vpop.f32.mrb[0].mxu0
  %v3674 = vadd.f32 %v752, %v3673
  %v3675 = vpop.f32.mrb[0].mxu0
  %v3676 = vadd.f32 %v752, %v3675
  %v3677 = vpop.f32.mrb[0].mxu0
  %v3678 = vadd.f32 %v757, %v3677
  %v3679 = vpop.f32.mrb[0].mxu0
  %v3680 = vadd.f32 %v757, %v3679
  %3681 = vmatprep.mubr.bf16.mxu0 %v1888
  %3682 = vmatmul.mubr.bf16.gmra.mrb[0].mxu0 %v1523
  %v3683 = vpop.f32.mrb[0].mxu0
  %v3684 = vadd.f32 %v762, %v3683
  %v3685 = vpop.f32.mrb[0].mxu0
  %v3686 = vadd.f32 %v762, %v3685
  %v3687 = vpop.f32.mrb[0].mxu0
  %v3688 = vadd.f32 %v767, %v3687
  %v3689 = vpop.f32.mrb[0].mxu0
  %v3690 = vadd.f32 %v767, %v3689
  %3691 = vmatprep.mubr.bf16.mxu0 %v1891
  %3692 = vmatmul.mubr.bf16.gmra.mrb[0].mxu0 %v1525
  %v3693 = vpop.f32.mrb[0].mxu0
  %v3694 = vadd.f32 %v772, %v3693
  %v3695 = vpop.f32.mrb[0].mxu0
  %v3696 = vadd.f32 %v772, %v3695
  %v3697 = vpop.f32.mrb[0].mxu0
  %v3698 = vadd.f32 %v777, %v3697
  %v3699 = vpop.f32.mrb[0].mxu0
  %v3700 = vadd.f32 %v777, %v3699
  %3701 = vmatprep.mubr.bf16.mxu0 %v1894
  %3702 = vmatmul.mubr.bf16.gmra.mrb[0].mxu0 %v1527
  %v3703 = vpop.f32.mrb[0].mxu0
  %v3704 = vadd.f32 %v782, %v3703
  %v3705 = vpop.f32.mrb[0].mxu0
  %v3706 = vadd.f32 %v782, %v3705
  %v3707 = vpop.f32.mrb[0].mxu0
  %v3708 = vadd.f32 %v787, %v3707
  %v3709 = vpop.f32.mrb[0].mxu0
  %v3710 = vadd.f32 %v787, %v3709
  %3711 = vmatprep.mubr.bf16.mxu0 %v1897
  %3712 = vmatmul.mubr.bf16.gmra.mrb[0].mxu0 %v1529
  %v3713 = vpop.f32.mrb[0].mxu0
  %v3714 = vadd.f32 %v792, %v3713
  %v3715 = vpop.f32.mrb[0].mxu0
  %v3716 = vadd.f32 %v792, %v3715
  %v3717 = vpop.f32.mrb[0].mxu0
  %v3718 = vadd.f32 %v797, %v3717
  %v3719 = vpop.f32.mrb[0].mxu0
  %v3720 = vadd.f32 %v797, %v3719
  %3721 = vmatprep.mubr.bf16.mxu0 %v1900
  %3722 = vmatmul.mubr.bf16.gmra.mrb[0].mxu0 %v1531
  %v3723 = vpop.f32.mrb[0].mxu0
  %v3724 = vadd.f32 %v802, %v3723
  %v3725 = vpop.f32.mrb[0].mxu0
  %v3726 = vadd.f32 %v802, %v3725
  %v3727 = vpop.f32.mrb[0].mxu0
  %v3728 = vadd.f32 %v807, %v3727
  %v3729 = vpop.f32.mrb[0].mxu0
  %v3730 = vadd.f32 %v807, %v3729
  %3731 = vmatprep.mubr.bf16.mxu0 %v1903
  %3732 = vmatmul.mubr.bf16.gmra.mrb[0].mxu0 %v1533
  %v3733 = vpop.f32.mrb[0].mxu0
  %v3734 = vadd.f32 %v812, %v3733
  %v3735 = vpop.f32.mrb[0].mxu0
  %v3736 = vadd.f32 %v812, %v3735
  %v3737 = vpop.f32.mrb[0].mxu0
  %v3738 = vadd.f32 %v817, %v3737
  %v3739 = vpop.f32.mrb[0].mxu0
  %v3740 = vadd.f32 %v817, %v3739
  %3741 = vmatprep.mubr.bf16.mxu0 %v1906
  %3742 = vmatmul.mubr.bf16.gmra.mrb[0].mxu0 %v1535
  %v3743 = vpop.f32.mrb[0].mxu0
  %v3744 = vadd.f32 %v822, %v3743
  %v3745 = vpop.f32.mrb[0].mxu0
  %v3746 = vadd.f32 %v822, %v3745
  %v3747 = vpop.f32.mrb[0].mxu0
  %v3748 = vadd.f32 %v827, %v3747
  %v3749 = vpop.f32.mrb[0].mxu0
  %v3750 = vadd.f32 %v827, %v3749
  %3751 = vmatprep.mubr.bf16.mxu0 %v1909
  %3752 = vmatmul.mubr.bf16.gmra.mrb[0].mxu0 %v1537
  %v3753 = vpop.f32.mrb[0].mxu0
  %v3754 = vadd.f32 %v832, %v3753
  %v3755 = vpop.f32.mrb[0].mxu0
  %v3756 = vadd.f32 %v832, %v3755
  %v3757 = vpop.f32.mrb[0].mxu0
  %v3758 = vadd.f32 %v837, %v3757
  %v3759 = vpop.f32.mrb[0].mxu0
  %v3760 = vadd.f32 %v837, %v3759
  %3761 = vmatprep.mubr.bf16.mxu0 %v1912
  %3762 = vmatmul.mubr.bf16.gmra.mrb[0].mxu0 %v1539
  %v3763 = vpop.f32.mrb[0].mxu0
  %v3764 = vadd.f32 %v842, %v3763
  %v3765 = vpop.f32.mrb[0].mxu0
  %v3766 = vadd.f32 %v842, %v3765
  %v3767 = vpop.f32.mrb[0].mxu0
  %v3768 = vadd.f32 %v847, %v3767
  %v3769 = vpop.f32.mrb[0].mxu0
  %v3770 = vadd.f32 %v847, %v3769
  %3771 = vmatprep.mubr.bf16.mxu0 %v1915
  %3772 = vmatmul.mubr.bf16.gmra.mrb[0].mxu0 %v1541
  %v3773 = vpop.f32.mrb[0].mxu0
  %v3774 = vadd.f32 %v852, %v3773
  %v3775 = vpop.f32.mrb[0].mxu0
  %v3776 = vadd.f32 %v852, %v3775
  %v3777 = vpop.f32.mrb[0].mxu0
  %v3778 = vadd.f32 %v857, %v3777
  %v3779 = vpop.f32.mrb[0].mxu0
  %v3780 = vadd.f32 %v857, %v3779
  %3781 = vmatprep.mubr.bf16.mxu0 %v1918
  %3782 = vmatmul.mubr.bf16.gmra.mrb[0].mxu0 %v1543
  %v3783 = vpop.f32.mrb[0].mxu0
  %v3784 = vadd.f32 %v862, %v3783
  %v3785 = vpop.f32.mrb[0].mxu0
  %v3786 = vadd.f32 %v862, %v3785
  %v3787 = vpop.f32.mrb[0].mxu0
  %v3788 = vadd.f32 %v867, %v3787
  %v3789 = vpop.f32.mrb[0].mxu0
  %v3790 = vadd.f32 %v867, %v3789
  %3791 = vmatprep.mubr.bf16.mxu0 %v1921
  %3792 = vmatmul.mubr.bf16.gmra.mrb[0].mxu0 %v1545
  %v3793 = vpop.f32.mrb[0].mxu0
  %v3794 = vadd.f32 %v872, %v3793
  %v3795 = vpop.f32.mrb[0].mxu0
  %v3796 = vadd.f32 %v872, %v3795
  %v3797 = vpop.f32.mrb[0].mxu0
  %v3798 = vadd.f32 %v877, %v3797
  %v3799 = vpop.f32.mrb[0].mxu0
  %v3800 = vadd.f32 %v877, %v3799
  %3801 = vmatprep.mubr.bf16.mxu0 %v1924
  %3802 = vmatmul.mubr.bf16.gmra.mrb[0].mxu0 %v1547
  %v3803 = vpop.f32.mrb[0].mxu0
  %v3804 = vadd.f32 %v882, %v3803
  %v3805 = vpop.f32.mrb[0].mxu0
  %v3806 = vadd.f32 %v882, %v3805
  %v3807 = vpop.f32.mrb[0].mxu0
  %v3808 = vadd.f32 %v887, %v3807
  %v3809 = vpop.f32.mrb[0].mxu0
  %v3810 = vadd.f32 %v887, %v3809
  %3811 = vmatprep.mubr.bf16.mxu0 %v1927
  %3812 = vmatmul.mubr.bf16.gmra.mrb[0].mxu0 %v1549
  %v3813 = vpop.f32.mrb[0].mxu0
  %v3814 = vadd.f32 %v892, %v3813
  %v3815 = vpop.f32.mrb[0].mxu0
  %v3816 = vadd.f32 %v892, %v3815
  %v3817 = vpop.f32.mrb[0].mxu0
  %v3818 = vadd.f32 %v897, %v3817
  %v3819 = vpop.f32.mrb[0].mxu0
  %v3820 = vadd.f32 %v897, %v3819
  %3821 = vmatprep.mubr.bf16.mxu0 %v1930
  %3822 = vmatmul.mubr.bf16.gmra.mrb[0].mxu0 %v1551
  %v3823 = vpop.f32.mrb[0].mxu0
  %v3824 = vadd.f32 %v902, %v3823
  %v3825 = vpop.f32.mrb[0].mxu0
  %v3826 = vadd.f32 %v902, %v3825
  %v3827 = vpop.f32.mrb[0].mxu0
  %v3828 = vadd.f32 %v907, %v3827
  %v3829 = vpop.f32.mrb[0].mxu0
  %v3830 = vadd.f32 %v907, %v3829
  %3831 = vmatprep.mubr.bf16.mxu0 %v1933
  %3832 = vmatmul.mubr.bf16.gmra.mrb[0].mxu0 %v1553
  %v3833 = vpop.f32.mrb[0].mxu0
  %v3834 = vadd.f32 %v912, %v3833
  %v3835 = vpop.f32.mrb[0].mxu0
  %v3836 = vadd.f32 %v912, %v3835
  %v3837 = vpop.f32.mrb[0].mxu0
  %v3838 = vadd.f32 %v917, %v3837
  %v3839 = vpop.f32.mrb[0].mxu0
  %v3840 = vadd.f32 %v917, %v3839
  %3841 = vmatprep.mubr.bf16.mxu0 %v1936
  %3842 = vmatmul.mubr.bf16.gmra.mrb[0].mxu0 %v1555
  %v3843 = vpop.f32.mrb[0].mxu0
  %v3844 = vadd.f32 %v922, %v3843
  %v3845 = vpop.f32.mrb[0].mxu0
  %v3846 = vadd.f32 %v922, %v3845
  %v3847 = vpop.f32.mrb[0].mxu0
  %v3848 = vadd.f32 %v927, %v3847
  %v3849 = vpop.f32.mrb[0].mxu0
  %v3850 = vadd.f32 %v927, %v3849
  %3851 = vdwg.mxu0
  %v3852 = vmax.f32 %v3254, 0.0
  %v3853 = vmax.f32 %v3256, 0.0
  %v3854 = vmax.f32 %v3258, 0.0
  %v3855 = vmax.f32 %v3260, 0.0
  %v3856 = vmax.f32 %v3264, 0.0
  %v3857 = vmax.f32 %v3266, 0.0
  %v3858 = vmax.f32 %v3268, 0.0
  %v3859 = vmax.f32 %v3270, 0.0
  %v3860 = vmax.f32 %v3274, 0.0
  %v3861 = vmax.f32 %v3276, 0.0
  %v3862 = vmax.f32 %v3278, 0.0
  %v3863 = vmax.f32 %v3280, 0.0
  %v3864 = vmax.f32 %v3284, 0.0
  %v3865 = vmax.f32 %v3286, 0.0
  %v3866 = vmax.f32 %v3288, 0.0
  %v3867 = vmax.f32 %v3290, 0.0
  %v3868 = vmax.f32 %v3294, 0.0
  %v3869 = vmax.f32 %v3296, 0.0
  %v3870 = vmax.f32 %v3298, 0.0
  %v3871 = vmax.f32 %v3300, 0.0
  %v3872 = vmax.f32 %v3304, 0.0
  %v3873 = vmax.f32 %v3306, 0.0
  %v3874 = vmax.f32 %v3308, 0.0
  %v3875 = vmax.f32 %v3310, 0.0
  %v3876 = vmax.f32 %v3314, 0.0
  %v3877 = vmax.f32 %v3316, 0.0
  %v3878 = vmax.f32 %v3318, 0.0
  %v3879 = vmax.f32 %v3320, 0.0
  %v3880 = vmax.f32 %v3324, 0.0
  %v3881 = vmax.f32 %v3326, 0.0
  %v3882 = vmax.f32 %v3328, 0.0
  %v3883 = vmax.f32 %v3330, 0.0
  %v3884 = vmax.f32 %v3334, 0.0
  %v3885 = vmax.f32 %v3336, 0.0
  %v3886 = vmax.f32 %v3338, 0.0
  %v3887 = vmax.f32 %v3340, 0.0
  %v3888 = vmax.f32 %v3344, 0.0
  %v3889 = vmax.f32 %v3346, 0.0
  %v3890 = vmax.f32 %v3348, 0.0
  %v3891 = vmax.f32 %v3350, 0.0
  %v3892 = vmax.f32 %v3354, 0.0
  %v3893 = vmax.f32 %v3356, 0.0
  %v3894 = vmax.f32 %v3358, 0.0
  %v3895 = vmax.f32 %v3360, 0.0
  %v3896 = vmax.f32 %v3364, 0.0
  %v3897 = vmax.f32 %v3366, 0.0
  %v3898 = vmax.f32 %v3368, 0.0
  %v3899 = vmax.f32 %v3370, 0.0
  %v3900 = vmax.f32 %v3374, 0.0
  %v3901 = vmax.f32 %v3376, 0.0
  %v3902 = vmax.f32 %v3378, 0.0
  %v3903 = vmax.f32 %v3380, 0.0
  %v3904 = vmax.f32 %v3384, 0.0
  %v3905 = vmax.f32 %v3386, 0.0
  %v3906 = vmax.f32 %v3388, 0.0
  %v3907 = vmax.f32 %v3390, 0.0
  %v3908 = vmax.f32 %v3394, 0.0
  %v3909 = vmax.f32 %v3396, 0.0
  %v3910 = vmax.f32 %v3398, 0.0
  %v3911 = vmax.f32 %v3400, 0.0
  %v3912 = vmax.f32 %v3404, 0.0
  %v3913 = vmax.f32 %v3406, 0.0
  %v3914 = vmax.f32 %v3408, 0.0
  %v3915 = vmax.f32 %v3410, 0.0
  %v3916 = vmax.f32 %v3414, 0.0
  %v3917 = vmax.f32 %v3416, 0.0
  %v3918 = vmax.f32 %v3418, 0.0
  %v3919 = vmax.f32 %v3420, 0.0
  %v3920 = vmax.f32 %v3424, 0.0
  %v3921 = vmax.f32 %v3426, 0.0
  %v3922 = vmax.f32 %v3428, 0.0
  %v3923 = vmax.f32 %v3430, 0.0
  %v3924 = vmax.f32 %v3434, 0.0
  %v3925 = vmax.f32 %v3436, 0.0
  %v3926 = vmax.f32 %v3438, 0.0
  %v3927 = vmax.f32 %v3440, 0.0
  %v3928 = vmax.f32 %v3444, 0.0
  %v3929 = vmax.f32 %v3446, 0.0
  %v3930 = vmax.f32 %v3448, 0.0
  %v3931 = vmax.f32 %v3450, 0.0
  %v3932 = vmax.f32 %v3454, 0.0
  %v3933 = vmax.f32 %v3456, 0.0
  %v3934 = vmax.f32 %v3458, 0.0
  %v3935 = vmax.f32 %v3460, 0.0
  %v3936 = vmax.f32 %v3464, 0.0
  %v3937 = vmax.f32 %v3466, 0.0
  %v3938 = vmax.f32 %v3468, 0.0
  %v3939 = vmax.f32 %v3470, 0.0
  %v3940 = vmax.f32 %v3474, 0.0
  %v3941 = vmax.f32 %v3476, 0.0
  %v3942 = vmax.f32 %v3478, 0.0
  %v3943 = vmax.f32 %v3480, 0.0
  %v3944 = vmax.f32 %v3484, 0.0
  %v3945 = vmax.f32 %v3486, 0.0
  %v3946 = vmax.f32 %v3488, 0.0
  %v3947 = vmax.f32 %v3490, 0.0
  %v3948 = vmax.f32 %v3494, 0.0
  %v3949 = vmax.f32 %v3496, 0.0
  %v3950 = vmax.f32 %v3498, 0.0
  %v3951 = vmax.f32 %v3500, 0.0
  %v3952 = vmax.f32 %v3504, 0.0
  %v3953 = vmax.f32 %v3506, 0.0
  %v3954 = vmax.f32 %v3508, 0.0
  %v3955 = vmax.f32 %v3510, 0.0
  %v3956 = vmax.f32 %v3514, 0.0
  %v3957 = vmax.f32 %v3516, 0.0
  %v3958 = vmax.f32 %v3518, 0.0
  %v3959 = vmax.f32 %v3520, 0.0
  %v3960 = vmax.f32 %v3524, 0.0
  %v3961 = vmax.f32 %v3526, 0.0
  %v3962 = vmax.f32 %v3528, 0.0
  %v3963 = vmax.f32 %v3530, 0.0
  %v3964 = vmax.f32 %v3534, 0.0
  %v3965 = vmax.f32 %v3536, 0.0
  %v3966 = vmax.f32 %v3538, 0.0
  %v3967 = vmax.f32 %v3540, 0.0
  %v3968 = vmax.f32 %v3544, 0.0
  %v3969 = vmax.f32 %v3546, 0.0
  %v3970 = vmax.f32 %v3548, 0.0
  %v3971 = vmax.f32 %v3550, 0.0
  %v3972 = vmax.f32 %v3554, 0.0
  %v3973 = vmax.f32 %v3556, 0.0
  %v3974 = vmax.f32 %v3558, 0.0
  %v3975 = vmax.f32 %v3560, 0.0
  %v3976 = vmax.f32 %v3564, 0.0
  %v3977 = vmax.f32 %v3566, 0.0
  %v3978 = vmax.f32 %v3568, 0.0
  %v3979 = vmax.f32 %v3570, 0.0
  %v3980 = vmax.f32 %v3574, 0.0
  %v3981 = vmax.f32 %v3576, 0.0
  %v3982 = vmax.f32 %v3578, 0.0
  %v3983 = vmax.f32 %v3580, 0.0
  %v3984 = vmax.f32 %v3584, 0.0
  %v3985 = vmax.f32 %v3586, 0.0
  %v3986 = vmax.f32 %v3588, 0.0
  %v3987 = vmax.f32 %v3590, 0.0
  %v3988 = vmax.f32 %v3594, 0.0
  %v3989 = vmax.f32 %v3596, 0.0
  %v3990 = vmax.f32 %v3598, 0.0
  %v3991 = vmax.f32 %v3600, 0.0
  %v3992 = vmax.f32 %v3604, 0.0
  %v3993 = vmax.f32 %v3606, 0.0
  %v3994 = vmax.f32 %v3608, 0.0
  %v3995 = vmax.f32 %v3610, 0.0
  %v3996 = vmax.f32 %v3614, 0.0
  %v3997 = vmax.f32 %v3616, 0.0
  %v3998 = vmax.f32 %v3618, 0.0
  %v3999 = vmax.f32 %v3620, 0.0
  %v4000 = vmax.f32 %v3624, 0.0
  %v4001 = vmax.f32 %v3626, 0.0
  %v4002 = vmax.f32 %v3628, 0.0
  %v4003 = vmax.f32 %v3630, 0.0
  %v4004 = vmax.f32 %v3634, 0.0
  %v4005 = vmax.f32 %v3636, 0.0
  %v4006 = vmax.f32 %v3638, 0.0
  %v4007 = vmax.f32 %v3640, 0.0
  %v4008 = vmax.f32 %v3644, 0.0
  %v4009 = vmax.f32 %v3646, 0.0
  %v4010 = vmax.f32 %v3648, 0.0
  %v4011 = vmax.f32 %v3650, 0.0
  %v4012 = vmax.f32 %v3654, 0.0
  %v4013 = vmax.f32 %v3656, 0.0
  %v4014 = vmax.f32 %v3658, 0.0
  %v4015 = vmax.f32 %v3660, 0.0
  %v4016 = vmax.f32 %v3664, 0.0
  %v4017 = vmax.f32 %v3666, 0.0
  %v4018 = vmax.f32 %v3668, 0.0
  %v4019 = vmax.f32 %v3670, 0.0
  %v4020 = vmax.f32 %v3674, 0.0
  %v4021 = vmax.f32 %v3676, 0.0
  %v4022 = vmax.f32 %v3678, 0.0
  %v4023 = vmax.f32 %v3680, 0.0
  %v4024 = vmax.f32 %v3684, 0.0
  %v4025 = vmax.f32 %v3686, 0.0
  %v4026 = vmax.f32 %v3688, 0.0
  %v4027 = vmax.f32 %v3690, 0.0
  %v4028 = vmax.f32 %v3694, 0.0
  %v4029 = vmax.f32 %v3696, 0.0
  %v4030 = vmax.f32 %v3698, 0.0
  %v4031 = vmax.f32 %v3700, 0.0
  %v4032 = vmax.f32 %v3704, 0.0
  %v4033 = vmax.f32 %v3706, 0.0
  %v4034 = vmax.f32 %v3708, 0.0
  %v4035 = vmax.f32 %v3710, 0.0
  %v4036 = vmax.f32 %v3714, 0.0
  %v4037 = vmax.f32 %v3716, 0.0
  %v4038 = vmax.f32 %v3718, 0.0
  %v4039 = vmax.f32 %v3720, 0.0
  %v4040 = vmax.f32 %v3724, 0.0
  %v4041 = vmax.f32 %v3726, 0.0
  %v4042 = vmax.f32 %v3728, 0.0
  %v4043 = vmax.f32 %v3730, 0.0
  %v4044 = vmax.f32 %v3734, 0.0
  %v4045 = vmax.f32 %v3736, 0.0
  %v4046 = vmax.f32 %v3738, 0.0
  %v4047 = vmax.f32 %v3740, 0.0
  %v4048 = vmax.f32 %v3744, 0.0
  %v4049 = vmax.f32 %v3746, 0.0
  %v4050 = vmax.f32 %v3748, 0.0
  %v4051 = vmax.f32 %v3750, 0.0
  %v4052 = vmax.f32 %v3754, 0.0
  %v4053 = vmax.f32 %v3756, 0.0
  %v4054 = vmax.f32 %v3758, 0.0
  %v4055 = vmax.f32 %v3760, 0.0
  %v4056 = vmax.f32 %v3764, 0.0
  %v4057 = vmax.f32 %v3766, 0.0
  %v4058 = vmax.f32 %v3768, 0.0
  %v4059 = vmax.f32 %v3770, 0.0
  %v4060 = vmax.f32 %v3774, 0.0
  %v4061 = vmax.f32 %v3776, 0.0
  %v4062 = vmax.f32 %v3778, 0.0
  %v4063 = vmax.f32 %v3780, 0.0
  %v4064 = vmax.f32 %v3784, 0.0
  %v4065 = vmax.f32 %v3786, 0.0
  %v4066 = vmax.f32 %v3788, 0.0
  %v4067 = vmax.f32 %v3790, 0.0
  %v4068 = vmax.f32 %v3794, 0.0
  %v4069 = vmax.f32 %v3796, 0.0
  %v4070 = vmax.f32 %v3798, 0.0
  %v4071 = vmax.f32 %v3800, 0.0
  %v4072 = vmax.f32 %v3804, 0.0
  %v4073 = vmax.f32 %v3806, 0.0
  %v4074 = vmax.f32 %v3808, 0.0
  %v4075 = vmax.f32 %v3810, 0.0
  %v4076 = vmax.f32 %v3814, 0.0
  %v4077 = vmax.f32 %v3816, 0.0
  %v4078 = vmax.f32 %v3818, 0.0
  %v4079 = vmax.f32 %v3820, 0.0
  %v4080 = vmax.f32 %v3824, 0.0
  %v4081 = vmax.f32 %v3826, 0.0
  %v4082 = vmax.f32 %v3828, 0.0
  %v4083 = vmax.f32 %v3830, 0.0
  %v4084 = vmax.f32 %v3834, 0.0
  %v4085 = vmax.f32 %v3836, 0.0
  %v4086 = vmax.f32 %v3838, 0.0
  %v4087 = vmax.f32 %v3840, 0.0
  %v4088 = vmax.f32 %v3844, 0.0
  %v4089 = vmax.f32 %v3846, 0.0
  %v4090 = vmax.f32 %v3848, 0.0
  %v4091 = vmax.f32 %v3850, 0.0
  %v4092 = vmax.f32 %v3852, %v3912
  %v4093 = vmax.f32 %v3853, %v3913
  %v4094 = vmax.f32 %v3854, %v3914
  %v4095 = vmax.f32 %v3855, %v3915
  %v4096 = vmax.f32 %v3856, %v3916
  %v4097 = vmax.f32 %v3857, %v3917
  %v4098 = vmax.f32 %v3858, %v3918
  %v4099 = vmax.f32 %v3859, %v3919
  %v4100 = vmax.f32 %v3860, %v3920
  %v4101 = vmax.f32 %v3861, %v3921
  %v4102 = vmax.f32 %v3862, %v3922
  %v4103 = vmax.f32 %v3863, %v3923
  %v4104 = vmax.f32 %v3864, %v3924
  %v4105 = vmax.f32 %v3865, %v3925
  %v4106 = vmax.f32 %v3866, %v3926
  %v4107 = vmax.f32 %v3867, %v3927
  %v4108 = vmax.f32 %v3868, %v3928
  %v4109 = vmax.f32 %v3869, %v3929
  %v4110 = vmax.f32 %v3870, %v3930
  %v4111 = vmax.f32 %v3871, %v3931
  %v4112 = vmax.f32 %v3872, %v3932
  %v4113 = vmax.f32 %v3873, %v3933
  %v4114 = vmax.f32 %v3874, %v3934
  %v4115 = vmax.f32 %v3875, %v3935
  %v4116 = vmax.f32 %v3876, %v3936
  %v4117 = vmax.f32 %v3877, %v3937
  %v4118 = vmax.f32 %v3878, %v3938
  %v4119 = vmax.f32 %v3879, %v3939
  %v4120 = vmax.f32 %v3880, %v3940
  %v4121 = vmax.f32 %v3881, %v3941
  %v4122 = vmax.f32 %v3882, %v3942
  %v4123 = vmax.f32 %v3883, %v3943
  %v4124 = vmax.f32 %v3884, %v3944
  %v4125 = vmax.f32 %v3885, %v3945
  %v4126 = vmax.f32 %v3886, %v3946
  %v4127 = vmax.f32 %v3887, %v3947
  %v4128 = vmax.f32 %v3888, %v3948
  %v4129 = vmax.f32 %v3889, %v3949
  %v4130 = vmax.f32 %v3890, %v3950
  %v4131 = vmax.f32 %v3891, %v3951
  %v4132 = vmax.f32 %v3892, %v3952
  %v4133 = vmax.f32 %v3893, %v3953
  %v4134 = vmax.f32 %v3894, %v3954
  %v4135 = vmax.f32 %v3895, %v3955
  %v4136 = vmax.f32 %v3896, %v3956
  %v4137 = vmax.f32 %v3897, %v3957
  %v4138 = vmax.f32 %v3898, %v3958
  %v4139 = vmax.f32 %v3899, %v3959
  %v4140 = vmax.f32 %v3900, %v3960
  %v4141 = vmax.f32 %v3901, %v3961
  %v4142 = vmax.f32 %v3902, %v3962
  %v4143 = vmax.f32 %v3903, %v3963
  %v4144 = vmax.f32 %v3904, %v3964
  %v4145 = vmax.f32 %v3905, %v3965
  %v4146 = vmax.f32 %v3906, %v3966
  %v4147 = vmax.f32 %v3907, %v3967
  %v4148 = vmax.f32 %v3908, %v3968
  %v4149 = vmax.f32 %v3909, %v3969
  %v4150 = vmax.f32 %v3910, %v3970
  %v4151 = vmax.f32 %v3911, %v3971
  %v4152 = vmax.f32 %v3972, %v4032
  %v4153 = vmax.f32 %v3973, %v4033
  %v4154 = vmax.f32 %v3974, %v4034
  %v4155 = vmax.f32 %v3975, %v4035
  %v4156 = vmax.f32 %v3976, %v4036
  %v4157 = vmax.f32 %v3977, %v4037
  %v4158 = vmax.f32 %v3978, %v4038
  %v4159 = vmax.f32 %v3979, %v4039
  %v4160 = vmax.f32 %v3980, %v4040
  %v4161 = vmax.f32 %v3981, %v4041
  %v4162 = vmax.f32 %v3982, %v4042
  %v4163 = vmax.f32 %v3983, %v4043
  %v4164 = vmax.f32 %v3984, %v4044
  %v4165 = vmax.f32 %v3985, %v4045
  %v4166 = vmax.f32 %v3986, %v4046
  %v4167 = vmax.f32 %v3987, %v4047
  %v4168 = vmax.f32 %v3988, %v4048
  %v4169 = vmax.f32 %v3989, %v4049
  %v4170 = vmax.f32 %v3990, %v4050
  %v4171 = vmax.f32 %v3991, %v4051
  %v4172 = vmax.f32 %v3992, %v4052
  %v4173 = vmax.f32 %v3993, %v4053
  %v4174 = vmax.f32 %v3994, %v4054
  %v4175 = vmax.f32 %v3995, %v4055
  %v4176 = vmax.f32 %v3996, %v4056
  %v4177 = vmax.f32 %v3997, %v4057
  %v4178 = vmax.f32 %v3998, %v4058
  %v4179 = vmax.f32 %v3999, %v4059
  %v4180 = vmax.f32 %v4000, %v4060
  %v4181 = vmax.f32 %v4001, %v4061
  %v4182 = vmax.f32 %v4002, %v4062
  %v4183 = vmax.f32 %v4003, %v4063
  %v4184 = vmax.f32 %v4004, %v4064
  %v4185 = vmax.f32 %v4005, %v4065
  %v4186 = vmax.f32 %v4006, %v4066
  %v4187 = vmax.f32 %v4007, %v4067
  %v4188 = vmax.f32 %v4008, %v4068
  %v4189 = vmax.f32 %v4009, %v4069
  %v4190 = vmax.f32 %v4010, %v4070
  %v4191 = vmax.f32 %v4011, %v4071
  %v4192 = vmax.f32 %v4012, %v4072
  %v4193 = vmax.f32 %v4013, %v4073
  %v4194 = vmax.f32 %v4014, %v4074
  %v4195 = vmax.f32 %v4015, %v4075
  %v4196 = vmax.f32 %v4016, %v4076
  %v4197 = vmax.f32 %v4017, %v4077
  %v4198 = vmax.f32 %v4018, %v4078
  %v4199 = vmax.f32 %v4019, %v4079
  %v4200 = vmax.f32 %v4020, %v4080
  %v4201 = vmax.f32 %v4021, %v4081
  %v4202 = vmax.f32 %v4022, %v4082
  %v4203 = vmax.f32 %v4023, %v4083
  %v4204 = vmax.f32 %v4024, %v4084
  %v4205 = vmax.f32 %v4025, %v4085
  %v4206 = vmax.f32 %v4026, %v4086
  %v4207 = vmax.f32 %v4027, %v4087
  %v4208 = vmax.f32 %v4028, %v4088
  %v4209 = vmax.f32 %v4029, %v4089
  %v4210 = vmax.f32 %v4030, %v4090
  %v4211 = vmax.f32 %v4031, %v4091
  %v4212 = vmax.f32 %v4092, %v4152
  %v4213 = vmax.f32 %v4093, %v4153
  %v4214 = vmax.f32 %v4094, %v4154
  %v4215 = vmax.f32 %v4095, %v4155
  %v4216 = vmax.f32 %v4096, %v4156
  %v4217 = vmax.f32 %v4097, %v4157
  %v4218 = vmax.f32 %v4098, %v4158
  %v4219 = vmax.f32 %v4099, %v4159
  %v4220 = vmax.f32 %v4100, %v4160
  %v4221 = vmax.f32 %v4101, %v4161
  %v4222 = vmax.f32 %v4102, %v4162
  %v4223 = vmax.f32 %v4103, %v4163
  %v4224 = vmax.f32 %v4104, %v4164
  %v4225 = vmax.f32 %v4105, %v4165
  %v4226 = vmax.f32 %v4106, %v4166
  %v4227 = vmax.f32 %v4107, %v4167
  %v4228 = vmax.f32 %v4108, %v4168
  %v4229 = vmax.f32 %v4109, %v4169
  %v4230 = vmax.f32 %v4110, %v4170
  %v4231 = vmax.f32 %v4111, %v4171
  %v4232 = vmax.f32 %v4112, %v4172
  %v4233 = vmax.f32 %v4113, %v4173
  %v4234 = vmax.f32 %v4114, %v4174
  %v4235 = vmax.f32 %v4115, %v4175
  %v4236 = vmax.f32 %v4116, %v4176
  %v4237 = vmax.f32 %v4117, %v4177
  %v4238 = vmax.f32 %v4118, %v4178
  %v4239 = vmax.f32 %v4119, %v4179
  %v4240 = vmax.f32 %v4120, %v4180
  %v4241 = vmax.f32 %v4121, %v4181
  %v4242 = vmax.f32 %v4122, %v4182
  %v4243 = vmax.f32 %v4123, %v4183
  %v4244 = vmax.f32 %v4124, %v4184
  %v4245 = vmax.f32 %v4125, %v4185
  %v4246 = vmax.f32 %v4126, %v4186
  %v4247 = vmax.f32 %v4127, %v4187
  %v4248 = vmax.f32 %v4128, %v4188
  %v4249 = vmax.f32 %v4129, %v4189
  %v4250 = vmax.f32 %v4130, %v4190
  %v4251 = vmax.f32 %v4131, %v4191
  %v4252 = vmax.f32 %v4132, %v4192
  %v4253 = vmax.f32 %v4133, %v4193
  %v4254 = vmax.f32 %v4134, %v4194
  %v4255 = vmax.f32 %v4135, %v4195
  %v4256 = vmax.f32 %v4136, %v4196
  %v4257 = vmax.f32 %v4137, %v4197
  %v4258 = vmax.f32 %v4138, %v4198
  %v4259 = vmax.f32 %v4139, %v4199
  %v4260 = vmax.f32 %v4140, %v4200
  %v4261 = vmax.f32 %v4141, %v4201
  %v4262 = vmax.f32 %v4142, %v4202
  %v4263 = vmax.f32 %v4143, %v4203
  %v4264 = vmax.f32 %v4144, %v4204
  %v4265 = vmax.f32 %v4145, %v4205
  %v4266 = vmax.f32 %v4146, %v4206
  %v4267 = vmax.f32 %v4147, %v4207
  %v4268 = vmax.f32 %v4148, %v4208
  %v4269 = vmax.f32 %v4149, %v4209
  %v4270 = vmax.f32 %v4150, %v4210
  %v4271 = vmax.f32 %v4151, %v4211
  %v4272 = vpack.c.bf16 %v4214, %v4212
  %v4273 = vpack.c.bf16 %v4215, %v4213
  %v4274 = vpack.c.bf16 %v4218, %v4216
  %v4275 = vpack.c.bf16 %v4219, %v4217
  %v4276 = vpack.c.bf16 %v4222, %v4220
  %v4277 = vpack.c.bf16 %v4223, %v4221
  %v4278 = vpack.c.bf16 %v4226, %v4224
  %v4279 = vpack.c.bf16 %v4227, %v4225
  %v4280 = vpack.c.bf16 %v4230, %v4228
  %v4281 = vpack.c.bf16 %v4231, %v4229
  %v4282 = vpack.c.bf16 %v4234, %v4232
  %v4283 = vpack.c.bf16 %v4235, %v4233
  %v4284 = vpack.c.bf16 %v4238, %v4236
  %v4285 = vpack.c.bf16 %v4239, %v4237
  %v4286 = vpack.c.bf16 %v4242, %v4240
  %v4287 = vpack.c.bf16 %v4243, %v4241
  %v4288 = vpack.c.bf16 %v4246, %v4244
  %v4289 = vpack.c.bf16 %v4247, %v4245
  %v4290 = vpack.c.bf16 %v4250, %v4248
  %v4291 = vpack.c.bf16 %v4251, %v4249
  %v4292 = vpack.c.bf16 %v4254, %v4252
  %v4293 = vpack.c.bf16 %v4255, %v4253
  %v4294 = vpack.c.bf16 %v4258, %v4256
  %v4295 = vpack.c.bf16 %v4259, %v4257
  %v4296 = vpack.c.bf16 %v4262, %v4260
  %v4297 = vpack.c.bf16 %v4263, %v4261
  %v4298 = vpack.c.bf16 %v4266, %v4264
  %v4299 = vpack.c.bf16 %v4267, %v4265
  %v4300 = vpack.c.bf16 %v4270, %v4268
  %v4301 = vpack.c.bf16 %v4271, %v4269
  %4302 = vst [vmem:[#allocation2 + $0xf0] sm:$0xff] %v4272
  %4303 = vst [vmem:[#allocation2 + $0xf8] sm:$0xff] %v4273
  %4304 = vst [vmem:[#allocation2 + $0x100] sm:$0xff] %v4274
  %4305 = vst [vmem:[#allocation2 + $0x108] sm:$0xff] %v4275
  %4306 = vst [vmem:[#allocation2 + $0x110] sm:$0xff] %v4276
  %4307 = vst [vmem:[#allocation2 + $0x118] sm:$0xff] %v4277
  %4308 = vst [vmem:[#allocation2 + $0x120] sm:$0xff] %v4278
  %4309 = vst [vmem:[#allocation2 + $0x128] sm:$0xff] %v4279
  %4310 = vst [vmem:[#allocation2 + $0x130] sm:$0xff] %v4280
  %4311 = vst [vmem:[#allocation2 + $0x138] sm:$0xff] %v4281
  %4312 = vst [vmem:[#allocation2 + $0x140] sm:$0xff] %v4282
  %4313 = vst [vmem:[#allocation2 + $0x148] sm:$0xff] %v4283
  %4314 = vst [vmem:[#allocation2 + $0x150] sm:$0xff] %v4284
  %4315 = vst [vmem:[#allocation2 + $0x158] sm:$0xff] %v4285
  %4316 = vst [vmem:[#allocation2 + $0x160] sm:$0xff] %v4286
  %4317 = vst [vmem:[#allocation2 + $0x168] sm:$0xff] %v4287
  %4318 = vst [vmem:[#allocation2 + $0x170] sm:$0xff] %v4288
  %4319 = vst [vmem:[#allocation2 + $0x178] sm:$0xff] %v4289
  %4320 = vst [vmem:[#allocation2 + $0x180] sm:$0xff] %v4290
  %4321 = vst [vmem:[#allocation2 + $0x188] sm:$0xff] %v4291
  %4322 = vst [vmem:[#allocation2 + $0x190] sm:$0xff] %v4292
  %4323 = vst [vmem:[#allocation2 + $0x198] sm:$0xff] %v4293
  %4324 = vst [vmem:[#allocation2 + $0x1a0] sm:$0xff] %v4294
  %4325 = vst [vmem:[#allocation2 + $0x1a8] sm:$0xff] %v4295
  %4326 = vst [vmem:[#allocation2 + $0x1b0] sm:$0xff] %v4296
  %4327 = vst [vmem:[#allocation2 + $0x1b8] sm:$0xff] %v4297
  %4328 = vst [vmem:[#allocation2 + $0x1c0] sm:$0xff] %v4298
  %4329 = vst [vmem:[#allocation2 + $0x1c8] sm:$0xff] %v4299
  %4330 = vst [vmem:[#allocation2 + $0x1d0] sm:$0xff] %v4300
  %4331 = vst [vmem:[#allocation2 + $0x1d8] sm:$0xff] %v4301
  %v4332 = vld [vmem:[%s0 + $0xe0] sm:$0xff]
  %v4333 = vld [vmem:[%s0 + $0xe8] sm:$0xff]
  %v4334 = vld [vmem:[%s0 + $0xf0] sm:$0xff]
  %v4335 = vld [vmem:[%s0 + $0xf8] sm:$0xff]
  %v4336 = vld [vmem:[%s0 + $0x100] sm:$0xff]
  %v4337 = vld [vmem:[%s0 + $0x108] sm:$0xff]
  %v4338 = vld [vmem:[%s0 + $0x110] sm:$0xff]
  %v4339 = vld [vmem:[%s0 + $0x118] sm:$0xff]
  %v4340 = vld [vmem:[%s0 + $0x120] sm:$0xff]
  %v4341 = vld [vmem:[%s0 + $0x128] sm:$0xff]
  %v4342 = vld [vmem:[%s0 + $0x130] sm:$0xff]
  %v4343 = vld [vmem:[%s0 + $0x138] sm:$0xff]
  %v4344 = vld [vmem:[%s0 + $0x140] sm:$0xff]
  %v4345 = vld [vmem:[%s0 + $0x148] sm:$0xff]
  %v4346 = vld [vmem:[%s0 + $0x150] sm:$0xff]
  %v4347 = vld [vmem:[%s0 + $0x158] sm:$0xff]
  %v4348 = vld [vmem:[%s0 + $0x160] sm:$0xff]
  %v4349 = vld [vmem:[%s0 + $0x168] sm:$0xff]
  %v4350 = vld [vmem:[%s0 + $0x170] sm:$0xff]
  %v4351 = vld [vmem:[%s0 + $0x178] sm:$0xff]
  %v4352 = vld [vmem:[%s0 + $0x180] sm:$0xff]
  %v4353 = vld [vmem:[%s0 + $0x188] sm:$0xff]
  %v4354 = vld [vmem:[%s0 + $0x190] sm:$0xff]
  %v4355 = vld [vmem:[%s0 + $0x198] sm:$0xff]
  %v4356 = vld [vmem:[%s0 + $0x1a0] sm:$0xff]
  %v4357 = vld [vmem:[%s0 + $0x1a8] sm:$0xff]
  %v4358 = vld [vmem:[%s0 + $0x1b0] sm:$0xff]
  %v4359 = vld [vmem:[%s0 + $0x1b8] sm:$0xff]
  %v4388 = vunpack.c.l.b16 %v4332
  %v4389 = vunpack.c.h.b16 %v4332
  %v4390 = vunpack.c.l.b16 %v4333
  %v4391 = vunpack.c.h.b16 %v4333
  %v4392 = vunpack.c.l.b16 %v4334
  %v4393 = vunpack.c.h.b16 %v4334
  %v4394 = vunpack.c.l.b16 %v4335
  %v4395 = vunpack.c.h.b16 %v4335
  %v4396 = vunpack.c.l.b16 %v4336
  %v4397 = vunpack.c.h.b16 %v4336
  %v4398 = vunpack.c.l.b16 %v4337
  %v4399 = vunpack.c.h.b16 %v4337
  %v4400 = vunpack.c.l.b16 %v4338
  %v4401 = vunpack.c.h.b16 %v4338
  %v4402 = vunpack.c.l.b16 %v4339
  %v4403 = vunpack.c.h.b16 %v4339
  %v4404 = vunpack.c.l.b16 %v4340
  %v4405 = vunpack.c.h.b16 %v4340
  %v4406 = vunpack.c.l.b16 %v4341
  %v4407 = vunpack.c.h.b16 %v4341
  %v4408 = vunpack.c.l.b16 %v4342
  %v4409 = vunpack.c.h.b16 %v4342
  %v4410 = vunpack.c.l.b16 %v4343
  %v4411 = vunpack.c.h.b16 %v4343
  %v4412 = vunpack.c.l.b16 %v4344
  %v4413 = vunpack.c.h.b16 %v4344
  %v4414 = vunpack.c.l.b16 %v4345
  %v4415 = vunpack.c.h.b16 %v4345
  %v4416 = vunpack.c.l.b16 %v4346
  %v4417 = vunpack.c.h.b16 %v4346
  %v4418 = vunpack.c.l.b16 %v4347
  %v4419 = vunpack.c.h.b16 %v4347
  %v4420 = vunpack.c.l.b16 %v4348
  %v4421 = vunpack.c.h.b16 %v4348
  %v4422 = vunpack.c.l.b16 %v4349
  %v4423 = vunpack.c.h.b16 %v4349
  %v4424 = vunpack.c.l.b16 %v4350
  %v4425 = vunpack.c.h.b16 %v4350
  %v4426 = vunpack.c.l.b16 %v4351
  %v4427 = vunpack.c.h.b16 %v4351
  %v4428 = vunpack.c.l.b16 %v4352
  %v4429 = vunpack.c.h.b16 %v4352
  %v4430 = vunpack.c.l.b16 %v4353
  %v4431 = vunpack.c.h.b16 %v4353
  %v4432 = vunpack.c.l.b16 %v4354
  %v4433 = vunpack.c.h.b16 %v4354
  %v4434 = vunpack.c.l.b16 %v4355
  %v4435 = vunpack.c.h.b16 %v4355
  %v4436 = vunpack.c.l.b16 %v4356
  %v4437 = vunpack.c.h.b16 %v4356
  %v4438 = vunpack.c.l.b16 %v4357
  %v4439 = vunpack.c.h.b16 %v4357
  %v4440 = vunpack.c.l.b16 %v4358
  %v4441 = vunpack.c.h.b16 %v4358
  %v4442 = vunpack.c.l.b16 %v4359
  %v4443 = vunpack.c.h.b16 %v4359
  %v4444 = vpack.c.b16 %v4390, %v4388
  %v4445 = vpack.c.b16 %v4391, %v4389
  %v4446 = vpack.c.b16 %v4394, %v4392
  %v4447 = vpack.c.b16 %v4395, %v4393
  %v4448 = vpack.c.b16 %v4398, %v4396
  %v4449 = vpack.c.b16 %v4399, %v4397
  %v4450 = vpack.c.b16 %v4402, %v4400
  %v4451 = vpack.c.b16 %v4403, %v4401
  %v4452 = vpack.c.b16 %v4406, %v4404
  %v4453 = vpack.c.b16 %v4407, %v4405
  %v4454 = vpack.c.b16 %v4410, %v4408
  %v4455 = vpack.c.b16 %v4411, %v4409
  %v4456 = vpack.c.b16 %v4414, %v4412
  %v4457 = vpack.c.b16 %v4415, %v4413
  %v4458 = vpack.c.b16 %v4418, %v4416
  %v4459 = vpack.c.b16 %v4419, %v4417
  %v4460 = vpack.c.b16 %v4422, %v4420
  %v4461 = vpack.c.b16 %v4423, %v4421
  %v4462 = vpack.c.b16 %v4426, %v4424
  %v4463 = vpack.c.b16 %v4427, %v4425
  %v4464 = vpack.c.b16 %v4430, %v4428
  %v4465 = vpack.c.b16 %v4431, %v4429
  %v4466 = vpack.c.b16 %v4434, %v4432
  %v4467 = vpack.c.b16 %v4435, %v4433
  %v4468 = vpack.c.b16 %v4438, %v4436
  %v4469 = vpack.c.b16 %v4439, %v4437
  %v4470 = vpack.c.b16 %v4442, %v4440
  %v4471 = vpack.c.b16 %v4443, %v4441
  %4500 = vmatprep.subr.bf16.mxu0 %v4445
  %4501 = vmatpush1.bf16.msra.mxu0 %v4444
  %4502 = vmatprep.subr.bf16.mxu0 %v4447
  %4503 = vmatpush1.bf16.msra.mxu0 %v4446
  %4504 = vmatprep.subr.bf16.mxu0 %v4449
  %4505 = vmatpush1.bf16.msra.mxu0 %v4448
  %4506 = vmatprep.subr.bf16.mxu0 %v4451
  %4507 = vmatpush1.bf16.msra.mxu0 %v4450
  %4508 = vmatprep.subr.bf16.mxu0 %v4453
  %4509 = vmatpush1.bf16.msra.mxu0 %v4452
  %4510 = vmatprep.subr.bf16.mxu0 %v4455
  %4511 = vmatpush1.bf16.msra.mxu0 %v4454
  %4512 = vmatprep.subr.bf16.mxu0 %v4457
  %4513 = vmatpush1.bf16.msra.mxu0 %v4456
  %4514 = vmatprep.subr.bf16.mxu0 %v4459
  %4515 = vmatpush1.bf16.msra.mxu0 %v4458
  %4516 = vmatprep.subr.bf16.mxu0 %v4461
  %4517 = vmatpush1.bf16.msra.mxu0 %v4460
  %4518 = vmatprep.subr.bf16.mxu0 %v4463
  %4519 = vmatpush1.bf16.msra.mxu0 %v4462
  %4520 = vmatprep.subr.bf16.mxu0 %v4465
  %4521 = vmatpush1.bf16.msra.mxu0 %v4464
  %4522 = vmatprep.subr.bf16.mxu0 %v4467
  %4523 = vmatpush1.bf16.msra.mxu0 %v4466
  %4524 = vmatprep.subr.bf16.mxu0 %v4469
  %4525 = vmatpush1.bf16.msra.mxu0 %v4468
  %4526 = vmatprep.subr.bf16.mxu0 %v4471
  %4527 = vmatpush1.bf16.msra.mxu0 %v4470
  %4528 = vmatprep.subr.bf16.mxu0 0
  %4529 = vmatpush1.bf16.msra.mxu0 0
  %4530 = vmatprep.subr.bf16.mxu0 0
  %4531 = vmatpush1.bf16.msra.mxu0 0
  %4532 = vmatprep.mubr.bf16.mxu0 %v1759
  %4533 = vmatmul.mubr.bf16.gmra.mrb[0].mxu0 %v1437
  %v4534 = vpop.f32.mrb[0].mxu0
  %v4535 = vadd.f32 %v332, %v4534
  %v4536 = vpop.f32.mrb[0].mxu0
  %v4537 = vadd.f32 %v332, %v4536
  %v4538 = vpop.f32.mrb[0].mxu0
  %v4539 = vadd.f32 %v337, %v4538
  %v4540 = vpop.f32.mrb[0].mxu0
  %v4541 = vadd.f32 %v337, %v4540
  %4542 = vmatprep.mubr.bf16.mxu0 %v1762
  %4543 = vmatmul.mubr.bf16.gmra.mrb[0].mxu0 %v1439
  %v4544 = vpop.f32.mrb[0].mxu0
  %v4545 = vadd.f32 %v342, %v4544
  %v4546 = vpop.f32.mrb[0].mxu0
  %v4547 = vadd.f32 %v342, %v4546
  %v4548 = vpop.f32.mrb[0].mxu0
  %v4549 = vadd.f32 %v347, %v4548
  %v4550 = vpop.f32.mrb[0].mxu0
  %v4551 = vadd.f32 %v347, %v4550
  %4552 = vmatprep.mubr.bf16.mxu0 %v1765
  %4553 = vmatmul.mubr.bf16.gmra.mrb[0].mxu0 %v1441
  %v4554 = vpop.f32.mrb[0].mxu0
  %v4555 = vadd.f32 %v352, %v4554
  %v4556 = vpop.f32.mrb[0].mxu0
  %v4557 = vadd.f32 %v352, %v4556
  %v4558 = vpop.f32.mrb[0].mxu0
  %v4559 = vadd.f32 %v357, %v4558
  %v4560 = vpop.f32.mrb[0].mxu0
  %v4561 = vadd.f32 %v357, %v4560
  %4562 = vmatprep.mubr.bf16.mxu0 %v1768
  %4563 = vmatmul.mubr.bf16.gmra.mrb[0].mxu0 %v1443
  %v4564 = vpop.f32.mrb[0].mxu0
  %v4565 = vadd.f32 %v362, %v4564
  %v4566 = vpop.f32.mrb[0].mxu0
  %v4567 = vadd.f32 %v362, %v4566
  %v4568 = vpop.f32.mrb[0].mxu0
  %v4569 = vadd.f32 %v367, %v4568
  %v4570 = vpop.f32.mrb[0].mxu0
  %v4571 = vadd.f32 %v367, %v4570
  %4572 = vmatprep.mubr.bf16.mxu0 %v1771
  %4573 = vmatmul.mubr.bf16.gmra.mrb[0].mxu0 %v1445
  %v4574 = vpop.f32.mrb[0].mxu0
  %v4575 = vadd.f32 %v372, %v4574
  %v4576 = vpop.f32.mrb[0].mxu0
  %v4577 = vadd.f32 %v372, %v4576
  %v4578 = vpop.f32.mrb[0].mxu0
  %v4579 = vadd.f32 %v377, %v4578
  %v4580 = vpop.f32.mrb[0].mxu0
  %v4581 = vadd.f32 %v377, %v4580
  %4582 = vmatprep.mubr.bf16.mxu0 %v1774
  %4583 = vmatmul.mubr.bf16.gmra.mrb[0].mxu0 %v1447
  %v4584 = vpop.f32.mrb[0].mxu0
  %v4585 = vadd.f32 %v382, %v4584
  %v4586 = vpop.f32.mrb[0].mxu0
  %v4587 = vadd.f32 %v382, %v4586
  %v4588 = vpop.f32.mrb[0].mxu0
  %v4589 = vadd.f32 %v387, %v4588
  %v4590 = vpop.f32.mrb[0].mxu0
  %v4591 = vadd.f32 %v387, %v4590
  %4592 = vmatprep.mubr.bf16.mxu0 %v1777
  %4593 = vmatmul.mubr.bf16.gmra.mrb[0].mxu0 %v1449
  %v4594 = vpop.f32.mrb[0].mxu0
  %v4595 = vadd.f32 %v392, %v4594
  %v4596 = vpop.f32.mrb[0].mxu0
  %v4597 = vadd.f32 %v392, %v4596
  %v4598 = vpop.f32.mrb[0].mxu0
  %v4599 = vadd.f32 %v397, %v4598
  %v4600 = vpop.f32.mrb[0].mxu0
  %v4601 = vadd.f32 %v397, %v4600
  %4602 = vmatprep.mubr.bf16.mxu0 %v1780
  %4603 = vmatmul.mubr.bf16.gmra.mrb[0].mxu0 %v1451
  %v4604 = vpop.f32.mrb[0].mxu0
  %v4605 = vadd.f32 %v402, %v4604
  %v4606 = vpop.f32.mrb[0].mxu0
  %v4607 = vadd.f32 %v402, %v4606
  %v4608 = vpop.f32.mrb[0].mxu0
  %v4609 = vadd.f32 %v407, %v4608
  %v4610 = vpop.f32.mrb[0].mxu0
  %v4611 = vadd.f32 %v407, %v4610
  %4612 = vmatprep.mubr.bf16.mxu0 %v1783
  %4613 = vmatmul.mubr.bf16.gmra.mrb[0].mxu0 %v1453
  %v4614 = vpop.f32.mrb[0].mxu0
  %v4615 = vadd.f32 %v412, %v4614
  %v4616 = vpop.f32.mrb[0].mxu0
  %v4617 = vadd.f32 %v412, %v4616
  %v4618 = vpop.f32.mrb[0].mxu0
  %v4619 = vadd.f32 %v417, %v4618
  %v4620 = vpop.f32.mrb[0].mxu0
  %v4621 = vadd.f32 %v417, %v4620
  %4622 = vmatprep.mubr.bf16.mxu0 %v1786
  %4623 = vmatmul.mubr.bf16.gmra.mrb[0].mxu0 %v1455
  %v4624 = vpop.f32.mrb[0].mxu0
  %v4625 = vadd.f32 %v422, %v4624
  %v4626 = vpop.f32.mrb[0].mxu0
  %v4627 = vadd.f32 %v422, %v4626
  %v4628 = vpop.f32.mrb[0].mxu0
  %v4629 = vadd.f32 %v427, %v4628
  %v4630 = vpop.f32.mrb[0].mxu0
  %v4631 = vadd.f32 %v427, %v4630
  %4632 = vmatprep.mubr.bf16.mxu0 %v1789
  %4633 = vmatmul.mubr.bf16.gmra.mrb[0].mxu0 %v1457
  %v4634 = vpop.f32.mrb[0].mxu0
  %v4635 = vadd.f32 %v432, %v4634
  %v4636 = vpop.f32.mrb[0].mxu0
  %v4637 = vadd.f32 %v432, %v4636
  %v4638 = vpop.f32.mrb[0].mxu0
  %v4639 = vadd.f32 %v437, %v4638
  %v4640 = vpop.f32.mrb[0].mxu0
  %v4641 = vadd.f32 %v437, %v4640
  %4642 = vmatprep.mubr.bf16.mxu0 %v1792
  %4643 = vmatmul.mubr.bf16.gmra.mrb[0].mxu0 %v1459
  %v4644 = vpop.f32.mrb[0].mxu0
  %v4645 = vadd.f32 %v442, %v4644
  %v4646 = vpop.f32.mrb[0].mxu0
  %v4647 = vadd.f32 %v442, %v4646
  %v4648 = vpop.f32.mrb[0].mxu0
  %v4649 = vadd.f32 %v447, %v4648
  %v4650 = vpop.f32.mrb[0].mxu0
  %v4651 = vadd.f32 %v447, %v4650
  %4652 = vmatprep.mubr.bf16.mxu0 %v1795
  %4653 = vmatmul.mubr.bf16.gmra.mrb[0].mxu0 %v1461
  %v4654 = vpop.f32.mrb[0].mxu0
  %v4655 = vadd.f32 %v452, %v4654
  %v4656 = vpop.f32.mrb[0].mxu0
  %v4657 = vadd.f32 %v452, %v4656
  %v4658 = vpop.f32.mrb[0].mxu0
  %v4659 = vadd.f32 %v457, %v4658
  %v4660 = vpop.f32.mrb[0].mxu0
  %v4661 = vadd.f32 %v457, %v4660
  %4662 = vmatprep.mubr.bf16.mxu0 %v1798
  %4663 = vmatmul.mubr.bf16.gmra.mrb[0].mxu0 %v1463
  %v4664 = vpop.f32.mrb[0].mxu0
  %v4665 = vadd.f32 %v462, %v4664
  %v4666 = vpop.f32.mrb[0].mxu0
  %v4667 = vadd.f32 %v462, %v4666
  %v4668 = vpop.f32.mrb[0].mxu0
  %v4669 = vadd.f32 %v467, %v4668
  %v4670 = vpop.f32.mrb[0].mxu0
  %v4671 = vadd.f32 %v467, %v4670
  %4672 = vmatprep.mubr.bf16.mxu0 %v1801
  %4673 = vmatmul.mubr.bf16.gmra.mrb[0].mxu0 %v1465
  %v4674 = vpop.f32.mrb[0].mxu0
  %v4675 = vadd.f32 %v472, %v4674
  %v4676 = vpop.f32.mrb[0].mxu0
  %v4677 = vadd.f32 %v472, %v4676
  %v4678 = vpop.f32.mrb[0].mxu0
  %v4679 = vadd.f32 %v477, %v4678
  %v4680 = vpop.f32.mrb[0].mxu0
  %v4681 = vadd.f32 %v477, %v4680
  %4682 = vmatprep.mubr.bf16.mxu0 %v1804
  %4683 = vmatmul.mubr.bf16.gmra.mrb[0].mxu0 %v1467
  %v4684 = vpop.f32.mrb[0].mxu0
  %v4685 = vadd.f32 %v482, %v4684
  %v4686 = vpop.f32.mrb[0].mxu0
  %v4687 = vadd.f32 %v482, %v4686
  %v4688 = vpop.f32.mrb[0].mxu0
  %v4689 = vadd.f32 %v487, %v4688
  %v4690 = vpop.f32.mrb[0].mxu0
  %v4691 = vadd.f32 %v487, %v4690
  %4692 = vmatprep.mubr.bf16.mxu0 %v1807
  %4693 = vmatmul.mubr.bf16.gmra.mrb[0].mxu0 %v1469
  %v4694 = vpop.f32.mrb[0].mxu0
  %v4695 = vadd.f32 %v492, %v4694
  %v4696 = vpop.f32.mrb[0].mxu0
  %v4697 = vadd.f32 %v492, %v4696
  %v4698 = vpop.f32.mrb[0].mxu0
  %v4699 = vadd.f32 %v497, %v4698
  %v4700 = vpop.f32.mrb[0].mxu0
  %v4701 = vadd.f32 %v497, %v4700
  %4702 = vmatprep.mubr.bf16.mxu0 %v1810
  %4703 = vmatmul.mubr.bf16.gmra.mrb[0].mxu0 %v1471
  %v4704 = vpop.f32.mrb[0].mxu0
  %v4705 = vadd.f32 %v502, %v4704
  %v4706 = vpop.f32.mrb[0].mxu0
  %v4707 = vadd.f32 %v502, %v4706
  %v4708 = vpop.f32.mrb[0].mxu0
  %v4709 = vadd.f32 %v507, %v4708
  %v4710 = vpop.f32.mrb[0].mxu0
  %v4711 = vadd.f32 %v507, %v4710
  %4712 = vmatprep.mubr.bf16.mxu0 %v1813
  %4713 = vmatmul.mubr.bf16.gmra.mrb[0].mxu0 %v1473
  %v4714 = vpop.f32.mrb[0].mxu0
  %v4715 = vadd.f32 %v512, %v4714
  %v4716 = vpop.f32.mrb[0].mxu0
  %v4717 = vadd.f32 %v512, %v4716
  %v4718 = vpop.f32.mrb[0].mxu0
  %v4719 = vadd.f32 %v517, %v4718
  %v4720 = vpop.f32.mrb[0].mxu0
  %v4721 = vadd.f32 %v517, %v4720
  %4722 = vmatprep.mubr.bf16.mxu0 %v1816
  %4723 = vmatmul.mubr.bf16.gmra.mrb[0].mxu0 %v1475
  %v4724 = vpop.f32.mrb[0].mxu0
  %v4725 = vadd.f32 %v522, %v4724
  %v4726 = vpop.f32.mrb[0].mxu0
  %v4727 = vadd.f32 %v522, %v4726
  %v4728 = vpop.f32.mrb[0].mxu0
  %v4729 = vadd.f32 %v527, %v4728
  %v4730 = vpop.f32.mrb[0].mxu0
  %v4731 = vadd.f32 %v527, %v4730
  %4732 = vmatprep.mubr.bf16.mxu0 %v1819
  %4733 = vmatmul.mubr.bf16.gmra.mrb[0].mxu0 %v1477
  %v4734 = vpop.f32.mrb[0].mxu0
  %v4735 = vadd.f32 %v532, %v4734
  %v4736 = vpop.f32.mrb[0].mxu0
  %v4737 = vadd.f32 %v532, %v4736
  %v4738 = vpop.f32.mrb[0].mxu0
  %v4739 = vadd.f32 %v537, %v4738
  %v4740 = vpop.f32.mrb[0].mxu0
  %v4741 = vadd.f32 %v537, %v4740
  %4742 = vmatprep.mubr.bf16.mxu0 %v1822
  %4743 = vmatmul.mubr.bf16.gmra.mrb[0].mxu0 %v1479
  %v4744 = vpop.f32.mrb[0].mxu0
  %v4745 = vadd.f32 %v542, %v4744
  %v4746 = vpop.f32.mrb[0].mxu0
  %v4747 = vadd.f32 %v542, %v4746
  %v4748 = vpop.f32.mrb[0].mxu0
  %v4749 = vadd.f32 %v547, %v4748
  %v4750 = vpop.f32.mrb[0].mxu0
  %v4751 = vadd.f32 %v547, %v4750
  %4752 = vmatprep.mubr.bf16.mxu0 %v1825
  %4753 = vmatmul.mubr.bf16.gmra.mrb[0].mxu0 %v1481
  %v4754 = vpop.f32.mrb[0].mxu0
  %v4755 = vadd.f32 %v552, %v4754
  %v4756 = vpop.f32.mrb[0].mxu0
  %v4757 = vadd.f32 %v552, %v4756
  %v4758 = vpop.f32.mrb[0].mxu0
  %v4759 = vadd.f32 %v557, %v4758
  %v4760 = vpop.f32.mrb[0].mxu0
  %v4761 = vadd.f32 %v557, %v4760
  %4762 = vmatprep.mubr.bf16.mxu0 %v1828
  %4763 = vmatmul.mubr.bf16.gmra.mrb[0].mxu0 %v1483
  %v4764 = vpop.f32.mrb[0].mxu0
  %v4765 = vadd.f32 %v562, %v4764
  %v4766 = vpop.f32.mrb[0].mxu0
  %v4767 = vadd.f32 %v562, %v4766
  %v4768 = vpop.f32.mrb[0].mxu0
  %v4769 = vadd.f32 %v567, %v4768
  %v4770 = vpop.f32.mrb[0].mxu0
  %v4771 = vadd.f32 %v567, %v4770
  %4772 = vmatprep.mubr.bf16.mxu0 %v1831
  %4773 = vmatmul.mubr.bf16.gmra.mrb[0].mxu0 %v1485
  %v4774 = vpop.f32.mrb[0].mxu0
  %v4775 = vadd.f32 %v572, %v4774
  %v4776 = vpop.f32.mrb[0].mxu0
  %v4777 = vadd.f32 %v572, %v4776
  %v4778 = vpop.f32.mrb[0].mxu0
  %v4779 = vadd.f32 %v577, %v4778
  %v4780 = vpop.f32.mrb[0].mxu0
  %v4781 = vadd.f32 %v577, %v4780
  %4782 = vmatprep.mubr.bf16.mxu0 %v1834
  %4783 = vmatmul.mubr.bf16.gmra.mrb[0].mxu0 %v1487
  %v4784 = vpop.f32.mrb[0].mxu0
  %v4785 = vadd.f32 %v582, %v4784
  %v4786 = vpop.f32.mrb[0].mxu0
  %v4787 = vadd.f32 %v582, %v4786
  %v4788 = vpop.f32.mrb[0].mxu0
  %v4789 = vadd.f32 %v587, %v4788
  %v4790 = vpop.f32.mrb[0].mxu0
  %v4791 = vadd.f32 %v587, %v4790
  %4792 = vmatprep.mubr.bf16.mxu0 %v1837
  %4793 = vmatmul.mubr.bf16.gmra.mrb[0].mxu0 %v1489
  %v4794 = vpop.f32.mrb[0].mxu0
  %v4795 = vadd.f32 %v592, %v4794
  %v4796 = vpop.f32.mrb[0].mxu0
  %v4797 = vadd.f32 %v592, %v4796
  %v4798 = vpop.f32.mrb[0].mxu0
  %v4799 = vadd.f32 %v597, %v4798
  %v4800 = vpop.f32.mrb[0].mxu0
  %v4801 = vadd.f32 %v597, %v4800
  %4802 = vmatprep.mubr.bf16.mxu0 %v1840
  %4803 = vmatmul.mubr.bf16.gmra.mrb[0].mxu0 %v1491
  %v4804 = vpop.f32.mrb[0].mxu0
  %v4805 = vadd.f32 %v602, %v4804
  %v4806 = vpop.f32.mrb[0].mxu0
  %v4807 = vadd.f32 %v602, %v4806
  %v4808 = vpop.f32.mrb[0].mxu0
  %v4809 = vadd.f32 %v607, %v4808
  %v4810 = vpop.f32.mrb[0].mxu0
  %v4811 = vadd.f32 %v607, %v4810
  %4812 = vmatprep.mubr.bf16.mxu0 %v1843
  %4813 = vmatmul.mubr.bf16.gmra.mrb[0].mxu0 %v1493
  %v4814 = vpop.f32.mrb[0].mxu0
  %v4815 = vadd.f32 %v612, %v4814
  %v4816 = vpop.f32.mrb[0].mxu0
  %v4817 = vadd.f32 %v612, %v4816
  %v4818 = vpop.f32.mrb[0].mxu0
  %v4819 = vadd.f32 %v617, %v4818
  %v4820 = vpop.f32.mrb[0].mxu0
  %v4821 = vadd.f32 %v617, %v4820
  %4822 = vmatprep.mubr.bf16.mxu0 %v1846
  %4823 = vmatmul.mubr.bf16.gmra.mrb[0].mxu0 %v1495
  %v4824 = vpop.f32.mrb[0].mxu0
  %v4825 = vadd.f32 %v622, %v4824
  %v4826 = vpop.f32.mrb[0].mxu0
  %v4827 = vadd.f32 %v622, %v4826
  %v4828 = vpop.f32.mrb[0].mxu0
  %v4829 = vadd.f32 %v627, %v4828
  %v4830 = vpop.f32.mrb[0].mxu0
  %v4831 = vadd.f32 %v627, %v4830
  %4832 = vmatprep.mubr.bf16.mxu0 %v1849
  %4833 = vmatmul.mubr.bf16.gmra.mrb[0].mxu0 %v1497
  %v4834 = vpop.f32.mrb[0].mxu0
  %v4835 = vadd.f32 %v632, %v4834
  %v4836 = vpop.f32.mrb[0].mxu0
  %v4837 = vadd.f32 %v632, %v4836
  %v4838 = vpop.f32.mrb[0].mxu0
  %v4839 = vadd.f32 %v637, %v4838
  %v4840 = vpop.f32.mrb[0].mxu0
  %v4841 = vadd.f32 %v637, %v4840
  %4842 = vmatprep.mubr.bf16.mxu0 %v1852
  %4843 = vmatmul.mubr.bf16.gmra.mrb[0].mxu0 %v1499
  %v4844 = vpop.f32.mrb[0].mxu0
  %v4845 = vadd.f32 %v642, %v4844
  %v4846 = vpop.f32.mrb[0].mxu0
  %v4847 = vadd.f32 %v642, %v4846
  %v4848 = vpop.f32.mrb[0].mxu0
  %v4849 = vadd.f32 %v647, %v4848
  %v4850 = vpop.f32.mrb[0].mxu0
  %v4851 = vadd.f32 %v647, %v4850
  %4852 = vmatprep.mubr.bf16.mxu0 %v1855
  %4853 = vmatmul.mubr.bf16.gmra.mrb[0].mxu0 %v1501
  %v4854 = vpop.f32.mrb[0].mxu0
  %v4855 = vadd.f32 %v652, %v4854
  %v4856 = vpop.f32.mrb[0].mxu0
  %v4857 = vadd.f32 %v652, %v4856
  %v4858 = vpop.f32.mrb[0].mxu0
  %v4859 = vadd.f32 %v657, %v4858
  %v4860 = vpop.f32.mrb[0].mxu0
  %v4861 = vadd.f32 %v657, %v4860
  %4862 = vmatprep.mubr.bf16.mxu0 %v1858
  %4863 = vmatmul.mubr.bf16.gmra.mrb[0].mxu0 %v1503
  %v4864 = vpop.f32.mrb[0].mxu0
  %v4865 = vadd.f32 %v662, %v4864
  %v4866 = vpop.f32.mrb[0].mxu0
  %v4867 = vadd.f32 %v662, %v4866
  %v4868 = vpop.f32.mrb[0].mxu0
  %v4869 = vadd.f32 %v667, %v4868
  %v4870 = vpop.f32.mrb[0].mxu0
  %v4871 = vadd.f32 %v667, %v4870
  %4872 = vmatprep.mubr.bf16.mxu0 %v1861
  %4873 = vmatmul.mubr.bf16.gmra.mrb[0].mxu0 %v1505
  %v4874 = vpop.f32.mrb[0].mxu0
  %v4875 = vadd.f32 %v672, %v4874
  %v4876 = vpop.f32.mrb[0].mxu0
  %v4877 = vadd.f32 %v672, %v4876
  %v4878 = vpop.f32.mrb[0].mxu0
  %v4879 = vadd.f32 %v677, %v4878
  %v4880 = vpop.f32.mrb[0].mxu0
  %v4881 = vadd.f32 %v677, %v4880
  %4882 = vmatprep.mubr.bf16.mxu0 %v1864
  %4883 = vmatmul.mubr.bf16.gmra.mrb[0].mxu0 %v1507
  %v4884 = vpop.f32.mrb[0].mxu0
  %v4885 = vadd.f32 %v682, %v4884
  %v4886 = vpop.f32.mrb[0].mxu0
  %v4887 = vadd.f32 %v682, %v4886
  %v4888 = vpop.f32.mrb[0].mxu0
  %v4889 = vadd.f32 %v687, %v4888
  %v4890 = vpop.f32.mrb[0].mxu0
  %v4891 = vadd.f32 %v687, %v4890
  %4892 = vmatprep.mubr.bf16.mxu0 %v1867
  %4893 = vmatmul.mubr.bf16.gmra.mrb[0].mxu0 %v1509
  %v4894 = vpop.f32.mrb[0].mxu0
  %v4895 = vadd.f32 %v692, %v4894
  %v4896 = vpop.f32.mrb[0].mxu0
  %v4897 = vadd.f32 %v692, %v4896
  %v4898 = vpop.f32.mrb[0].mxu0
  %v4899 = vadd.f32 %v697, %v4898
  %v4900 = vpop.f32.mrb[0].mxu0
  %v4901 = vadd.f32 %v697, %v4900
  %4902 = vmatprep.mubr.bf16.mxu0 %v1870
  %4903 = vmatmul.mubr.bf16.gmra.mrb[0].mxu0 %v1511
  %v4904 = vpop.f32.mrb[0].mxu0
  %v4905 = vadd.f32 %v702, %v4904
  %v4906 = vpop.f32.mrb[0].mxu0
  %v4907 = vadd.f32 %v702, %v4906
  %v4908 = vpop.f32.mrb[0].mxu0
  %v4909 = vadd.f32 %v707, %v4908
  %v4910 = vpop.f32.mrb[0].mxu0
  %v4911 = vadd.f32 %v707, %v4910
  %4912 = vmatprep.mubr.bf16.mxu0 %v1873
  %4913 = vmatmul.mubr.bf16.gmra.mrb[0].mxu0 %v1513
  %v4914 = vpop.f32.mrb[0].mxu0
  %v4915 = vadd.f32 %v712, %v4914
  %v4916 = vpop.f32.mrb[0].mxu0
  %v4917 = vadd.f32 %v712, %v4916
  %v4918 = vpop.f32.mrb[0].mxu0
  %v4919 = vadd.f32 %v717, %v4918
  %v4920 = vpop.f32.mrb[0].mxu0
  %v4921 = vadd.f32 %v717, %v4920
  %4922 = vmatprep.mubr.bf16.mxu0 %v1876
  %4923 = vmatmul.mubr.bf16.gmra.mrb[0].mxu0 %v1515
  %v4924 = vpop.f32.mrb[0].mxu0
  %v4925 = vadd.f32 %v722, %v4924
  %v4926 = vpop.f32.mrb[0].mxu0
  %v4927 = vadd.f32 %v722, %v4926
  %v4928 = vpop.f32.mrb[0].mxu0
  %v4929 = vadd.f32 %v727, %v4928
  %v4930 = vpop.f32.mrb[0].mxu0
  %v4931 = vadd.f32 %v727, %v4930
  %4932 = vmatprep.mubr.bf16.mxu0 %v1879
  %4933 = vmatmul.mubr.bf16.gmra.mrb[0].mxu0 %v1517
  %v4934 = vpop.f32.mrb[0].mxu0
  %v4935 = vadd.f32 %v732, %v4934
  %v4936 = vpop.f32.mrb[0].mxu0
  %v4937 = vadd.f32 %v732, %v4936
  %v4938 = vpop.f32.mrb[0].mxu0
  %v4939 = vadd.f32 %v737, %v4938
  %v4940 = vpop.f32.mrb[0].mxu0
  %v4941 = vadd.f32 %v737, %v4940
  %4942 = vmatprep.mubr.bf16.mxu0 %v1882
  %4943 = vmatmul.mubr.bf16.gmra.mrb[0].mxu0 %v1519
  %v4944 = vpop.f32.mrb[0].mxu0
  %v4945 = vadd.f32 %v742, %v4944
  %v4946 = vpop.f32.mrb[0].mxu0
  %v4947 = vadd.f32 %v742, %v4946
  %v4948 = vpop.f32.mrb[0].mxu0
  %v4949 = vadd.f32 %v747, %v4948
  %v4950 = vpop.f32.mrb[0].mxu0
  %v4951 = vadd.f32 %v747, %v4950
  %4952 = vmatprep.mubr.bf16.mxu0 %v1885
  %4953 = vmatmul.mubr.bf16.gmra.mrb[0].mxu0 %v1521
  %v4954 = vpop.f32.mrb[0].mxu0
  %v4955 = vadd.f32 %v752, %v4954
  %v4956 = vpop.f32.mrb[0].mxu0
  %v4957 = vadd.f32 %v752, %v4956
  %v4958 = vpop.f32.mrb[0].mxu0
  %v4959 = vadd.f32 %v757, %v4958
  %v4960 = vpop.f32.mrb[0].mxu0
  %v4961 = vadd.f32 %v757, %v4960
  %4962 = vmatprep.mubr.bf16.mxu0 %v1888
  %4963 = vmatmul.mubr.bf16.gmra.mrb[0].mxu0 %v1523
  %v4964 = vpop.f32.mrb[0].mxu0
  %v4965 = vadd.f32 %v762, %v4964
  %v4966 = vpop.f32.mrb[0].mxu0
  %v4967 = vadd.f32 %v762, %v4966
  %v4968 = vpop.f32.mrb[0].mxu0
  %v4969 = vadd.f32 %v767, %v4968
  %v4970 = vpop.f32.mrb[0].mxu0
  %v4971 = vadd.f32 %v767, %v4970
  %4972 = vmatprep.mubr.bf16.mxu0 %v1891
  %4973 = vmatmul.mubr.bf16.gmra.mrb[0].mxu0 %v1525
  %v4974 = vpop.f32.mrb[0].mxu0
  %v4975 = vadd.f32 %v772, %v4974
  %v4976 = vpop.f32.mrb[0].mxu0
  %v4977 = vadd.f32 %v772, %v4976
  %v4978 = vpop.f32.mrb[0].mxu0
  %v4979 = vadd.f32 %v777, %v4978
  %v4980 = vpop.f32.mrb[0].mxu0
  %v4981 = vadd.f32 %v777, %v4980
  %4982 = vmatprep.mubr.bf16.mxu0 %v1894
  %4983 = vmatmul.mubr.bf16.gmra.mrb[0].mxu0 %v1527
  %v4984 = vpop.f32.mrb[0].mxu0
  %v4985 = vadd.f32 %v782, %v4984
  %v4986 = vpop.f32.mrb[0].mxu0
  %v4987 = vadd.f32 %v782, %v4986
  %v4988 = vpop.f32.mrb[0].mxu0
  %v4989 = vadd.f32 %v787, %v4988
  %v4990 = vpop.f32.mrb[0].mxu0
  %v4991 = vadd.f32 %v787, %v4990
  %4992 = vmatprep.mubr.bf16.mxu0 %v1897
  %4993 = vmatmul.mubr.bf16.gmra.mrb[0].mxu0 %v1529
  %v4994 = vpop.f32.mrb[0].mxu0
  %v4995 = vadd.f32 %v792, %v4994
  %v4996 = vpop.f32.mrb[0].mxu0
  %v4997 = vadd.f32 %v792, %v4996
  %v4998 = vpop.f32.mrb[0].mxu0
  %v4999 = vadd.f32 %v797, %v4998
  %v5000 = vpop.f32.mrb[0].mxu0
  %v5001 = vadd.f32 %v797, %v5000
  %5002 = vmatprep.mubr.bf16.mxu0 %v1900
  %5003 = vmatmul.mubr.bf16.gmra.mrb[0].mxu0 %v1531
  %v5004 = vpop.f32.mrb[0].mxu0
  %v5005 = vadd.f32 %v802, %v5004
  %v5006 = vpop.f32.mrb[0].mxu0
  %v5007 = vadd.f32 %v802, %v5006
  %v5008 = vpop.f32.mrb[0].mxu0
  %v5009 = vadd.f32 %v807, %v5008
  %v5010 = vpop.f32.mrb[0].mxu0
  %v5011 = vadd.f32 %v807, %v5010
  %5012 = vmatprep.mubr.bf16.mxu0 %v1903
  %5013 = vmatmul.mubr.bf16.gmra.mrb[0].mxu0 %v1533
  %v5014 = vpop.f32.mrb[0].mxu0
  %v5015 = vadd.f32 %v812, %v5014
  %v5016 = vpop.f32.mrb[0].mxu0
  %v5017 = vadd.f32 %v812, %v5016
  %v5018 = vpop.f32.mrb[0].mxu0
  %v5019 = vadd.f32 %v817, %v5018
  %v5020 = vpop.f32.mrb[0].mxu0
  %v5021 = vadd.f32 %v817, %v5020
  %5022 = vmatprep.mubr.bf16.mxu0 %v1906
  %5023 = vmatmul.mubr.bf16.gmra.mrb[0].mxu0 %v1535
  %v5024 = vpop.f32.mrb[0].mxu0
  %v5025 = vadd.f32 %v822, %v5024
  %v5026 = vpop.f32.mrb[0].mxu0
  %v5027 = vadd.f32 %v822, %v5026
  %v5028 = vpop.f32.mrb[0].mxu0
  %v5029 = vadd.f32 %v827, %v5028
  %v5030 = vpop.f32.mrb[0].mxu0
  %v5031 = vadd.f32 %v827, %v5030
  %5032 = vmatprep.mubr.bf16.mxu0 %v1909
  %5033 = vmatmul.mubr.bf16.gmra.mrb[0].mxu0 %v1537
  %v5034 = vpop.f32.mrb[0].mxu0
  %v5035 = vadd.f32 %v832, %v5034
  %v5036 = vpop.f32.mrb[0].mxu0
  %v5037 = vadd.f32 %v832, %v5036
  %v5038 = vpop.f32.mrb[0].mxu0
  %v5039 = vadd.f32 %v837, %v5038
  %v5040 = vpop.f32.mrb[0].mxu0
  %v5041 = vadd.f32 %v837, %v5040
  %5042 = vmatprep.mubr.bf16.mxu0 %v1912
  %5043 = vmatmul.mubr.bf16.gmra.mrb[0].mxu0 %v1539
  %v5044 = vpop.f32.mrb[0].mxu0
  %v5045 = vadd.f32 %v842, %v5044
  %v5046 = vpop.f32.mrb[0].mxu0
  %v5047 = vadd.f32 %v842, %v5046
  %v5048 = vpop.f32.mrb[0].mxu0
  %v5049 = vadd.f32 %v847, %v5048
  %v5050 = vpop.f32.mrb[0].mxu0
  %v5051 = vadd.f32 %v847, %v5050
  %5052 = vmatprep.mubr.bf16.mxu0 %v1915
  %5053 = vmatmul.mubr.bf16.gmra.mrb[0].mxu0 %v1541
  %v5054 = vpop.f32.mrb[0].mxu0
  %v5055 = vadd.f32 %v852, %v5054
  %v5056 = vpop.f32.mrb[0].mxu0
  %v5057 = vadd.f32 %v852, %v5056
  %v5058 = vpop.f32.mrb[0].mxu0
  %v5059 = vadd.f32 %v857, %v5058
  %v5060 = vpop.f32.mrb[0].mxu0
  %v5061 = vadd.f32 %v857, %v5060
  %5062 = vmatprep.mubr.bf16.mxu0 %v1918
  %5063 = vmatmul.mubr.bf16.gmra.mrb[0].mxu0 %v1543
  %v5064 = vpop.f32.mrb[0].mxu0
  %v5065 = vadd.f32 %v862, %v5064
  %v5066 = vpop.f32.mrb[0].mxu0
  %v5067 = vadd.f32 %v862, %v5066
  %v5068 = vpop.f32.mrb[0].mxu0
  %v5069 = vadd.f32 %v867, %v5068
  %v5070 = vpop.f32.mrb[0].mxu0
  %v5071 = vadd.f32 %v867, %v5070
  %5072 = vmatprep.mubr.bf16.mxu0 %v1921
  %5073 = vmatmul.mubr.bf16.gmra.mrb[0].mxu0 %v1545
  %v5074 = vpop.f32.mrb[0].mxu0
  %v5075 = vadd.f32 %v872, %v5074
  %v5076 = vpop.f32.mrb[0].mxu0
  %v5077 = vadd.f32 %v872, %v5076
  %v5078 = vpop.f32.mrb[0].mxu0
  %v5079 = vadd.f32 %v877, %v5078
  %v5080 = vpop.f32.mrb[0].mxu0
  %v5081 = vadd.f32 %v877, %v5080
  %5082 = vmatprep.mubr.bf16.mxu0 %v1924
  %5083 = vmatmul.mubr.bf16.gmra.mrb[0].mxu0 %v1547
  %v5084 = vpop.f32.mrb[0].mxu0
  %v5085 = vadd.f32 %v882, %v5084
  %v5086 = vpop.f32.mrb[0].mxu0
  %v5087 = vadd.f32 %v882, %v5086
  %v5088 = vpop.f32.mrb[0].mxu0
  %v5089 = vadd.f32 %v887, %v5088
  %v5090 = vpop.f32.mrb[0].mxu0
  %v5091 = vadd.f32 %v887, %v5090
  %5092 = vmatprep.mubr.bf16.mxu0 %v1927
  %5093 = vmatmul.mubr.bf16.gmra.mrb[0].mxu0 %v1549
  %v5094 = vpop.f32.mrb[0].mxu0
  %v5095 = vadd.f32 %v892, %v5094
  %v5096 = vpop.f32.mrb[0].mxu0
  %v5097 = vadd.f32 %v892, %v5096
  %v5098 = vpop.f32.mrb[0].mxu0
  %v5099 = vadd.f32 %v897, %v5098
  %v5100 = vpop.f32.mrb[0].mxu0
  %v5101 = vadd.f32 %v897, %v5100
  %5102 = vmatprep.mubr.bf16.mxu0 %v1930
  %5103 = vmatmul.mubr.bf16.gmra.mrb[0].mxu0 %v1551
  %v5104 = vpop.f32.mrb[0].mxu0
  %v5105 = vadd.f32 %v902, %v5104
  %v5106 = vpop.f32.mrb[0].mxu0
  %v5107 = vadd.f32 %v902, %v5106
  %v5108 = vpop.f32.mrb[0].mxu0
  %v5109 = vadd.f32 %v907, %v5108
  %v5110 = vpop.f32.mrb[0].mxu0
  %v5111 = vadd.f32 %v907, %v5110
  %5112 = vmatprep.mubr.bf16.mxu0 %v1933
  %5113 = vmatmul.mubr.bf16.gmra.mrb[0].mxu0 %v1553
  %v5114 = vpop.f32.mrb[0].mxu0
  %v5115 = vadd.f32 %v912, %v5114
  %v5116 = vpop.f32.mrb[0].mxu0
  %v5117 = vadd.f32 %v912, %v5116
  %v5118 = vpop.f32.mrb[0].mxu0
  %v5119 = vadd.f32 %v917, %v5118
  %v5120 = vpop.f32.mrb[0].mxu0
  %v5121 = vadd.f32 %v917, %v5120
  %5122 = vmatprep.mubr.bf16.mxu0 %v1936
  %5123 = vmatmul.mubr.bf16.gmra.mrb[0].mxu0 %v1555
  %v5124 = vpop.f32.mrb[0].mxu0
  %v5125 = vadd.f32 %v922, %v5124
  %v5126 = vpop.f32.mrb[0].mxu0
  %v5127 = vadd.f32 %v922, %v5126
  %v5128 = vpop.f32.mrb[0].mxu0
  %v5129 = vadd.f32 %v927, %v5128
  %v5130 = vpop.f32.mrb[0].mxu0
  %v5131 = vadd.f32 %v927, %v5130
  %5132 = vdwg.mxu0
  %v5133 = vmax.f32 %v4535, 0.0
  %v5134 = vmax.f32 %v4537, 0.0
  %v5135 = vmax.f32 %v4539, 0.0
  %v5136 = vmax.f32 %v4541, 0.0
  %v5137 = vmax.f32 %v4545, 0.0
  %v5138 = vmax.f32 %v4547, 0.0
  %v5139 = vmax.f32 %v4549, 0.0
  %v5140 = vmax.f32 %v4551, 0.0
  %v5141 = vmax.f32 %v4555, 0.0
  %v5142 = vmax.f32 %v4557, 0.0
  %v5143 = vmax.f32 %v4559, 0.0
  %v5144 = vmax.f32 %v4561, 0.0
  %v5145 = vmax.f32 %v4565, 0.0
  %v5146 = vmax.f32 %v4567, 0.0
  %v5147 = vmax.f32 %v4569, 0.0
  %v5148 = vmax.f32 %v4571, 0.0
  %v5149 = vmax.f32 %v4575, 0.0
  %v5150 = vmax.f32 %v4577, 0.0
  %v5151 = vmax.f32 %v4579, 0.0
  %v5152 = vmax.f32 %v4581, 0.0
  %v5153 = vmax.f32 %v4585, 0.0
  %v5154 = vmax.f32 %v4587, 0.0
  %v5155 = vmax.f32 %v4589, 0.0
  %v5156 = vmax.f32 %v4591, 0.0
  %v5157 = vmax.f32 %v4595, 0.0
  %v5158 = vmax.f32 %v4597, 0.0
  %v5159 = vmax.f32 %v4599, 0.0
  %v5160 = vmax.f32 %v4601, 0.0
  %v5161 = vmax.f32 %v4605, 0.0
  %v5162 = vmax.f32 %v4607, 0.0
  %v5163 = vmax.f32 %v4609, 0.0
  %v5164 = vmax.f32 %v4611, 0.0
  %v5165 = vmax.f32 %v4615, 0.0
  %v5166 = vmax.f32 %v4617, 0.0
  %v5167 = vmax.f32 %v4619, 0.0
  %v5168 = vmax.f32 %v4621, 0.0
  %v5169 = vmax.f32 %v4625, 0.0
  %v5170 = vmax.f32 %v4627, 0.0
  %v5171 = vmax.f32 %v4629, 0.0
  %v5172 = vmax.f32 %v4631, 0.0
  %v5173 = vmax.f32 %v4635, 0.0
  %v5174 = vmax.f32 %v4637, 0.0
  %v5175 = vmax.f32 %v4639, 0.0
  %v5176 = vmax.f32 %v4641, 0.0
  %v5177 = vmax.f32 %v4645, 0.0
  %v5178 = vmax.f32 %v4647, 0.0
  %v5179 = vmax.f32 %v4649, 0.0
  %v5180 = vmax.f32 %v4651, 0.0
  %v5181 = vmax.f32 %v4655, 0.0
  %v5182 = vmax.f32 %v4657, 0.0
  %v5183 = vmax.f32 %v4659, 0.0
  %v5184 = vmax.f32 %v4661, 0.0
  %v5185 = vmax.f32 %v4665, 0.0
  %v5186 = vmax.f32 %v4667, 0.0
  %v5187 = vmax.f32 %v4669, 0.0
  %v5188 = vmax.f32 %v4671, 0.0
  %v5189 = vmax.f32 %v4675, 0.0
  %v5190 = vmax.f32 %v4677, 0.0
  %v5191 = vmax.f32 %v4679, 0.0
  %v5192 = vmax.f32 %v4681, 0.0
  %v5193 = vmax.f32 %v4685, 0.0
  %v5194 = vmax.f32 %v4687, 0.0
  %v5195 = vmax.f32 %v4689, 0.0
  %v5196 = vmax.f32 %v4691, 0.0
  %v5197 = vmax.f32 %v4695, 0.0
  %v5198 = vmax.f32 %v4697, 0.0
  %v5199 = vmax.f32 %v4699, 0.0
  %v5200 = vmax.f32 %v4701, 0.0
  %v5201 = vmax.f32 %v4705, 0.0
  %v5202 = vmax.f32 %v4707, 0.0
  %v5203 = vmax.f32 %v4709, 0.0
  %v5204 = vmax.f32 %v4711, 0.0
  %v5205 = vmax.f32 %v4715, 0.0
  %v5206 = vmax.f32 %v4717, 0.0
  %v5207 = vmax.f32 %v4719, 0.0
  %v5208 = vmax.f32 %v4721, 0.0
  %v5209 = vmax.f32 %v4725, 0.0
  %v5210 = vmax.f32 %v4727, 0.0
  %v5211 = vmax.f32 %v4729, 0.0
  %v5212 = vmax.f32 %v4731, 0.0
  %v5213 = vmax.f32 %v4735, 0.0
  %v5214 = vmax.f32 %v4737, 0.0
  %v5215 = vmax.f32 %v4739, 0.0
  %v5216 = vmax.f32 %v4741, 0.0
  %v5217 = vmax.f32 %v4745, 0.0
  %v5218 = vmax.f32 %v4747, 0.0
  %v5219 = vmax.f32 %v4749, 0.0
  %v5220 = vmax.f32 %v4751, 0.0
  %v5221 = vmax.f32 %v4755, 0.0
  %v5222 = vmax.f32 %v4757, 0.0
  %v5223 = vmax.f32 %v4759, 0.0
  %v5224 = vmax.f32 %v4761, 0.0
  %v5225 = vmax.f32 %v4765, 0.0
  %v5226 = vmax.f32 %v4767, 0.0
  %v5227 = vmax.f32 %v4769, 0.0
  %v5228 = vmax.f32 %v4771, 0.0
  %v5229 = vmax.f32 %v4775, 0.0
  %v5230 = vmax.f32 %v4777, 0.0
  %v5231 = vmax.f32 %v4779, 0.0
  %v5232 = vmax.f32 %v4781, 0.0
  %v5233 = vmax.f32 %v4785, 0.0
  %v5234 = vmax.f32 %v4787, 0.0
  %v5235 = vmax.f32 %v4789, 0.0
  %v5236 = vmax.f32 %v4791, 0.0
  %v5237 = vmax.f32 %v4795, 0.0
  %v5238 = vmax.f32 %v4797, 0.0
  %v5239 = vmax.f32 %v4799, 0.0
  %v5240 = vmax.f32 %v4801, 0.0
  %v5241 = vmax.f32 %v4805, 0.0
  %v5242 = vmax.f32 %v4807, 0.0
  %v5243 = vmax.f32 %v4809, 0.0
  %v5244 = vmax.f32 %v4811, 0.0
  %v5245 = vmax.f32 %v4815, 0.0
  %v5246 = vmax.f32 %v4817, 0.0
  %v5247 = vmax.f32 %v4819, 0.0
  %v5248 = vmax.f32 %v4821, 0.0
  %v5249 = vmax.f32 %v4825, 0.0
  %v5250 = vmax.f32 %v4827, 0.0
  %v5251 = vmax.f32 %v4829, 0.0
  %v5252 = vmax.f32 %v4831, 0.0
  %v5253 = vmax.f32 %v4835, 0.0
  %v5254 = vmax.f32 %v4837, 0.0
  %v5255 = vmax.f32 %v4839, 0.0
  %v5256 = vmax.f32 %v4841, 0.0
  %v5257 = vmax.f32 %v4845, 0.0
  %v5258 = vmax.f32 %v4847, 0.0
  %v5259 = vmax.f32 %v4849, 0.0
  %v5260 = vmax.f32 %v4851, 0.0
  %v5261 = vmax.f32 %v4855, 0.0
  %v5262 = vmax.f32 %v4857, 0.0
  %v5263 = vmax.f32 %v4859, 0.0
  %v5264 = vmax.f32 %v4861, 0.0
  %v5265 = vmax.f32 %v4865, 0.0
  %v5266 = vmax.f32 %v4867, 0.0
  %v5267 = vmax.f32 %v4869, 0.0
  %v5268 = vmax.f32 %v4871, 0.0
  %v5269 = vmax.f32 %v4875, 0.0
  %v5270 = vmax.f32 %v4877, 0.0
  %v5271 = vmax.f32 %v4879, 0.0
  %v5272 = vmax.f32 %v4881, 0.0
  %v5273 = vmax.f32 %v4885, 0.0
  %v5274 = vmax.f32 %v4887, 0.0
  %v5275 = vmax.f32 %v4889, 0.0
  %v5276 = vmax.f32 %v4891, 0.0
  %v5277 = vmax.f32 %v4895, 0.0
  %v5278 = vmax.f32 %v4897, 0.0
  %v5279 = vmax.f32 %v4899, 0.0
  %v5280 = vmax.f32 %v4901, 0.0
  %v5281 = vmax.f32 %v4905, 0.0
  %v5282 = vmax.f32 %v4907, 0.0
  %v5283 = vmax.f32 %v4909, 0.0
  %v5284 = vmax.f32 %v4911, 0.0
  %v5285 = vmax.f32 %v4915, 0.0
  %v5286 = vmax.f32 %v4917, 0.0
  %v5287 = vmax.f32 %v4919, 0.0
  %v5288 = vmax.f32 %v4921, 0.0
  %v5289 = vmax.f32 %v4925, 0.0
  %v5290 = vmax.f32 %v4927, 0.0
  %v5291 = vmax.f32 %v4929, 0.0
  %v5292 = vmax.f32 %v4931, 0.0
  %v5293 = vmax.f32 %v4935, 0.0
  %v5294 = vmax.f32 %v4937, 0.0
  %v5295 = vmax.f32 %v4939, 0.0
  %v5296 = vmax.f32 %v4941, 0.0
  %v5297 = vmax.f32 %v4945, 0.0
  %v5298 = vmax.f32 %v4947, 0.0
  %v5299 = vmax.f32 %v4949, 0.0
  %v5300 = vmax.f32 %v4951, 0.0
  %v5301 = vmax.f32 %v4955, 0.0
  %v5302 = vmax.f32 %v4957, 0.0
  %v5303 = vmax.f32 %v4959, 0.0
  %v5304 = vmax.f32 %v4961, 0.0
  %v5305 = vmax.f32 %v4965, 0.0
  %v5306 = vmax.f32 %v4967, 0.0
  %v5307 = vmax.f32 %v4969, 0.0
  %v5308 = vmax.f32 %v4971, 0.0
  %v5309 = vmax.f32 %v4975, 0.0
  %v5310 = vmax.f32 %v4977, 0.0
  %v5311 = vmax.f32 %v4979, 0.0
  %v5312 = vmax.f32 %v4981, 0.0
  %v5313 = vmax.f32 %v4985, 0.0
  %v5314 = vmax.f32 %v4987, 0.0
  %v5315 = vmax.f32 %v4989, 0.0
  %v5316 = vmax.f32 %v4991, 0.0
  %v5317 = vmax.f32 %v4995, 0.0
  %v5318 = vmax.f32 %v4997, 0.0
  %v5319 = vmax.f32 %v4999, 0.0
  %v5320 = vmax.f32 %v5001, 0.0
  %v5321 = vmax.f32 %v5005, 0.0
  %v5322 = vmax.f32 %v5007, 0.0
  %v5323 = vmax.f32 %v5009, 0.0
  %v5324 = vmax.f32 %v5011, 0.0
  %v5325 = vmax.f32 %v5015, 0.0
  %v5326 = vmax.f32 %v5017, 0.0
  %v5327 = vmax.f32 %v5019, 0.0
  %v5328 = vmax.f32 %v5021, 0.0
  %v5329 = vmax.f32 %v5025, 0.0
  %v5330 = vmax.f32 %v5027, 0.0
  %v5331 = vmax.f32 %v5029, 0.0
  %v5332 = vmax.f32 %v5031, 0.0
  %v5333 = vmax.f32 %v5035, 0.0
  %v5334 = vmax.f32 %v5037, 0.0
  %v5335 = vmax.f32 %v5039, 0.0
  %v5336 = vmax.f32 %v5041, 0.0
  %v5337 = vmax.f32 %v5045, 0.0
  %v5338 = vmax.f32 %v5047, 0.0
  %v5339 = vmax.f32 %v5049, 0.0
  %v5340 = vmax.f32 %v5051, 0.0
  %v5341 = vmax.f32 %v5055, 0.0
  %v5342 = vmax.f32 %v5057, 0.0
  %v5343 = vmax.f32 %v5059, 0.0
  %v5344 = vmax.f32 %v5061, 0.0
  %v5345 = vmax.f32 %v5065, 0.0
  %v5346 = vmax.f32 %v5067, 0.0
  %v5347 = vmax.f32 %v5069, 0.0
  %v5348 = vmax.f32 %v5071, 0.0
  %v5349 = vmax.f32 %v5075, 0.0
  %v5350 = vmax.f32 %v5077, 0.0
  %v5351 = vmax.f32 %v5079, 0.0
  %v5352 = vmax.f32 %v5081, 0.0
  %v5353 = vmax.f32 %v5085, 0.0
  %v5354 = vmax.f32 %v5087, 0.0
  %v5355 = vmax.f32 %v5089, 0.0
  %v5356 = vmax.f32 %v5091, 0.0
  %v5357 = vmax.f32 %v5095, 0.0
  %v5358 = vmax.f32 %v5097, 0.0
  %v5359 = vmax.f32 %v5099, 0.0
  %v5360 = vmax.f32 %v5101, 0.0
  %v5361 = vmax.f32 %v5105, 0.0
  %v5362 = vmax.f32 %v5107, 0.0
  %v5363 = vmax.f32 %v5109, 0.0
  %v5364 = vmax.f32 %v5111, 0.0
  %v5365 = vmax.f32 %v5115, 0.0
  %v5366 = vmax.f32 %v5117, 0.0
  %v5367 = vmax.f32 %v5119, 0.0
  %v5368 = vmax.f32 %v5121, 0.0
  %v5369 = vmax.f32 %v5125, 0.0
  %v5370 = vmax.f32 %v5127, 0.0
  %v5371 = vmax.f32 %v5129, 0.0
  %v5372 = vmax.f32 %v5131, 0.0
  %v5373 = vmax.f32 %v5133, %v5193
  %v5374 = vmax.f32 %v5134, %v5194
  %v5375 = vmax.f32 %v5135, %v5195
  %v5376 = vmax.f32 %v5136, %v5196
  %v5377 = vmax.f32 %v5137, %v5197
  %v5378 = vmax.f32 %v5138, %v5198
  %v5379 = vmax.f32 %v5139, %v5199
  %v5380 = vmax.f32 %v5140, %v5200
  %v5381 = vmax.f32 %v5141, %v5201
  %v5382 = vmax.f32 %v5142, %v5202
  %v5383 = vmax.f32 %v5143, %v5203
  %v5384 = vmax.f32 %v5144, %v5204
  %v5385 = vmax.f32 %v5145, %v5205
  %v5386 = vmax.f32 %v5146, %v5206
  %v5387 = vmax.f32 %v5147, %v5207
  %v5388 = vmax.f32 %v5148, %v5208
  %v5389 = vmax.f32 %v5149, %v5209
  %v5390 = vmax.f32 %v5150, %v5210
  %v5391 = vmax.f32 %v5151, %v5211
  %v5392 = vmax.f32 %v5152, %v5212
  %v5393 = vmax.f32 %v5153, %v5213
  %v5394 = vmax.f32 %v5154, %v5214
  %v5395 = vmax.f32 %v5155, %v5215
  %v5396 = vmax.f32 %v5156, %v5216
  %v5397 = vmax.f32 %v5157, %v5217
  %v5398 = vmax.f32 %v5158, %v5218
  %v5399 = vmax.f32 %v5159, %v5219
  %v5400 = vmax.f32 %v5160, %v5220
  %v5401 = vmax.f32 %v5161, %v5221
  %v5402 = vmax.f32 %v5162, %v5222
  %v5403 = vmax.f32 %v5163, %v5223
  %v5404 = vmax.f32 %v5164, %v5224
  %v5405 = vmax.f32 %v5165, %v5225
  %v5406 = vmax.f32 %v5166, %v5226
  %v5407 = vmax.f32 %v5167, %v5227
  %v5408 = vmax.f32 %v5168, %v5228
  %v5409 = vmax.f32 %v5169, %v5229
  %v5410 = vmax.f32 %v5170, %v5230
  %v5411 = vmax.f32 %v5171, %v5231
  %v5412 = vmax.f32 %v5172, %v5232
  %v5413 = vmax.f32 %v5173, %v5233
  %v5414 = vmax.f32 %v5174, %v5234
  %v5415 = vmax.f32 %v5175, %v5235
  %v5416 = vmax.f32 %v5176, %v5236
  %v5417 = vmax.f32 %v5177, %v5237
  %v5418 = vmax.f32 %v5178, %v5238
  %v5419 = vmax.f32 %v5179, %v5239
  %v5420 = vmax.f32 %v5180, %v5240
  %v5421 = vmax.f32 %v5181, %v5241
  %v5422 = vmax.f32 %v5182, %v5242
  %v5423 = vmax.f32 %v5183, %v5243
  %v5424 = vmax.f32 %v5184, %v5244
  %v5425 = vmax.f32 %v5185, %v5245
  %v5426 = vmax.f32 %v5186, %v5246
  %v5427 = vmax.f32 %v5187, %v5247
  %v5428 = vmax.f32 %v5188, %v5248
  %v5429 = vmax.f32 %v5189, %v5249
  %v5430 = vmax.f32 %v5190, %v5250
  %v5431 = vmax.f32 %v5191, %v5251
  %v5432 = vmax.f32 %v5192, %v5252
  %v5433 = vmax.f32 %v5253, %v5313
  %v5434 = vmax.f32 %v5254, %v5314
  %v5435 = vmax.f32 %v5255, %v5315
  %v5436 = vmax.f32 %v5256, %v5316
  %v5437 = vmax.f32 %v5257, %v5317
  %v5438 = vmax.f32 %v5258, %v5318
  %v5439 = vmax.f32 %v5259, %v5319
  %v5440 = vmax.f32 %v5260, %v5320
  %v5441 = vmax.f32 %v5261, %v5321
  %v5442 = vmax.f32 %v5262, %v5322
  %v5443 = vmax.f32 %v5263, %v5323
  %v5444 = vmax.f32 %v5264, %v5324
  %v5445 = vmax.f32 %v5265, %v5325
  %v5446 = vmax.f32 %v5266, %v5326
  %v5447 = vmax.f32 %v5267, %v5327
  %v5448 = vmax.f32 %v5268, %v5328
  %v5449 = vmax.f32 %v5269, %v5329
  %v5450 = vmax.f32 %v5270, %v5330
  %v5451 = vmax.f32 %v5271, %v5331
  %v5452 = vmax.f32 %v5272, %v5332
  %v5453 = vmax.f32 %v5273, %v5333
  %v5454 = vmax.f32 %v5274, %v5334
  %v5455 = vmax.f32 %v5275, %v5335
  %v5456 = vmax.f32 %v5276, %v5336
  %v5457 = vmax.f32 %v5277, %v5337
  %v5458 = vmax.f32 %v5278, %v5338
  %v5459 = vmax.f32 %v5279, %v5339
  %v5460 = vmax.f32 %v5280, %v5340
  %v5461 = vmax.f32 %v5281, %v5341
  %v5462 = vmax.f32 %v5282, %v5342
  %v5463 = vmax.f32 %v5283, %v5343
  %v5464 = vmax.f32 %v5284, %v5344
  %v5465 = vmax.f32 %v5285, %v5345
  %v5466 = vmax.f32 %v5286, %v5346
  %v5467 = vmax.f32 %v5287, %v5347
  %v5468 = vmax.f32 %v5288, %v5348
  %v5469 = vmax.f32 %v5289, %v5349
  %v5470 = vmax.f32 %v5290, %v5350
  %v5471 = vmax.f32 %v5291, %v5351
  %v5472 = vmax.f32 %v5292, %v5352
  %v5473 = vmax.f32 %v5293, %v5353
  %v5474 = vmax.f32 %v5294, %v5354
  %v5475 = vmax.f32 %v5295, %v5355
  %v5476 = vmax.f32 %v5296, %v5356
  %v5477 = vmax.f32 %v5297, %v5357
  %v5478 = vmax.f32 %v5298, %v5358
  %v5479 = vmax.f32 %v5299, %v5359
  %v5480 = vmax.f32 %v5300, %v5360
  %v5481 = vmax.f32 %v5301, %v5361
  %v5482 = vmax.f32 %v5302, %v5362
  %v5483 = vmax.f32 %v5303, %v5363
  %v5484 = vmax.f32 %v5304, %v5364
  %v5485 = vmax.f32 %v5305, %v5365
  %v5486 = vmax.f32 %v5306, %v5366
  %v5487 = vmax.f32 %v5307, %v5367
  %v5488 = vmax.f32 %v5308, %v5368
  %v5489 = vmax.f32 %v5309, %v5369
  %v5490 = vmax.f32 %v5310, %v5370
  %v5491 = vmax.f32 %v5311, %v5371
  %v5492 = vmax.f32 %v5312, %v5372
  %v5493 = vmax.f32 %v5373, %v5433
  %v5494 = vmax.f32 %v5374, %v5434
  %v5495 = vmax.f32 %v5375, %v5435
  %v5496 = vmax.f32 %v5376, %v5436
  %v5497 = vmax.f32 %v5377, %v5437
  %v5498 = vmax.f32 %v5378, %v5438
  %v5499 = vmax.f32 %v5379, %v5439
  %v5500 = vmax.f32 %v5380, %v5440
  %v5501 = vmax.f32 %v5381, %v5441
  %v5502 = vmax.f32 %v5382, %v5442
  %v5503 = vmax.f32 %v5383, %v5443
  %v5504 = vmax.f32 %v5384, %v5444
  %v5505 = vmax.f32 %v5385, %v5445
  %v5506 = vmax.f32 %v5386, %v5446
  %v5507 = vmax.f32 %v5387, %v5447
  %v5508 = vmax.f32 %v5388, %v5448
  %v5509 = vmax.f32 %v5389, %v5449
  %v5510 = vmax.f32 %v5390, %v5450
  %v5511 = vmax.f32 %v5391, %v5451
  %v5512 = vmax.f32 %v5392, %v5452
  %v5513 = vmax.f32 %v5393, %v5453
  %v5514 = vmax.f32 %v5394, %v5454
  %v5515 = vmax.f32 %v5395, %v5455
  %v5516 = vmax.f32 %v5396, %v5456
  %v5517 = vmax.f32 %v5397, %v5457
  %v5518 = vmax.f32 %v5398, %v5458
  %v5519 = vmax.f32 %v5399, %v5459
  %v5520 = vmax.f32 %v5400, %v5460
  %v5521 = vmax.f32 %v5401, %v5461
  %v5522 = vmax.f32 %v5402, %v5462
  %v5523 = vmax.f32 %v5403, %v5463
  %v5524 = vmax.f32 %v5404, %v5464
  %v5525 = vmax.f32 %v5405, %v5465
  %v5526 = vmax.f32 %v5406, %v5466
  %v5527 = vmax.f32 %v5407, %v5467
  %v5528 = vmax.f32 %v5408, %v5468
  %v5529 = vmax.f32 %v5409, %v5469
  %v5530 = vmax.f32 %v5410, %v5470
  %v5531 = vmax.f32 %v5411, %v5471
  %v5532 = vmax.f32 %v5412, %v5472
  %v5533 = vmax.f32 %v5413, %v5473
  %v5534 = vmax.f32 %v5414, %v5474
  %v5535 = vmax.f32 %v5415, %v5475
  %v5536 = vmax.f32 %v5416, %v5476
  %v5537 = vmax.f32 %v5417, %v5477
  %v5538 = vmax.f32 %v5418, %v5478
  %v5539 = vmax.f32 %v5419, %v5479
  %v5540 = vmax.f32 %v5420, %v5480
  %v5541 = vmax.f32 %v5421, %v5481
  %v5542 = vmax.f32 %v5422, %v5482
  %v5543 = vmax.f32 %v5423, %v5483
  %v5544 = vmax.f32 %v5424, %v5484
  %v5545 = vmax.f32 %v5425, %v5485
  %v5546 = vmax.f32 %v5426, %v5486
  %v5547 = vmax.f32 %v5427, %v5487
  %v5548 = vmax.f32 %v5428, %v5488
  %v5549 = vmax.f32 %v5429, %v5489
  %v5550 = vmax.f32 %v5430, %v5490
  %v5551 = vmax.f32 %v5431, %v5491
  %v5552 = vmax.f32 %v5432, %v5492
  %v5553 = vpack.c.bf16 %v5495, %v5493
  %v5554 = vpack.c.bf16 %v5496, %v5494
  %v5555 = vpack.c.bf16 %v5499, %v5497
  %v5556 = vpack.c.bf16 %v5500, %v5498
  %v5557 = vpack.c.bf16 %v5503, %v5501
  %v5558 = vpack.c.bf16 %v5504, %v5502
  %v5559 = vpack.c.bf16 %v5507, %v5505
  %v5560 = vpack.c.bf16 %v5508, %v5506
  %v5561 = vpack.c.bf16 %v5511, %v5509
  %v5562 = vpack.c.bf16 %v5512, %v5510
  %v5563 = vpack.c.bf16 %v5515, %v5513
  %v5564 = vpack.c.bf16 %v5516, %v5514
  %v5565 = vpack.c.bf16 %v5519, %v5517
  %v5566 = vpack.c.bf16 %v5520, %v5518
  %v5567 = vpack.c.bf16 %v5523, %v5521
  %v5568 = vpack.c.bf16 %v5524, %v5522
  %v5569 = vpack.c.bf16 %v5527, %v5525
  %v5570 = vpack.c.bf16 %v5528, %v5526
  %v5571 = vpack.c.bf16 %v5531, %v5529
  %v5572 = vpack.c.bf16 %v5532, %v5530
  %v5573 = vpack.c.bf16 %v5535, %v5533
  %v5574 = vpack.c.bf16 %v5536, %v5534
  %v5575 = vpack.c.bf16 %v5539, %v5537
  %v5576 = vpack.c.bf16 %v5540, %v5538
  %v5577 = vpack.c.bf16 %v5543, %v5541
  %v5578 = vpack.c.bf16 %v5544, %v5542
  %v5579 = vpack.c.bf16 %v5547, %v5545
  %v5580 = vpack.c.bf16 %v5548, %v5546
  %v5581 = vpack.c.bf16 %v5551, %v5549
  %v5582 = vpack.c.bf16 %v5552, %v5550
  %5583 = vst [vmem:[#allocation2 + $0x1e0] sm:$0xff] %v5553
  %5584 = vst [vmem:[#allocation2 + $0x1e8] sm:$0xff] %v5554
  %5585 = vst [vmem:[#allocation2 + $0x1f0] sm:$0xff] %v5555
  %5586 = vst [vmem:[#allocation2 + $0x1f8] sm:$0xff] %v5556
  %5587 = vst [vmem:[#allocation2 + $0x200] sm:$0xff] %v5557
  %5588 = vst [vmem:[#allocation2 + $0x208] sm:$0xff] %v5558
  %5589 = vst [vmem:[#allocation2 + $0x210] sm:$0xff] %v5559
  %5590 = vst [vmem:[#allocation2 + $0x218] sm:$0xff] %v5560
  %5591 = vst [vmem:[#allocation2 + $0x220] sm:$0xff] %v5561
  %5592 = vst [vmem:[#allocation2 + $0x228] sm:$0xff] %v5562
  %5593 = vst [vmem:[#allocation2 + $0x230] sm:$0xff] %v5563
  %5594 = vst [vmem:[#allocation2 + $0x238] sm:$0xff] %v5564
  %5595 = vst [vmem:[#allocation2 + $0x240] sm:$0xff] %v5565
  %5596 = vst [vmem:[#allocation2 + $0x248] sm:$0xff] %v5566
  %5597 = vst [vmem:[#allocation2 + $0x250] sm:$0xff] %v5567
  %5598 = vst [vmem:[#allocation2 + $0x258] sm:$0xff] %v5568
  %5599 = vst [vmem:[#allocation2 + $0x260] sm:$0xff] %v5569
  %5600 = vst [vmem:[#allocation2 + $0x268] sm:$0xff] %v5570
  %5601 = vst [vmem:[#allocation2 + $0x270] sm:$0xff] %v5571
  %5602 = vst [vmem:[#allocation2 + $0x278] sm:$0xff] %v5572
  %5603 = vst [vmem:[#allocation2 + $0x280] sm:$0xff] %v5573
  %5604 = vst [vmem:[#allocation2 + $0x288] sm:$0xff] %v5574
  %5605 = vst [vmem:[#allocation2 + $0x290] sm:$0xff] %v5575
  %5606 = vst [vmem:[#allocation2 + $0x298] sm:$0xff] %v5576
  %5607 = vst [vmem:[#allocation2 + $0x2a0] sm:$0xff] %v5577
  %5608 = vst [vmem:[#allocation2 + $0x2a8] sm:$0xff] %v5578
  %5609 = vst [vmem:[#allocation2 + $0x2b0] sm:$0xff] %v5579
  %5610 = vst [vmem:[#allocation2 + $0x2b8] sm:$0xff] %v5580
  %5611 = vst [vmem:[#allocation2 + $0x2c0] sm:$0xff] %v5581
  %5612 = vst [vmem:[#allocation2 + $0x2c8] sm:$0xff] %v5582
  %v5613 = vld [vmem:[%s0 + $0x150] sm:$0xff]
  %v5614 = vld [vmem:[%s0 + $0x158] sm:$0xff]
  %v5615 = vld [vmem:[%s0 + $0x160] sm:$0xff]
  %v5616 = vld [vmem:[%s0 + $0x168] sm:$0xff]
  %v5617 = vld [vmem:[%s0 + $0x170] sm:$0xff]
  %v5618 = vld [vmem:[%s0 + $0x178] sm:$0xff]
  %v5619 = vld [vmem:[%s0 + $0x180] sm:$0xff]
  %v5620 = vld [vmem:[%s0 + $0x188] sm:$0xff]
  %v5621 = vld [vmem:[%s0 + $0x190] sm:$0xff]
  %v5622 = vld [vmem:[%s0 + $0x198] sm:$0xff]
  %v5623 = vld [vmem:[%s0 + $0x1a0] sm:$0xff]
  %v5624 = vld [vmem:[%s0 + $0x1a8] sm:$0xff]
  %v5625 = vld [vmem:[%s0 + $0x1b0] sm:$0xff]
  %v5626 = vld [vmem:[%s0 + $0x1b8] sm:$0xff]
  %v5627 = vld [vmem:[%s0 + $0x1c0] sm:$0xff]
  %v5628 = vld [vmem:[%s0 + $0x1c8] sm:$0xff]
  %v5629 = vld [vmem:[%s0 + $0x1d0] sm:$0xff]
  %v5630 = vld [vmem:[%s0 + $0x1d8] sm:$0xff]
  %v5631 = vld [vmem:[%s0 + $0x1e0] sm:$0xff]
  %v5632 = vld [vmem:[%s0 + $0x1e8] sm:$0xff]
  %v5633 = vld [vmem:[%s0 + $0x1f0] sm:$0xff]
  %v5634 = vld [vmem:[%s0 + $0x1f8] sm:$0xff]
  %v5635 = vld [vmem:[%s0 + $0x200] sm:$0xff]
  %v5636 = vld [vmem:[%s0 + $0x208] sm:$0xff]
  %v5637 = vld [vmem:[%s0 + $0x210] sm:$0xff]
  %v5638 = vld [vmem:[%s0 + $0x218] sm:$0xff]
  %v5639 = vld [vmem:[%s0 + $0x220] sm:$0xff]
  %v5640 = vld [vmem:[%s0 + $0x228] sm:$0xff]
  %v5669 = vunpack.c.l.b16 %v5613
  %v5670 = vunpack.c.h.b16 %v5613
  %v5671 = vunpack.c.l.b16 %v5614
  %v5672 = vunpack.c.h.b16 %v5614
  %v5673 = vunpack.c.l.b16 %v5615
  %v5674 = vunpack.c.h.b16 %v5615
  %v5675 = vunpack.c.l.b16 %v5616
  %v5676 = vunpack.c.h.b16 %v5616
  %v5677 = vunpack.c.l.b16 %v5617
  %v5678 = vunpack.c.h.b16 %v5617
  %v5679 = vunpack.c.l.b16 %v5618
  %v5680 = vunpack.c.h.b16 %v5618
  %v5681 = vunpack.c.l.b16 %v5619
  %v5682 = vunpack.c.h.b16 %v5619
  %v5683 = vunpack.c.l.b16 %v5620
  %v5684 = vunpack.c.h.b16 %v5620
  %v5685 = vunpack.c.l.b16 %v5621
  %v5686 = vunpack.c.h.b16 %v5621
  %v5687 = vunpack.c.l.b16 %v5622
  %v5688 = vunpack.c.h.b16 %v5622
  %v5689 = vunpack.c.l.b16 %v5623
  %v5690 = vunpack.c.h.b16 %v5623
  %v5691 = vunpack.c.l.b16 %v5624
  %v5692 = vunpack.c.h.b16 %v5624
  %v5693 = vunpack.c.l.b16 %v5625
  %v5694 = vunpack.c.h.b16 %v5625
  %v5695 = vunpack.c.l.b16 %v5626
  %v5696 = vunpack.c.h.b16 %v5626
  %v5697 = vunpack.c.l.b16 %v5627
  %v5698 = vunpack.c.h.b16 %v5627
  %v5699 = vunpack.c.l.b16 %v5628
  %v5700 = vunpack.c.h.b16 %v5628
  %v5701 = vunpack.c.l.b16 %v5629
  %v5702 = vunpack.c.h.b16 %v5629
  %v5703 = vunpack.c.l.b16 %v5630
  %v5704 = vunpack.c.h.b16 %v5630
  %v5705 = vunpack.c.l.b16 %v5631
  %v5706 = vunpack.c.h.b16 %v5631
  %v5707 = vunpack.c.l.b16 %v5632
  %v5708 = vunpack.c.h.b16 %v5632
  %v5709 = vunpack.c.l.b16 %v5633
  %v5710 = vunpack.c.h.b16 %v5633
  %v5711 = vunpack.c.l.b16 %v5634
  %v5712 = vunpack.c.h.b16 %v5634
  %v5713 = vunpack.c.l.b16 %v5635
  %v5714 = vunpack.c.h.b16 %v5635
  %v5715 = vunpack.c.l.b16 %v5636
  %v5716 = vunpack.c.h.b16 %v5636
  %v5717 = vunpack.c.l.b16 %v5637
  %v5718 = vunpack.c.h.b16 %v5637
  %v5719 = vunpack.c.l.b16 %v5638
  %v5720 = vunpack.c.h.b16 %v5638
  %v5721 = vunpack.c.l.b16 %v5639
  %v5722 = vunpack.c.h.b16 %v5639
  %v5723 = vunpack.c.l.b16 %v5640
  %v5724 = vunpack.c.h.b16 %v5640
  %v5725 = vpack.c.b16 %v5671, %v5669
  %v5726 = vpack.c.b16 %v5672, %v5670
  %v5727 = vpack.c.b16 %v5675, %v5673
  %v5728 = vpack.c.b16 %v5676, %v5674
  %v5729 = vpack.c.b16 %v5679, %v5677
  %v5730 = vpack.c.b16 %v5680, %v5678
  %v5731 = vpack.c.b16 %v5683, %v5681
  %v5732 = vpack.c.b16 %v5684, %v5682
  %v5733 = vpack.c.b16 %v5687, %v5685
  %v5734 = vpack.c.b16 %v5688, %v5686
  %v5735 = vpack.c.b16 %v5691, %v5689
  %v5736 = vpack.c.b16 %v5692, %v5690
  %v5737 = vpack.c.b16 %v5695, %v5693
  %v5738 = vpack.c.b16 %v5696, %v5694
  %v5739 = vpack.c.b16 %v5699, %v5697
  %v5740 = vpack.c.b16 %v5700, %v5698
  %v5741 = vpack.c.b16 %v5703, %v5701
  %v5742 = vpack.c.b16 %v5704, %v5702
  %v5743 = vpack.c.b16 %v5707, %v5705
  %v5744 = vpack.c.b16 %v5708, %v5706
  %v5745 = vpack.c.b16 %v5711, %v5709
  %v5746 = vpack.c.b16 %v5712, %v5710
  %v5747 = vpack.c.b16 %v5715, %v5713
  %v5748 = vpack.c.b16 %v5716, %v5714
  %v5749 = vpack.c.b16 %v5719, %v5717
  %v5750 = vpack.c.b16 %v5720, %v5718
  %v5751 = vpack.c.b16 %v5723, %v5721
  %v5752 = vpack.c.b16 %v5724, %v5722
  %5781 = vmatprep.subr.bf16.mxu0 %v5726
  %5782 = vmatpush1.bf16.msra.mxu0 %v5725
  %5783 = vmatprep.subr.bf16.mxu0 %v5728
  %5784 = vmatpush1.bf16.msra.mxu0 %v5727
  %5785 = vmatprep.subr.bf16.mxu0 %v5730
  %5786 = vmatpush1.bf16.msra.mxu0 %v5729
  %5787 = vmatprep.subr.bf16.mxu0 %v5732
  %5788 = vmatpush1.bf16.msra.mxu0 %v5731
  %5789 = vmatprep.subr.bf16.mxu0 %v5734
  %5790 = vmatpush1.bf16.msra.mxu0 %v5733
  %5791 = vmatprep.subr.bf16.mxu0 %v5736
  %5792 = vmatpush1.bf16.msra.mxu0 %v5735
  %5793 = vmatprep.subr.bf16.mxu0 %v5738
  %5794 = vmatpush1.bf16.msra.mxu0 %v5737
  %5795 = vmatprep.subr.bf16.mxu0 %v5740
  %5796 = vmatpush1.bf16.msra.mxu0 %v5739
  %5797 = vmatprep.subr.bf16.mxu0 %v5742
  %5798 = vmatpush1.bf16.msra.mxu0 %v5741
  %5799 = vmatprep.subr.bf16.mxu0 %v5744
  %5800 = vmatpush1.bf16.msra.mxu0 %v5743
  %5801 = vmatprep.subr.bf16.mxu0 %v5746
  %5802 = vmatpush1.bf16.msra.mxu0 %v5745
  %5803 = vmatprep.subr.bf16.mxu0 %v5748
  %5804 = vmatpush1.bf16.msra.mxu0 %v5747
  %5805 = vmatprep.subr.bf16.mxu0 %v5750
  %5806 = vmatpush1.bf16.msra.mxu0 %v5749
  %5807 = vmatprep.subr.bf16.mxu0 %v5752
  %5808 = vmatpush1.bf16.msra.mxu0 %v5751
  %5809 = vmatprep.subr.bf16.mxu0 0
  %5810 = vmatpush1.bf16.msra.mxu0 0
  %5811 = vmatprep.subr.bf16.mxu0 0
  %5812 = vmatpush1.bf16.msra.mxu0 0
  %5813 = vmatprep.mubr.bf16.mxu0 %v1759
  %5814 = vmatmul.mubr.bf16.gmra.mrb[0].mxu0 %v1437
  %v5815 = vpop.f32.mrb[0].mxu0
  %v5816 = vadd.f32 %v332, %v5815
  %v5817 = vpop.f32.mrb[0].mxu0
  %v5818 = vadd.f32 %v332, %v5817
  %v5819 = vpop.f32.mrb[0].mxu0
  %v5820 = vadd.f32 %v337, %v5819
  %v5821 = vpop.f32.mrb[0].mxu0
  %v5822 = vadd.f32 %v337, %v5821
  %5823 = vmatprep.mubr.bf16.mxu0 %v1762
  %5824 = vmatmul.mubr.bf16.gmra.mrb[0].mxu0 %v1439
  %v5825 = vpop.f32.mrb[0].mxu0
  %v5826 = vadd.f32 %v342, %v5825
  %v5827 = vpop.f32.mrb[0].mxu0
  %v5828 = vadd.f32 %v342, %v5827
  %v5829 = vpop.f32.mrb[0].mxu0
  %v5830 = vadd.f32 %v347, %v5829
  %v5831 = vpop.f32.mrb[0].mxu0
  %v5832 = vadd.f32 %v347, %v5831
  %5833 = vmatprep.mubr.bf16.mxu0 %v1765
  %5834 = vmatmul.mubr.bf16.gmra.mrb[0].mxu0 %v1441
  %v5835 = vpop.f32.mrb[0].mxu0
  %v5836 = vadd.f32 %v352, %v5835
  %v5837 = vpop.f32.mrb[0].mxu0
  %v5838 = vadd.f32 %v352, %v5837
  %v5839 = vpop.f32.mrb[0].mxu0
  %v5840 = vadd.f32 %v357, %v5839
  %v5841 = vpop.f32.mrb[0].mxu0
  %v5842 = vadd.f32 %v357, %v5841
  %5843 = vmatprep.mubr.bf16.mxu0 %v1768
  %5844 = vmatmul.mubr.bf16.gmra.mrb[0].mxu0 %v1443
  %v5845 = vpop.f32.mrb[0].mxu0
  %v5846 = vadd.f32 %v362, %v5845
  %v5847 = vpop.f32.mrb[0].mxu0
  %v5848 = vadd.f32 %v362, %v5847
  %v5849 = vpop.f32.mrb[0].mxu0
  %v5850 = vadd.f32 %v367, %v5849
  %v5851 = vpop.f32.mrb[0].mxu0
  %v5852 = vadd.f32 %v367, %v5851
  %5853 = vmatprep.mubr.bf16.mxu0 %v1771
  %5854 = vmatmul.mubr.bf16.gmra.mrb[0].mxu0 %v1445
  %v5855 = vpop.f32.mrb[0].mxu0
  %v5856 = vadd.f32 %v372, %v5855
  %v5857 = vpop.f32.mrb[0].mxu0
  %v5858 = vadd.f32 %v372, %v5857
  %v5859 = vpop.f32.mrb[0].mxu0
  %v5860 = vadd.f32 %v377, %v5859
  %v5861 = vpop.f32.mrb[0].mxu0
  %v5862 = vadd.f32 %v377, %v5861
  %5863 = vmatprep.mubr.bf16.mxu0 %v1774
  %5864 = vmatmul.mubr.bf16.gmra.mrb[0].mxu0 %v1447
  %v5865 = vpop.f32.mrb[0].mxu0
  %v5866 = vadd.f32 %v382, %v5865
  %v5867 = vpop.f32.mrb[0].mxu0
  %v5868 = vadd.f32 %v382, %v5867
  %v5869 = vpop.f32.mrb[0].mxu0
  %v5870 = vadd.f32 %v387, %v5869
  %v5871 = vpop.f32.mrb[0].mxu0
  %v5872 = vadd.f32 %v387, %v5871
  %5873 = vmatprep.mubr.bf16.mxu0 %v1777
  %5874 = vmatmul.mubr.bf16.gmra.mrb[0].mxu0 %v1449
  %v5875 = vpop.f32.mrb[0].mxu0
  %v5876 = vadd.f32 %v392, %v5875
  %v5877 = vpop.f32.mrb[0].mxu0
  %v5878 = vadd.f32 %v392, %v5877
  %v5879 = vpop.f32.mrb[0].mxu0
  %v5880 = vadd.f32 %v397, %v5879
  %v5881 = vpop.f32.mrb[0].mxu0
  %v5882 = vadd.f32 %v397, %v5881
  %5883 = vmatprep.mubr.bf16.mxu0 %v1780
  %5884 = vmatmul.mubr.bf16.gmra.mrb[0].mxu0 %v1451
  %v5885 = vpop.f32.mrb[0].mxu0
  %v5886 = vadd.f32 %v402, %v5885
  %v5887 = vpop.f32.mrb[0].mxu0
  %v5888 = vadd.f32 %v402, %v5887
  %v5889 = vpop.f32.mrb[0].mxu0
  %v5890 = vadd.f32 %v407, %v5889
  %v5891 = vpop.f32.mrb[0].mxu0
  %v5892 = vadd.f32 %v407, %v5891
  %5893 = vmatprep.mubr.bf16.mxu0 %v1783
  %5894 = vmatmul.mubr.bf16.gmra.mrb[0].mxu0 %v1453
  %v5895 = vpop.f32.mrb[0].mxu0
  %v5896 = vadd.f32 %v412, %v5895
  %v5897 = vpop.f32.mrb[0].mxu0
  %v5898 = vadd.f32 %v412, %v5897
  %v5899 = vpop.f32.mrb[0].mxu0
  %v5900 = vadd.f32 %v417, %v5899
  %v5901 = vpop.f32.mrb[0].mxu0
  %v5902 = vadd.f32 %v417, %v5901
  %5903 = vmatprep.mubr.bf16.mxu0 %v1786
  %5904 = vmatmul.mubr.bf16.gmra.mrb[0].mxu0 %v1455
  %v5905 = vpop.f32.mrb[0].mxu0
  %v5906 = vadd.f32 %v422, %v5905
  %v5907 = vpop.f32.mrb[0].mxu0
  %v5908 = vadd.f32 %v422, %v5907
  %v5909 = vpop.f32.mrb[0].mxu0
  %v5910 = vadd.f32 %v427, %v5909
  %v5911 = vpop.f32.mrb[0].mxu0
  %v5912 = vadd.f32 %v427, %v5911
  %5913 = vmatprep.mubr.bf16.mxu0 %v1789
  %5914 = vmatmul.mubr.bf16.gmra.mrb[0].mxu0 %v1457
  %v5915 = vpop.f32.mrb[0].mxu0
  %v5916 = vadd.f32 %v432, %v5915
  %v5917 = vpop.f32.mrb[0].mxu0
  %v5918 = vadd.f32 %v432, %v5917
  %v5919 = vpop.f32.mrb[0].mxu0
  %v5920 = vadd.f32 %v437, %v5919
  %v5921 = vpop.f32.mrb[0].mxu0
  %v5922 = vadd.f32 %v437, %v5921
  %5923 = vmatprep.mubr.bf16.mxu0 %v1792
  %5924 = vmatmul.mubr.bf16.gmra.mrb[0].mxu0 %v1459
  %v5925 = vpop.f32.mrb[0].mxu0
  %v5926 = vadd.f32 %v442, %v5925
  %v5927 = vpop.f32.mrb[0].mxu0
  %v5928 = vadd.f32 %v442, %v5927
  %v5929 = vpop.f32.mrb[0].mxu0
  %v5930 = vadd.f32 %v447, %v5929
  %v5931 = vpop.f32.mrb[0].mxu0
  %v5932 = vadd.f32 %v447, %v5931
  %5933 = vmatprep.mubr.bf16.mxu0 %v1795
  %5934 = vmatmul.mubr.bf16.gmra.mrb[0].mxu0 %v1461
  %v5935 = vpop.f32.mrb[0].mxu0
  %v5936 = vadd.f32 %v452, %v5935
  %v5937 = vpop.f32.mrb[0].mxu0
  %v5938 = vadd.f32 %v452, %v5937
  %v5939 = vpop.f32.mrb[0].mxu0
  %v5940 = vadd.f32 %v457, %v5939
  %v5941 = vpop.f32.mrb[0].mxu0
  %v5942 = vadd.f32 %v457, %v5941
  %5943 = vmatprep.mubr.bf16.mxu0 %v1798
  %5944 = vmatmul.mubr.bf16.gmra.mrb[0].mxu0 %v1463
  %v5945 = vpop.f32.mrb[0].mxu0
  %v5946 = vadd.f32 %v462, %v5945
  %v5947 = vpop.f32.mrb[0].mxu0
  %v5948 = vadd.f32 %v462, %v5947
  %v5949 = vpop.f32.mrb[0].mxu0
  %v5950 = vadd.f32 %v467, %v5949
  %v5951 = vpop.f32.mrb[0].mxu0
  %v5952 = vadd.f32 %v467, %v5951
  %5953 = vmatprep.mubr.bf16.mxu0 %v1801
  %5954 = vmatmul.mubr.bf16.gmra.mrb[0].mxu0 %v1465
  %v5955 = vpop.f32.mrb[0].mxu0
  %v5956 = vadd.f32 %v472, %v5955
  %v5957 = vpop.f32.mrb[0].mxu0
  %v5958 = vadd.f32 %v472, %v5957
  %v5959 = vpop.f32.mrb[0].mxu0
  %v5960 = vadd.f32 %v477, %v5959
  %v5961 = vpop.f32.mrb[0].mxu0
  %v5962 = vadd.f32 %v477, %v5961
  %5963 = vmatprep.mubr.bf16.mxu0 %v1804
  %5964 = vmatmul.mubr.bf16.gmra.mrb[0].mxu0 %v1467
  %v5965 = vpop.f32.mrb[0].mxu0
  %v5966 = vadd.f32 %v482, %v5965
  %v5967 = vpop.f32.mrb[0].mxu0
  %v5968 = vadd.f32 %v482, %v5967
  %v5969 = vpop.f32.mrb[0].mxu0
  %v5970 = vadd.f32 %v487, %v5969
  %v5971 = vpop.f32.mrb[0].mxu0
  %v5972 = vadd.f32 %v487, %v5971
  %5973 = vmatprep.mubr.bf16.mxu0 %v1807
  %5974 = vmatmul.mubr.bf16.gmra.mrb[0].mxu0 %v1469
  %v5975 = vpop.f32.mrb[0].mxu0
  %v5976 = vadd.f32 %v492, %v5975
  %v5977 = vpop.f32.mrb[0].mxu0
  %v5978 = vadd.f32 %v492, %v5977
  %v5979 = vpop.f32.mrb[0].mxu0
  %v5980 = vadd.f32 %v497, %v5979
  %v5981 = vpop.f32.mrb[0].mxu0
  %v5982 = vadd.f32 %v497, %v5981
  %5983 = vmatprep.mubr.bf16.mxu0 %v1810
  %5984 = vmatmul.mubr.bf16.gmra.mrb[0].mxu0 %v1471
  %v5985 = vpop.f32.mrb[0].mxu0
  %v5986 = vadd.f32 %v502, %v5985
  %v5987 = vpop.f32.mrb[0].mxu0
  %v5988 = vadd.f32 %v502, %v5987
  %v5989 = vpop.f32.mrb[0].mxu0
  %v5990 = vadd.f32 %v507, %v5989
  %v5991 = vpop.f32.mrb[0].mxu0
  %v5992 = vadd.f32 %v507, %v5991
  %5993 = vmatprep.mubr.bf16.mxu0 %v1813
  %5994 = vmatmul.mubr.bf16.gmra.mrb[0].mxu0 %v1473
  %v5995 = vpop.f32.mrb[0].mxu0
  %v5996 = vadd.f32 %v512, %v5995
  %v5997 = vpop.f32.mrb[0].mxu0
  %v5998 = vadd.f32 %v512, %v5997
  %v5999 = vpop.f32.mrb[0].mxu0
  %v6000 = vadd.f32 %v517, %v5999
  %v6001 = vpop.f32.mrb[0].mxu0
  %v6002 = vadd.f32 %v517, %v6001
  %6003 = vmatprep.mubr.bf16.mxu0 %v1816
  %6004 = vmatmul.mubr.bf16.gmra.mrb[0].mxu0 %v1475
  %v6005 = vpop.f32.mrb[0].mxu0
  %v6006 = vadd.f32 %v522, %v6005
  %v6007 = vpop.f32.mrb[0].mxu0
  %v6008 = vadd.f32 %v522, %v6007
  %v6009 = vpop.f32.mrb[0].mxu0
  %v6010 = vadd.f32 %v527, %v6009
  %v6011 = vpop.f32.mrb[0].mxu0
  %v6012 = vadd.f32 %v527, %v6011
  %6013 = vmatprep.mubr.bf16.mxu0 %v1819
  %6014 = vmatmul.mubr.bf16.gmra.mrb[0].mxu0 %v1477
  %v6015 = vpop.f32.mrb[0].mxu0
  %v6016 = vadd.f32 %v532, %v6015
  %v6017 = vpop.f32.mrb[0].mxu0
  %v6018 = vadd.f32 %v532, %v6017
  %v6019 = vpop.f32.mrb[0].mxu0
  %v6020 = vadd.f32 %v537, %v6019
  %v6021 = vpop.f32.mrb[0].mxu0
  %v6022 = vadd.f32 %v537, %v6021
  %6023 = vmatprep.mubr.bf16.mxu0 %v1822
  %6024 = vmatmul.mubr.bf16.gmra.mrb[0].mxu0 %v1479
  %v6025 = vpop.f32.mrb[0].mxu0
  %v6026 = vadd.f32 %v542, %v6025
  %v6027 = vpop.f32.mrb[0].mxu0
  %v6028 = vadd.f32 %v542, %v6027
  %v6029 = vpop.f32.mrb[0].mxu0
  %v6030 = vadd.f32 %v547, %v6029
  %v6031 = vpop.f32.mrb[0].mxu0
  %v6032 = vadd.f32 %v547, %v6031
  %6033 = vmatprep.mubr.bf16.mxu0 %v1825
  %6034 = vmatmul.mubr.bf16.gmra.mrb[0].mxu0 %v1481
  %v6035 = vpop.f32.mrb[0].mxu0
  %v6036 = vadd.f32 %v552, %v6035
  %v6037 = vpop.f32.mrb[0].mxu0
  %v6038 = vadd.f32 %v552, %v6037
  %v6039 = vpop.f32.mrb[0].mxu0
  %v6040 = vadd.f32 %v557, %v6039
  %v6041 = vpop.f32.mrb[0].mxu0
  %v6042 = vadd.f32 %v557, %v6041
  %6043 = vmatprep.mubr.bf16.mxu0 %v1828
  %6044 = vmatmul.mubr.bf16.gmra.mrb[0].mxu0 %v1483
  %v6045 = vpop.f32.mrb[0].mxu0
  %v6046 = vadd.f32 %v562, %v6045
  %v6047 = vpop.f32.mrb[0].mxu0
  %v6048 = vadd.f32 %v562, %v6047
  %v6049 = vpop.f32.mrb[0].mxu0
  %v6050 = vadd.f32 %v567, %v6049
  %v6051 = vpop.f32.mrb[0].mxu0
  %v6052 = vadd.f32 %v567, %v6051
  %6053 = vmatprep.mubr.bf16.mxu0 %v1831
  %6054 = vmatmul.mubr.bf16.gmra.mrb[0].mxu0 %v1485
  %v6055 = vpop.f32.mrb[0].mxu0
  %v6056 = vadd.f32 %v572, %v6055
  %v6057 = vpop.f32.mrb[0].mxu0
  %v6058 = vadd.f32 %v572, %v6057
  %v6059 = vpop.f32.mrb[0].mxu0
  %v6060 = vadd.f32 %v577, %v6059
  %v6061 = vpop.f32.mrb[0].mxu0
  %v6062 = vadd.f32 %v577, %v6061
  %6063 = vmatprep.mubr.bf16.mxu0 %v1834
  %6064 = vmatmul.mubr.bf16.gmra.mrb[0].mxu0 %v1487
  %v6065 = vpop.f32.mrb[0].mxu0
  %v6066 = vadd.f32 %v582, %v6065
  %v6067 = vpop.f32.mrb[0].mxu0
  %v6068 = vadd.f32 %v582, %v6067
  %v6069 = vpop.f32.mrb[0].mxu0
  %v6070 = vadd.f32 %v587, %v6069
  %v6071 = vpop.f32.mrb[0].mxu0
  %v6072 = vadd.f32 %v587, %v6071
  %6073 = vmatprep.mubr.bf16.mxu0 %v1837
  %6074 = vmatmul.mubr.bf16.gmra.mrb[0].mxu0 %v1489
  %v6075 = vpop.f32.mrb[0].mxu0
  %v6076 = vadd.f32 %v592, %v6075
  %v6077 = vpop.f32.mrb[0].mxu0
  %v6078 = vadd.f32 %v592, %v6077
  %v6079 = vpop.f32.mrb[0].mxu0
  %v6080 = vadd.f32 %v597, %v6079
  %v6081 = vpop.f32.mrb[0].mxu0
  %v6082 = vadd.f32 %v597, %v6081
  %6083 = vmatprep.mubr.bf16.mxu0 %v1840
  %6084 = vmatmul.mubr.bf16.gmra.mrb[0].mxu0 %v1491
  %v6085 = vpop.f32.mrb[0].mxu0
  %v6086 = vadd.f32 %v602, %v6085
  %v6087 = vpop.f32.mrb[0].mxu0
  %v6088 = vadd.f32 %v602, %v6087
  %v6089 = vpop.f32.mrb[0].mxu0
  %v6090 = vadd.f32 %v607, %v6089
  %v6091 = vpop.f32.mrb[0].mxu0
  %v6092 = vadd.f32 %v607, %v6091
  %6093 = vmatprep.mubr.bf16.mxu0 %v1843
  %6094 = vmatmul.mubr.bf16.gmra.mrb[0].mxu0 %v1493
  %v6095 = vpop.f32.mrb[0].mxu0
  %v6096 = vadd.f32 %v612, %v6095
  %v6097 = vpop.f32.mrb[0].mxu0
  %v6098 = vadd.f32 %v612, %v6097
  %v6099 = vpop.f32.mrb[0].mxu0
  %v6100 = vadd.f32 %v617, %v6099
  %v6101 = vpop.f32.mrb[0].mxu0
  %v6102 = vadd.f32 %v617, %v6101
  %6103 = vmatprep.mubr.bf16.mxu0 %v1846
  %6104 = vmatmul.mubr.bf16.gmra.mrb[0].mxu0 %v1495
  %v6105 = vpop.f32.mrb[0].mxu0
  %v6106 = vadd.f32 %v622, %v6105
  %v6107 = vpop.f32.mrb[0].mxu0
  %v6108 = vadd.f32 %v622, %v6107
  %v6109 = vpop.f32.mrb[0].mxu0
  %v6110 = vadd.f32 %v627, %v6109
  %v6111 = vpop.f32.mrb[0].mxu0
  %v6112 = vadd.f32 %v627, %v6111
  %6113 = vmatprep.mubr.bf16.mxu0 %v1849
  %6114 = vmatmul.mubr.bf16.gmra.mrb[0].mxu0 %v1497
  %v6115 = vpop.f32.mrb[0].mxu0
  %v6116 = vadd.f32 %v632, %v6115
  %v6117 = vpop.f32.mrb[0].mxu0
  %v6118 = vadd.f32 %v632, %v6117
  %v6119 = vpop.f32.mrb[0].mxu0
  %v6120 = vadd.f32 %v637, %v6119
  %v6121 = vpop.f32.mrb[0].mxu0
  %v6122 = vadd.f32 %v637, %v6121
  %6123 = vmatprep.mubr.bf16.mxu0 %v1852
  %6124 = vmatmul.mubr.bf16.gmra.mrb[0].mxu0 %v1499
  %v6125 = vpop.f32.mrb[0].mxu0
  %v6126 = vadd.f32 %v642, %v6125
  %v6127 = vpop.f32.mrb[0].mxu0
  %v6128 = vadd.f32 %v642, %v6127
  %v6129 = vpop.f32.mrb[0].mxu0
  %v6130 = vadd.f32 %v647, %v6129
  %v6131 = vpop.f32.mrb[0].mxu0
  %v6132 = vadd.f32 %v647, %v6131
  %6133 = vmatprep.mubr.bf16.mxu0 %v1855
  %6134 = vmatmul.mubr.bf16.gmra.mrb[0].mxu0 %v1501
  %v6135 = vpop.f32.mrb[0].mxu0
  %v6136 = vadd.f32 %v652, %v6135
  %v6137 = vpop.f32.mrb[0].mxu0
  %v6138 = vadd.f32 %v652, %v6137
  %v6139 = vpop.f32.mrb[0].mxu0
  %v6140 = vadd.f32 %v657, %v6139
  %v6141 = vpop.f32.mrb[0].mxu0
  %v6142 = vadd.f32 %v657, %v6141
  %6143 = vmatprep.mubr.bf16.mxu0 %v1858
  %6144 = vmatmul.mubr.bf16.gmra.mrb[0].mxu0 %v1503
  %v6145 = vpop.f32.mrb[0].mxu0
  %v6146 = vadd.f32 %v662, %v6145
  %v6147 = vpop.f32.mrb[0].mxu0
  %v6148 = vadd.f32 %v662, %v6147
  %v6149 = vpop.f32.mrb[0].mxu0
  %v6150 = vadd.f32 %v667, %v6149
  %v6151 = vpop.f32.mrb[0].mxu0
  %v6152 = vadd.f32 %v667, %v6151
  %6153 = vmatprep.mubr.bf16.mxu0 %v1861
  %6154 = vmatmul.mubr.bf16.gmra.mrb[0].mxu0 %v1505
  %v6155 = vpop.f32.mrb[0].mxu0
  %v6156 = vadd.f32 %v672, %v6155
  %v6157 = vpop.f32.mrb[0].mxu0
  %v6158 = vadd.f32 %v672, %v6157
  %v6159 = vpop.f32.mrb[0].mxu0
  %v6160 = vadd.f32 %v677, %v6159
  %v6161 = vpop.f32.mrb[0].mxu0
  %v6162 = vadd.f32 %v677, %v6161
  %6163 = vmatprep.mubr.bf16.mxu0 %v1864
  %6164 = vmatmul.mubr.bf16.gmra.mrb[0].mxu0 %v1507
  %v6165 = vpop.f32.mrb[0].mxu0
  %v6166 = vadd.f32 %v682, %v6165
  %v6167 = vpop.f32.mrb[0].mxu0
  %v6168 = vadd.f32 %v682, %v6167
  %v6169 = vpop.f32.mrb[0].mxu0
  %v6170 = vadd.f32 %v687, %v6169
  %v6171 = vpop.f32.mrb[0].mxu0
  %v6172 = vadd.f32 %v687, %v6171
  %6173 = vmatprep.mubr.bf16.mxu0 %v1867
  %6174 = vmatmul.mubr.bf16.gmra.mrb[0].mxu0 %v1509
  %v6175 = vpop.f32.mrb[0].mxu0
  %v6176 = vadd.f32 %v692, %v6175
  %v6177 = vpop.f32.mrb[0].mxu0
  %v6178 = vadd.f32 %v692, %v6177
  %v6179 = vpop.f32.mrb[0].mxu0
  %v6180 = vadd.f32 %v697, %v6179
  %v6181 = vpop.f32.mrb[0].mxu0
  %v6182 = vadd.f32 %v697, %v6181
  %6183 = vmatprep.mubr.bf16.mxu0 %v1870
  %6184 = vmatmul.mubr.bf16.gmra.mrb[0].mxu0 %v1511
  %v6185 = vpop.f32.mrb[0].mxu0
  %v6186 = vadd.f32 %v702, %v6185
  %v6187 = vpop.f32.mrb[0].mxu0
  %v6188 = vadd.f32 %v702, %v6187
  %v6189 = vpop.f32.mrb[0].mxu0
  %v6190 = vadd.f32 %v707, %v6189
  %v6191 = vpop.f32.mrb[0].mxu0
  %v6192 = vadd.f32 %v707, %v6191
  %6193 = vmatprep.mubr.bf16.mxu0 %v1873
  %6194 = vmatmul.mubr.bf16.gmra.mrb[0].mxu0 %v1513
  %v6195 = vpop.f32.mrb[0].mxu0
  %v6196 = vadd.f32 %v712, %v6195
  %v6197 = vpop.f32.mrb[0].mxu0
  %v6198 = vadd.f32 %v712, %v6197
  %v6199 = vpop.f32.mrb[0].mxu0
  %v6200 = vadd.f32 %v717, %v6199
  %v6201 = vpop.f32.mrb[0].mxu0
  %v6202 = vadd.f32 %v717, %v6201
  %6203 = vmatprep.mubr.bf16.mxu0 %v1876
  %6204 = vmatmul.mubr.bf16.gmra.mrb[0].mxu0 %v1515
  %v6205 = vpop.f32.mrb[0].mxu0
  %v6206 = vadd.f32 %v722, %v6205
  %v6207 = vpop.f32.mrb[0].mxu0
  %v6208 = vadd.f32 %v722, %v6207
  %v6209 = vpop.f32.mrb[0].mxu0
  %v6210 = vadd.f32 %v727, %v6209
  %v6211 = vpop.f32.mrb[0].mxu0
  %v6212 = vadd.f32 %v727, %v6211
  %6213 = vmatprep.mubr.bf16.mxu0 %v1879
  %6214 = vmatmul.mubr.bf16.gmra.mrb[0].mxu0 %v1517
  %v6215 = vpop.f32.mrb[0].mxu0
  %v6216 = vadd.f32 %v732, %v6215
  %v6217 = vpop.f32.mrb[0].mxu0
  %v6218 = vadd.f32 %v732, %v6217
  %v6219 = vpop.f32.mrb[0].mxu0
  %v6220 = vadd.f32 %v737, %v6219
  %v6221 = vpop.f32.mrb[0].mxu0
  %v6222 = vadd.f32 %v737, %v6221
  %6223 = vmatprep.mubr.bf16.mxu0 %v1882
  %6224 = vmatmul.mubr.bf16.gmra.mrb[0].mxu0 %v1519
  %v6225 = vpop.f32.mrb[0].mxu0
  %v6226 = vadd.f32 %v742, %v6225
  %v6227 = vpop.f32.mrb[0].mxu0
  %v6228 = vadd.f32 %v742, %v6227
  %v6229 = vpop.f32.mrb[0].mxu0
  %v6230 = vadd.f32 %v747, %v6229
  %v6231 = vpop.f32.mrb[0].mxu0
  %v6232 = vadd.f32 %v747, %v6231
  %6233 = vmatprep.mubr.bf16.mxu0 %v1885
  %6234 = vmatmul.mubr.bf16.gmra.mrb[0].mxu0 %v1521
  %v6235 = vpop.f32.mrb[0].mxu0
  %v6236 = vadd.f32 %v752, %v6235
  %v6237 = vpop.f32.mrb[0].mxu0
  %v6238 = vadd.f32 %v752, %v6237
  %v6239 = vpop.f32.mrb[0].mxu0
  %v6240 = vadd.f32 %v757, %v6239
  %v6241 = vpop.f32.mrb[0].mxu0
  %v6242 = vadd.f32 %v757, %v6241
  %6243 = vmatprep.mubr.bf16.mxu0 %v1888
  %6244 = vmatmul.mubr.bf16.gmra.mrb[0].mxu0 %v1523
  %v6245 = vpop.f32.mrb[0].mxu0
  %v6246 = vadd.f32 %v762, %v6245
  %v6247 = vpop.f32.mrb[0].mxu0
  %v6248 = vadd.f32 %v762, %v6247
  %v6249 = vpop.f32.mrb[0].mxu0
  %v6250 = vadd.f32 %v767, %v6249
  %v6251 = vpop.f32.mrb[0].mxu0
  %v6252 = vadd.f32 %v767, %v6251
  %6253 = vmatprep.mubr.bf16.mxu0 %v1891
  %6254 = vmatmul.mubr.bf16.gmra.mrb[0].mxu0 %v1525
  %v6255 = vpop.f32.mrb[0].mxu0
  %v6256 = vadd.f32 %v772, %v6255
  %v6257 = vpop.f32.mrb[0].mxu0
  %v6258 = vadd.f32 %v772, %v6257
  %v6259 = vpop.f32.mrb[0].mxu0
  %v6260 = vadd.f32 %v777, %v6259
  %v6261 = vpop.f32.mrb[0].mxu0
  %v6262 = vadd.f32 %v777, %v6261
  %6263 = vmatprep.mubr.bf16.mxu0 %v1894
  %6264 = vmatmul.mubr.bf16.gmra.mrb[0].mxu0 %v1527
  %v6265 = vpop.f32.mrb[0].mxu0
  %v6266 = vadd.f32 %v782, %v6265
  %v6267 = vpop.f32.mrb[0].mxu0
  %v6268 = vadd.f32 %v782, %v6267
  %v6269 = vpop.f32.mrb[0].mxu0
  %v6270 = vadd.f32 %v787, %v6269
  %v6271 = vpop.f32.mrb[0].mxu0
  %v6272 = vadd.f32 %v787, %v6271
  %6273 = vmatprep.mubr.bf16.mxu0 %v1897
  %6274 = vmatmul.mubr.bf16.gmra.mrb[0].mxu0 %v1529
  %v6275 = vpop.f32.mrb[0].mxu0
  %v6276 = vadd.f32 %v792, %v6275
  %v6277 = vpop.f32.mrb[0].mxu0
  %v6278 = vadd.f32 %v792, %v6277
  %v6279 = vpop.f32.mrb[0].mxu0
  %v6280 = vadd.f32 %v797, %v6279
  %v6281 = vpop.f32.mrb[0].mxu0
  %v6282 = vadd.f32 %v797, %v6281
  %6283 = vmatprep.mubr.bf16.mxu0 %v1900
  %6284 = vmatmul.mubr.bf16.gmra.mrb[0].mxu0 %v1531
  %v6285 = vpop.f32.mrb[0].mxu0
  %v6286 = vadd.f32 %v802, %v6285
  %v6287 = vpop.f32.mrb[0].mxu0
  %v6288 = vadd.f32 %v802, %v6287
  %v6289 = vpop.f32.mrb[0].mxu0
  %v6290 = vadd.f32 %v807, %v6289
  %v6291 = vpop.f32.mrb[0].mxu0
  %v6292 = vadd.f32 %v807, %v6291
  %6293 = vmatprep.mubr.bf16.mxu0 %v1903
  %6294 = vmatmul.mubr.bf16.gmra.mrb[0].mxu0 %v1533
  %v6295 = vpop.f32.mrb[0].mxu0
  %v6296 = vadd.f32 %v812, %v6295
  %v6297 = vpop.f32.mrb[0].mxu0
  %v6298 = vadd.f32 %v812, %v6297
  %v6299 = vpop.f32.mrb[0].mxu0
  %v6300 = vadd.f32 %v817, %v6299
  %v6301 = vpop.f32.mrb[0].mxu0
  %v6302 = vadd.f32 %v817, %v6301
  %6303 = vmatprep.mubr.bf16.mxu0 %v1906
  %6304 = vmatmul.mubr.bf16.gmra.mrb[0].mxu0 %v1535
  %v6305 = vpop.f32.mrb[0].mxu0
  %v6306 = vadd.f32 %v822, %v6305
  %v6307 = vpop.f32.mrb[0].mxu0
  %v6308 = vadd.f32 %v822, %v6307
  %v6309 = vpop.f32.mrb[0].mxu0
  %v6310 = vadd.f32 %v827, %v6309
  %v6311 = vpop.f32.mrb[0].mxu0
  %v6312 = vadd.f32 %v827, %v6311
  %6313 = vmatprep.mubr.bf16.mxu0 %v1909
  %6314 = vmatmul.mubr.bf16.gmra.mrb[0].mxu0 %v1537
  %v6315 = vpop.f32.mrb[0].mxu0
  %v6316 = vadd.f32 %v832, %v6315
  %v6317 = vpop.f32.mrb[0].mxu0
  %v6318 = vadd.f32 %v832, %v6317
  %v6319 = vpop.f32.mrb[0].mxu0
  %v6320 = vadd.f32 %v837, %v6319
  %v6321 = vpop.f32.mrb[0].mxu0
  %v6322 = vadd.f32 %v837, %v6321
  %6323 = vmatprep.mubr.bf16.mxu0 %v1912
  %6324 = vmatmul.mubr.bf16.gmra.mrb[0].mxu0 %v1539
  %v6325 = vpop.f32.mrb[0].mxu0
  %v6326 = vadd.f32 %v842, %v6325
  %v6327 = vpop.f32.mrb[0].mxu0
  %v6328 = vadd.f32 %v842, %v6327
  %v6329 = vpop.f32.mrb[0].mxu0
  %v6330 = vadd.f32 %v847, %v6329
  %v6331 = vpop.f32.mrb[0].mxu0
  %v6332 = vadd.f32 %v847, %v6331
  %6333 = vmatprep.mubr.bf16.mxu0 %v1915
  %6334 = vmatmul.mubr.bf16.gmra.mrb[0].mxu0 %v1541
  %v6335 = vpop.f32.mrb[0].mxu0
  %v6336 = vadd.f32 %v852, %v6335
  %v6337 = vpop.f32.mrb[0].mxu0
  %v6338 = vadd.f32 %v852, %v6337
  %v6339 = vpop.f32.mrb[0].mxu0
  %v6340 = vadd.f32 %v857, %v6339
  %v6341 = vpop.f32.mrb[0].mxu0
  %v6342 = vadd.f32 %v857, %v6341
  %6343 = vmatprep.mubr.bf16.mxu0 %v1918
  %6344 = vmatmul.mubr.bf16.gmra.mrb[0].mxu0 %v1543
  %v6345 = vpop.f32.mrb[0].mxu0
  %v6346 = vadd.f32 %v862, %v6345
  %v6347 = vpop.f32.mrb[0].mxu0
  %v6348 = vadd.f32 %v862, %v6347
  %v6349 = vpop.f32.mrb[0].mxu0
  %v6350 = vadd.f32 %v867, %v6349
  %v6351 = vpop.f32.mrb[0].mxu0
  %v6352 = vadd.f32 %v867, %v6351
  %6353 = vmatprep.mubr.bf16.mxu0 %v1921
  %6354 = vmatmul.mubr.bf16.gmra.mrb[0].mxu0 %v1545
  %v6355 = vpop.f32.mrb[0].mxu0
  %v6356 = vadd.f32 %v872, %v6355
  %v6357 = vpop.f32.mrb[0].mxu0
  %v6358 = vadd.f32 %v872, %v6357
  %v6359 = vpop.f32.mrb[0].mxu0
  %v6360 = vadd.f32 %v877, %v6359
  %v6361 = vpop.f32.mrb[0].mxu0
  %v6362 = vadd.f32 %v877, %v6361
  %6363 = vmatprep.mubr.bf16.mxu0 %v1924
  %6364 = vmatmul.mubr.bf16.gmra.mrb[0].mxu0 %v1547
  %v6365 = vpop.f32.mrb[0].mxu0
  %v6366 = vadd.f32 %v882, %v6365
  %v6367 = vpop.f32.mrb[0].mxu0
  %v6368 = vadd.f32 %v882, %v6367
  %v6369 = vpop.f32.mrb[0].mxu0
  %v6370 = vadd.f32 %v887, %v6369
  %v6371 = vpop.f32.mrb[0].mxu0
  %v6372 = vadd.f32 %v887, %v6371
  %6373 = vmatprep.mubr.bf16.mxu0 %v1927
  %6374 = vmatmul.mubr.bf16.gmra.mrb[0].mxu0 %v1549
  %v6375 = vpop.f32.mrb[0].mxu0
  %v6376 = vadd.f32 %v892, %v6375
  %v6377 = vpop.f32.mrb[0].mxu0
  %v6378 = vadd.f32 %v892, %v6377
  %v6379 = vpop.f32.mrb[0].mxu0
  %v6380 = vadd.f32 %v897, %v6379
  %v6381 = vpop.f32.mrb[0].mxu0
  %v6382 = vadd.f32 %v897, %v6381
  %6383 = vmatprep.mubr.bf16.mxu0 %v1930
  %6384 = vmatmul.mubr.bf16.gmra.mrb[0].mxu0 %v1551
  %v6385 = vpop.f32.mrb[0].mxu0
  %v6386 = vadd.f32 %v902, %v6385
  %v6387 = vpop.f32.mrb[0].mxu0
  %v6388 = vadd.f32 %v902, %v6387
  %v6389 = vpop.f32.mrb[0].mxu0
  %v6390 = vadd.f32 %v907, %v6389
  %v6391 = vpop.f32.mrb[0].mxu0
  %v6392 = vadd.f32 %v907, %v6391
  %6393 = vmatprep.mubr.bf16.mxu0 %v1933
  %6394 = vmatmul.mubr.bf16.gmra.mrb[0].mxu0 %v1553
  %v6395 = vpop.f32.mrb[0].mxu0
  %v6396 = vadd.f32 %v912, %v6395
  %v6397 = vpop.f32.mrb[0].mxu0
  %v6398 = vadd.f32 %v912, %v6397
  %v6399 = vpop.f32.mrb[0].mxu0
  %v6400 = vadd.f32 %v917, %v6399
  %v6401 = vpop.f32.mrb[0].mxu0
  %v6402 = vadd.f32 %v917, %v6401
  %6403 = vmatprep.mubr.bf16.mxu0 %v1936
  %6404 = vmatmul.mubr.bf16.gmra.mrb[0].mxu0 %v1555
  %v6405 = vpop.f32.mrb[0].mxu0
  %v6406 = vadd.f32 %v922, %v6405
  %v6407 = vpop.f32.mrb[0].mxu0
  %v6408 = vadd.f32 %v922, %v6407
  %v6409 = vpop.f32.mrb[0].mxu0
  %v6410 = vadd.f32 %v927, %v6409
  %v6411 = vpop.f32.mrb[0].mxu0
  %v6412 = vadd.f32 %v927, %v6411
  %6413 = vdwg.mxu0
  %v6414 = vmax.f32 %v5816, 0.0
  %v6415 = vmax.f32 %v5818, 0.0
  %v6416 = vmax.f32 %v5820, 0.0
  %v6417 = vmax.f32 %v5822, 0.0
  %v6418 = vmax.f32 %v5826, 0.0
  %v6419 = vmax.f32 %v5828, 0.0
  %v6420 = vmax.f32 %v5830, 0.0
  %v6421 = vmax.f32 %v5832, 0.0
  %v6422 = vmax.f32 %v5836, 0.0
  %v6423 = vmax.f32 %v5838, 0.0
  %v6424 = vmax.f32 %v5840, 0.0
  %v6425 = vmax.f32 %v5842, 0.0
  %v6426 = vmax.f32 %v5846, 0.0
  %v6427 = vmax.f32 %v5848, 0.0
  %v6428 = vmax.f32 %v5850, 0.0
  %v6429 = vmax.f32 %v5852, 0.0
  %v6430 = vmax.f32 %v5856, 0.0
  %v6431 = vmax.f32 %v5858, 0.0
  %v6432 = vmax.f32 %v5860, 0.0
  %v6433 = vmax.f32 %v5862, 0.0
  %v6434 = vmax.f32 %v5866, 0.0
  %v6435 = vmax.f32 %v5868, 0.0
  %v6436 = vmax.f32 %v5870, 0.0
  %v6437 = vmax.f32 %v5872, 0.0
  %v6438 = vmax.f32 %v5876, 0.0
  %v6439 = vmax.f32 %v5878, 0.0
  %v6440 = vmax.f32 %v5880, 0.0
  %v6441 = vmax.f32 %v5882, 0.0
  %v6442 = vmax.f32 %v5886, 0.0
  %v6443 = vmax.f32 %v5888, 0.0
  %v6444 = vmax.f32 %v5890, 0.0
  %v6445 = vmax.f32 %v5892, 0.0
  %v6446 = vmax.f32 %v5896, 0.0
  %v6447 = vmax.f32 %v5898, 0.0
  %v6448 = vmax.f32 %v5900, 0.0
  %v6449 = vmax.f32 %v5902, 0.0
  %v6450 = vmax.f32 %v5906, 0.0
  %v6451 = vmax.f32 %v5908, 0.0
  %v6452 = vmax.f32 %v5910, 0.0
  %v6453 = vmax.f32 %v5912, 0.0
  %v6454 = vmax.f32 %v5916, 0.0
  %v6455 = vmax.f32 %v5918, 0.0
  %v6456 = vmax.f32 %v5920, 0.0
  %v6457 = vmax.f32 %v5922, 0.0
  %v6458 = vmax.f32 %v5926, 0.0
  %v6459 = vmax.f32 %v5928, 0.0
  %v6460 = vmax.f32 %v5930, 0.0
  %v6461 = vmax.f32 %v5932, 0.0
  %v6462 = vmax.f32 %v5936, 0.0
  %v6463 = vmax.f32 %v5938, 0.0
  %v6464 = vmax.f32 %v5940, 0.0
  %v6465 = vmax.f32 %v5942, 0.0
  %v6466 = vmax.f32 %v5946, 0.0
  %v6467 = vmax.f32 %v5948, 0.0
  %v6468 = vmax.f32 %v5950, 0.0
  %v6469 = vmax.f32 %v5952, 0.0
  %v6470 = vmax.f32 %v5956, 0.0
  %v6471 = vmax.f32 %v5958, 0.0
  %v6472 = vmax.f32 %v5960, 0.0
  %v6473 = vmax.f32 %v5962, 0.0
  %v6474 = vmax.f32 %v5966, 0.0
  %v6475 = vmax.f32 %v5968, 0.0
  %v6476 = vmax.f32 %v5970, 0.0
  %v6477 = vmax.f32 %v5972, 0.0
  %v6478 = vmax.f32 %v5976, 0.0
  %v6479 = vmax.f32 %v5978, 0.0
  %v6480 = vmax.f32 %v5980, 0.0
  %v6481 = vmax.f32 %v5982, 0.0
  %v6482 = vmax.f32 %v5986, 0.0
  %v6483 = vmax.f32 %v5988, 0.0
  %v6484 = vmax.f32 %v5990, 0.0
  %v6485 = vmax.f32 %v5992, 0.0
  %v6486 = vmax.f32 %v5996, 0.0
  %v6487 = vmax.f32 %v5998, 0.0
  %v6488 = vmax.f32 %v6000, 0.0
  %v6489 = vmax.f32 %v6002, 0.0
  %v6490 = vmax.f32 %v6006, 0.0
  %v6491 = vmax.f32 %v6008, 0.0
  %v6492 = vmax.f32 %v6010, 0.0
  %v6493 = vmax.f32 %v6012, 0.0
  %v6494 = vmax.f32 %v6016, 0.0
  %v6495 = vmax.f32 %v6018, 0.0
  %v6496 = vmax.f32 %v6020, 0.0
  %v6497 = vmax.f32 %v6022, 0.0
  %v6498 = vmax.f32 %v6026, 0.0
  %v6499 = vmax.f32 %v6028, 0.0
  %v6500 = vmax.f32 %v6030, 0.0
  %v6501 = vmax.f32 %v6032, 0.0
  %v6502 = vmax.f32 %v6036, 0.0
  %v6503 = vmax.f32 %v6038, 0.0
  %v6504 = vmax.f32 %v6040, 0.0
  %v6505 = vmax.f32 %v6042, 0.0
  %v6506 = vmax.f32 %v6046, 0.0
  %v6507 = vmax.f32 %v6048, 0.0
  %v6508 = vmax.f32 %v6050, 0.0
  %v6509 = vmax.f32 %v6052, 0.0
  %v6510 = vmax.f32 %v6056, 0.0
  %v6511 = vmax.f32 %v6058, 0.0
  %v6512 = vmax.f32 %v6060, 0.0
  %v6513 = vmax.f32 %v6062, 0.0
  %v6514 = vmax.f32 %v6066, 0.0
  %v6515 = vmax.f32 %v6068, 0.0
  %v6516 = vmax.f32 %v6070, 0.0
  %v6517 = vmax.f32 %v6072, 0.0
  %v6518 = vmax.f32 %v6076, 0.0
  %v6519 = vmax.f32 %v6078, 0.0
  %v6520 = vmax.f32 %v6080, 0.0
  %v6521 = vmax.f32 %v6082, 0.0
  %v6522 = vmax.f32 %v6086, 0.0
  %v6523 = vmax.f32 %v6088, 0.0
  %v6524 = vmax.f32 %v6090, 0.0
  %v6525 = vmax.f32 %v6092, 0.0
  %v6526 = vmax.f32 %v6096, 0.0
  %v6527 = vmax.f32 %v6098, 0.0
  %v6528 = vmax.f32 %v6100, 0.0
  %v6529 = vmax.f32 %v6102, 0.0
  %v6530 = vmax.f32 %v6106, 0.0
  %v6531 = vmax.f32 %v6108, 0.0
  %v6532 = vmax.f32 %v6110, 0.0
  %v6533 = vmax.f32 %v6112, 0.0
  %v6534 = vmax.f32 %v6116, 0.0
  %v6535 = vmax.f32 %v6118, 0.0
  %v6536 = vmax.f32 %v6120, 0.0
  %v6537 = vmax.f32 %v6122, 0.0
  %v6538 = vmax.f32 %v6126, 0.0
  %v6539 = vmax.f32 %v6128, 0.0
  %v6540 = vmax.f32 %v6130, 0.0
  %v6541 = vmax.f32 %v6132, 0.0
  %v6542 = vmax.f32 %v6136, 0.0
  %v6543 = vmax.f32 %v6138, 0.0
  %v6544 = vmax.f32 %v6140, 0.0
  %v6545 = vmax.f32 %v6142, 0.0
  %v6546 = vmax.f32 %v6146, 0.0
  %v6547 = vmax.f32 %v6148, 0.0
  %v6548 = vmax.f32 %v6150, 0.0
  %v6549 = vmax.f32 %v6152, 0.0
  %v6550 = vmax.f32 %v6156, 0.0
  %v6551 = vmax.f32 %v6158, 0.0
  %v6552 = vmax.f32 %v6160, 0.0
  %v6553 = vmax.f32 %v6162, 0.0
  %v6554 = vmax.f32 %v6166, 0.0
  %v6555 = vmax.f32 %v6168, 0.0
  %v6556 = vmax.f32 %v6170, 0.0
  %v6557 = vmax.f32 %v6172, 0.0
  %v6558 = vmax.f32 %v6176, 0.0
  %v6559 = vmax.f32 %v6178, 0.0
  %v6560 = vmax.f32 %v6180, 0.0
  %v6561 = vmax.f32 %v6182, 0.0
  %v6562 = vmax.f32 %v6186, 0.0
  %v6563 = vmax.f32 %v6188, 0.0
  %v6564 = vmax.f32 %v6190, 0.0
  %v6565 = vmax.f32 %v6192, 0.0
  %v6566 = vmax.f32 %v6196, 0.0
  %v6567 = vmax.f32 %v6198, 0.0
  %v6568 = vmax.f32 %v6200, 0.0
  %v6569 = vmax.f32 %v6202, 0.0
  %v6570 = vmax.f32 %v6206, 0.0
  %v6571 = vmax.f32 %v6208, 0.0
  %v6572 = vmax.f32 %v6210, 0.0
  %v6573 = vmax.f32 %v6212, 0.0
  %v6574 = vmax.f32 %v6216, 0.0
  %v6575 = vmax.f32 %v6218, 0.0
  %v6576 = vmax.f32 %v6220, 0.0
  %v6577 = vmax.f32 %v6222, 0.0
  %v6578 = vmax.f32 %v6226, 0.0
  %v6579 = vmax.f32 %v6228, 0.0
  %v6580 = vmax.f32 %v6230, 0.0
  %v6581 = vmax.f32 %v6232, 0.0
  %v6582 = vmax.f32 %v6236, 0.0
  %v6583 = vmax.f32 %v6238, 0.0
  %v6584 = vmax.f32 %v6240, 0.0
  %v6585 = vmax.f32 %v6242, 0.0
  %v6586 = vmax.f32 %v6246, 0.0
  %v6587 = vmax.f32 %v6248, 0.0
  %v6588 = vmax.f32 %v6250, 0.0
  %v6589 = vmax.f32 %v6252, 0.0
  %v6590 = vmax.f32 %v6256, 0.0
  %v6591 = vmax.f32 %v6258, 0.0
  %v6592 = vmax.f32 %v6260, 0.0
  %v6593 = vmax.f32 %v6262, 0.0
  %v6594 = vmax.f32 %v6266, 0.0
  %v6595 = vmax.f32 %v6268, 0.0
  %v6596 = vmax.f32 %v6270, 0.0
  %v6597 = vmax.f32 %v6272, 0.0
  %v6598 = vmax.f32 %v6276, 0.0
  %v6599 = vmax.f32 %v6278, 0.0
  %v6600 = vmax.f32 %v6280, 0.0
  %v6601 = vmax.f32 %v6282, 0.0
  %v6602 = vmax.f32 %v6286, 0.0
  %v6603 = vmax.f32 %v6288, 0.0
  %v6604 = vmax.f32 %v6290, 0.0
  %v6605 = vmax.f32 %v6292, 0.0
  %v6606 = vmax.f32 %v6296, 0.0
  %v6607 = vmax.f32 %v6298, 0.0
  %v6608 = vmax.f32 %v6300, 0.0
  %v6609 = vmax.f32 %v6302, 0.0
  %v6610 = vmax.f32 %v6306, 0.0
  %v6611 = vmax.f32 %v6308, 0.0
  %v6612 = vmax.f32 %v6310, 0.0
  %v6613 = vmax.f32 %v6312, 0.0
  %v6614 = vmax.f32 %v6316, 0.0
  %v6615 = vmax.f32 %v6318, 0.0
  %v6616 = vmax.f32 %v6320, 0.0
  %v6617 = vmax.f32 %v6322, 0.0
  %v6618 = vmax.f32 %v6326, 0.0
  %v6619 = vmax.f32 %v6328, 0.0
  %v6620 = vmax.f32 %v6330, 0.0
  %v6621 = vmax.f32 %v6332, 0.0
  %v6622 = vmax.f32 %v6336, 0.0
  %v6623 = vmax.f32 %v6338, 0.0
  %v6624 = vmax.f32 %v6340, 0.0
  %v6625 = vmax.f32 %v6342, 0.0
  %v6626 = vmax.f32 %v6346, 0.0
  %v6627 = vmax.f32 %v6348, 0.0
  %v6628 = vmax.f32 %v6350, 0.0
  %v6629 = vmax.f32 %v6352, 0.0
  %v6630 = vmax.f32 %v6356, 0.0
  %v6631 = vmax.f32 %v6358, 0.0
  %v6632 = vmax.f32 %v6360, 0.0
  %v6633 = vmax.f32 %v6362, 0.0
  %v6634 = vmax.f32 %v6366, 0.0
  %v6635 = vmax.f32 %v6368, 0.0
  %v6636 = vmax.f32 %v6370, 0.0
  %v6637 = vmax.f32 %v6372, 0.0
  %v6638 = vmax.f32 %v6376, 0.0
  %v6639 = vmax.f32 %v6378, 0.0
  %v6640 = vmax.f32 %v6380, 0.0
  %v6641 = vmax.f32 %v6382, 0.0
  %v6642 = vmax.f32 %v6386, 0.0
  %v6643 = vmax.f32 %v6388, 0.0
  %v6644 = vmax.f32 %v6390, 0.0
  %v6645 = vmax.f32 %v6392, 0.0
  %v6646 = vmax.f32 %v6396, 0.0
  %v6647 = vmax.f32 %v6398, 0.0
  %v6648 = vmax.f32 %v6400, 0.0
  %v6649 = vmax.f32 %v6402, 0.0
  %v6650 = vmax.f32 %v6406, 0.0
  %v6651 = vmax.f32 %v6408, 0.0
  %v6652 = vmax.f32 %v6410, 0.0
  %v6653 = vmax.f32 %v6412, 0.0
  %v6654 = vmax.f32 %v6414, %v6474
  %v6655 = vmax.f32 %v6415, %v6475
  %v6656 = vmax.f32 %v6416, %v6476
  %v6657 = vmax.f32 %v6417, %v6477
  %v6658 = vmax.f32 %v6418, %v6478
  %v6659 = vmax.f32 %v6419, %v6479
  %v6660 = vmax.f32 %v6420, %v6480
  %v6661 = vmax.f32 %v6421, %v6481
  %v6662 = vmax.f32 %v6422, %v6482
  %v6663 = vmax.f32 %v6423, %v6483
  %v6664 = vmax.f32 %v6424, %v6484
  %v6665 = vmax.f32 %v6425, %v6485
  %v6666 = vmax.f32 %v6426, %v6486
  %v6667 = vmax.f32 %v6427, %v6487
  %v6668 = vmax.f32 %v6428, %v6488
  %v6669 = vmax.f32 %v6429, %v6489
  %v6670 = vmax.f32 %v6430, %v6490
  %v6671 = vmax.f32 %v6431, %v6491
  %v6672 = vmax.f32 %v6432, %v6492
  %v6673 = vmax.f32 %v6433, %v6493
  %v6674 = vmax.f32 %v6434, %v6494
  %v6675 = vmax.f32 %v6435, %v6495
  %v6676 = vmax.f32 %v6436, %v6496
  %v6677 = vmax.f32 %v6437, %v6497
  %v6678 = vmax.f32 %v6438, %v6498
  %v6679 = vmax.f32 %v6439, %v6499
  %v6680 = vmax.f32 %v6440, %v6500
  %v6681 = vmax.f32 %v6441, %v6501
  %v6682 = vmax.f32 %v6442, %v6502
  %v6683 = vmax.f32 %v6443, %v6503
  %v6684 = vmax.f32 %v6444, %v6504
  %v6685 = vmax.f32 %v6445, %v6505
  %v6686 = vmax.f32 %v6446, %v6506
  %v6687 = vmax.f32 %v6447, %v6507
  %v6688 = vmax.f32 %v6448, %v6508
  %v6689 = vmax.f32 %v6449, %v6509
  %v6690 = vmax.f32 %v6450, %v6510
  %v6691 = vmax.f32 %v6451, %v6511
  %v6692 = vmax.f32 %v6452, %v6512
  %v6693 = vmax.f32 %v6453, %v6513
  %v6694 = vmax.f32 %v6454, %v6514
  %v6695 = vmax.f32 %v6455, %v6515
  %v6696 = vmax.f32 %v6456, %v6516
  %v6697 = vmax.f32 %v6457, %v6517
  %v6698 = vmax.f32 %v6458, %v6518
  %v6699 = vmax.f32 %v6459, %v6519
  %v6700 = vmax.f32 %v6460, %v6520
  %v6701 = vmax.f32 %v6461, %v6521
  %v6702 = vmax.f32 %v6462, %v6522
  %v6703 = vmax.f32 %v6463, %v6523
  %v6704 = vmax.f32 %v6464, %v6524
  %v6705 = vmax.f32 %v6465, %v6525
  %v6706 = vmax.f32 %v6466, %v6526
  %v6707 = vmax.f32 %v6467, %v6527
  %v6708 = vmax.f32 %v6468, %v6528
  %v6709 = vmax.f32 %v6469, %v6529
  %v6710 = vmax.f32 %v6470, %v6530
  %v6711 = vmax.f32 %v6471, %v6531
  %v6712 = vmax.f32 %v6472, %v6532
  %v6713 = vmax.f32 %v6473, %v6533
  %v6714 = vmax.f32 %v6534, %v6594
  %v6715 = vmax.f32 %v6535, %v6595
  %v6716 = vmax.f32 %v6536, %v6596
  %v6717 = vmax.f32 %v6537, %v6597
  %v6718 = vmax.f32 %v6538, %v6598
  %v6719 = vmax.f32 %v6539, %v6599
  %v6720 = vmax.f32 %v6540, %v6600
  %v6721 = vmax.f32 %v6541, %v6601
  %v6722 = vmax.f32 %v6542, %v6602
  %v6723 = vmax.f32 %v6543, %v6603
  %v6724 = vmax.f32 %v6544, %v6604
  %v6725 = vmax.f32 %v6545, %v6605
  %v6726 = vmax.f32 %v6546, %v6606
  %v6727 = vmax.f32 %v6547, %v6607
  %v6728 = vmax.f32 %v6548, %v6608
  %v6729 = vmax.f32 %v6549, %v6609
  %v6730 = vmax.f32 %v6550, %v6610
  %v6731 = vmax.f32 %v6551, %v6611
  %v6732 = vmax.f32 %v6552, %v6612
  %v6733 = vmax.f32 %v6553, %v6613
  %v6734 = vmax.f32 %v6554, %v6614
  %v6735 = vmax.f32 %v6555, %v6615
  %v6736 = vmax.f32 %v6556, %v6616
  %v6737 = vmax.f32 %v6557, %v6617
  %v6738 = vmax.f32 %v6558, %v6618
  %v6739 = vmax.f32 %v6559, %v6619
  %v6740 = vmax.f32 %v6560, %v6620
  %v6741 = vmax.f32 %v6561, %v6621
  %v6742 = vmax.f32 %v6562, %v6622
  %v6743 = vmax.f32 %v6563, %v6623
  %v6744 = vmax.f32 %v6564, %v6624
  %v6745 = vmax.f32 %v6565, %v6625
  %v6746 = vmax.f32 %v6566, %v6626
  %v6747 = vmax.f32 %v6567, %v6627
  %v6748 = vmax.f32 %v6568, %v6628
  %v6749 = vmax.f32 %v6569, %v6629
  %v6750 = vmax.f32 %v6570, %v6630
  %v6751 = vmax.f32 %v6571, %v6631
  %v6752 = vmax.f32 %v6572, %v6632
  %v6753 = vmax.f32 %v6573, %v6633
  %v6754 = vmax.f32 %v6574, %v6634
  %v6755 = vmax.f32 %v6575, %v6635
  %v6756 = vmax.f32 %v6576, %v6636
  %v6757 = vmax.f32 %v6577, %v6637
  %v6758 = vmax.f32 %v6578, %v6638
  %v6759 = vmax.f32 %v6579, %v6639
  %v6760 = vmax.f32 %v6580, %v6640
  %v6761 = vmax.f32 %v6581, %v6641
  %v6762 = vmax.f32 %v6582, %v6642
  %v6763 = vmax.f32 %v6583, %v6643
  %v6764 = vmax.f32 %v6584, %v6644
  %v6765 = vmax.f32 %v6585, %v6645
  %v6766 = vmax.f32 %v6586, %v6646
  %v6767 = vmax.f32 %v6587, %v6647
  %v6768 = vmax.f32 %v6588, %v6648
  %v6769 = vmax.f32 %v6589, %v6649
  %v6770 = vmax.f32 %v6590, %v6650
  %v6771 = vmax.f32 %v6591, %v6651
  %v6772 = vmax.f32 %v6592, %v6652
  %v6773 = vmax.f32 %v6593, %v6653
  %v6774 = vmax.f32 %v6654, %v6714
  %v6775 = vmax.f32 %v6655, %v6715
  %v6776 = vmax.f32 %v6656, %v6716
  %v6777 = vmax.f32 %v6657, %v6717
  %v6778 = vmax.f32 %v6658, %v6718
  %v6779 = vmax.f32 %v6659, %v6719
  %v6780 = vmax.f32 %v6660, %v6720
  %v6781 = vmax.f32 %v6661, %v6721
  %v6782 = vmax.f32 %v6662, %v6722
  %v6783 = vmax.f32 %v6663, %v6723
  %v6784 = vmax.f32 %v6664, %v6724
  %v6785 = vmax.f32 %v6665, %v6725
  %v6786 = vmax.f32 %v6666, %v6726
  %v6787 = vmax.f32 %v6667, %v6727
  %v6788 = vmax.f32 %v6668, %v6728
  %v6789 = vmax.f32 %v6669, %v6729
  %v6790 = vmax.f32 %v6670, %v6730
  %v6791 = vmax.f32 %v6671, %v6731
  %v6792 = vmax.f32 %v6672, %v6732
  %v6793 = vmax.f32 %v6673, %v6733
  %v6794 = vmax.f32 %v6674, %v6734
  %v6795 = vmax.f32 %v6675, %v6735
  %v6796 = vmax.f32 %v6676, %v6736
  %v6797 = vmax.f32 %v6677, %v6737
  %v6798 = vmax.f32 %v6678, %v6738
  %v6799 = vmax.f32 %v6679, %v6739
  %v6800 = vmax.f32 %v6680, %v6740
  %v6801 = vmax.f32 %v6681, %v6741
  %v6802 = vmax.f32 %v6682, %v6742
  %v6803 = vmax.f32 %v6683, %v6743
  %v6804 = vmax.f32 %v6684, %v6744
  %v6805 = vmax.f32 %v6685, %v6745
  %v6806 = vmax.f32 %v6686, %v6746
  %v6807 = vmax.f32 %v6687, %v6747
  %v6808 = vmax.f32 %v6688, %v6748
  %v6809 = vmax.f32 %v6689, %v6749
  %v6810 = vmax.f32 %v6690, %v6750
  %v6811 = vmax.f32 %v6691, %v6751
  %v6812 = vmax.f32 %v6692, %v6752
  %v6813 = vmax.f32 %v6693, %v6753
  %v6814 = vmax.f32 %v6694, %v6754
  %v6815 = vmax.f32 %v6695, %v6755
  %v6816 = vmax.f32 %v6696, %v6756
  %v6817 = vmax.f32 %v6697, %v6757
  %v6818 = vmax.f32 %v6698, %v6758
  %v6819 = vmax.f32 %v6699, %v6759
  %v6820 = vmax.f32 %v6700, %v6760
  %v6821 = vmax.f32 %v6701, %v6761
  %v6822 = vmax.f32 %v6702, %v6762
  %v6823 = vmax.f32 %v6703, %v6763
  %v6824 = vmax.f32 %v6704, %v6764
  %v6825 = vmax.f32 %v6705, %v6765
  %v6826 = vmax.f32 %v6706, %v6766
  %v6827 = vmax.f32 %v6707, %v6767
  %v6828 = vmax.f32 %v6708, %v6768
  %v6829 = vmax.f32 %v6709, %v6769
  %v6830 = vmax.f32 %v6710, %v6770
  %v6831 = vmax.f32 %v6711, %v6771
  %v6832 = vmax.f32 %v6712, %v6772
  %v6833 = vmax.f32 %v6713, %v6773
  %v6834 = vpack.c.bf16 %v6776, %v6774
  %v6835 = vpack.c.bf16 %v6777, %v6775
  %v6836 = vpack.c.bf16 %v6780, %v6778
  %v6837 = vpack.c.bf16 %v6781, %v6779
  %v6838 = vpack.c.bf16 %v6784, %v6782
  %v6839 = vpack.c.bf16 %v6785, %v6783
  %v6840 = vpack.c.bf16 %v6788, %v6786
  %v6841 = vpack.c.bf16 %v6789, %v6787
  %v6842 = vpack.c.bf16 %v6792, %v6790
  %v6843 = vpack.c.bf16 %v6793, %v6791
  %v6844 = vpack.c.bf16 %v6796, %v6794
  %v6845 = vpack.c.bf16 %v6797, %v6795
  %v6846 = vpack.c.bf16 %v6800, %v6798
  %v6847 = vpack.c.bf16 %v6801, %v6799
  %v6848 = vpack.c.bf16 %v6804, %v6802
  %v6849 = vpack.c.bf16 %v6805, %v6803
  %v6850 = vpack.c.bf16 %v6808, %v6806
  %v6851 = vpack.c.bf16 %v6809, %v6807
  %v6852 = vpack.c.bf16 %v6812, %v6810
  %v6853 = vpack.c.bf16 %v6813, %v6811
  %v6854 = vpack.c.bf16 %v6816, %v6814
  %v6855 = vpack.c.bf16 %v6817, %v6815
  %v6856 = vpack.c.bf16 %v6820, %v6818
  %v6857 = vpack.c.bf16 %v6821, %v6819
  %v6858 = vpack.c.bf16 %v6824, %v6822
  %v6859 = vpack.c.bf16 %v6825, %v6823
  %v6860 = vpack.c.bf16 %v6828, %v6826
  %v6861 = vpack.c.bf16 %v6829, %v6827
  %v6862 = vpack.c.bf16 %v6832, %v6830
  %v6863 = vpack.c.bf16 %v6833, %v6831
  %6864 = vst [vmem:[#allocation2 + $0x2d0] sm:$0xff] %v6834
  %6865 = vst [vmem:[#allocation2 + $0x2d8] sm:$0xff] %v6835
  %6866 = vst [vmem:[#allocation2 + $0x2e0] sm:$0xff] %v6836
  %6867 = vst [vmem:[#allocation2 + $0x2e8] sm:$0xff] %v6837
  %6868 = vst [vmem:[#allocation2 + $0x2f0] sm:$0xff] %v6838
  %6869 = vst [vmem:[#allocation2 + $0x2f8] sm:$0xff] %v6839
  %6870 = vst [vmem:[#allocation2 + $0x300] sm:$0xff] %v6840
  %6871 = vst [vmem:[#allocation2 + $0x308] sm:$0xff] %v6841
  %6872 = vst [vmem:[#allocation2 + $0x310] sm:$0xff] %v6842
  %6873 = vst [vmem:[#allocation2 + $0x318] sm:$0xff] %v6843
  %6874 = vst [vmem:[#allocation2 + $0x320] sm:$0xff] %v6844
  %6875 = vst [vmem:[#allocation2 + $0x328] sm:$0xff] %v6845
  %6876 = vst [vmem:[#allocation2 + $0x330] sm:$0xff] %v6846
  %6877 = vst [vmem:[#allocation2 + $0x338] sm:$0xff] %v6847
  %6878 = vst [vmem:[#allocation2 + $0x340] sm:$0xff] %v6848
  %6879 = vst [vmem:[#allocation2 + $0x348] sm:$0xff] %v6849
  %6880 = vst [vmem:[#allocation2 + $0x350] sm:$0xff] %v6850
  %6881 = vst [vmem:[#allocation2 + $0x358] sm:$0xff] %v6851
  %6882 = vst [vmem:[#allocation2 + $0x360] sm:$0xff] %v6852
  %6883 = vst [vmem:[#allocation2 + $0x368] sm:$0xff] %v6853
  %6884 = vst [vmem:[#allocation2 + $0x370] sm:$0xff] %v6854
  %6885 = vst [vmem:[#allocation2 + $0x378] sm:$0xff] %v6855
  %6886 = vst [vmem:[#allocation2 + $0x380] sm:$0xff] %v6856
  %6887 = vst [vmem:[#allocation2 + $0x388] sm:$0xff] %v6857
  %6888 = vst [vmem:[#allocation2 + $0x390] sm:$0xff] %v6858
  %6889 = vst [vmem:[#allocation2 + $0x398] sm:$0xff] %v6859
  %6890 = vst [vmem:[#allocation2 + $0x3a0] sm:$0xff] %v6860
  %6891 = vst [vmem:[#allocation2 + $0x3a8] sm:$0xff] %v6861
  %6892 = vst [vmem:[#allocation2 + $0x3b0] sm:$0xff] %v6862
  %6893 = vst [vmem:[#allocation2 + $0x3b8] sm:$0xff] %v6863
  %v6894 = vld [vmem:[%s0 + $0x1c0] sm:$0xff]
  %v6895 = vld [vmem:[%s0 + $0x1c8] sm:$0xff]
  %v6896 = vld [vmem:[%s0 + $0x1d0] sm:$0xff]
  %v6897 = vld [vmem:[%s0 + $0x1d8] sm:$0xff]
  %v6898 = vld [vmem:[%s0 + $0x1e0] sm:$0xff]
  %v6899 = vld [vmem:[%s0 + $0x1e8] sm:$0xff]
  %v6900 = vld [vmem:[%s0 + $0x1f0] sm:$0xff]
  %v6901 = vld [vmem:[%s0 + $0x1f8] sm:$0xff]
  %v6902 = vld [vmem:[%s0 + $0x200] sm:$0xff]
  %v6903 = vld [vmem:[%s0 + $0x208] sm:$0xff]
  %v6904 = vld [vmem:[%s0 + $0x210] sm:$0xff]
  %v6905 = vld [vmem:[%s0 + $0x218] sm:$0xff]
  %v6906 = vld [vmem:[%s0 + $0x220] sm:$0xff]
  %v6907 = vld [vmem:[%s0 + $0x228] sm:$0xff]
  %v6908 = vld [vmem:[%s0 + $0x230] sm:$0xff]
  %v6909 = vld [vmem:[%s0 + $0x238] sm:$0xff]
  %v6910 = vld [vmem:[%s0 + $0x240] sm:$0xff]
  %v6911 = vld [vmem:[%s0 + $0x248] sm:$0xff]
  %v6912 = vld [vmem:[%s0 + $0x250] sm:$0xff]
  %v6913 = vld [vmem:[%s0 + $0x258] sm:$0xff]
  %v6914 = vld [vmem:[%s0 + $0x260] sm:$0xff]
  %v6915 = vld [vmem:[%s0 + $0x268] sm:$0xff]
  %v6916 = vld [vmem:[%s0 + $0x270] sm:$0xff]
  %v6917 = vld [vmem:[%s0 + $0x278] sm:$0xff]
  %v6918 = vld [vmem:[%s0 + $0x280] sm:$0xff]
  %v6919 = vld [vmem:[%s0 + $0x288] sm:$0xff]
  %v6920 = vld [vmem:[%s0 + $0x290] sm:$0xff]
  %v6921 = vld [vmem:[%s0 + $0x298] sm:$0xff]
  %v6950 = vunpack.c.l.b16 %v6894
  %v6951 = vunpack.c.h.b16 %v6894
  %v6952 = vunpack.c.l.b16 %v6895
  %v6953 = vunpack.c.h.b16 %v6895
  %v6954 = vunpack.c.l.b16 %v6896
  %v6955 = vunpack.c.h.b16 %v6896
  %v6956 = vunpack.c.l.b16 %v6897
  %v6957 = vunpack.c.h.b16 %v6897
  %v6958 = vunpack.c.l.b16 %v6898
  %v6959 = vunpack.c.h.b16 %v6898
  %v6960 = vunpack.c.l.b16 %v6899
  %v6961 = vunpack.c.h.b16 %v6899
  %v6962 = vunpack.c.l.b16 %v6900
  %v6963 = vunpack.c.h.b16 %v6900
  %v6964 = vunpack.c.l.b16 %v6901
  %v6965 = vunpack.c.h.b16 %v6901
  %v6966 = vunpack.c.l.b16 %v6902
  %v6967 = vunpack.c.h.b16 %v6902
  %v6968 = vunpack.c.l.b16 %v6903
  %v6969 = vunpack.c.h.b16 %v6903
  %v6970 = vunpack.c.l.b16 %v6904
  %v6971 = vunpack.c.h.b16 %v6904
  %v6972 = vunpack.c.l.b16 %v6905
  %v6973 = vunpack.c.h.b16 %v6905
  %v6974 = vunpack.c.l.b16 %v6906
  %v6975 = vunpack.c.h.b16 %v6906
  %v6976 = vunpack.c.l.b16 %v6907
  %v6977 = vunpack.c.h.b16 %v6907
  %v6978 = vunpack.c.l.b16 %v6908
  %v6979 = vunpack.c.h.b16 %v6908
  %v6980 = vunpack.c.l.b16 %v6909
  %v6981 = vunpack.c.h.b16 %v6909
  %v6982 = vunpack.c.l.b16 %v6910
  %v6983 = vunpack.c.h.b16 %v6910
  %v6984 = vunpack.c.l.b16 %v6911
  %v6985 = vunpack.c.h.b16 %v6911
  %v6986 = vunpack.c.l.b16 %v6912
  %v6987 = vunpack.c.h.b16 %v6912
  %v6988 = vunpack.c.l.b16 %v6913
  %v6989 = vunpack.c.h.b16 %v6913
  %v6990 = vunpack.c.l.b16 %v6914
  %v6991 = vunpack.c.h.b16 %v6914
  %v6992 = vunpack.c.l.b16 %v6915
  %v6993 = vunpack.c.h.b16 %v6915
  %v6994 = vunpack.c.l.b16 %v6916
  %v6995 = vunpack.c.h.b16 %v6916
  %v6996 = vunpack.c.l.b16 %v6917
  %v6997 = vunpack.c.h.b16 %v6917
  %v6998 = vunpack.c.l.b16 %v6918
  %v6999 = vunpack.c.h.b16 %v6918
  %v7000 = vunpack.c.l.b16 %v6919
  %v7001 = vunpack.c.h.b16 %v6919
  %v7002 = vunpack.c.l.b16 %v6920
  %v7003 = vunpack.c.h.b16 %v6920
  %v7004 = vunpack.c.l.b16 %v6921
  %v7005 = vunpack.c.h.b16 %v6921
  %v7006 = vpack.c.b16 %v6952, %v6950
  %v7007 = vpack.c.b16 %v6953, %v6951
  %v7008 = vpack.c.b16 %v6956, %v6954
  %v7009 = vpack.c.b16 %v6957, %v6955
  %v7010 = vpack.c.b16 %v6960, %v6958
  %v7011 = vpack.c.b16 %v6961, %v6959
  %v7012 = vpack.c.b16 %v6964, %v6962
  %v7013 = vpack.c.b16 %v6965, %v6963
  %v7014 = vpack.c.b16 %v6968, %v6966
  %v7015 = vpack.c.b16 %v6969, %v6967
  %v7016 = vpack.c.b16 %v6972, %v6970
  %v7017 = vpack.c.b16 %v6973, %v6971
  %v7018 = vpack.c.b16 %v6976, %v6974
  %v7019 = vpack.c.b16 %v6977, %v6975
  %v7020 = vpack.c.b16 %v6980, %v6978
  %v7021 = vpack.c.b16 %v6981, %v6979
  %v7022 = vpack.c.b16 %v6984, %v6982
  %v7023 = vpack.c.b16 %v6985, %v6983
  %v7024 = vpack.c.b16 %v6988, %v6986
  %v7025 = vpack.c.b16 %v6989, %v6987
  %v7026 = vpack.c.b16 %v6992, %v6990
  %v7027 = vpack.c.b16 %v6993, %v6991
  %v7028 = vpack.c.b16 %v6996, %v6994
  %v7029 = vpack.c.b16 %v6997, %v6995
  %v7030 = vpack.c.b16 %v7000, %v6998
  %v7031 = vpack.c.b16 %v7001, %v6999
  %v7032 = vpack.c.b16 %v7004, %v7002
  %v7033 = vpack.c.b16 %v7005, %v7003
  %7062 = vmatprep.subr.bf16.mxu0 %v7007
  %7063 = vmatpush1.bf16.msra.mxu0 %v7006
  %7064 = vmatprep.subr.bf16.mxu0 %v7009
  %7065 = vmatpush1.bf16.msra.mxu0 %v7008
  %7066 = vmatprep.subr.bf16.mxu0 %v7011
  %7067 = vmatpush1.bf16.msra.mxu0 %v7010
  %7068 = vmatprep.subr.bf16.mxu0 %v7013
  %7069 = vmatpush1.bf16.msra.mxu0 %v7012
  %7070 = vmatprep.subr.bf16.mxu0 %v7015
  %7071 = vmatpush1.bf16.msra.mxu0 %v7014
  %7072 = vmatprep.subr.bf16.mxu0 %v7017
  %7073 = vmatpush1.bf16.msra.mxu0 %v7016
  %7074 = vmatprep.subr.bf16.mxu0 %v7019
  %7075 = vmatpush1.bf16.msra.mxu0 %v7018
  %7076 = vmatprep.subr.bf16.mxu0 %v7021
  %7077 = vmatpush1.bf16.msra.mxu0 %v7020
  %7078 = vmatprep.subr.bf16.mxu0 %v7023
  %7079 = vmatpush1.bf16.msra.mxu0 %v7022
  %7080 = vmatprep.subr.bf16.mxu0 %v7025
  %7081 = vmatpush1.bf16.msra.mxu0 %v7024
  %7082 = vmatprep.subr.bf16.mxu0 %v7027
  %7083 = vmatpush1.bf16.msra.mxu0 %v7026
  %7084 = vmatprep.subr.bf16.mxu0 %v7029
  %7085 = vmatpush1.bf16.msra.mxu0 %v7028
  %7086 = vmatprep.subr.bf16.mxu0 %v7031
  %7087 = vmatpush1.bf16.msra.mxu0 %v7030
  %7088 = vmatprep.subr.bf16.mxu0 %v7033
  %7089 = vmatpush1.bf16.msra.mxu0 %v7032
  %7090 = vmatprep.subr.bf16.mxu0 0
  %7091 = vmatpush1.bf16.msra.mxu0 0
  %7092 = vmatprep.subr.bf16.mxu0 0
  %7093 = vmatpush1.bf16.msra.mxu0 0
  %7094 = vmatprep.mubr.bf16.mxu0 %v1759
  %7095 = vmatmul.mubr.bf16.gmra.mrb[0].mxu0 %v1437
  %v7096 = vpop.f32.mrb[0].mxu0
  %v7097 = vadd.f32 %v332, %v7096
  %v7098 = vpop.f32.mrb[0].mxu0
  %v7099 = vadd.f32 %v332, %v7098
  %v7100 = vpop.f32.mrb[0].mxu0
  %v7101 = vadd.f32 %v337, %v7100
  %v7102 = vpop.f32.mrb[0].mxu0
  %v7103 = vadd.f32 %v337, %v7102
  %7104 = vmatprep.mubr.bf16.mxu0 %v1762
  %7105 = vmatmul.mubr.bf16.gmra.mrb[0].mxu0 %v1439
  %v7106 = vpop.f32.mrb[0].mxu0
  %v7107 = vadd.f32 %v342, %v7106
  %v7108 = vpop.f32.mrb[0].mxu0
  %v7109 = vadd.f32 %v342, %v7108
  %v7110 = vpop.f32.mrb[0].mxu0
  %v7111 = vadd.f32 %v347, %v7110
  %v7112 = vpop.f32.mrb[0].mxu0
  %v7113 = vadd.f32 %v347, %v7112
  %7114 = vmatprep.mubr.bf16.mxu0 %v1765
  %7115 = vmatmul.mubr.bf16.gmra.mrb[0].mxu0 %v1441
  %v7116 = vpop.f32.mrb[0].mxu0
  %v7117 = vadd.f32 %v352, %v7116
  %v7118 = vpop.f32.mrb[0].mxu0
  %v7119 = vadd.f32 %v352, %v7118
  %v7120 = vpop.f32.mrb[0].mxu0
  %v7121 = vadd.f32 %v357, %v7120
  %v7122 = vpop.f32.mrb[0].mxu0
  %v7123 = vadd.f32 %v357, %v7122
  %7124 = vmatprep.mubr.bf16.mxu0 %v1768
  %7125 = vmatmul.mubr.bf16.gmra.mrb[0].mxu0 %v1443
  %v7126 = vpop.f32.mrb[0].mxu0
  %v7127 = vadd.f32 %v362, %v7126
  %v7128 = vpop.f32.mrb[0].mxu0
  %v7129 = vadd.f32 %v362, %v7128
  %v7130 = vpop.f32.mrb[0].mxu0
  %v7131 = vadd.f32 %v367, %v7130
  %v7132 = vpop.f32.mrb[0].mxu0
  %v7133 = vadd.f32 %v367, %v7132
  %7134 = vmatprep.mubr.bf16.mxu0 %v1771
  %7135 = vmatmul.mubr.bf16.gmra.mrb[0].mxu0 %v1445
  %v7136 = vpop.f32.mrb[0].mxu0
  %v7137 = vadd.f32 %v372, %v7136
  %v7138 = vpop.f32.mrb[0].mxu0
  %v7139 = vadd.f32 %v372, %v7138
  %v7140 = vpop.f32.mrb[0].mxu0
  %v7141 = vadd.f32 %v377, %v7140
  %v7142 = vpop.f32.mrb[0].mxu0
  %v7143 = vadd.f32 %v377, %v7142
  %7144 = vmatprep.mubr.bf16.mxu0 %v1774
  %7145 = vmatmul.mubr.bf16.gmra.mrb[0].mxu0 %v1447
  %v7146 = vpop.f32.mrb[0].mxu0
  %v7147 = vadd.f32 %v382, %v7146
  %v7148 = vpop.f32.mrb[0].mxu0
  %v7149 = vadd.f32 %v382, %v7148
  %v7150 = vpop.f32.mrb[0].mxu0
  %v7151 = vadd.f32 %v387, %v7150
  %v7152 = vpop.f32.mrb[0].mxu0
  %v7153 = vadd.f32 %v387, %v7152
  %7154 = vmatprep.mubr.bf16.mxu0 %v1777
  %7155 = vmatmul.mubr.bf16.gmra.mrb[0].mxu0 %v1449
  %v7156 = vpop.f32.mrb[0].mxu0
  %v7157 = vadd.f32 %v392, %v7156
  %v7158 = vpop.f32.mrb[0].mxu0
  %v7159 = vadd.f32 %v392, %v7158
  %v7160 = vpop.f32.mrb[0].mxu0
  %v7161 = vadd.f32 %v397, %v7160
  %v7162 = vpop.f32.mrb[0].mxu0
  %v7163 = vadd.f32 %v397, %v7162
  %7164 = vmatprep.mubr.bf16.mxu0 %v1780
  %7165 = vmatmul.mubr.bf16.gmra.mrb[0].mxu0 %v1451
  %v7166 = vpop.f32.mrb[0].mxu0
  %v7167 = vadd.f32 %v402, %v7166
  %v7168 = vpop.f32.mrb[0].mxu0
  %v7169 = vadd.f32 %v402, %v7168
  %v7170 = vpop.f32.mrb[0].mxu0
  %v7171 = vadd.f32 %v407, %v7170
  %v7172 = vpop.f32.mrb[0].mxu0
  %v7173 = vadd.f32 %v407, %v7172
  %7174 = vmatprep.mubr.bf16.mxu0 %v1783
  %7175 = vmatmul.mubr.bf16.gmra.mrb[0].mxu0 %v1453
  %v7176 = vpop.f32.mrb[0].mxu0
  %v7177 = vadd.f32 %v412, %v7176
  %v7178 = vpop.f32.mrb[0].mxu0
  %v7179 = vadd.f32 %v412, %v7178
  %v7180 = vpop.f32.mrb[0].mxu0
  %v7181 = vadd.f32 %v417, %v7180
  %v7182 = vpop.f32.mrb[0].mxu0
  %v7183 = vadd.f32 %v417, %v7182
  %7184 = vmatprep.mubr.bf16.mxu0 %v1786
  %7185 = vmatmul.mubr.bf16.gmra.mrb[0].mxu0 %v1455
  %v7186 = vpop.f32.mrb[0].mxu0
  %v7187 = vadd.f32 %v422, %v7186
  %v7188 = vpop.f32.mrb[0].mxu0
  %v7189 = vadd.f32 %v422, %v7188
  %v7190 = vpop.f32.mrb[0].mxu0
  %v7191 = vadd.f32 %v427, %v7190
  %v7192 = vpop.f32.mrb[0].mxu0
  %v7193 = vadd.f32 %v427, %v7192
  %7194 = vmatprep.mubr.bf16.mxu0 %v1789
  %7195 = vmatmul.mubr.bf16.gmra.mrb[0].mxu0 %v1457
  %v7196 = vpop.f32.mrb[0].mxu0
  %v7197 = vadd.f32 %v432, %v7196
  %v7198 = vpop.f32.mrb[0].mxu0
  %v7199 = vadd.f32 %v432, %v7198
  %v7200 = vpop.f32.mrb[0].mxu0
  %v7201 = vadd.f32 %v437, %v7200
  %v7202 = vpop.f32.mrb[0].mxu0
  %v7203 = vadd.f32 %v437, %v7202
  %7204 = vmatprep.mubr.bf16.mxu0 %v1792
  %7205 = vmatmul.mubr.bf16.gmra.mrb[0].mxu0 %v1459
  %v7206 = vpop.f32.mrb[0].mxu0
  %v7207 = vadd.f32 %v442, %v7206
  %v7208 = vpop.f32.mrb[0].mxu0
  %v7209 = vadd.f32 %v442, %v7208
  %v7210 = vpop.f32.mrb[0].mxu0
  %v7211 = vadd.f32 %v447, %v7210
  %v7212 = vpop.f32.mrb[0].mxu0
  %v7213 = vadd.f32 %v447, %v7212
  %7214 = vmatprep.mubr.bf16.mxu0 %v1795
  %7215 = vmatmul.mubr.bf16.gmra.mrb[0].mxu0 %v1461
  %v7216 = vpop.f32.mrb[0].mxu0
  %v7217 = vadd.f32 %v452, %v7216
  %v7218 = vpop.f32.mrb[0].mxu0
  %v7219 = vadd.f32 %v452, %v7218
  %v7220 = vpop.f32.mrb[0].mxu0
  %v7221 = vadd.f32 %v457, %v7220
  %v7222 = vpop.f32.mrb[0].mxu0
  %v7223 = vadd.f32 %v457, %v7222
  %7224 = vmatprep.mubr.bf16.mxu0 %v1798
  %7225 = vmatmul.mubr.bf16.gmra.mrb[0].mxu0 %v1463
  %v7226 = vpop.f32.mrb[0].mxu0
  %v7227 = vadd.f32 %v462, %v7226
  %v7228 = vpop.f32.mrb[0].mxu0
  %v7229 = vadd.f32 %v462, %v7228
  %v7230 = vpop.f32.mrb[0].mxu0
  %v7231 = vadd.f32 %v467, %v7230
  %v7232 = vpop.f32.mrb[0].mxu0
  %v7233 = vadd.f32 %v467, %v7232
  %7234 = vmatprep.mubr.bf16.mxu0 %v1801
  %7235 = vmatmul.mubr.bf16.gmra.mrb[0].mxu0 %v1465
  %v7236 = vpop.f32.mrb[0].mxu0
  %v7237 = vadd.f32 %v472, %v7236
  %v7238 = vpop.f32.mrb[0].mxu0
  %v7239 = vadd.f32 %v472, %v7238
  %v7240 = vpop.f32.mrb[0].mxu0
  %v7241 = vadd.f32 %v477, %v7240
  %v7242 = vpop.f32.mrb[0].mxu0
  %v7243 = vadd.f32 %v477, %v7242
  %7244 = vmatprep.mubr.bf16.mxu0 %v1804
  %7245 = vmatmul.mubr.bf16.gmra.mrb[0].mxu0 %v1467
  %v7246 = vpop.f32.mrb[0].mxu0
  %v7247 = vadd.f32 %v482, %v7246
  %v7248 = vpop.f32.mrb[0].mxu0
  %v7249 = vadd.f32 %v482, %v7248
  %v7250 = vpop.f32.mrb[0].mxu0
  %v7251 = vadd.f32 %v487, %v7250
  %v7252 = vpop.f32.mrb[0].mxu0
  %v7253 = vadd.f32 %v487, %v7252
  %7254 = vmatprep.mubr.bf16.mxu0 %v1807
  %7255 = vmatmul.mubr.bf16.gmra.mrb[0].mxu0 %v1469
  %v7256 = vpop.f32.mrb[0].mxu0
  %v7257 = vadd.f32 %v492, %v7256
  %v7258 = vpop.f32.mrb[0].mxu0
  %v7259 = vadd.f32 %v492, %v7258
  %v7260 = vpop.f32.mrb[0].mxu0
  %v7261 = vadd.f32 %v497, %v7260
  %v7262 = vpop.f32.mrb[0].mxu0
  %v7263 = vadd.f32 %v497, %v7262
  %7264 = vmatprep.mubr.bf16.mxu0 %v1810
  %7265 = vmatmul.mubr.bf16.gmra.mrb[0].mxu0 %v1471
  %v7266 = vpop.f32.mrb[0].mxu0
  %v7267 = vadd.f32 %v502, %v7266
  %v7268 = vpop.f32.mrb[0].mxu0
  %v7269 = vadd.f32 %v502, %v7268
  %v7270 = vpop.f32.mrb[0].mxu0
  %v7271 = vadd.f32 %v507, %v7270
  %v7272 = vpop.f32.mrb[0].mxu0
  %v7273 = vadd.f32 %v507, %v7272
  %7274 = vmatprep.mubr.bf16.mxu0 %v1813
  %7275 = vmatmul.mubr.bf16.gmra.mrb[0].mxu0 %v1473
  %v7276 = vpop.f32.mrb[0].mxu0
  %v7277 = vadd.f32 %v512, %v7276
  %v7278 = vpop.f32.mrb[0].mxu0
  %v7279 = vadd.f32 %v512, %v7278
  %v7280 = vpop.f32.mrb[0].mxu0
  %v7281 = vadd.f32 %v517, %v7280
  %v7282 = vpop.f32.mrb[0].mxu0
  %v7283 = vadd.f32 %v517, %v7282
  %7284 = vmatprep.mubr.bf16.mxu0 %v1816
  %7285 = vmatmul.mubr.bf16.gmra.mrb[0].mxu0 %v1475
  %v7286 = vpop.f32.mrb[0].mxu0
  %v7287 = vadd.f32 %v522, %v7286
  %v7288 = vpop.f32.mrb[0].mxu0
  %v7289 = vadd.f32 %v522, %v7288
  %v7290 = vpop.f32.mrb[0].mxu0
  %v7291 = vadd.f32 %v527, %v7290
  %v7292 = vpop.f32.mrb[0].mxu0
  %v7293 = vadd.f32 %v527, %v7292
  %7294 = vmatprep.mubr.bf16.mxu0 %v1819
  %7295 = vmatmul.mubr.bf16.gmra.mrb[0].mxu0 %v1477
  %v7296 = vpop.f32.mrb[0].mxu0
  %v7297 = vadd.f32 %v532, %v7296
  %v7298 = vpop.f32.mrb[0].mxu0
  %v7299 = vadd.f32 %v532, %v7298
  %v7300 = vpop.f32.mrb[0].mxu0
  %v7301 = vadd.f32 %v537, %v7300
  %v7302 = vpop.f32.mrb[0].mxu0
  %v7303 = vadd.f32 %v537, %v7302
  %7304 = vmatprep.mubr.bf16.mxu0 %v1822
  %7305 = vmatmul.mubr.bf16.gmra.mrb[0].mxu0 %v1479
  %v7306 = vpop.f32.mrb[0].mxu0
  %v7307 = vadd.f32 %v542, %v7306
  %v7308 = vpop.f32.mrb[0].mxu0
  %v7309 = vadd.f32 %v542, %v7308
  %v7310 = vpop.f32.mrb[0].mxu0
  %v7311 = vadd.f32 %v547, %v7310
  %v7312 = vpop.f32.mrb[0].mxu0
  %v7313 = vadd.f32 %v547, %v7312
  %7314 = vmatprep.mubr.bf16.mxu0 %v1825
  %7315 = vmatmul.mubr.bf16.gmra.mrb[0].mxu0 %v1481
  %v7316 = vpop.f32.mrb[0].mxu0
  %v7317 = vadd.f32 %v552, %v7316
  %v7318 = vpop.f32.mrb[0].mxu0
  %v7319 = vadd.f32 %v552, %v7318
  %v7320 = vpop.f32.mrb[0].mxu0
  %v7321 = vadd.f32 %v557, %v7320
  %v7322 = vpop.f32.mrb[0].mxu0
  %v7323 = vadd.f32 %v557, %v7322
  %7324 = vmatprep.mubr.bf16.mxu0 %v1828
  %7325 = vmatmul.mubr.bf16.gmra.mrb[0].mxu0 %v1483
  %v7326 = vpop.f32.mrb[0].mxu0
  %v7327 = vadd.f32 %v562, %v7326
  %v7328 = vpop.f32.mrb[0].mxu0
  %v7329 = vadd.f32 %v562, %v7328
  %v7330 = vpop.f32.mrb[0].mxu0
  %v7331 = vadd.f32 %v567, %v7330
  %v7332 = vpop.f32.mrb[0].mxu0
  %v7333 = vadd.f32 %v567, %v7332
  %7334 = vmatprep.mubr.bf16.mxu0 %v1831
  %7335 = vmatmul.mubr.bf16.gmra.mrb[0].mxu0 %v1485
  %v7336 = vpop.f32.mrb[0].mxu0
  %v7337 = vadd.f32 %v572, %v7336
  %v7338 = vpop.f32.mrb[0].mxu0
  %v7339 = vadd.f32 %v572, %v7338
  %v7340 = vpop.f32.mrb[0].mxu0
  %v7341 = vadd.f32 %v577, %v7340
  %v7342 = vpop.f32.mrb[0].mxu0
  %v7343 = vadd.f32 %v577, %v7342
  %7344 = vmatprep.mubr.bf16.mxu0 %v1834
  %7345 = vmatmul.mubr.bf16.gmra.mrb[0].mxu0 %v1487
  %v7346 = vpop.f32.mrb[0].mxu0
  %v7347 = vadd.f32 %v582, %v7346
  %v7348 = vpop.f32.mrb[0].mxu0
  %v7349 = vadd.f32 %v582, %v7348
  %v7350 = vpop.f32.mrb[0].mxu0
  %v7351 = vadd.f32 %v587, %v7350
  %v7352 = vpop.f32.mrb[0].mxu0
  %v7353 = vadd.f32 %v587, %v7352
  %7354 = vmatprep.mubr.bf16.mxu0 %v1837
  %7355 = vmatmul.mubr.bf16.gmra.mrb[0].mxu0 %v1489
  %v7356 = vpop.f32.mrb[0].mxu0
  %v7357 = vadd.f32 %v592, %v7356
  %v7358 = vpop.f32.mrb[0].mxu0
  %v7359 = vadd.f32 %v592, %v7358
  %v7360 = vpop.f32.mrb[0].mxu0
  %v7361 = vadd.f32 %v597, %v7360
  %v7362 = vpop.f32.mrb[0].mxu0
  %v7363 = vadd.f32 %v597, %v7362
  %7364 = vmatprep.mubr.bf16.mxu0 %v1840
  %7365 = vmatmul.mubr.bf16.gmra.mrb[0].mxu0 %v1491
  %v7366 = vpop.f32.mrb[0].mxu0
  %v7367 = vadd.f32 %v602, %v7366
  %v7368 = vpop.f32.mrb[0].mxu0
  %v7369 = vadd.f32 %v602, %v7368
  %v7370 = vpop.f32.mrb[0].mxu0
  %v7371 = vadd.f32 %v607, %v7370
  %v7372 = vpop.f32.mrb[0].mxu0
  %v7373 = vadd.f32 %v607, %v7372
  %7374 = vmatprep.mubr.bf16.mxu0 %v1843
  %7375 = vmatmul.mubr.bf16.gmra.mrb[0].mxu0 %v1493
  %v7376 = vpop.f32.mrb[0].mxu0
  %v7377 = vadd.f32 %v612, %v7376
  %v7378 = vpop.f32.mrb[0].mxu0
  %v7379 = vadd.f32 %v612, %v7378
  %v7380 = vpop.f32.mrb[0].mxu0
  %v7381 = vadd.f32 %v617, %v7380
  %v7382 = vpop.f32.mrb[0].mxu0
  %v7383 = vadd.f32 %v617, %v7382
  %7384 = vmatprep.mubr.bf16.mxu0 %v1846
  %7385 = vmatmul.mubr.bf16.gmra.mrb[0].mxu0 %v1495
  %v7386 = vpop.f32.mrb[0].mxu0
  %v7387 = vadd.f32 %v622, %v7386
  %v7388 = vpop.f32.mrb[0].mxu0
  %v7389 = vadd.f32 %v622, %v7388
  %v7390 = vpop.f32.mrb[0].mxu0
  %v7391 = vadd.f32 %v627, %v7390
  %v7392 = vpop.f32.mrb[0].mxu0
  %v7393 = vadd.f32 %v627, %v7392
  %7394 = vmatprep.mubr.bf16.mxu0 %v1849
  %7395 = vmatmul.mubr.bf16.gmra.mrb[0].mxu0 %v1497
  %v7396 = vpop.f32.mrb[0].mxu0
  %v7397 = vadd.f32 %v632, %v7396
  %v7398 = vpop.f32.mrb[0].mxu0
  %v7399 = vadd.f32 %v632, %v7398
  %v7400 = vpop.f32.mrb[0].mxu0
  %v7401 = vadd.f32 %v637, %v7400
  %v7402 = vpop.f32.mrb[0].mxu0
  %v7403 = vadd.f32 %v637, %v7402
  %7404 = vmatprep.mubr.bf16.mxu0 %v1852
  %7405 = vmatmul.mubr.bf16.gmra.mrb[0].mxu0 %v1499
  %v7406 = vpop.f32.mrb[0].mxu0
  %v7407 = vadd.f32 %v642, %v7406
  %v7408 = vpop.f32.mrb[0].mxu0
  %v7409 = vadd.f32 %v642, %v7408
  %v7410 = vpop.f32.mrb[0].mxu0
  %v7411 = vadd.f32 %v647, %v7410
  %v7412 = vpop.f32.mrb[0].mxu0
  %v7413 = vadd.f32 %v647, %v7412
  %7414 = vmatprep.mubr.bf16.mxu0 %v1855
  %7415 = vmatmul.mubr.bf16.gmra.mrb[0].mxu0 %v1501
  %v7416 = vpop.f32.mrb[0].mxu0
  %v7417 = vadd.f32 %v652, %v7416
  %v7418 = vpop.f32.mrb[0].mxu0
  %v7419 = vadd.f32 %v652, %v7418
  %v7420 = vpop.f32.mrb[0].mxu0
  %v7421 = vadd.f32 %v657, %v7420
  %v7422 = vpop.f32.mrb[0].mxu0
  %v7423 = vadd.f32 %v657, %v7422
  %7424 = vmatprep.mubr.bf16.mxu0 %v1858
  %7425 = vmatmul.mubr.bf16.gmra.mrb[0].mxu0 %v1503
  %v7426 = vpop.f32.mrb[0].mxu0
  %v7427 = vadd.f32 %v662, %v7426
  %v7428 = vpop.f32.mrb[0].mxu0
  %v7429 = vadd.f32 %v662, %v7428
  %v7430 = vpop.f32.mrb[0].mxu0
  %v7431 = vadd.f32 %v667, %v7430
  %v7432 = vpop.f32.mrb[0].mxu0
  %v7433 = vadd.f32 %v667, %v7432
  %7434 = vmatprep.mubr.bf16.mxu0 %v1861
  %7435 = vmatmul.mubr.bf16.gmra.mrb[0].mxu0 %v1505
  %v7436 = vpop.f32.mrb[0].mxu0
  %v7437 = vadd.f32 %v672, %v7436
  %v7438 = vpop.f32.mrb[0].mxu0
  %v7439 = vadd.f32 %v672, %v7438
  %v7440 = vpop.f32.mrb[0].mxu0
  %v7441 = vadd.f32 %v677, %v7440
  %v7442 = vpop.f32.mrb[0].mxu0
  %v7443 = vadd.f32 %v677, %v7442
  %7444 = vmatprep.mubr.bf16.mxu0 %v1864
  %7445 = vmatmul.mubr.bf16.gmra.mrb[0].mxu0 %v1507
  %v7446 = vpop.f32.mrb[0].mxu0
  %v7447 = vadd.f32 %v682, %v7446
  %v7448 = vpop.f32.mrb[0].mxu0
  %v7449 = vadd.f32 %v682, %v7448
  %v7450 = vpop.f32.mrb[0].mxu0
  %v7451 = vadd.f32 %v687, %v7450
  %v7452 = vpop.f32.mrb[0].mxu0
  %v7453 = vadd.f32 %v687, %v7452
  %7454 = vmatprep.mubr.bf16.mxu0 %v1867
  %7455 = vmatmul.mubr.bf16.gmra.mrb[0].mxu0 %v1509
  %v7456 = vpop.f32.mrb[0].mxu0
  %v7457 = vadd.f32 %v692, %v7456
  %v7458 = vpop.f32.mrb[0].mxu0
  %v7459 = vadd.f32 %v692, %v7458
  %v7460 = vpop.f32.mrb[0].mxu0
  %v7461 = vadd.f32 %v697, %v7460
  %v7462 = vpop.f32.mrb[0].mxu0
  %v7463 = vadd.f32 %v697, %v7462
  %7464 = vmatprep.mubr.bf16.mxu0 %v1870
  %7465 = vmatmul.mubr.bf16.gmra.mrb[0].mxu0 %v1511
  %v7466 = vpop.f32.mrb[0].mxu0
  %v7467 = vadd.f32 %v702, %v7466
  %v7468 = vpop.f32.mrb[0].mxu0
  %v7469 = vadd.f32 %v702, %v7468
  %v7470 = vpop.f32.mrb[0].mxu0
  %v7471 = vadd.f32 %v707, %v7470
  %v7472 = vpop.f32.mrb[0].mxu0
  %v7473 = vadd.f32 %v707, %v7472
  %7474 = vmatprep.mubr.bf16.mxu0 %v1873
  %7475 = vmatmul.mubr.bf16.gmra.mrb[0].mxu0 %v1513
  %v7476 = vpop.f32.mrb[0].mxu0
  %v7477 = vadd.f32 %v712, %v7476
  %v7478 = vpop.f32.mrb[0].mxu0
  %v7479 = vadd.f32 %v712, %v7478
  %v7480 = vpop.f32.mrb[0].mxu0
  %v7481 = vadd.f32 %v717, %v7480
  %v7482 = vpop.f32.mrb[0].mxu0
  %v7483 = vadd.f32 %v717, %v7482
  %7484 = vmatprep.mubr.bf16.mxu0 %v1876
  %7485 = vmatmul.mubr.bf16.gmra.mrb[0].mxu0 %v1515
  %v7486 = vpop.f32.mrb[0].mxu0
  %v7487 = vadd.f32 %v722, %v7486
  %v7488 = vpop.f32.mrb[0].mxu0
  %v7489 = vadd.f32 %v722, %v7488
  %v7490 = vpop.f32.mrb[0].mxu0
  %v7491 = vadd.f32 %v727, %v7490
  %v7492 = vpop.f32.mrb[0].mxu0
  %v7493 = vadd.f32 %v727, %v7492
  %7494 = vmatprep.mubr.bf16.mxu0 %v1879
  %7495 = vmatmul.mubr.bf16.gmra.mrb[0].mxu0 %v1517
  %v7496 = vpop.f32.mrb[0].mxu0
  %v7497 = vadd.f32 %v732, %v7496
  %v7498 = vpop.f32.mrb[0].mxu0
  %v7499 = vadd.f32 %v732, %v7498
  %v7500 = vpop.f32.mrb[0].mxu0
  %v7501 = vadd.f32 %v737, %v7500
  %v7502 = vpop.f32.mrb[0].mxu0
  %v7503 = vadd.f32 %v737, %v7502
  %7504 = vmatprep.mubr.bf16.mxu0 %v1882
  %7505 = vmatmul.mubr.bf16.gmra.mrb[0].mxu0 %v1519
  %v7506 = vpop.f32.mrb[0].mxu0
  %v7507 = vadd.f32 %v742, %v7506
  %v7508 = vpop.f32.mrb[0].mxu0
  %v7509 = vadd.f32 %v742, %v7508
  %v7510 = vpop.f32.mrb[0].mxu0
  %v7511 = vadd.f32 %v747, %v7510
  %v7512 = vpop.f32.mrb[0].mxu0
  %v7513 = vadd.f32 %v747, %v7512
  %7514 = vmatprep.mubr.bf16.mxu0 %v1885
  %7515 = vmatmul.mubr.bf16.gmra.mrb[0].mxu0 %v1521
  %v7516 = vpop.f32.mrb[0].mxu0
  %v7517 = vadd.f32 %v752, %v7516
  %v7518 = vpop.f32.mrb[0].mxu0
  %v7519 = vadd.f32 %v752, %v7518
  %v7520 = vpop.f32.mrb[0].mxu0
  %v7521 = vadd.f32 %v757, %v7520
  %v7522 = vpop.f32.mrb[0].mxu0
  %v7523 = vadd.f32 %v757, %v7522
  %7524 = vmatprep.mubr.bf16.mxu0 %v1888
  %7525 = vmatmul.mubr.bf16.gmra.mrb[0].mxu0 %v1523
  %v7526 = vpop.f32.mrb[0].mxu0
  %v7527 = vadd.f32 %v762, %v7526
  %v7528 = vpop.f32.mrb[0].mxu0
  %v7529 = vadd.f32 %v762, %v7528
  %v7530 = vpop.f32.mrb[0].mxu0
  %v7531 = vadd.f32 %v767, %v7530
  %v7532 = vpop.f32.mrb[0].mxu0
  %v7533 = vadd.f32 %v767, %v7532
  %7534 = vmatprep.mubr.bf16.mxu0 %v1891
  %7535 = vmatmul.mubr.bf16.gmra.mrb[0].mxu0 %v1525
  %v7536 = vpop.f32.mrb[0].mxu0
  %v7537 = vadd.f32 %v772, %v7536
  %v7538 = vpop.f32.mrb[0].mxu0
  %v7539 = vadd.f32 %v772, %v7538
  %v7540 = vpop.f32.mrb[0].mxu0
  %v7541 = vadd.f32 %v777, %v7540
  %v7542 = vpop.f32.mrb[0].mxu0
  %v7543 = vadd.f32 %v777, %v7542
  %7544 = vmatprep.mubr.bf16.mxu0 %v1894
  %7545 = vmatmul.mubr.bf16.gmra.mrb[0].mxu0 %v1527
  %v7546 = vpop.f32.mrb[0].mxu0
  %v7547 = vadd.f32 %v782, %v7546
  %v7548 = vpop.f32.mrb[0].mxu0
  %v7549 = vadd.f32 %v782, %v7548
  %v7550 = vpop.f32.mrb[0].mxu0
  %v7551 = vadd.f32 %v787, %v7550
  %v7552 = vpop.f32.mrb[0].mxu0
  %v7553 = vadd.f32 %v787, %v7552
  %7554 = vmatprep.mubr.bf16.mxu0 %v1897
  %7555 = vmatmul.mubr.bf16.gmra.mrb[0].mxu0 %v1529
  %v7556 = vpop.f32.mrb[0].mxu0
  %v7557 = vadd.f32 %v792, %v7556
  %v7558 = vpop.f32.mrb[0].mxu0
  %v7559 = vadd.f32 %v792, %v7558
  %v7560 = vpop.f32.mrb[0].mxu0
  %v7561 = vadd.f32 %v797, %v7560
  %v7562 = vpop.f32.mrb[0].mxu0
  %v7563 = vadd.f32 %v797, %v7562
  %7564 = vmatprep.mubr.bf16.mxu0 %v1900
  %7565 = vmatmul.mubr.bf16.gmra.mrb[0].mxu0 %v1531
  %v7566 = vpop.f32.mrb[0].mxu0
  %v7567 = vadd.f32 %v802, %v7566
  %v7568 = vpop.f32.mrb[0].mxu0
  %v7569 = vadd.f32 %v802, %v7568
  %v7570 = vpop.f32.mrb[0].mxu0
  %v7571 = vadd.f32 %v807, %v7570
  %v7572 = vpop.f32.mrb[0].mxu0
  %v7573 = vadd.f32 %v807, %v7572
  %7574 = vmatprep.mubr.bf16.mxu0 %v1903
  %7575 = vmatmul.mubr.bf16.gmra.mrb[0].mxu0 %v1533
  %v7576 = vpop.f32.mrb[0].mxu0
  %v7577 = vadd.f32 %v812, %v7576
  %v7578 = vpop.f32.mrb[0].mxu0
  %v7579 = vadd.f32 %v812, %v7578
  %v7580 = vpop.f32.mrb[0].mxu0
  %v7581 = vadd.f32 %v817, %v7580
  %v7582 = vpop.f32.mrb[0].mxu0
  %v7583 = vadd.f32 %v817, %v7582
  %7584 = vmatprep.mubr.bf16.mxu0 %v1906
  %7585 = vmatmul.mubr.bf16.gmra.mrb[0].mxu0 %v1535
  %v7586 = vpop.f32.mrb[0].mxu0
  %v7587 = vadd.f32 %v822, %v7586
  %v7588 = vpop.f32.mrb[0].mxu0
  %v7589 = vadd.f32 %v822, %v7588
  %v7590 = vpop.f32.mrb[0].mxu0
  %v7591 = vadd.f32 %v827, %v7590
  %v7592 = vpop.f32.mrb[0].mxu0
  %v7593 = vadd.f32 %v827, %v7592
  %7594 = vmatprep.mubr.bf16.mxu0 %v1909
  %7595 = vmatmul.mubr.bf16.gmra.mrb[0].mxu0 %v1537
  %v7596 = vpop.f32.mrb[0].mxu0
  %v7597 = vadd.f32 %v832, %v7596
  %v7598 = vpop.f32.mrb[0].mxu0
  %v7599 = vadd.f32 %v832, %v7598
  %v7600 = vpop.f32.mrb[0].mxu0
  %v7601 = vadd.f32 %v837, %v7600
  %v7602 = vpop.f32.mrb[0].mxu0
  %v7603 = vadd.f32 %v837, %v7602
  %7604 = vmatprep.mubr.bf16.mxu0 %v1912
  %7605 = vmatmul.mubr.bf16.gmra.mrb[0].mxu0 %v1539
  %v7606 = vpop.f32.mrb[0].mxu0
  %v7607 = vadd.f32 %v842, %v7606
  %v7608 = vpop.f32.mrb[0].mxu0
  %v7609 = vadd.f32 %v842, %v7608
  %v7610 = vpop.f32.mrb[0].mxu0
  %v7611 = vadd.f32 %v847, %v7610
  %v7612 = vpop.f32.mrb[0].mxu0
  %v7613 = vadd.f32 %v847, %v7612
  %7614 = vmatprep.mubr.bf16.mxu0 %v1915
  %7615 = vmatmul.mubr.bf16.gmra.mrb[0].mxu0 %v1541
  %v7616 = vpop.f32.mrb[0].mxu0
  %v7617 = vadd.f32 %v852, %v7616
  %v7618 = vpop.f32.mrb[0].mxu0
  %v7619 = vadd.f32 %v852, %v7618
  %v7620 = vpop.f32.mrb[0].mxu0
  %v7621 = vadd.f32 %v857, %v7620
  %v7622 = vpop.f32.mrb[0].mxu0
  %v7623 = vadd.f32 %v857, %v7622
  %7624 = vmatprep.mubr.bf16.mxu0 %v1918
  %7625 = vmatmul.mubr.bf16.gmra.mrb[0].mxu0 %v1543
  %v7626 = vpop.f32.mrb[0].mxu0
  %v7627 = vadd.f32 %v862, %v7626
  %v7628 = vpop.f32.mrb[0].mxu0
  %v7629 = vadd.f32 %v862, %v7628
  %v7630 = vpop.f32.mrb[0].mxu0
  %v7631 = vadd.f32 %v867, %v7630
  %v7632 = vpop.f32.mrb[0].mxu0
  %v7633 = vadd.f32 %v867, %v7632
  %7634 = vmatprep.mubr.bf16.mxu0 %v1921
  %7635 = vmatmul.mubr.bf16.gmra.mrb[0].mxu0 %v1545
  %v7636 = vpop.f32.mrb[0].mxu0
  %v7637 = vadd.f32 %v872, %v7636
  %v7638 = vpop.f32.mrb[0].mxu0
  %v7639 = vadd.f32 %v872, %v7638
  %v7640 = vpop.f32.mrb[0].mxu0
  %v7641 = vadd.f32 %v877, %v7640
  %v7642 = vpop.f32.mrb[0].mxu0
  %v7643 = vadd.f32 %v877, %v7642
  %7644 = vmatprep.mubr.bf16.mxu0 %v1924
  %7645 = vmatmul.mubr.bf16.gmra.mrb[0].mxu0 %v1547
  %v7646 = vpop.f32.mrb[0].mxu0
  %v7647 = vadd.f32 %v882, %v7646
  %v7648 = vpop.f32.mrb[0].mxu0
  %v7649 = vadd.f32 %v882, %v7648
  %v7650 = vpop.f32.mrb[0].mxu0
  %v7651 = vadd.f32 %v887, %v7650
  %v7652 = vpop.f32.mrb[0].mxu0
  %v7653 = vadd.f32 %v887, %v7652
  %7654 = vmatprep.mubr.bf16.mxu0 %v1927
  %7655 = vmatmul.mubr.bf16.gmra.mrb[0].mxu0 %v1549
  %v7656 = vpop.f32.mrb[0].mxu0
  %v7657 = vadd.f32 %v892, %v7656
  %v7658 = vpop.f32.mrb[0].mxu0
  %v7659 = vadd.f32 %v892, %v7658
  %v7660 = vpop.f32.mrb[0].mxu0
  %v7661 = vadd.f32 %v897, %v7660
  %v7662 = vpop.f32.mrb[0].mxu0
  %v7663 = vadd.f32 %v897, %v7662
  %7664 = vmatprep.mubr.bf16.mxu0 %v1930
  %7665 = vmatmul.mubr.bf16.gmra.mrb[0].mxu0 %v1551
  %v7666 = vpop.f32.mrb[0].mxu0
  %v7667 = vadd.f32 %v902, %v7666
  %v7668 = vpop.f32.mrb[0].mxu0
  %v7669 = vadd.f32 %v902, %v7668
  %v7670 = vpop.f32.mrb[0].mxu0
  %v7671 = vadd.f32 %v907, %v7670
  %v7672 = vpop.f32.mrb[0].mxu0
  %v7673 = vadd.f32 %v907, %v7672
  %7674 = vmatprep.mubr.bf16.mxu0 %v1933
  %7675 = vmatmul.mubr.bf16.gmra.mrb[0].mxu0 %v1553
  %v7676 = vpop.f32.mrb[0].mxu0
  %v7677 = vadd.f32 %v912, %v7676
  %v7678 = vpop.f32.mrb[0].mxu0
  %v7679 = vadd.f32 %v912, %v7678
  %v7680 = vpop.f32.mrb[0].mxu0
  %v7681 = vadd.f32 %v917, %v7680
  %v7682 = vpop.f32.mrb[0].mxu0
  %v7683 = vadd.f32 %v917, %v7682
  %7684 = vmatprep.mubr.bf16.mxu0 %v1936
  %7685 = vmatmul.mubr.bf16.gmra.mrb[0].mxu0 %v1555
  %v7686 = vpop.f32.mrb[0].mxu0
  %v7687 = vadd.f32 %v922, %v7686
  %v7688 = vpop.f32.mrb[0].mxu0
  %v7689 = vadd.f32 %v922, %v7688
  %v7690 = vpop.f32.mrb[0].mxu0
  %v7691 = vadd.f32 %v927, %v7690
  %v7692 = vpop.f32.mrb[0].mxu0
  %v7693 = vadd.f32 %v927, %v7692
  %7694 = vdwg.mxu0
  %v7695 = vmax.f32 %v7097, 0.0
  %v7696 = vmax.f32 %v7099, 0.0
  %v7697 = vmax.f32 %v7101, 0.0
  %v7698 = vmax.f32 %v7103, 0.0
  %v7699 = vmax.f32 %v7107, 0.0
  %v7700 = vmax.f32 %v7109, 0.0
  %v7701 = vmax.f32 %v7111, 0.0
  %v7702 = vmax.f32 %v7113, 0.0
  %v7703 = vmax.f32 %v7117, 0.0
  %v7704 = vmax.f32 %v7119, 0.0
  %v7705 = vmax.f32 %v7121, 0.0
  %v7706 = vmax.f32 %v7123, 0.0
  %v7707 = vmax.f32 %v7127, 0.0
  %v7708 = vmax.f32 %v7129, 0.0
  %v7709 = vmax.f32 %v7131, 0.0
  %v7710 = vmax.f32 %v7133, 0.0
  %v7711 = vmax.f32 %v7137, 0.0
  %v7712 = vmax.f32 %v7139, 0.0
  %v7713 = vmax.f32 %v7141, 0.0
  %v7714 = vmax.f32 %v7143, 0.0
  %v7715 = vmax.f32 %v7147, 0.0
  %v7716 = vmax.f32 %v7149, 0.0
  %v7717 = vmax.f32 %v7151, 0.0
  %v7718 = vmax.f32 %v7153, 0.0
  %v7719 = vmax.f32 %v7157, 0.0
  %v7720 = vmax.f32 %v7159, 0.0
  %v7721 = vmax.f32 %v7161, 0.0
  %v7722 = vmax.f32 %v7163, 0.0
  %v7723 = vmax.f32 %v7167, 0.0
  %v7724 = vmax.f32 %v7169, 0.0
  %v7725 = vmax.f32 %v7171, 0.0
  %v7726 = vmax.f32 %v7173, 0.0
  %v7727 = vmax.f32 %v7177, 0.0
  %v7728 = vmax.f32 %v7179, 0.0
  %v7729 = vmax.f32 %v7181, 0.0
  %v7730 = vmax.f32 %v7183, 0.0
  %v7731 = vmax.f32 %v7187, 0.0
  %v7732 = vmax.f32 %v7189, 0.0
  %v7733 = vmax.f32 %v7191, 0.0
  %v7734 = vmax.f32 %v7193, 0.0
  %v7735 = vmax.f32 %v7197, 0.0
  %v7736 = vmax.f32 %v7199, 0.0
  %v7737 = vmax.f32 %v7201, 0.0
  %v7738 = vmax.f32 %v7203, 0.0
  %v7739 = vmax.f32 %v7207, 0.0
  %v7740 = vmax.f32 %v7209, 0.0
  %v7741 = vmax.f32 %v7211, 0.0
  %v7742 = vmax.f32 %v7213, 0.0
  %v7743 = vmax.f32 %v7217, 0.0
  %v7744 = vmax.f32 %v7219, 0.0
  %v7745 = vmax.f32 %v7221, 0.0
  %v7746 = vmax.f32 %v7223, 0.0
  %v7747 = vmax.f32 %v7227, 0.0
  %v7748 = vmax.f32 %v7229, 0.0
  %v7749 = vmax.f32 %v7231, 0.0
  %v7750 = vmax.f32 %v7233, 0.0
  %v7751 = vmax.f32 %v7237, 0.0
  %v7752 = vmax.f32 %v7239, 0.0
  %v7753 = vmax.f32 %v7241, 0.0
  %v7754 = vmax.f32 %v7243, 0.0
  %v7755 = vmax.f32 %v7247, 0.0
  %v7756 = vmax.f32 %v7249, 0.0
  %v7757 = vmax.f32 %v7251, 0.0
  %v7758 = vmax.f32 %v7253, 0.0
  %v7759 = vmax.f32 %v7257, 0.0
  %v7760 = vmax.f32 %v7259, 0.0
  %v7761 = vmax.f32 %v7261, 0.0
  %v7762 = vmax.f32 %v7263, 0.0
  %v7763 = vmax.f32 %v7267, 0.0
  %v7764 = vmax.f32 %v7269, 0.0
  %v7765 = vmax.f32 %v7271, 0.0
  %v7766 = vmax.f32 %v7273, 0.0
  %v7767 = vmax.f32 %v7277, 0.0
  %v7768 = vmax.f32 %v7279, 0.0
  %v7769 = vmax.f32 %v7281, 0.0
  %v7770 = vmax.f32 %v7283, 0.0
  %v7771 = vmax.f32 %v7287, 0.0
  %v7772 = vmax.f32 %v7289, 0.0
  %v7773 = vmax.f32 %v7291, 0.0
  %v7774 = vmax.f32 %v7293, 0.0
  %v7775 = vmax.f32 %v7297, 0.0
  %v7776 = vmax.f32 %v7299, 0.0
  %v7777 = vmax.f32 %v7301, 0.0
  %v7778 = vmax.f32 %v7303, 0.0
  %v7779 = vmax.f32 %v7307, 0.0
  %v7780 = vmax.f32 %v7309, 0.0
  %v7781 = vmax.f32 %v7311, 0.0
  %v7782 = vmax.f32 %v7313, 0.0
  %v7783 = vmax.f32 %v7317, 0.0
  %v7784 = vmax.f32 %v7319, 0.0
  %v7785 = vmax.f32 %v7321, 0.0
  %v7786 = vmax.f32 %v7323, 0.0
  %v7787 = vmax.f32 %v7327, 0.0
  %v7788 = vmax.f32 %v7329, 0.0
  %v7789 = vmax.f32 %v7331, 0.0
  %v7790 = vmax.f32 %v7333, 0.0
  %v7791 = vmax.f32 %v7337, 0.0
  %v7792 = vmax.f32 %v7339, 0.0
  %v7793 = vmax.f32 %v7341, 0.0
  %v7794 = vmax.f32 %v7343, 0.0
  %v7795 = vmax.f32 %v7347, 0.0
  %v7796 = vmax.f32 %v7349, 0.0
  %v7797 = vmax.f32 %v7351, 0.0
  %v7798 = vmax.f32 %v7353, 0.0
  %v7799 = vmax.f32 %v7357, 0.0
  %v7800 = vmax.f32 %v7359, 0.0
  %v7801 = vmax.f32 %v7361, 0.0
  %v7802 = vmax.f32 %v7363, 0.0
  %v7803 = vmax.f32 %v7367, 0.0
  %v7804 = vmax.f32 %v7369, 0.0
  %v7805 = vmax.f32 %v7371, 0.0
  %v7806 = vmax.f32 %v7373, 0.0
  %v7807 = vmax.f32 %v7377, 0.0
  %v7808 = vmax.f32 %v7379, 0.0
  %v7809 = vmax.f32 %v7381, 0.0
  %v7810 = vmax.f32 %v7383, 0.0
  %v7811 = vmax.f32 %v7387, 0.0
  %v7812 = vmax.f32 %v7389, 0.0
  %v7813 = vmax.f32 %v7391, 0.0
  %v7814 = vmax.f32 %v7393, 0.0
  %v7815 = vmax.f32 %v7397, 0.0
  %v7816 = vmax.f32 %v7399, 0.0
  %v7817 = vmax.f32 %v7401, 0.0
  %v7818 = vmax.f32 %v7403, 0.0
  %v7819 = vmax.f32 %v7407, 0.0
  %v7820 = vmax.f32 %v7409, 0.0
  %v7821 = vmax.f32 %v7411, 0.0
  %v7822 = vmax.f32 %v7413, 0.0
  %v7823 = vmax.f32 %v7417, 0.0
  %v7824 = vmax.f32 %v7419, 0.0
  %v7825 = vmax.f32 %v7421, 0.0
  %v7826 = vmax.f32 %v7423, 0.0
  %v7827 = vmax.f32 %v7427, 0.0
  %v7828 = vmax.f32 %v7429, 0.0
  %v7829 = vmax.f32 %v7431, 0.0
  %v7830 = vmax.f32 %v7433, 0.0
  %v7831 = vmax.f32 %v7437, 0.0
  %v7832 = vmax.f32 %v7439, 0.0
  %v7833 = vmax.f32 %v7441, 0.0
  %v7834 = vmax.f32 %v7443, 0.0
  %v7835 = vmax.f32 %v7447, 0.0
  %v7836 = vmax.f32 %v7449, 0.0
  %v7837 = vmax.f32 %v7451, 0.0
  %v7838 = vmax.f32 %v7453, 0.0
  %v7839 = vmax.f32 %v7457, 0.0
  %v7840 = vmax.f32 %v7459, 0.0
  %v7841 = vmax.f32 %v7461, 0.0
  %v7842 = vmax.f32 %v7463, 0.0
  %v7843 = vmax.f32 %v7467, 0.0
  %v7844 = vmax.f32 %v7469, 0.0
  %v7845 = vmax.f32 %v7471, 0.0
  %v7846 = vmax.f32 %v7473, 0.0
  %v7847 = vmax.f32 %v7477, 0.0
  %v7848 = vmax.f32 %v7479, 0.0
  %v7849 = vmax.f32 %v7481, 0.0
  %v7850 = vmax.f32 %v7483, 0.0
  %v7851 = vmax.f32 %v7487, 0.0
  %v7852 = vmax.f32 %v7489, 0.0
  %v7853 = vmax.f32 %v7491, 0.0
  %v7854 = vmax.f32 %v7493, 0.0
  %v7855 = vmax.f32 %v7497, 0.0
  %v7856 = vmax.f32 %v7499, 0.0
  %v7857 = vmax.f32 %v7501, 0.0
  %v7858 = vmax.f32 %v7503, 0.0
  %v7859 = vmax.f32 %v7507, 0.0
  %v7860 = vmax.f32 %v7509, 0.0
  %v7861 = vmax.f32 %v7511, 0.0
  %v7862 = vmax.f32 %v7513, 0.0
  %v7863 = vmax.f32 %v7517, 0.0
  %v7864 = vmax.f32 %v7519, 0.0
  %v7865 = vmax.f32 %v7521, 0.0
  %v7866 = vmax.f32 %v7523, 0.0
  %v7867 = vmax.f32 %v7527, 0.0
  %v7868 = vmax.f32 %v7529, 0.0
  %v7869 = vmax.f32 %v7531, 0.0
  %v7870 = vmax.f32 %v7533, 0.0
  %v7871 = vmax.f32 %v7537, 0.0
  %v7872 = vmax.f32 %v7539, 0.0
  %v7873 = vmax.f32 %v7541, 0.0
  %v7874 = vmax.f32 %v7543, 0.0
  %v7875 = vmax.f32 %v7547, 0.0
  %v7876 = vmax.f32 %v7549, 0.0
  %v7877 = vmax.f32 %v7551, 0.0
  %v7878 = vmax.f32 %v7553, 0.0
  %v7879 = vmax.f32 %v7557, 0.0
  %v7880 = vmax.f32 %v7559, 0.0
  %v7881 = vmax.f32 %v7561, 0.0
  %v7882 = vmax.f32 %v7563, 0.0
  %v7883 = vmax.f32 %v7567, 0.0
  %v7884 = vmax.f32 %v7569, 0.0
  %v7885 = vmax.f32 %v7571, 0.0
  %v7886 = vmax.f32 %v7573, 0.0
  %v7887 = vmax.f32 %v7577, 0.0
  %v7888 = vmax.f32 %v7579, 0.0
  %v7889 = vmax.f32 %v7581, 0.0
  %v7890 = vmax.f32 %v7583, 0.0
  %v7891 = vmax.f32 %v7587, 0.0
  %v7892 = vmax.f32 %v7589, 0.0
  %v7893 = vmax.f32 %v7591, 0.0
  %v7894 = vmax.f32 %v7593, 0.0
  %v7895 = vmax.f32 %v7597, 0.0
  %v7896 = vmax.f32 %v7599, 0.0
  %v7897 = vmax.f32 %v7601, 0.0
  %v7898 = vmax.f32 %v7603, 0.0
  %v7899 = vmax.f32 %v7607, 0.0
  %v7900 = vmax.f32 %v7609, 0.0
  %v7901 = vmax.f32 %v7611, 0.0
  %v7902 = vmax.f32 %v7613, 0.0
  %v7903 = vmax.f32 %v7617, 0.0
  %v7904 = vmax.f32 %v7619, 0.0
  %v7905 = vmax.f32 %v7621, 0.0
  %v7906 = vmax.f32 %v7623, 0.0
  %v7907 = vmax.f32 %v7627, 0.0
  %v7908 = vmax.f32 %v7629, 0.0
  %v7909 = vmax.f32 %v7631, 0.0
  %v7910 = vmax.f32 %v7633, 0.0
  %v7911 = vmax.f32 %v7637, 0.0
  %v7912 = vmax.f32 %v7639, 0.0
  %v7913 = vmax.f32 %v7641, 0.0
  %v7914 = vmax.f32 %v7643, 0.0
  %v7915 = vmax.f32 %v7647, 0.0
  %v7916 = vmax.f32 %v7649, 0.0
  %v7917 = vmax.f32 %v7651, 0.0
  %v7918 = vmax.f32 %v7653, 0.0
  %v7919 = vmax.f32 %v7657, 0.0
  %v7920 = vmax.f32 %v7659, 0.0
  %v7921 = vmax.f32 %v7661, 0.0
  %v7922 = vmax.f32 %v7663, 0.0
  %v7923 = vmax.f32 %v7667, 0.0
  %v7924 = vmax.f32 %v7669, 0.0
  %v7925 = vmax.f32 %v7671, 0.0
  %v7926 = vmax.f32 %v7673, 0.0
  %v7927 = vmax.f32 %v7677, 0.0
  %v7928 = vmax.f32 %v7679, 0.0
  %v7929 = vmax.f32 %v7681, 0.0
  %v7930 = vmax.f32 %v7683, 0.0
  %v7931 = vmax.f32 %v7687, 0.0
  %v7932 = vmax.f32 %v7689, 0.0
  %v7933 = vmax.f32 %v7691, 0.0
  %v7934 = vmax.f32 %v7693, 0.0
  %v7935 = vmax.f32 %v7695, %v7755
  %v7936 = vmax.f32 %v7696, %v7756
  %v7937 = vmax.f32 %v7697, %v7757
  %v7938 = vmax.f32 %v7698, %v7758
  %v7939 = vmax.f32 %v7699, %v7759
  %v7940 = vmax.f32 %v7700, %v7760
  %v7941 = vmax.f32 %v7701, %v7761
  %v7942 = vmax.f32 %v7702, %v7762
  %v7943 = vmax.f32 %v7703, %v7763
  %v7944 = vmax.f32 %v7704, %v7764
  %v7945 = vmax.f32 %v7705, %v7765
  %v7946 = vmax.f32 %v7706, %v7766
  %v7947 = vmax.f32 %v7707, %v7767
  %v7948 = vmax.f32 %v7708, %v7768
  %v7949 = vmax.f32 %v7709, %v7769
  %v7950 = vmax.f32 %v7710, %v7770
  %v7951 = vmax.f32 %v7711, %v7771
  %v7952 = vmax.f32 %v7712, %v7772
  %v7953 = vmax.f32 %v7713, %v7773
  %v7954 = vmax.f32 %v7714, %v7774
  %v7955 = vmax.f32 %v7715, %v7775
  %v7956 = vmax.f32 %v7716, %v7776
  %v7957 = vmax.f32 %v7717, %v7777
  %v7958 = vmax.f32 %v7718, %v7778
  %v7959 = vmax.f32 %v7719, %v7779
  %v7960 = vmax.f32 %v7720, %v7780
  %v7961 = vmax.f32 %v7721, %v7781
  %v7962 = vmax.f32 %v7722, %v7782
  %v7963 = vmax.f32 %v7723, %v7783
  %v7964 = vmax.f32 %v7724, %v7784
  %v7965 = vmax.f32 %v7725, %v7785
  %v7966 = vmax.f32 %v7726, %v7786
  %v7967 = vmax.f32 %v7727, %v7787
  %v7968 = vmax.f32 %v7728, %v7788
  %v7969 = vmax.f32 %v7729, %v7789
  %v7970 = vmax.f32 %v7730, %v7790
  %v7971 = vmax.f32 %v7731, %v7791
  %v7972 = vmax.f32 %v7732, %v7792
  %v7973 = vmax.f32 %v7733, %v7793
  %v7974 = vmax.f32 %v7734, %v7794
  %v7975 = vmax.f32 %v7735, %v7795
  %v7976 = vmax.f32 %v7736, %v7796
  %v7977 = vmax.f32 %v7737, %v7797
  %v7978 = vmax.f32 %v7738, %v7798
  %v7979 = vmax.f32 %v7739, %v7799
  %v7980 = vmax.f32 %v7740, %v7800
  %v7981 = vmax.f32 %v7741, %v7801
  %v7982 = vmax.f32 %v7742, %v7802
  %v7983 = vmax.f32 %v7743, %v7803
  %v7984 = vmax.f32 %v7744, %v7804
  %v7985 = vmax.f32 %v7745, %v7805
  %v7986 = vmax.f32 %v7746, %v7806
  %v7987 = vmax.f32 %v7747, %v7807
  %v7988 = vmax.f32 %v7748, %v7808
  %v7989 = vmax.f32 %v7749, %v7809
  %v7990 = vmax.f32 %v7750, %v7810
  %v7991 = vmax.f32 %v7751, %v7811
  %v7992 = vmax.f32 %v7752, %v7812
  %v7993 = vmax.f32 %v7753, %v7813
  %v7994 = vmax.f32 %v7754, %v7814
  %v7995 = vmax.f32 %v7815, %v7875
  %v7996 = vmax.f32 %v7816, %v7876
  %v7997 = vmax.f32 %v7817, %v7877
  %v7998 = vmax.f32 %v7818, %v7878
  %v7999 = vmax.f32 %v7819, %v7879
  %v8000 = vmax.f32 %v7820, %v7880
  %v8001 = vmax.f32 %v7821, %v7881
  %v8002 = vmax.f32 %v7822, %v7882
  %v8003 = vmax.f32 %v7823, %v7883
  %v8004 = vmax.f32 %v7824, %v7884
  %v8005 = vmax.f32 %v7825, %v7885
  %v8006 = vmax.f32 %v7826, %v7886
  %v8007 = vmax.f32 %v7827, %v7887
  %v8008 = vmax.f32 %v7828, %v7888
  %v8009 = vmax.f32 %v7829, %v7889
  %v8010 = vmax.f32 %v7830, %v7890
  %v8011 = vmax.f32 %v7831, %v7891
  %v8012 = vmax.f32 %v7832, %v7892
  %v8013 = vmax.f32 %v7833, %v7893
  %v8014 = vmax.f32 %v7834, %v7894
  %v8015 = vmax.f32 %v7835, %v7895
  %v8016 = vmax.f32 %v7836, %v7896
  %v8017 = vmax.f32 %v7837, %v7897
  %v8018 = vmax.f32 %v7838, %v7898
  %v8019 = vmax.f32 %v7839, %v7899
  %v8020 = vmax.f32 %v7840, %v7900
  %v8021 = vmax.f32 %v7841, %v7901
  %v8022 = vmax.f32 %v7842, %v7902
  %v8023 = vmax.f32 %v7843, %v7903
  %v8024 = vmax.f32 %v7844, %v7904
  %v8025 = vmax.f32 %v7845, %v7905
  %v8026 = vmax.f32 %v7846, %v7906
  %v8027 = vmax.f32 %v7847, %v7907
  %v8028 = vmax.f32 %v7848, %v7908
  %v8029 = vmax.f32 %v7849, %v7909
  %v8030 = vmax.f32 %v7850, %v7910
  %v8031 = vmax.f32 %v7851, %v7911
  %v8032 = vmax.f32 %v7852, %v7912
  %v8033 = vmax.f32 %v7853, %v7913
  %v8034 = vmax.f32 %v7854, %v7914
  %v8035 = vmax.f32 %v7855, %v7915
  %v8036 = vmax.f32 %v7856, %v7916
  %v8037 = vmax.f32 %v7857, %v7917
  %v8038 = vmax.f32 %v7858, %v7918
  %v8039 = vmax.f32 %v7859, %v7919
  %v8040 = vmax.f32 %v7860, %v7920
  %v8041 = vmax.f32 %v7861, %v7921
  %v8042 = vmax.f32 %v7862, %v7922
  %v8043 = vmax.f32 %v7863, %v7923
  %v8044 = vmax.f32 %v7864, %v7924
  %v8045 = vmax.f32 %v7865, %v7925
  %v8046 = vmax.f32 %v7866, %v7926
  %v8047 = vmax.f32 %v7867, %v7927
  %v8048 = vmax.f32 %v7868, %v7928
  %v8049 = vmax.f32 %v7869, %v7929
  %v8050 = vmax.f32 %v7870, %v7930
  %v8051 = vmax.f32 %v7871, %v7931
  %v8052 = vmax.f32 %v7872, %v7932
  %v8053 = vmax.f32 %v7873, %v7933
  %v8054 = vmax.f32 %v7874, %v7934
  %v8055 = vmax.f32 %v7935, %v7995
  %v8056 = vmax.f32 %v7936, %v7996
  %v8057 = vmax.f32 %v7937, %v7997
  %v8058 = vmax.f32 %v7938, %v7998
  %v8059 = vmax.f32 %v7939, %v7999
  %v8060 = vmax.f32 %v7940, %v8000
  %v8061 = vmax.f32 %v7941, %v8001
  %v8062 = vmax.f32 %v7942, %v8002
  %v8063 = vmax.f32 %v7943, %v8003
  %v8064 = vmax.f32 %v7944, %v8004
  %v8065 = vmax.f32 %v7945, %v8005
  %v8066 = vmax.f32 %v7946, %v8006
  %v8067 = vmax.f32 %v7947, %v8007
  %v8068 = vmax.f32 %v7948, %v8008
  %v8069 = vmax.f32 %v7949, %v8009
  %v8070 = vmax.f32 %v7950, %v8010
  %v8071 = vmax.f32 %v7951, %v8011
  %v8072 = vmax.f32 %v7952, %v8012
  %v8073 = vmax.f32 %v7953, %v8013
  %v8074 = vmax.f32 %v7954, %v8014
  %v8075 = vmax.f32 %v7955, %v8015
  %v8076 = vmax.f32 %v7956, %v8016
  %v8077 = vmax.f32 %v7957, %v8017
  %v8078 = vmax.f32 %v7958, %v8018
  %v8079 = vmax.f32 %v7959, %v8019
  %v8080 = vmax.f32 %v7960, %v8020
  %v8081 = vmax.f32 %v7961, %v8021
  %v8082 = vmax.f32 %v7962, %v8022
  %v8083 = vmax.f32 %v7963, %v8023
  %v8084 = vmax.f32 %v7964, %v8024
  %v8085 = vmax.f32 %v7965, %v8025
  %v8086 = vmax.f32 %v7966, %v8026
  %v8087 = vmax.f32 %v7967, %v8027
  %v8088 = vmax.f32 %v7968, %v8028
  %v8089 = vmax.f32 %v7969, %v8029
  %v8090 = vmax.f32 %v7970, %v8030
  %v8091 = vmax.f32 %v7971, %v8031
  %v8092 = vmax.f32 %v7972, %v8032
  %v8093 = vmax.f32 %v7973, %v8033
  %v8094 = vmax.f32 %v7974, %v8034
  %v8095 = vmax.f32 %v7975, %v8035
  %v8096 = vmax.f32 %v7976, %v8036
  %v8097 = vmax.f32 %v7977, %v8037
  %v8098 = vmax.f32 %v7978, %v8038
  %v8099 = vmax.f32 %v7979, %v8039
  %v8100 = vmax.f32 %v7980, %v8040
  %v8101 = vmax.f32 %v7981, %v8041
  %v8102 = vmax.f32 %v7982, %v8042
  %v8103 = vmax.f32 %v7983, %v8043
  %v8104 = vmax.f32 %v7984, %v8044
  %v8105 = vmax.f32 %v7985, %v8045
  %v8106 = vmax.f32 %v7986, %v8046
  %v8107 = vmax.f32 %v7987, %v8047
  %v8108 = vmax.f32 %v7988, %v8048
  %v8109 = vmax.f32 %v7989, %v8049
  %v8110 = vmax.f32 %v7990, %v8050
  %v8111 = vmax.f32 %v7991, %v8051
  %v8112 = vmax.f32 %v7992, %v8052
  %v8113 = vmax.f32 %v7993, %v8053
  %v8114 = vmax.f32 %v7994, %v8054
  %v8115 = vpack.c.bf16 %v8057, %v8055
  %v8116 = vpack.c.bf16 %v8058, %v8056
  %v8117 = vpack.c.bf16 %v8061, %v8059
  %v8118 = vpack.c.bf16 %v8062, %v8060
  %v8119 = vpack.c.bf16 %v8065, %v8063
  %v8120 = vpack.c.bf16 %v8066, %v8064
  %v8121 = vpack.c.bf16 %v8069, %v8067
  %v8122 = vpack.c.bf16 %v8070, %v8068
  %v8123 = vpack.c.bf16 %v8073, %v8071
  %v8124 = vpack.c.bf16 %v8074, %v8072
  %v8125 = vpack.c.bf16 %v8077, %v8075
  %v8126 = vpack.c.bf16 %v8078, %v8076
  %v8127 = vpack.c.bf16 %v8081, %v8079
  %v8128 = vpack.c.bf16 %v8082, %v8080
  %v8129 = vpack.c.bf16 %v8085, %v8083
  %v8130 = vpack.c.bf16 %v8086, %v8084
  %v8131 = vpack.c.bf16 %v8089, %v8087
  %v8132 = vpack.c.bf16 %v8090, %v8088
  %v8133 = vpack.c.bf16 %v8093, %v8091
  %v8134 = vpack.c.bf16 %v8094, %v8092
  %v8135 = vpack.c.bf16 %v8097, %v8095
  %v8136 = vpack.c.bf16 %v8098, %v8096
  %v8137 = vpack.c.bf16 %v8101, %v8099
  %v8138 = vpack.c.bf16 %v8102, %v8100
  %v8139 = vpack.c.bf16 %v8105, %v8103
  %v8140 = vpack.c.bf16 %v8106, %v8104
  %v8141 = vpack.c.bf16 %v8109, %v8107
  %v8142 = vpack.c.bf16 %v8110, %v8108
  %v8143 = vpack.c.bf16 %v8113, %v8111
  %v8144 = vpack.c.bf16 %v8114, %v8112
  %8145 = vst [vmem:[#allocation2 + $0x3c0] sm:$0xff] %v8115
  %8146 = vst [vmem:[#allocation2 + $0x3c8] sm:$0xff] %v8116
  %8147 = vst [vmem:[#allocation2 + $0x3d0] sm:$0xff] %v8117
  %8148 = vst [vmem:[#allocation2 + $0x3d8] sm:$0xff] %v8118
  %8149 = vst [vmem:[#allocation2 + $0x3e0] sm:$0xff] %v8119
  %8150 = vst [vmem:[#allocation2 + $0x3e8] sm:$0xff] %v8120
  %8151 = vst [vmem:[#allocation2 + $0x3f0] sm:$0xff] %v8121
  %8152 = vst [vmem:[#allocation2 + $0x3f8] sm:$0xff] %v8122
  %8153 = vst [vmem:[#allocation2 + $0x400] sm:$0xff] %v8123
  %8154 = vst [vmem:[#allocation2 + $0x408] sm:$0xff] %v8124
  %8155 = vst [vmem:[#allocation2 + $0x410] sm:$0xff] %v8125
  %8156 = vst [vmem:[#allocation2 + $0x418] sm:$0xff] %v8126
  %8157 = vst [vmem:[#allocation2 + $0x420] sm:$0xff] %v8127
  %8158 = vst [vmem:[#allocation2 + $0x428] sm:$0xff] %v8128
  %8159 = vst [vmem:[#allocation2 + $0x430] sm:$0xff] %v8129
  %8160 = vst [vmem:[#allocation2 + $0x438] sm:$0xff] %v8130
  %8161 = vst [vmem:[#allocation2 + $0x440] sm:$0xff] %v8131
  %8162 = vst [vmem:[#allocation2 + $0x448] sm:$0xff] %v8132
  %8163 = vst [vmem:[#allocation2 + $0x450] sm:$0xff] %v8133
  %8164 = vst [vmem:[#allocation2 + $0x458] sm:$0xff] %v8134
  %8165 = vst [vmem:[#allocation2 + $0x460] sm:$0xff] %v8135
  %8166 = vst [vmem:[#allocation2 + $0x468] sm:$0xff] %v8136
  %8167 = vst [vmem:[#allocation2 + $0x470] sm:$0xff] %v8137
  %8168 = vst [vmem:[#allocation2 + $0x478] sm:$0xff] %v8138
  %8169 = vst [vmem:[#allocation2 + $0x480] sm:$0xff] %v8139
  %8170 = vst [vmem:[#allocation2 + $0x488] sm:$0xff] %v8140
  %8171 = vst [vmem:[#allocation2 + $0x490] sm:$0xff] %v8141
  %8172 = vst [vmem:[#allocation2 + $0x498] sm:$0xff] %v8142
  %8173 = vst [vmem:[#allocation2 + $0x4a0] sm:$0xff] %v8143
  %8174 = vst [vmem:[#allocation2 + $0x4a8] sm:$0xff] %v8144
  %v8175 = vld [vmem:[%s0 + $0x230] sm:$0xff]
  %v8176 = vld [vmem:[%s0 + $0x238] sm:$0xff]
  %v8177 = vld [vmem:[%s0 + $0x240] sm:$0xff]
  %v8178 = vld [vmem:[%s0 + $0x248] sm:$0xff]
  %v8179 = vld [vmem:[%s0 + $0x250] sm:$0xff]
  %v8180 = vld [vmem:[%s0 + $0x258] sm:$0xff]
  %v8181 = vld [vmem:[%s0 + $0x260] sm:$0xff]
  %v8182 = vld [vmem:[%s0 + $0x268] sm:$0xff]
  %v8183 = vld [vmem:[%s0 + $0x270] sm:$0xff]
  %v8184 = vld [vmem:[%s0 + $0x278] sm:$0xff]
  %v8185 = vld [vmem:[%s0 + $0x280] sm:$0xff]
  %v8186 = vld [vmem:[%s0 + $0x288] sm:$0xff]
  %v8187 = vld [vmem:[%s0 + $0x290] sm:$0xff]
  %v8188 = vld [vmem:[%s0 + $0x298] sm:$0xff]
  %v8189 = vld [vmem:[%s0 + $0x2a0] sm:$0xff]
  %v8190 = vld [vmem:[%s0 + $0x2a8] sm:$0xff]
  %v8191 = vld [vmem:[%s0 + $0x2b0] sm:$0xff]
  %v8192 = vld [vmem:[%s0 + $0x2b8] sm:$0xff]
  %v8193 = vld [vmem:[%s0 + $0x2c0] sm:$0xff]
  %v8194 = vld [vmem:[%s0 + $0x2c8] sm:$0xff]
  %v8195 = vld [vmem:[%s0 + $0x2d0] sm:$0xff]
  %v8196 = vld [vmem:[%s0 + $0x2d8] sm:$0xff]
  %v8197 = vld [vmem:[%s0 + $0x2e0] sm:$0xff]
  %v8198 = vld [vmem:[%s0 + $0x2e8] sm:$0xff]
  %v8199 = vld [vmem:[%s0 + $0x2f0] sm:$0xff]
  %v8200 = vld [vmem:[%s0 + $0x2f8] sm:$0xff]
  %v8201 = vld [vmem:[%s0 + $0x300] sm:$0xff]
  %v8202 = vld [vmem:[%s0 + $0x308] sm:$0xff]
  %v8231 = vunpack.c.l.b16 %v8175
  %v8232 = vunpack.c.h.b16 %v8175
  %v8233 = vunpack.c.l.b16 %v8176
  %v8234 = vunpack.c.h.b16 %v8176
  %v8235 = vunpack.c.l.b16 %v8177
  %v8236 = vunpack.c.h.b16 %v8177
  %v8237 = vunpack.c.l.b16 %v8178
  %v8238 = vunpack.c.h.b16 %v8178
  %v8239 = vunpack.c.l.b16 %v8179
  %v8240 = vunpack.c.h.b16 %v8179
  %v8241 = vunpack.c.l.b16 %v8180
  %v8242 = vunpack.c.h.b16 %v8180
  %v8243 = vunpack.c.l.b16 %v8181
  %v8244 = vunpack.c.h.b16 %v8181
  %v8245 = vunpack.c.l.b16 %v8182
  %v8246 = vunpack.c.h.b16 %v8182
  %v8247 = vunpack.c.l.b16 %v8183
  %v8248 = vunpack.c.h.b16 %v8183
  %v8249 = vunpack.c.l.b16 %v8184
  %v8250 = vunpack.c.h.b16 %v8184
  %v8251 = vunpack.c.l.b16 %v8185
  %v8252 = vunpack.c.h.b16 %v8185
  %v8253 = vunpack.c.l.b16 %v8186
  %v8254 = vunpack.c.h.b16 %v8186
  %v8255 = vunpack.c.l.b16 %v8187
  %v8256 = vunpack.c.h.b16 %v8187
  %v8257 = vunpack.c.l.b16 %v8188
  %v8258 = vunpack.c.h.b16 %v8188
  %v8259 = vunpack.c.l.b16 %v8189
  %v8260 = vunpack.c.h.b16 %v8189
  %v8261 = vunpack.c.l.b16 %v8190
  %v8262 = vunpack.c.h.b16 %v8190
  %v8263 = vunpack.c.l.b16 %v8191
  %v8264 = vunpack.c.h.b16 %v8191
  %v8265 = vunpack.c.l.b16 %v8192
  %v8266 = vunpack.c.h.b16 %v8192
  %v8267 = vunpack.c.l.b16 %v8193
  %v8268 = vunpack.c.h.b16 %v8193
  %v8269 = vunpack.c.l.b16 %v8194
  %v8270 = vunpack.c.h.b16 %v8194
  %v8271 = vunpack.c.l.b16 %v8195
  %v8272 = vunpack.c.h.b16 %v8195
  %v8273 = vunpack.c.l.b16 %v8196
  %v8274 = vunpack.c.h.b16 %v8196
  %v8275 = vunpack.c.l.b16 %v8197
  %v8276 = vunpack.c.h.b16 %v8197
  %v8277 = vunpack.c.l.b16 %v8198
  %v8278 = vunpack.c.h.b16 %v8198
  %v8279 = vunpack.c.l.b16 %v8199
  %v8280 = vunpack.c.h.b16 %v8199
  %v8281 = vunpack.c.l.b16 %v8200
  %v8282 = vunpack.c.h.b16 %v8200
  %v8283 = vunpack.c.l.b16 %v8201
  %v8284 = vunpack.c.h.b16 %v8201
  %v8285 = vunpack.c.l.b16 %v8202
  %v8286 = vunpack.c.h.b16 %v8202
  %v8287 = vpack.c.b16 %v8233, %v8231
  %v8288 = vpack.c.b16 %v8234, %v8232
  %v8289 = vpack.c.b16 %v8237, %v8235
  %v8290 = vpack.c.b16 %v8238, %v8236
  %v8291 = vpack.c.b16 %v8241, %v8239
  %v8292 = vpack.c.b16 %v8242, %v8240
  %v8293 = vpack.c.b16 %v8245, %v8243
  %v8294 = vpack.c.b16 %v8246, %v8244
  %v8295 = vpack.c.b16 %v8249, %v8247
  %v8296 = vpack.c.b16 %v8250, %v8248
  %v8297 = vpack.c.b16 %v8253, %v8251
  %v8298 = vpack.c.b16 %v8254, %v8252
  %v8299 = vpack.c.b16 %v8257, %v8255
  %v8300 = vpack.c.b16 %v8258, %v8256
  %v8301 = vpack.c.b16 %v8261, %v8259
  %v8302 = vpack.c.b16 %v8262, %v8260
  %v8303 = vpack.c.b16 %v8265, %v8263
  %v8304 = vpack.c.b16 %v8266, %v8264
  %v8305 = vpack.c.b16 %v8269, %v8267
  %v8306 = vpack.c.b16 %v8270, %v8268
  %v8307 = vpack.c.b16 %v8273, %v8271
  %v8308 = vpack.c.b16 %v8274, %v8272
  %v8309 = vpack.c.b16 %v8277, %v8275
  %v8310 = vpack.c.b16 %v8278, %v8276
  %v8311 = vpack.c.b16 %v8281, %v8279
  %v8312 = vpack.c.b16 %v8282, %v8280
  %v8313 = vpack.c.b16 %v8285, %v8283
  %v8314 = vpack.c.b16 %v8286, %v8284
  %8343 = vmatprep.subr.bf16.mxu0 %v8288
  %8344 = vmatpush1.bf16.msra.mxu0 %v8287
  %8345 = vmatprep.subr.bf16.mxu0 %v8290
  %8346 = vmatpush1.bf16.msra.mxu0 %v8289
  %8347 = vmatprep.subr.bf16.mxu0 %v8292
  %8348 = vmatpush1.bf16.msra.mxu0 %v8291
  %8349 = vmatprep.subr.bf16.mxu0 %v8294
  %8350 = vmatpush1.bf16.msra.mxu0 %v8293
  %8351 = vmatprep.subr.bf16.mxu0 %v8296
  %8352 = vmatpush1.bf16.msra.mxu0 %v8295
  %8353 = vmatprep.subr.bf16.mxu0 %v8298
  %8354 = vmatpush1.bf16.msra.mxu0 %v8297
  %8355 = vmatprep.subr.bf16.mxu0 %v8300
  %8356 = vmatpush1.bf16.msra.mxu0 %v8299
  %8357 = vmatprep.subr.bf16.mxu0 %v8302
  %8358 = vmatpush1.bf16.msra.mxu0 %v8301
  %8359 = vmatprep.subr.bf16.mxu0 %v8304
  %8360 = vmatpush1.bf16.msra.mxu0 %v8303
  %8361 = vmatprep.subr.bf16.mxu0 %v8306
  %8362 = vmatpush1.bf16.msra.mxu0 %v8305
  %8363 = vmatprep.subr.bf16.mxu0 %v8308
  %8364 = vmatpush1.bf16.msra.mxu0 %v8307
  %8365 = vmatprep.subr.bf16.mxu0 %v8310
  %8366 = vmatpush1.bf16.msra.mxu0 %v8309
  %8367 = vmatprep.subr.bf16.mxu0 %v8312
  %8368 = vmatpush1.bf16.msra.mxu0 %v8311
  %8369 = vmatprep.subr.bf16.mxu0 %v8314
  %8370 = vmatpush1.bf16.msra.mxu0 %v8313
  %8371 = vmatprep.subr.bf16.mxu0 0
  %8372 = vmatpush1.bf16.msra.mxu0 0
  %8373 = vmatprep.subr.bf16.mxu0 0
  %8374 = vmatpush1.bf16.msra.mxu0 0
  %8375 = vmatprep.mubr.bf16.mxu0 %v1759
  %8376 = vmatmul.mubr.bf16.gmra.mrb[0].mxu0 %v1437
  %v8377 = vpop.f32.mrb[0].mxu0
  %v8378 = vadd.f32 %v332, %v8377
  %v8379 = vpop.f32.mrb[0].mxu0
  %v8380 = vadd.f32 %v332, %v8379
  %v8381 = vpop.f32.mrb[0].mxu0
  %v8382 = vadd.f32 %v337, %v8381
  %v8383 = vpop.f32.mrb[0].mxu0
  %v8384 = vadd.f32 %v337, %v8383
  %8385 = vmatprep.mubr.bf16.mxu0 %v1762
  %8386 = vmatmul.mubr.bf16.gmra.mrb[0].mxu0 %v1439
  %v8387 = vpop.f32.mrb[0].mxu0
  %v8388 = vadd.f32 %v342, %v8387
  %v8389 = vpop.f32.mrb[0].mxu0
  %v8390 = vadd.f32 %v342, %v8389
  %v8391 = vpop.f32.mrb[0].mxu0
  %v8392 = vadd.f32 %v347, %v8391
  %v8393 = vpop.f32.mrb[0].mxu0
  %v8394 = vadd.f32 %v347, %v8393
  %8395 = vmatprep.mubr.bf16.mxu0 %v1765
  %8396 = vmatmul.mubr.bf16.gmra.mrb[0].mxu0 %v1441
  %v8397 = vpop.f32.mrb[0].mxu0
  %v8398 = vadd.f32 %v352, %v8397
  %v8399 = vpop.f32.mrb[0].mxu0
  %v8400 = vadd.f32 %v352, %v8399
  %v8401 = vpop.f32.mrb[0].mxu0
  %v8402 = vadd.f32 %v357, %v8401
  %v8403 = vpop.f32.mrb[0].mxu0
  %v8404 = vadd.f32 %v357, %v8403
  %8405 = vmatprep.mubr.bf16.mxu0 %v1768
  %8406 = vmatmul.mubr.bf16.gmra.mrb[0].mxu0 %v1443
  %v8407 = vpop.f32.mrb[0].mxu0
  %v8408 = vadd.f32 %v362, %v8407
  %v8409 = vpop.f32.mrb[0].mxu0
  %v8410 = vadd.f32 %v362, %v8409
  %v8411 = vpop.f32.mrb[0].mxu0
  %v8412 = vadd.f32 %v367, %v8411
  %v8413 = vpop.f32.mrb[0].mxu0
  %v8414 = vadd.f32 %v367, %v8413
  %8415 = vmatprep.mubr.bf16.mxu0 %v1771
  %8416 = vmatmul.mubr.bf16.gmra.mrb[0].mxu0 %v1445
  %v8417 = vpop.f32.mrb[0].mxu0
  %v8418 = vadd.f32 %v372, %v8417
  %v8419 = vpop.f32.mrb[0].mxu0
  %v8420 = vadd.f32 %v372, %v8419
  %v8421 = vpop.f32.mrb[0].mxu0
  %v8422 = vadd.f32 %v377, %v8421
  %v8423 = vpop.f32.mrb[0].mxu0
  %v8424 = vadd.f32 %v377, %v8423
  %8425 = vmatprep.mubr.bf16.mxu0 %v1774
  %8426 = vmatmul.mubr.bf16.gmra.mrb[0].mxu0 %v1447
  %v8427 = vpop.f32.mrb[0].mxu0
  %v8428 = vadd.f32 %v382, %v8427
  %v8429 = vpop.f32.mrb[0].mxu0
  %v8430 = vadd.f32 %v382, %v8429
  %v8431 = vpop.f32.mrb[0].mxu0
  %v8432 = vadd.f32 %v387, %v8431
  %v8433 = vpop.f32.mrb[0].mxu0
  %v8434 = vadd.f32 %v387, %v8433
  %8435 = vmatprep.mubr.bf16.mxu0 %v1777
  %8436 = vmatmul.mubr.bf16.gmra.mrb[0].mxu0 %v1449
  %v8437 = vpop.f32.mrb[0].mxu0
  %v8438 = vadd.f32 %v392, %v8437
  %v8439 = vpop.f32.mrb[0].mxu0
  %v8440 = vadd.f32 %v392, %v8439
  %v8441 = vpop.f32.mrb[0].mxu0
  %v8442 = vadd.f32 %v397, %v8441
  %v8443 = vpop.f32.mrb[0].mxu0
  %v8444 = vadd.f32 %v397, %v8443
  %8445 = vmatprep.mubr.bf16.mxu0 %v1780
  %8446 = vmatmul.mubr.bf16.gmra.mrb[0].mxu0 %v1451
  %v8447 = vpop.f32.mrb[0].mxu0
  %v8448 = vadd.f32 %v402, %v8447
  %v8449 = vpop.f32.mrb[0].mxu0
  %v8450 = vadd.f32 %v402, %v8449
  %v8451 = vpop.f32.mrb[0].mxu0
  %v8452 = vadd.f32 %v407, %v8451
  %v8453 = vpop.f32.mrb[0].mxu0
  %v8454 = vadd.f32 %v407, %v8453
  %8455 = vmatprep.mubr.bf16.mxu0 %v1783
  %8456 = vmatmul.mubr.bf16.gmra.mrb[0].mxu0 %v1453
  %v8457 = vpop.f32.mrb[0].mxu0
  %v8458 = vadd.f32 %v412, %v8457
  %v8459 = vpop.f32.mrb[0].mxu0
  %v8460 = vadd.f32 %v412, %v8459
  %v8461 = vpop.f32.mrb[0].mxu0
  %v8462 = vadd.f32 %v417, %v8461
  %v8463 = vpop.f32.mrb[0].mxu0
  %v8464 = vadd.f32 %v417, %v8463
  %8465 = vmatprep.mubr.bf16.mxu0 %v1786
  %8466 = vmatmul.mubr.bf16.gmra.mrb[0].mxu0 %v1455
  %v8467 = vpop.f32.mrb[0].mxu0
  %v8468 = vadd.f32 %v422, %v8467
  %v8469 = vpop.f32.mrb[0].mxu0
  %v8470 = vadd.f32 %v422, %v8469
  %v8471 = vpop.f32.mrb[0].mxu0
  %v8472 = vadd.f32 %v427, %v8471
  %v8473 = vpop.f32.mrb[0].mxu0
  %v8474 = vadd.f32 %v427, %v8473
  %8475 = vmatprep.mubr.bf16.mxu0 %v1789
  %8476 = vmatmul.mubr.bf16.gmra.mrb[0].mxu0 %v1457
  %v8477 = vpop.f32.mrb[0].mxu0
  %v8478 = vadd.f32 %v432, %v8477
  %v8479 = vpop.f32.mrb[0].mxu0
  %v8480 = vadd.f32 %v432, %v8479
  %v8481 = vpop.f32.mrb[0].mxu0
  %v8482 = vadd.f32 %v437, %v8481
  %v8483 = vpop.f32.mrb[0].mxu0
  %v8484 = vadd.f32 %v437, %v8483
  %8485 = vmatprep.mubr.bf16.mxu0 %v1792
  %8486 = vmatmul.mubr.bf16.gmra.mrb[0].mxu0 %v1459
  %v8487 = vpop.f32.mrb[0].mxu0
  %v8488 = vadd.f32 %v442, %v8487
  %v8489 = vpop.f32.mrb[0].mxu0
  %v8490 = vadd.f32 %v442, %v8489
  %v8491 = vpop.f32.mrb[0].mxu0
  %v8492 = vadd.f32 %v447, %v8491
  %v8493 = vpop.f32.mrb[0].mxu0
  %v8494 = vadd.f32 %v447, %v8493
  %8495 = vmatprep.mubr.bf16.mxu0 %v1795
  %8496 = vmatmul.mubr.bf16.gmra.mrb[0].mxu0 %v1461
  %v8497 = vpop.f32.mrb[0].mxu0
  %v8498 = vadd.f32 %v452, %v8497
  %v8499 = vpop.f32.mrb[0].mxu0
  %v8500 = vadd.f32 %v452, %v8499
  %v8501 = vpop.f32.mrb[0].mxu0
  %v8502 = vadd.f32 %v457, %v8501
  %v8503 = vpop.f32.mrb[0].mxu0
  %v8504 = vadd.f32 %v457, %v8503
  %8505 = vmatprep.mubr.bf16.mxu0 %v1798
  %8506 = vmatmul.mubr.bf16.gmra.mrb[0].mxu0 %v1463
  %v8507 = vpop.f32.mrb[0].mxu0
  %v8508 = vadd.f32 %v462, %v8507
  %v8509 = vpop.f32.mrb[0].mxu0
  %v8510 = vadd.f32 %v462, %v8509
  %v8511 = vpop.f32.mrb[0].mxu0
  %v8512 = vadd.f32 %v467, %v8511
  %v8513 = vpop.f32.mrb[0].mxu0
  %v8514 = vadd.f32 %v467, %v8513
  %8515 = vmatprep.mubr.bf16.mxu0 %v1801
  %8516 = vmatmul.mubr.bf16.gmra.mrb[0].mxu0 %v1465
  %v8517 = vpop.f32.mrb[0].mxu0
  %v8518 = vadd.f32 %v472, %v8517
  %v8519 = vpop.f32.mrb[0].mxu0
  %v8520 = vadd.f32 %v472, %v8519
  %v8521 = vpop.f32.mrb[0].mxu0
  %v8522 = vadd.f32 %v477, %v8521
  %v8523 = vpop.f32.mrb[0].mxu0
  %v8524 = vadd.f32 %v477, %v8523
  %8525 = vmatprep.mubr.bf16.mxu0 %v1804
  %8526 = vmatmul.mubr.bf16.gmra.mrb[0].mxu0 %v1467
  %v8527 = vpop.f32.mrb[0].mxu0
  %v8528 = vadd.f32 %v482, %v8527
  %v8529 = vpop.f32.mrb[0].mxu0
  %v8530 = vadd.f32 %v482, %v8529
  %v8531 = vpop.f32.mrb[0].mxu0
  %v8532 = vadd.f32 %v487, %v8531
  %v8533 = vpop.f32.mrb[0].mxu0
  %v8534 = vadd.f32 %v487, %v8533
  %8535 = vmatprep.mubr.bf16.mxu0 %v1807
  %8536 = vmatmul.mubr.bf16.gmra.mrb[0].mxu0 %v1469
  %v8537 = vpop.f32.mrb[0].mxu0
  %v8538 = vadd.f32 %v492, %v8537
  %v8539 = vpop.f32.mrb[0].mxu0
  %v8540 = vadd.f32 %v492, %v8539
  %v8541 = vpop.f32.mrb[0].mxu0
  %v8542 = vadd.f32 %v497, %v8541
  %v8543 = vpop.f32.mrb[0].mxu0
  %v8544 = vadd.f32 %v497, %v8543
  %8545 = vmatprep.mubr.bf16.mxu0 %v1810
  %8546 = vmatmul.mubr.bf16.gmra.mrb[0].mxu0 %v1471
  %v8547 = vpop.f32.mrb[0].mxu0
  %v8548 = vadd.f32 %v502, %v8547
  %v8549 = vpop.f32.mrb[0].mxu0
  %v8550 = vadd.f32 %v502, %v8549
  %v8551 = vpop.f32.mrb[0].mxu0
  %v8552 = vadd.f32 %v507, %v8551
  %v8553 = vpop.f32.mrb[0].mxu0
  %v8554 = vadd.f32 %v507, %v8553
  %8555 = vmatprep.mubr.bf16.mxu0 %v1813
  %8556 = vmatmul.mubr.bf16.gmra.mrb[0].mxu0 %v1473
  %v8557 = vpop.f32.mrb[0].mxu0
  %v8558 = vadd.f32 %v512, %v8557
  %v8559 = vpop.f32.mrb[0].mxu0
  %v8560 = vadd.f32 %v512, %v8559
  %v8561 = vpop.f32.mrb[0].mxu0
  %v8562 = vadd.f32 %v517, %v8561
  %v8563 = vpop.f32.mrb[0].mxu0
  %v8564 = vadd.f32 %v517, %v8563
  %8565 = vmatprep.mubr.bf16.mxu0 %v1816
  %8566 = vmatmul.mubr.bf16.gmra.mrb[0].mxu0 %v1475
  %v8567 = vpop.f32.mrb[0].mxu0
  %v8568 = vadd.f32 %v522, %v8567
  %v8569 = vpop.f32.mrb[0].mxu0
  %v8570 = vadd.f32 %v522, %v8569
  %v8571 = vpop.f32.mrb[0].mxu0
  %v8572 = vadd.f32 %v527, %v8571
  %v8573 = vpop.f32.mrb[0].mxu0
  %v8574 = vadd.f32 %v527, %v8573
  %8575 = vmatprep.mubr.bf16.mxu0 %v1819
  %8576 = vmatmul.mubr.bf16.gmra.mrb[0].mxu0 %v1477
  %v8577 = vpop.f32.mrb[0].mxu0
  %v8578 = vadd.f32 %v532, %v8577
  %v8579 = vpop.f32.mrb[0].mxu0
  %v8580 = vadd.f32 %v532, %v8579
  %v8581 = vpop.f32.mrb[0].mxu0
  %v8582 = vadd.f32 %v537, %v8581
  %v8583 = vpop.f32.mrb[0].mxu0
  %v8584 = vadd.f32 %v537, %v8583
  %8585 = vmatprep.mubr.bf16.mxu0 %v1822
  %8586 = vmatmul.mubr.bf16.gmra.mrb[0].mxu0 %v1479
  %v8587 = vpop.f32.mrb[0].mxu0
  %v8588 = vadd.f32 %v542, %v8587
  %v8589 = vpop.f32.mrb[0].mxu0
  %v8590 = vadd.f32 %v542, %v8589
  %v8591 = vpop.f32.mrb[0].mxu0
  %v8592 = vadd.f32 %v547, %v8591
  %v8593 = vpop.f32.mrb[0].mxu0
  %v8594 = vadd.f32 %v547, %v8593
  %8595 = vmatprep.mubr.bf16.mxu0 %v1825
  %8596 = vmatmul.mubr.bf16.gmra.mrb[0].mxu0 %v1481
  %v8597 = vpop.f32.mrb[0].mxu0
  %v8598 = vadd.f32 %v552, %v8597
  %v8599 = vpop.f32.mrb[0].mxu0
  %v8600 = vadd.f32 %v552, %v8599
  %v8601 = vpop.f32.mrb[0].mxu0
  %v8602 = vadd.f32 %v557, %v8601
  %v8603 = vpop.f32.mrb[0].mxu0
  %v8604 = vadd.f32 %v557, %v8603
  %8605 = vmatprep.mubr.bf16.mxu0 %v1828
  %8606 = vmatmul.mubr.bf16.gmra.mrb[0].mxu0 %v1483
  %v8607 = vpop.f32.mrb[0].mxu0
  %v8608 = vadd.f32 %v562, %v8607
  %v8609 = vpop.f32.mrb[0].mxu0
  %v8610 = vadd.f32 %v562, %v8609
  %v8611 = vpop.f32.mrb[0].mxu0
  %v8612 = vadd.f32 %v567, %v8611
  %v8613 = vpop.f32.mrb[0].mxu0
  %v8614 = vadd.f32 %v567, %v8613
  %8615 = vmatprep.mubr.bf16.mxu0 %v1831
  %8616 = vmatmul.mubr.bf16.gmra.mrb[0].mxu0 %v1485
  %v8617 = vpop.f32.mrb[0].mxu0
  %v8618 = vadd.f32 %v572, %v8617
  %v8619 = vpop.f32.mrb[0].mxu0
  %v8620 = vadd.f32 %v572, %v8619
  %v8621 = vpop.f32.mrb[0].mxu0
  %v8622 = vadd.f32 %v577, %v8621
  %v8623 = vpop.f32.mrb[0].mxu0
  %v8624 = vadd.f32 %v577, %v8623
  %8625 = vmatprep.mubr.bf16.mxu0 %v1834
  %8626 = vmatmul.mubr.bf16.gmra.mrb[0].mxu0 %v1487
  %v8627 = vpop.f32.mrb[0].mxu0
  %v8628 = vadd.f32 %v582, %v8627
  %v8629 = vpop.f32.mrb[0].mxu0
  %v8630 = vadd.f32 %v582, %v8629
  %v8631 = vpop.f32.mrb[0].mxu0
  %v8632 = vadd.f32 %v587, %v8631
  %v8633 = vpop.f32.mrb[0].mxu0
  %v8634 = vadd.f32 %v587, %v8633
  %8635 = vmatprep.mubr.bf16.mxu0 %v1837
  %8636 = vmatmul.mubr.bf16.gmra.mrb[0].mxu0 %v1489
  %v8637 = vpop.f32.mrb[0].mxu0
  %v8638 = vadd.f32 %v592, %v8637
  %v8639 = vpop.f32.mrb[0].mxu0
  %v8640 = vadd.f32 %v592, %v8639
  %v8641 = vpop.f32.mrb[0].mxu0
  %v8642 = vadd.f32 %v597, %v8641
  %v8643 = vpop.f32.mrb[0].mxu0
  %v8644 = vadd.f32 %v597, %v8643
  %8645 = vmatprep.mubr.bf16.mxu0 %v1840
  %8646 = vmatmul.mubr.bf16.gmra.mrb[0].mxu0 %v1491
  %v8647 = vpop.f32.mrb[0].mxu0
  %v8648 = vadd.f32 %v602, %v8647
  %v8649 = vpop.f32.mrb[0].mxu0
  %v8650 = vadd.f32 %v602, %v8649
  %v8651 = vpop.f32.mrb[0].mxu0
  %v8652 = vadd.f32 %v607, %v8651
  %v8653 = vpop.f32.mrb[0].mxu0
  %v8654 = vadd.f32 %v607, %v8653
  %8655 = vmatprep.mubr.bf16.mxu0 %v1843
  %8656 = vmatmul.mubr.bf16.gmra.mrb[0].mxu0 %v1493
  %v8657 = vpop.f32.mrb[0].mxu0
  %v8658 = vadd.f32 %v612, %v8657
  %v8659 = vpop.f32.mrb[0].mxu0
  %v8660 = vadd.f32 %v612, %v8659
  %v8661 = vpop.f32.mrb[0].mxu0
  %v8662 = vadd.f32 %v617, %v8661
  %v8663 = vpop.f32.mrb[0].mxu0
  %v8664 = vadd.f32 %v617, %v8663
  %8665 = vmatprep.mubr.bf16.mxu0 %v1846
  %8666 = vmatmul.mubr.bf16.gmra.mrb[0].mxu0 %v1495
  %v8667 = vpop.f32.mrb[0].mxu0
  %v8668 = vadd.f32 %v622, %v8667
  %v8669 = vpop.f32.mrb[0].mxu0
  %v8670 = vadd.f32 %v622, %v8669
  %v8671 = vpop.f32.mrb[0].mxu0
  %v8672 = vadd.f32 %v627, %v8671
  %v8673 = vpop.f32.mrb[0].mxu0
  %v8674 = vadd.f32 %v627, %v8673
  %8675 = vmatprep.mubr.bf16.mxu0 %v1849
  %8676 = vmatmul.mubr.bf16.gmra.mrb[0].mxu0 %v1497
  %v8677 = vpop.f32.mrb[0].mxu0
  %v8678 = vadd.f32 %v632, %v8677
  %v8679 = vpop.f32.mrb[0].mxu0
  %v8680 = vadd.f32 %v632, %v8679
  %v8681 = vpop.f32.mrb[0].mxu0
  %v8682 = vadd.f32 %v637, %v8681
  %v8683 = vpop.f32.mrb[0].mxu0
  %v8684 = vadd.f32 %v637, %v8683
  %8685 = vmatprep.mubr.bf16.mxu0 %v1852
  %8686 = vmatmul.mubr.bf16.gmra.mrb[0].mxu0 %v1499
  %v8687 = vpop.f32.mrb[0].mxu0
  %v8688 = vadd.f32 %v642, %v8687
  %v8689 = vpop.f32.mrb[0].mxu0
  %v8690 = vadd.f32 %v642, %v8689
  %v8691 = vpop.f32.mrb[0].mxu0
  %v8692 = vadd.f32 %v647, %v8691
  %v8693 = vpop.f32.mrb[0].mxu0
  %v8694 = vadd.f32 %v647, %v8693
  %8695 = vmatprep.mubr.bf16.mxu0 %v1855
  %8696 = vmatmul.mubr.bf16.gmra.mrb[0].mxu0 %v1501
  %v8697 = vpop.f32.mrb[0].mxu0
  %v8698 = vadd.f32 %v652, %v8697
  %v8699 = vpop.f32.mrb[0].mxu0
  %v8700 = vadd.f32 %v652, %v8699
  %v8701 = vpop.f32.mrb[0].mxu0
  %v8702 = vadd.f32 %v657, %v8701
  %v8703 = vpop.f32.mrb[0].mxu0
  %v8704 = vadd.f32 %v657, %v8703
  %8705 = vmatprep.mubr.bf16.mxu0 %v1858
  %8706 = vmatmul.mubr.bf16.gmra.mrb[0].mxu0 %v1503
  %v8707 = vpop.f32.mrb[0].mxu0
  %v8708 = vadd.f32 %v662, %v8707
  %v8709 = vpop.f32.mrb[0].mxu0
  %v8710 = vadd.f32 %v662, %v8709
  %v8711 = vpop.f32.mrb[0].mxu0
  %v8712 = vadd.f32 %v667, %v8711
  %v8713 = vpop.f32.mrb[0].mxu0
  %v8714 = vadd.f32 %v667, %v8713
  %8715 = vmatprep.mubr.bf16.mxu0 %v1861
  %8716 = vmatmul.mubr.bf16.gmra.mrb[0].mxu0 %v1505
  %v8717 = vpop.f32.mrb[0].mxu0
  %v8718 = vadd.f32 %v672, %v8717
  %v8719 = vpop.f32.mrb[0].mxu0
  %v8720 = vadd.f32 %v672, %v8719
  %v8721 = vpop.f32.mrb[0].mxu0
  %v8722 = vadd.f32 %v677, %v8721
  %v8723 = vpop.f32.mrb[0].mxu0
  %v8724 = vadd.f32 %v677, %v8723
  %8725 = vmatprep.mubr.bf16.mxu0 %v1864
  %8726 = vmatmul.mubr.bf16.gmra.mrb[0].mxu0 %v1507
  %v8727 = vpop.f32.mrb[0].mxu0
  %v8728 = vadd.f32 %v682, %v8727
  %v8729 = vpop.f32.mrb[0].mxu0
  %v8730 = vadd.f32 %v682, %v8729
  %v8731 = vpop.f32.mrb[0].mxu0
  %v8732 = vadd.f32 %v687, %v8731
  %v8733 = vpop.f32.mrb[0].mxu0
  %v8734 = vadd.f32 %v687, %v8733
  %8735 = vmatprep.mubr.bf16.mxu0 %v1867
  %8736 = vmatmul.mubr.bf16.gmra.mrb[0].mxu0 %v1509
  %v8737 = vpop.f32.mrb[0].mxu0
  %v8738 = vadd.f32 %v692, %v8737
  %v8739 = vpop.f32.mrb[0].mxu0
  %v8740 = vadd.f32 %v692, %v8739
  %v8741 = vpop.f32.mrb[0].mxu0
  %v8742 = vadd.f32 %v697, %v8741
  %v8743 = vpop.f32.mrb[0].mxu0
  %v8744 = vadd.f32 %v697, %v8743
  %8745 = vmatprep.mubr.bf16.mxu0 %v1870
  %8746 = vmatmul.mubr.bf16.gmra.mrb[0].mxu0 %v1511
  %v8747 = vpop.f32.mrb[0].mxu0
  %v8748 = vadd.f32 %v702, %v8747
  %v8749 = vpop.f32.mrb[0].mxu0
  %v8750 = vadd.f32 %v702, %v8749
  %v8751 = vpop.f32.mrb[0].mxu0
  %v8752 = vadd.f32 %v707, %v8751
  %v8753 = vpop.f32.mrb[0].mxu0
  %v8754 = vadd.f32 %v707, %v8753
  %8755 = vmatprep.mubr.bf16.mxu0 %v1873
  %8756 = vmatmul.mubr.bf16.gmra.mrb[0].mxu0 %v1513
  %v8757 = vpop.f32.mrb[0].mxu0
  %v8758 = vadd.f32 %v712, %v8757
  %v8759 = vpop.f32.mrb[0].mxu0
  %v8760 = vadd.f32 %v712, %v8759
  %v8761 = vpop.f32.mrb[0].mxu0
  %v8762 = vadd.f32 %v717, %v8761
  %v8763 = vpop.f32.mrb[0].mxu0
  %v8764 = vadd.f32 %v717, %v8763
  %8765 = vmatprep.mubr.bf16.mxu0 %v1876
  %8766 = vmatmul.mubr.bf16.gmra.mrb[0].mxu0 %v1515
  %v8767 = vpop.f32.mrb[0].mxu0
  %v8768 = vadd.f32 %v722, %v8767
  %v8769 = vpop.f32.mrb[0].mxu0
  %v8770 = vadd.f32 %v722, %v8769
  %v8771 = vpop.f32.mrb[0].mxu0
  %v8772 = vadd.f32 %v727, %v8771
  %v8773 = vpop.f32.mrb[0].mxu0
  %v8774 = vadd.f32 %v727, %v8773
  %8775 = vmatprep.mubr.bf16.mxu0 %v1879
  %8776 = vmatmul.mubr.bf16.gmra.mrb[0].mxu0 %v1517
  %v8777 = vpop.f32.mrb[0].mxu0
  %v8778 = vadd.f32 %v732, %v8777
  %v8779 = vpop.f32.mrb[0].mxu0
  %v8780 = vadd.f32 %v732, %v8779
  %v8781 = vpop.f32.mrb[0].mxu0
  %v8782 = vadd.f32 %v737, %v8781
  %v8783 = vpop.f32.mrb[0].mxu0
  %v8784 = vadd.f32 %v737, %v8783
  %8785 = vmatprep.mubr.bf16.mxu0 %v1882
  %8786 = vmatmul.mubr.bf16.gmra.mrb[0].mxu0 %v1519
  %v8787 = vpop.f32.mrb[0].mxu0
  %v8788 = vadd.f32 %v742, %v8787
  %v8789 = vpop.f32.mrb[0].mxu0
  %v8790 = vadd.f32 %v742, %v8789
  %v8791 = vpop.f32.mrb[0].mxu0
  %v8792 = vadd.f32 %v747, %v8791
  %v8793 = vpop.f32.mrb[0].mxu0
  %v8794 = vadd.f32 %v747, %v8793
  %8795 = vmatprep.mubr.bf16.mxu0 %v1885
  %8796 = vmatmul.mubr.bf16.gmra.mrb[0].mxu0 %v1521
  %v8797 = vpop.f32.mrb[0].mxu0
  %v8798 = vadd.f32 %v752, %v8797
  %v8799 = vpop.f32.mrb[0].mxu0
  %v8800 = vadd.f32 %v752, %v8799
  %v8801 = vpop.f32.mrb[0].mxu0
  %v8802 = vadd.f32 %v757, %v8801
  %v8803 = vpop.f32.mrb[0].mxu0
  %v8804 = vadd.f32 %v757, %v8803
  %8805 = vmatprep.mubr.bf16.mxu0 %v1888
  %8806 = vmatmul.mubr.bf16.gmra.mrb[0].mxu0 %v1523
  %v8807 = vpop.f32.mrb[0].mxu0
  %v8808 = vadd.f32 %v762, %v8807
  %v8809 = vpop.f32.mrb[0].mxu0
  %v8810 = vadd.f32 %v762, %v8809
  %v8811 = vpop.f32.mrb[0].mxu0
  %v8812 = vadd.f32 %v767, %v8811
  %v8813 = vpop.f32.mrb[0].mxu0
  %v8814 = vadd.f32 %v767, %v8813
  %8815 = vmatprep.mubr.bf16.mxu0 %v1891
  %8816 = vmatmul.mubr.bf16.gmra.mrb[0].mxu0 %v1525
  %v8817 = vpop.f32.mrb[0].mxu0
  %v8818 = vadd.f32 %v772, %v8817
  %v8819 = vpop.f32.mrb[0].mxu0
  %v8820 = vadd.f32 %v772, %v8819
  %v8821 = vpop.f32.mrb[0].mxu0
  %v8822 = vadd.f32 %v777, %v8821
  %v8823 = vpop.f32.mrb[0].mxu0
  %v8824 = vadd.f32 %v777, %v8823
  %8825 = vmatprep.mubr.bf16.mxu0 %v1894
  %8826 = vmatmul.mubr.bf16.gmra.mrb[0].mxu0 %v1527
  %v8827 = vpop.f32.mrb[0].mxu0
  %v8828 = vadd.f32 %v782, %v8827
  %v8829 = vpop.f32.mrb[0].mxu0
  %v8830 = vadd.f32 %v782, %v8829
  %v8831 = vpop.f32.mrb[0].mxu0
  %v8832 = vadd.f32 %v787, %v8831
  %v8833 = vpop.f32.mrb[0].mxu0
  %v8834 = vadd.f32 %v787, %v8833
  %8835 = vmatprep.mubr.bf16.mxu0 %v1897
  %8836 = vmatmul.mubr.bf16.gmra.mrb[0].mxu0 %v1529
  %v8837 = vpop.f32.mrb[0].mxu0
  %v8838 = vadd.f32 %v792, %v8837
  %v8839 = vpop.f32.mrb[0].mxu0
  %v8840 = vadd.f32 %v792, %v8839
  %v8841 = vpop.f32.mrb[0].mxu0
  %v8842 = vadd.f32 %v797, %v8841
  %v8843 = vpop.f32.mrb[0].mxu0
  %v8844 = vadd.f32 %v797, %v8843
  %8845 = vmatprep.mubr.bf16.mxu0 %v1900
  %8846 = vmatmul.mubr.bf16.gmra.mrb[0].mxu0 %v1531
  %v8847 = vpop.f32.mrb[0].mxu0
  %v8848 = vadd.f32 %v802, %v8847
  %v8849 = vpop.f32.mrb[0].mxu0
  %v8850 = vadd.f32 %v802, %v8849
  %v8851 = vpop.f32.mrb[0].mxu0
  %v8852 = vadd.f32 %v807, %v8851
  %v8853 = vpop.f32.mrb[0].mxu0
  %v8854 = vadd.f32 %v807, %v8853
  %8855 = vmatprep.mubr.bf16.mxu0 %v1903
  %8856 = vmatmul.mubr.bf16.gmra.mrb[0].mxu0 %v1533
  %v8857 = vpop.f32.mrb[0].mxu0
  %v8858 = vadd.f32 %v812, %v8857
  %v8859 = vpop.f32.mrb[0].mxu0
  %v8860 = vadd.f32 %v812, %v8859
  %v8861 = vpop.f32.mrb[0].mxu0
  %v8862 = vadd.f32 %v817, %v8861
  %v8863 = vpop.f32.mrb[0].mxu0
  %v8864 = vadd.f32 %v817, %v8863
  %8865 = vmatprep.mubr.bf16.mxu0 %v1906
  %8866 = vmatmul.mubr.bf16.gmra.mrb[0].mxu0 %v1535
  %v8867 = vpop.f32.mrb[0].mxu0
  %v8868 = vadd.f32 %v822, %v8867
  %v8869 = vpop.f32.mrb[0].mxu0
  %v8870 = vadd.f32 %v822, %v8869
  %v8871 = vpop.f32.mrb[0].mxu0
  %v8872 = vadd.f32 %v827, %v8871
  %v8873 = vpop.f32.mrb[0].mxu0
  %v8874 = vadd.f32 %v827, %v8873
  %8875 = vmatprep.mubr.bf16.mxu0 %v1909
  %8876 = vmatmul.mubr.bf16.gmra.mrb[0].mxu0 %v1537
  %v8877 = vpop.f32.mrb[0].mxu0
  %v8878 = vadd.f32 %v832, %v8877
  %v8879 = vpop.f32.mrb[0].mxu0
  %v8880 = vadd.f32 %v832, %v8879
  %v8881 = vpop.f32.mrb[0].mxu0
  %v8882 = vadd.f32 %v837, %v8881
  %v8883 = vpop.f32.mrb[0].mxu0
  %v8884 = vadd.f32 %v837, %v8883
  %8885 = vmatprep.mubr.bf16.mxu0 %v1912
  %8886 = vmatmul.mubr.bf16.gmra.mrb[0].mxu0 %v1539
  %v8887 = vpop.f32.mrb[0].mxu0
  %v8888 = vadd.f32 %v842, %v8887
  %v8889 = vpop.f32.mrb[0].mxu0
  %v8890 = vadd.f32 %v842, %v8889
  %v8891 = vpop.f32.mrb[0].mxu0
  %v8892 = vadd.f32 %v847, %v8891
  %v8893 = vpop.f32.mrb[0].mxu0
  %v8894 = vadd.f32 %v847, %v8893
  %8895 = vmatprep.mubr.bf16.mxu0 %v1915
  %8896 = vmatmul.mubr.bf16.gmra.mrb[0].mxu0 %v1541
  %v8897 = vpop.f32.mrb[0].mxu0
  %v8898 = vadd.f32 %v852, %v8897
  %v8899 = vpop.f32.mrb[0].mxu0
  %v8900 = vadd.f32 %v852, %v8899
  %v8901 = vpop.f32.mrb[0].mxu0
  %v8902 = vadd.f32 %v857, %v8901
  %v8903 = vpop.f32.mrb[0].mxu0
  %v8904 = vadd.f32 %v857, %v8903
  %8905 = vmatprep.mubr.bf16.mxu0 %v1918
  %8906 = vmatmul.mubr.bf16.gmra.mrb[0].mxu0 %v1543
  %v8907 = vpop.f32.mrb[0].mxu0
  %v8908 = vadd.f32 %v862, %v8907
  %v8909 = vpop.f32.mrb[0].mxu0
  %v8910 = vadd.f32 %v862, %v8909
  %v8911 = vpop.f32.mrb[0].mxu0
  %v8912 = vadd.f32 %v867, %v8911
  %v8913 = vpop.f32.mrb[0].mxu0
  %v8914 = vadd.f32 %v867, %v8913
  %8915 = vmatprep.mubr.bf16.mxu0 %v1921
  %8916 = vmatmul.mubr.bf16.gmra.mrb[0].mxu0 %v1545
  %v8917 = vpop.f32.mrb[0].mxu0
  %v8918 = vadd.f32 %v872, %v8917
  %v8919 = vpop.f32.mrb[0].mxu0
  %v8920 = vadd.f32 %v872, %v8919
  %v8921 = vpop.f32.mrb[0].mxu0
  %v8922 = vadd.f32 %v877, %v8921
  %v8923 = vpop.f32.mrb[0].mxu0
  %v8924 = vadd.f32 %v877, %v8923
  %8925 = vmatprep.mubr.bf16.mxu0 %v1924
  %8926 = vmatmul.mubr.bf16.gmra.mrb[0].mxu0 %v1547
  %v8927 = vpop.f32.mrb[0].mxu0
  %v8928 = vadd.f32 %v882, %v8927
  %v8929 = vpop.f32.mrb[0].mxu0
  %v8930 = vadd.f32 %v882, %v8929
  %v8931 = vpop.f32.mrb[0].mxu0
  %v8932 = vadd.f32 %v887, %v8931
  %v8933 = vpop.f32.mrb[0].mxu0
  %v8934 = vadd.f32 %v887, %v8933
  %8935 = vmatprep.mubr.bf16.mxu0 %v1927
  %8936 = vmatmul.mubr.bf16.gmra.mrb[0].mxu0 %v1549
  %v8937 = vpop.f32.mrb[0].mxu0
  %v8938 = vadd.f32 %v892, %v8937
  %v8939 = vpop.f32.mrb[0].mxu0
  %v8940 = vadd.f32 %v892, %v8939
  %v8941 = vpop.f32.mrb[0].mxu0
  %v8942 = vadd.f32 %v897, %v8941
  %v8943 = vpop.f32.mrb[0].mxu0
  %v8944 = vadd.f32 %v897, %v8943
  %8945 = vmatprep.mubr.bf16.mxu0 %v1930
  %8946 = vmatmul.mubr.bf16.gmra.mrb[0].mxu0 %v1551
  %v8947 = vpop.f32.mrb[0].mxu0
  %v8948 = vadd.f32 %v902, %v8947
  %v8949 = vpop.f32.mrb[0].mxu0
  %v8950 = vadd.f32 %v902, %v8949
  %v8951 = vpop.f32.mrb[0].mxu0
  %v8952 = vadd.f32 %v907, %v8951
  %v8953 = vpop.f32.mrb[0].mxu0
  %v8954 = vadd.f32 %v907, %v8953
  %8955 = vmatprep.mubr.bf16.mxu0 %v1933
  %8956 = vmatmul.mubr.bf16.gmra.mrb[0].mxu0 %v1553
  %v8957 = vpop.f32.mrb[0].mxu0
  %v8958 = vadd.f32 %v912, %v8957
  %v8959 = vpop.f32.mrb[0].mxu0
  %v8960 = vadd.f32 %v912, %v8959
  %v8961 = vpop.f32.mrb[0].mxu0
  %v8962 = vadd.f32 %v917, %v8961
  %v8963 = vpop.f32.mrb[0].mxu0
  %v8964 = vadd.f32 %v917, %v8963
  %8965 = vmatprep.mubr.bf16.mxu0 %v1936
  %8966 = vmatmul.mubr.bf16.gmra.mrb[0].mxu0 %v1555
  %v8967 = vpop.f32.mrb[0].mxu0
  %v8968 = vadd.f32 %v922, %v8967
  %v8969 = vpop.f32.mrb[0].mxu0
  %v8970 = vadd.f32 %v922, %v8969
  %v8971 = vpop.f32.mrb[0].mxu0
  %v8972 = vadd.f32 %v927, %v8971
  %v8973 = vpop.f32.mrb[0].mxu0
  %v8974 = vadd.f32 %v927, %v8973
  %8975 = vdwg.mxu0
  %v8976 = vmax.f32 %v8378, 0.0
  %v8977 = vmax.f32 %v8380, 0.0
  %v8978 = vmax.f32 %v8382, 0.0
  %v8979 = vmax.f32 %v8384, 0.0
  %v8980 = vmax.f32 %v8388, 0.0
  %v8981 = vmax.f32 %v8390, 0.0
  %v8982 = vmax.f32 %v8392, 0.0
  %v8983 = vmax.f32 %v8394, 0.0
  %v8984 = vmax.f32 %v8398, 0.0
  %v8985 = vmax.f32 %v8400, 0.0
  %v8986 = vmax.f32 %v8402, 0.0
  %v8987 = vmax.f32 %v8404, 0.0
  %v8988 = vmax.f32 %v8408, 0.0
  %v8989 = vmax.f32 %v8410, 0.0
  %v8990 = vmax.f32 %v8412, 0.0
  %v8991 = vmax.f32 %v8414, 0.0
  %v8992 = vmax.f32 %v8418, 0.0
  %v8993 = vmax.f32 %v8420, 0.0
  %v8994 = vmax.f32 %v8422, 0.0
  %v8995 = vmax.f32 %v8424, 0.0
  %v8996 = vmax.f32 %v8428, 0.0
  %v8997 = vmax.f32 %v8430, 0.0
  %v8998 = vmax.f32 %v8432, 0.0
  %v8999 = vmax.f32 %v8434, 0.0
  %v9000 = vmax.f32 %v8438, 0.0
  %v9001 = vmax.f32 %v8440, 0.0
  %v9002 = vmax.f32 %v8442, 0.0
  %v9003 = vmax.f32 %v8444, 0.0
  %v9004 = vmax.f32 %v8448, 0.0
  %v9005 = vmax.f32 %v8450, 0.0
  %v9006 = vmax.f32 %v8452, 0.0
  %v9007 = vmax.f32 %v8454, 0.0
  %v9008 = vmax.f32 %v8458, 0.0
  %v9009 = vmax.f32 %v8460, 0.0
  %v9010 = vmax.f32 %v8462, 0.0
  %v9011 = vmax.f32 %v8464, 0.0
  %v9012 = vmax.f32 %v8468, 0.0
  %v9013 = vmax.f32 %v8470, 0.0
  %v9014 = vmax.f32 %v8472, 0.0
  %v9015 = vmax.f32 %v8474, 0.0
  %v9016 = vmax.f32 %v8478, 0.0
  %v9017 = vmax.f32 %v8480, 0.0
  %v9018 = vmax.f32 %v8482, 0.0
  %v9019 = vmax.f32 %v8484, 0.0
  %v9020 = vmax.f32 %v8488, 0.0
  %v9021 = vmax.f32 %v8490, 0.0
  %v9022 = vmax.f32 %v8492, 0.0
  %v9023 = vmax.f32 %v8494, 0.0
  %v9024 = vmax.f32 %v8498, 0.0
  %v9025 = vmax.f32 %v8500, 0.0
  %v9026 = vmax.f32 %v8502, 0.0
  %v9027 = vmax.f32 %v8504, 0.0
  %v9028 = vmax.f32 %v8508, 0.0
  %v9029 = vmax.f32 %v8510, 0.0
  %v9030 = vmax.f32 %v8512, 0.0
  %v9031 = vmax.f32 %v8514, 0.0
  %v9032 = vmax.f32 %v8518, 0.0
  %v9033 = vmax.f32 %v8520, 0.0
  %v9034 = vmax.f32 %v8522, 0.0
  %v9035 = vmax.f32 %v8524, 0.0
  %v9036 = vmax.f32 %v8528, 0.0
  %v9037 = vmax.f32 %v8530, 0.0
  %v9038 = vmax.f32 %v8532, 0.0
  %v9039 = vmax.f32 %v8534, 0.0
  %v9040 = vmax.f32 %v8538, 0.0
  %v9041 = vmax.f32 %v8540, 0.0
  %v9042 = vmax.f32 %v8542, 0.0
  %v9043 = vmax.f32 %v8544, 0.0
  %v9044 = vmax.f32 %v8548, 0.0
  %v9045 = vmax.f32 %v8550, 0.0
  %v9046 = vmax.f32 %v8552, 0.0
  %v9047 = vmax.f32 %v8554, 0.0
  %v9048 = vmax.f32 %v8558, 0.0
  %v9049 = vmax.f32 %v8560, 0.0
  %v9050 = vmax.f32 %v8562, 0.0
  %v9051 = vmax.f32 %v8564, 0.0
  %v9052 = vmax.f32 %v8568, 0.0
  %v9053 = vmax.f32 %v8570, 0.0
  %v9054 = vmax.f32 %v8572, 0.0
  %v9055 = vmax.f32 %v8574, 0.0
  %v9056 = vmax.f32 %v8578, 0.0
  %v9057 = vmax.f32 %v8580, 0.0
  %v9058 = vmax.f32 %v8582, 0.0
  %v9059 = vmax.f32 %v8584, 0.0
  %v9060 = vmax.f32 %v8588, 0.0
  %v9061 = vmax.f32 %v8590, 0.0
  %v9062 = vmax.f32 %v8592, 0.0
  %v9063 = vmax.f32 %v8594, 0.0
  %v9064 = vmax.f32 %v8598, 0.0
  %v9065 = vmax.f32 %v8600, 0.0
  %v9066 = vmax.f32 %v8602, 0.0
  %v9067 = vmax.f32 %v8604, 0.0
  %v9068 = vmax.f32 %v8608, 0.0
  %v9069 = vmax.f32 %v8610, 0.0
  %v9070 = vmax.f32 %v8612, 0.0
  %v9071 = vmax.f32 %v8614, 0.0
  %v9072 = vmax.f32 %v8618, 0.0
  %v9073 = vmax.f32 %v8620, 0.0
  %v9074 = vmax.f32 %v8622, 0.0
  %v9075 = vmax.f32 %v8624, 0.0
  %v9076 = vmax.f32 %v8628, 0.0
  %v9077 = vmax.f32 %v8630, 0.0
  %v9078 = vmax.f32 %v8632, 0.0
  %v9079 = vmax.f32 %v8634, 0.0
  %v9080 = vmax.f32 %v8638, 0.0
  %v9081 = vmax.f32 %v8640, 0.0
  %v9082 = vmax.f32 %v8642, 0.0
  %v9083 = vmax.f32 %v8644, 0.0
  %v9084 = vmax.f32 %v8648, 0.0
  %v9085 = vmax.f32 %v8650, 0.0
  %v9086 = vmax.f32 %v8652, 0.0
  %v9087 = vmax.f32 %v8654, 0.0
  %v9088 = vmax.f32 %v8658, 0.0
  %v9089 = vmax.f32 %v8660, 0.0
  %v9090 = vmax.f32 %v8662, 0.0
  %v9091 = vmax.f32 %v8664, 0.0
  %v9092 = vmax.f32 %v8668, 0.0
  %v9093 = vmax.f32 %v8670, 0.0
  %v9094 = vmax.f32 %v8672, 0.0
  %v9095 = vmax.f32 %v8674, 0.0
  %v9096 = vmax.f32 %v8678, 0.0
  %v9097 = vmax.f32 %v8680, 0.0
  %v9098 = vmax.f32 %v8682, 0.0
  %v9099 = vmax.f32 %v8684, 0.0
  %v9100 = vmax.f32 %v8688, 0.0
  %v9101 = vmax.f32 %v8690, 0.0
  %v9102 = vmax.f32 %v8692, 0.0
  %v9103 = vmax.f32 %v8694, 0.0
  %v9104 = vmax.f32 %v8698, 0.0
  %v9105 = vmax.f32 %v8700, 0.0
  %v9106 = vmax.f32 %v8702, 0.0
  %v9107 = vmax.f32 %v8704, 0.0
  %v9108 = vmax.f32 %v8708, 0.0
  %v9109 = vmax.f32 %v8710, 0.0
  %v9110 = vmax.f32 %v8712, 0.0
  %v9111 = vmax.f32 %v8714, 0.0
  %v9112 = vmax.f32 %v8718, 0.0
  %v9113 = vmax.f32 %v8720, 0.0
  %v9114 = vmax.f32 %v8722, 0.0
  %v9115 = vmax.f32 %v8724, 0.0
  %v9116 = vmax.f32 %v8728, 0.0
  %v9117 = vmax.f32 %v8730, 0.0
  %v9118 = vmax.f32 %v8732, 0.0
  %v9119 = vmax.f32 %v8734, 0.0
  %v9120 = vmax.f32 %v8738, 0.0
  %v9121 = vmax.f32 %v8740, 0.0
  %v9122 = vmax.f32 %v8742, 0.0
  %v9123 = vmax.f32 %v8744, 0.0
  %v9124 = vmax.f32 %v8748, 0.0
  %v9125 = vmax.f32 %v8750, 0.0
  %v9126 = vmax.f32 %v8752, 0.0
  %v9127 = vmax.f32 %v8754, 0.0
  %v9128 = vmax.f32 %v8758, 0.0
  %v9129 = vmax.f32 %v8760, 0.0
  %v9130 = vmax.f32 %v8762, 0.0
  %v9131 = vmax.f32 %v8764, 0.0
  %v9132 = vmax.f32 %v8768, 0.0
  %v9133 = vmax.f32 %v8770, 0.0
  %v9134 = vmax.f32 %v8772, 0.0
  %v9135 = vmax.f32 %v8774, 0.0
  %v9136 = vmax.f32 %v8778, 0.0
  %v9137 = vmax.f32 %v8780, 0.0
  %v9138 = vmax.f32 %v8782, 0.0
  %v9139 = vmax.f32 %v8784, 0.0
  %v9140 = vmax.f32 %v8788, 0.0
  %v9141 = vmax.f32 %v8790, 0.0
  %v9142 = vmax.f32 %v8792, 0.0
  %v9143 = vmax.f32 %v8794, 0.0
  %v9144 = vmax.f32 %v8798, 0.0
  %v9145 = vmax.f32 %v8800, 0.0
  %v9146 = vmax.f32 %v8802, 0.0
  %v9147 = vmax.f32 %v8804, 0.0
  %v9148 = vmax.f32 %v8808, 0.0
  %v9149 = vmax.f32 %v8810, 0.0
  %v9150 = vmax.f32 %v8812, 0.0
  %v9151 = vmax.f32 %v8814, 0.0
  %v9152 = vmax.f32 %v8818, 0.0
  %v9153 = vmax.f32 %v8820, 0.0
  %v9154 = vmax.f32 %v8822, 0.0
  %v9155 = vmax.f32 %v8824, 0.0
  %v9156 = vmax.f32 %v8828, 0.0
  %v9157 = vmax.f32 %v8830, 0.0
  %v9158 = vmax.f32 %v8832, 0.0
  %v9159 = vmax.f32 %v8834, 0.0
  %v9160 = vmax.f32 %v8838, 0.0
  %v9161 = vmax.f32 %v8840, 0.0
  %v9162 = vmax.f32 %v8842, 0.0
  %v9163 = vmax.f32 %v8844, 0.0
  %v9164 = vmax.f32 %v8848, 0.0
  %v9165 = vmax.f32 %v8850, 0.0
  %v9166 = vmax.f32 %v8852, 0.0
  %v9167 = vmax.f32 %v8854, 0.0
  %v9168 = vmax.f32 %v8858, 0.0
  %v9169 = vmax.f32 %v8860, 0.0
  %v9170 = vmax.f32 %v8862, 0.0
  %v9171 = vmax.f32 %v8864, 0.0
  %v9172 = vmax.f32 %v8868, 0.0
  %v9173 = vmax.f32 %v8870, 0.0
  %v9174 = vmax.f32 %v8872, 0.0
  %v9175 = vmax.f32 %v8874, 0.0
  %v9176 = vmax.f32 %v8878, 0.0
  %v9177 = vmax.f32 %v8880, 0.0
  %v9178 = vmax.f32 %v8882, 0.0
  %v9179 = vmax.f32 %v8884, 0.0
  %v9180 = vmax.f32 %v8888, 0.0
  %v9181 = vmax.f32 %v8890, 0.0
  %v9182 = vmax.f32 %v8892, 0.0
  %v9183 = vmax.f32 %v8894, 0.0
  %v9184 = vmax.f32 %v8898, 0.0
  %v9185 = vmax.f32 %v8900, 0.0
  %v9186 = vmax.f32 %v8902, 0.0
  %v9187 = vmax.f32 %v8904, 0.0
  %v9188 = vmax.f32 %v8908, 0.0
  %v9189 = vmax.f32 %v8910, 0.0
  %v9190 = vmax.f32 %v8912, 0.0
  %v9191 = vmax.f32 %v8914, 0.0
  %v9192 = vmax.f32 %v8918, 0.0
  %v9193 = vmax.f32 %v8920, 0.0
  %v9194 = vmax.f32 %v8922, 0.0
  %v9195 = vmax.f32 %v8924, 0.0
  %v9196 = vmax.f32 %v8928, 0.0
  %v9197 = vmax.f32 %v8930, 0.0
  %v9198 = vmax.f32 %v8932, 0.0
  %v9199 = vmax.f32 %v8934, 0.0
  %v9200 = vmax.f32 %v8938, 0.0
  %v9201 = vmax.f32 %v8940, 0.0
  %v9202 = vmax.f32 %v8942, 0.0
  %v9203 = vmax.f32 %v8944, 0.0
  %v9204 = vmax.f32 %v8948, 0.0
  %v9205 = vmax.f32 %v8950, 0.0
  %v9206 = vmax.f32 %v8952, 0.0
  %v9207 = vmax.f32 %v8954, 0.0
  %v9208 = vmax.f32 %v8958, 0.0
  %v9209 = vmax.f32 %v8960, 0.0
  %v9210 = vmax.f32 %v8962, 0.0
  %v9211 = vmax.f32 %v8964, 0.0
  %v9212 = vmax.f32 %v8968, 0.0
  %v9213 = vmax.f32 %v8970, 0.0
  %v9214 = vmax.f32 %v8972, 0.0
  %v9215 = vmax.f32 %v8974, 0.0
  %v9216 = vmax.f32 %v8976, %v9036
  %v9217 = vmax.f32 %v8977, %v9037
  %v9218 = vmax.f32 %v8978, %v9038
  %v9219 = vmax.f32 %v8979, %v9039
  %v9220 = vmax.f32 %v8980, %v9040
  %v9221 = vmax.f32 %v8981, %v9041
  %v9222 = vmax.f32 %v8982, %v9042
  %v9223 = vmax.f32 %v8983, %v9043
  %v9224 = vmax.f32 %v8984, %v9044
  %v9225 = vmax.f32 %v8985, %v9045
  %v9226 = vmax.f32 %v8986, %v9046
  %v9227 = vmax.f32 %v8987, %v9047
  %v9228 = vmax.f32 %v8988, %v9048
  %v9229 = vmax.f32 %v8989, %v9049
  %v9230 = vmax.f32 %v8990, %v9050
  %v9231 = vmax.f32 %v8991, %v9051
  %v9232 = vmax.f32 %v8992, %v9052
  %v9233 = vmax.f32 %v8993, %v9053
  %v9234 = vmax.f32 %v8994, %v9054
  %v9235 = vmax.f32 %v8995, %v9055
  %v9236 = vmax.f32 %v8996, %v9056
  %v9237 = vmax.f32 %v8997, %v9057
  %v9238 = vmax.f32 %v8998, %v9058
  %v9239 = vmax.f32 %v8999, %v9059
  %v9240 = vmax.f32 %v9000, %v9060
  %v9241 = vmax.f32 %v9001, %v9061
  %v9242 = vmax.f32 %v9002, %v9062
  %v9243 = vmax.f32 %v9003, %v9063
  %v9244 = vmax.f32 %v9004, %v9064
  %v9245 = vmax.f32 %v9005, %v9065
  %v9246 = vmax.f32 %v9006, %v9066
  %v9247 = vmax.f32 %v9007, %v9067
  %v9248 = vmax.f32 %v9008, %v9068
  %v9249 = vmax.f32 %v9009, %v9069
  %v9250 = vmax.f32 %v9010, %v9070
  %v9251 = vmax.f32 %v9011, %v9071
  %v9252 = vmax.f32 %v9012, %v9072
  %v9253 = vmax.f32 %v9013, %v9073
  %v9254 = vmax.f32 %v9014, %v9074
  %v9255 = vmax.f32 %v9015, %v9075
  %v9256 = vmax.f32 %v9016, %v9076
  %v9257 = vmax.f32 %v9017, %v9077
  %v9258 = vmax.f32 %v9018, %v9078
  %v9259 = vmax.f32 %v9019, %v9079
  %v9260 = vmax.f32 %v9020, %v9080
  %v9261 = vmax.f32 %v9021, %v9081
  %v9262 = vmax.f32 %v9022, %v9082
  %v9263 = vmax.f32 %v9023, %v9083
  %v9264 = vmax.f32 %v9024, %v9084
  %v9265 = vmax.f32 %v9025, %v9085
  %v9266 = vmax.f32 %v9026, %v9086
  %v9267 = vmax.f32 %v9027, %v9087
  %v9268 = vmax.f32 %v9028, %v9088
  %v9269 = vmax.f32 %v9029, %v9089
  %v9270 = vmax.f32 %v9030, %v9090
  %v9271 = vmax.f32 %v9031, %v9091
  %v9272 = vmax.f32 %v9032, %v9092
  %v9273 = vmax.f32 %v9033, %v9093
  %v9274 = vmax.f32 %v9034, %v9094
  %v9275 = vmax.f32 %v9035, %v9095
  %v9276 = vmax.f32 %v9096, %v9156
  %v9277 = vmax.f32 %v9097, %v9157
  %v9278 = vmax.f32 %v9098, %v9158
  %v9279 = vmax.f32 %v9099, %v9159
  %v9280 = vmax.f32 %v9100, %v9160
  %v9281 = vmax.f32 %v9101, %v9161
  %v9282 = vmax.f32 %v9102, %v9162
  %v9283 = vmax.f32 %v9103, %v9163
  %v9284 = vmax.f32 %v9104, %v9164
  %v9285 = vmax.f32 %v9105, %v9165
  %v9286 = vmax.f32 %v9106, %v9166
  %v9287 = vmax.f32 %v9107, %v9167
  %v9288 = vmax.f32 %v9108, %v9168
  %v9289 = vmax.f32 %v9109, %v9169
  %v9290 = vmax.f32 %v9110, %v9170
  %v9291 = vmax.f32 %v9111, %v9171
  %v9292 = vmax.f32 %v9112, %v9172
  %v9293 = vmax.f32 %v9113, %v9173
  %v9294 = vmax.f32 %v9114, %v9174
  %v9295 = vmax.f32 %v9115, %v9175
  %v9296 = vmax.f32 %v9116, %v9176
  %v9297 = vmax.f32 %v9117, %v9177
  %v9298 = vmax.f32 %v9118, %v9178
  %v9299 = vmax.f32 %v9119, %v9179
  %v9300 = vmax.f32 %v9120, %v9180
  %v9301 = vmax.f32 %v9121, %v9181
  %v9302 = vmax.f32 %v9122, %v9182
  %v9303 = vmax.f32 %v9123, %v9183
  %v9304 = vmax.f32 %v9124, %v9184
  %v9305 = vmax.f32 %v9125, %v9185
  %v9306 = vmax.f32 %v9126, %v9186
  %v9307 = vmax.f32 %v9127, %v9187
  %v9308 = vmax.f32 %v9128, %v9188
  %v9309 = vmax.f32 %v9129, %v9189
  %v9310 = vmax.f32 %v9130, %v9190
  %v9311 = vmax.f32 %v9131, %v9191
  %v9312 = vmax.f32 %v9132, %v9192
  %v9313 = vmax.f32 %v9133, %v9193
  %v9314 = vmax.f32 %v9134, %v9194
  %v9315 = vmax.f32 %v9135, %v9195
  %v9316 = vmax.f32 %v9136, %v9196
  %v9317 = vmax.f32 %v9137, %v9197
  %v9318 = vmax.f32 %v9138, %v9198
  %v9319 = vmax.f32 %v9139, %v9199
  %v9320 = vmax.f32 %v9140, %v9200
  %v9321 = vmax.f32 %v9141, %v9201
  %v9322 = vmax.f32 %v9142, %v9202
  %v9323 = vmax.f32 %v9143, %v9203
  %v9324 = vmax.f32 %v9144, %v9204
  %v9325 = vmax.f32 %v9145, %v9205
  %v9326 = vmax.f32 %v9146, %v9206
  %v9327 = vmax.f32 %v9147, %v9207
  %v9328 = vmax.f32 %v9148, %v9208
  %v9329 = vmax.f32 %v9149, %v9209
  %v9330 = vmax.f32 %v9150, %v9210
  %v9331 = vmax.f32 %v9151, %v9211
  %v9332 = vmax.f32 %v9152, %v9212
  %v9333 = vmax.f32 %v9153, %v9213
  %v9334 = vmax.f32 %v9154, %v9214
  %v9335 = vmax.f32 %v9155, %v9215
  %v9336 = vmax.f32 %v9216, %v9276
  %v9337 = vmax.f32 %v9217, %v9277
  %v9338 = vmax.f32 %v9218, %v9278
  %v9339 = vmax.f32 %v9219, %v9279
  %v9340 = vmax.f32 %v9220, %v9280
  %v9341 = vmax.f32 %v9221, %v9281
  %v9342 = vmax.f32 %v9222, %v9282
  %v9343 = vmax.f32 %v9223, %v9283
  %v9344 = vmax.f32 %v9224, %v9284
  %v9345 = vmax.f32 %v9225, %v9285
  %v9346 = vmax.f32 %v9226, %v9286
  %v9347 = vmax.f32 %v9227, %v9287
  %v9348 = vmax.f32 %v9228, %v9288
  %v9349 = vmax.f32 %v9229, %v9289
  %v9350 = vmax.f32 %v9230, %v9290
  %v9351 = vmax.f32 %v9231, %v9291
  %v9352 = vmax.f32 %v9232, %v9292
  %v9353 = vmax.f32 %v9233, %v9293
  %v9354 = vmax.f32 %v9234, %v9294
  %v9355 = vmax.f32 %v9235, %v9295
  %v9356 = vmax.f32 %v9236, %v9296
  %v9357 = vmax.f32 %v9237, %v9297
  %v9358 = vmax.f32 %v9238, %v9298
  %v9359 = vmax.f32 %v9239, %v9299
  %v9360 = vmax.f32 %v9240, %v9300
  %v9361 = vmax.f32 %v9241, %v9301
  %v9362 = vmax.f32 %v9242, %v9302
  %v9363 = vmax.f32 %v9243, %v9303
  %v9364 = vmax.f32 %v9244, %v9304
  %v9365 = vmax.f32 %v9245, %v9305
  %v9366 = vmax.f32 %v9246, %v9306
  %v9367 = vmax.f32 %v9247, %v9307
  %v9368 = vmax.f32 %v9248, %v9308
  %v9369 = vmax.f32 %v9249, %v9309
  %v9370 = vmax.f32 %v9250, %v9310
  %v9371 = vmax.f32 %v9251, %v9311
  %v9372 = vmax.f32 %v9252, %v9312
  %v9373 = vmax.f32 %v9253, %v9313
  %v9374 = vmax.f32 %v9254, %v9314
  %v9375 = vmax.f32 %v9255, %v9315
  %v9376 = vmax.f32 %v9256, %v9316
  %v9377 = vmax.f32 %v9257, %v9317
  %v9378 = vmax.f32 %v9258, %v9318
  %v9379 = vmax.f32 %v9259, %v9319
  %v9380 = vmax.f32 %v9260, %v9320
  %v9381 = vmax.f32 %v9261, %v9321
  %v9382 = vmax.f32 %v9262, %v9322
  %v9383 = vmax.f32 %v9263, %v9323
  %v9384 = vmax.f32 %v9264, %v9324
  %v9385 = vmax.f32 %v9265, %v9325
  %v9386 = vmax.f32 %v9266, %v9326
  %v9387 = vmax.f32 %v9267, %v9327
  %v9388 = vmax.f32 %v9268, %v9328
  %v9389 = vmax.f32 %v9269, %v9329
  %v9390 = vmax.f32 %v9270, %v9330
  %v9391 = vmax.f32 %v9271, %v9331
  %v9392 = vmax.f32 %v9272, %v9332
  %v9393 = vmax.f32 %v9273, %v9333
  %v9394 = vmax.f32 %v9274, %v9334
  %v9395 = vmax.f32 %v9275, %v9335
  %v9396 = vpack.c.bf16 %v9338, %v9336
  %v9397 = vpack.c.bf16 %v9339, %v9337
  %v9398 = vpack.c.bf16 %v9342, %v9340
  %v9399 = vpack.c.bf16 %v9343, %v9341
  %v9400 = vpack.c.bf16 %v9346, %v9344
  %v9401 = vpack.c.bf16 %v9347, %v9345
  %v9402 = vpack.c.bf16 %v9350, %v9348
  %v9403 = vpack.c.bf16 %v9351, %v9349
  %v9404 = vpack.c.bf16 %v9354, %v9352
  %v9405 = vpack.c.bf16 %v9355, %v9353
  %v9406 = vpack.c.bf16 %v9358, %v9356
  %v9407 = vpack.c.bf16 %v9359, %v9357
  %v9408 = vpack.c.bf16 %v9362, %v9360
  %v9409 = vpack.c.bf16 %v9363, %v9361
  %v9410 = vpack.c.bf16 %v9366, %v9364
  %v9411 = vpack.c.bf16 %v9367, %v9365
  %v9412 = vpack.c.bf16 %v9370, %v9368
  %v9413 = vpack.c.bf16 %v9371, %v9369
  %v9414 = vpack.c.bf16 %v9374, %v9372
  %v9415 = vpack.c.bf16 %v9375, %v9373
  %v9416 = vpack.c.bf16 %v9378, %v9376
  %v9417 = vpack.c.bf16 %v9379, %v9377
  %v9418 = vpack.c.bf16 %v9382, %v9380
  %v9419 = vpack.c.bf16 %v9383, %v9381
  %v9420 = vpack.c.bf16 %v9386, %v9384
  %v9421 = vpack.c.bf16 %v9387, %v9385
  %v9422 = vpack.c.bf16 %v9390, %v9388
  %v9423 = vpack.c.bf16 %v9391, %v9389
  %v9424 = vpack.c.bf16 %v9394, %v9392
  %v9425 = vpack.c.bf16 %v9395, %v9393
  %9426 = vst [vmem:[#allocation2 + $0x4b0] sm:$0xff] %v9396
  %9427 = vst [vmem:[#allocation2 + $0x4b8] sm:$0xff] %v9397
  %9428 = vst [vmem:[#allocation2 + $0x4c0] sm:$0xff] %v9398
  %9429 = vst [vmem:[#allocation2 + $0x4c8] sm:$0xff] %v9399
  %9430 = vst [vmem:[#allocation2 + $0x4d0] sm:$0xff] %v9400
  %9431 = vst [vmem:[#allocation2 + $0x4d8] sm:$0xff] %v9401
  %9432 = vst [vmem:[#allocation2 + $0x4e0] sm:$0xff] %v9402
  %9433 = vst [vmem:[#allocation2 + $0x4e8] sm:$0xff] %v9403
  %9434 = vst [vmem:[#allocation2 + $0x4f0] sm:$0xff] %v9404
  %9435 = vst [vmem:[#allocation2 + $0x4f8] sm:$0xff] %v9405
  %9436 = vst [vmem:[#allocation2 + $0x500] sm:$0xff] %v9406
  %9437 = vst [vmem:[#allocation2 + $0x508] sm:$0xff] %v9407
  %9438 = vst [vmem:[#allocation2 + $0x510] sm:$0xff] %v9408
  %9439 = vst [vmem:[#allocation2 + $0x518] sm:$0xff] %v9409
  %9440 = vst [vmem:[#allocation2 + $0x520] sm:$0xff] %v9410
  %9441 = vst [vmem:[#allocation2 + $0x528] sm:$0xff] %v9411
  %9442 = vst [vmem:[#allocation2 + $0x530] sm:$0xff] %v9412
  %9443 = vst [vmem:[#allocation2 + $0x538] sm:$0xff] %v9413
  %9444 = vst [vmem:[#allocation2 + $0x540] sm:$0xff] %v9414
  %9445 = vst [vmem:[#allocation2 + $0x548] sm:$0xff] %v9415
  %9446 = vst [vmem:[#allocation2 + $0x550] sm:$0xff] %v9416
  %9447 = vst [vmem:[#allocation2 + $0x558] sm:$0xff] %v9417
  %9448 = vst [vmem:[#allocation2 + $0x560] sm:$0xff] %v9418
  %9449 = vst [vmem:[#allocation2 + $0x568] sm:$0xff] %v9419
  %9450 = vst [vmem:[#allocation2 + $0x570] sm:$0xff] %v9420
  %9451 = vst [vmem:[#allocation2 + $0x578] sm:$0xff] %v9421
  %9452 = vst [vmem:[#allocation2 + $0x580] sm:$0xff] %v9422
  %9453 = vst [vmem:[#allocation2 + $0x588] sm:$0xff] %v9423
  %9454 = vst [vmem:[#allocation2 + $0x590] sm:$0xff] %v9424
  %9455 = vst [vmem:[#allocation2 + $0x598] sm:$0xff] %v9425
  %v9456 = vld [vmem:[#allocation2] sm:$0xff]
  %v9457 = vld [vmem:[#allocation2 + $0x8] sm:$0xff]
  %v9458 = vld [vmem:[#allocation2 + $0x10] sm:$0xff]
  %v9459 = vld [vmem:[#allocation2 + $0x18] sm:$0xff]
  %v9460 = vld [vmem:[#allocation2 + $0x20] sm:$0xff]
  %v9461 = vld [vmem:[#allocation2 + $0x28] sm:$0xff]
  %v9462 = vld [vmem:[#allocation2 + $0x30] sm:$0xff]
  %v9463 = vld [vmem:[#allocation2 + $0x38] sm:$0xff]
  %v9464 = vld [vmem:[#allocation2 + $0x40] sm:$0xff]
  %v9465 = vld [vmem:[#allocation2 + $0x48] sm:$0xff]
  %v9466 = vld [vmem:[#allocation2 + $0x50] sm:$0xff]
  %v9467 = vld [vmem:[#allocation2 + $0x58] sm:$0xff]
  %v9468 = vld [vmem:[#allocation2 + $0x60] sm:$0xff]
  %v9469 = vld [vmem:[#allocation2 + $0x68] sm:$0xff]
  %v9470 = vld [vmem:[#allocation2 + $0x70] sm:$0xff]
  %v9471 = vld [vmem:[#allocation2 + $0x78] sm:$0xff]
  %v9472 = vld [vmem:[#allocation2 + $0x80] sm:$0xff]
  %v9473 = vld [vmem:[#allocation2 + $0x88] sm:$0xff]
  %v9474 = vld [vmem:[#allocation2 + $0x90] sm:$0xff]
  %v9475 = vld [vmem:[#allocation2 + $0x98] sm:$0xff]
  %v9476 = vld [vmem:[#allocation2 + $0xa0] sm:$0xff]
  %v9477 = vld [vmem:[#allocation2 + $0xa8] sm:$0xff]
  %v9478 = vld [vmem:[#allocation2 + $0xb0] sm:$0xff]
  %v9479 = vld [vmem:[#allocation2 + $0xb8] sm:$0xff]
  %v9480 = vld [vmem:[#allocation2 + $0xc0] sm:$0xff]
  %v9481 = vld [vmem:[#allocation2 + $0xc8] sm:$0xff]
  %v9482 = vld [vmem:[#allocation2 + $0xd0] sm:$0xff]
  %v9483 = vld [vmem:[#allocation2 + $0xd8] sm:$0xff]
  %v9484 = vld [vmem:[#allocation2 + $0xe0] sm:$0xff]
  %v9485 = vld [vmem:[#allocation2 + $0xe8] sm:$0xff]
  %v9486 = vld [vmem:[#allocation2 + $0xf0] sm:$0xff]
  %v9487 = vld [vmem:[#allocation2 + $0xf8] sm:$0xff]
  %v9488 = vld [vmem:[#allocation2 + $0x100] sm:$0xff]
  %v9489 = vld [vmem:[#allocation2 + $0x108] sm:$0xff]
  %v9490 = vld [vmem:[#allocation2 + $0x110] sm:$0xff]
  %v9491 = vld [vmem:[#allocation2 + $0x118] sm:$0xff]
  %v9492 = vld [vmem:[#allocation2 + $0x120] sm:$0xff]
  %v9493 = vld [vmem:[#allocation2 + $0x128] sm:$0xff]
  %v9494 = vld [vmem:[#allocation2 + $0x130] sm:$0xff]
  %v9495 = vld [vmem:[#allocation2 + $0x138] sm:$0xff]
  %v9496 = vld [vmem:[#allocation2 + $0x140] sm:$0xff]
  %v9497 = vld [vmem:[#allocation2 + $0x148] sm:$0xff]
  %v9498 = vld [vmem:[#allocation2 + $0x150] sm:$0xff]
  %v9499 = vld [vmem:[#allocation2 + $0x158] sm:$0xff]
  %v9500 = vld [vmem:[#allocation2 + $0x160] sm:$0xff]
  %v9501 = vld [vmem:[#allocation2 + $0x168] sm:$0xff]
  %v9502 = vld [vmem:[#allocation2 + $0x170] sm:$0xff]
  %v9503 = vld [vmem:[#allocation2 + $0x178] sm:$0xff]
  %v9504 = vld [vmem:[#allocation2 + $0x180] sm:$0xff]
  %v9505 = vld [vmem:[#allocation2 + $0x188] sm:$0xff]
  %v9506 = vld [vmem:[#allocation2 + $0x190] sm:$0xff]
  %v9507 = vld [vmem:[#allocation2 + $0x198] sm:$0xff]
  %v9508 = vld [vmem:[#allocation2 + $0x1a0] sm:$0xff]
  %v9509 = vld [vmem:[#allocation2 + $0x1a8] sm:$0xff]
  %v9510 = vld [vmem:[#allocation2 + $0x1b0] sm:$0xff]
  %v9511 = vld [vmem:[#allocation2 + $0x1b8] sm:$0xff]
  %v9512 = vld [vmem:[#allocation2 + $0x1c0] sm:$0xff]
  %v9513 = vld [vmem:[#allocation2 + $0x1c8] sm:$0xff]
  %v9514 = vld [vmem:[#allocation2 + $0x1d0] sm:$0xff]
  %v9515 = vld [vmem:[#allocation2 + $0x1d8] sm:$0xff]
  %v9516 = vld [vmem:[#allocation2 + $0x1e0] sm:$0xff]
  %v9517 = vld [vmem:[#allocation2 + $0x1e8] sm:$0xff]
  %v9518 = vld [vmem:[#allocation2 + $0x1f0] sm:$0xff]
  %v9519 = vld [vmem:[#allocation2 + $0x1f8] sm:$0xff]
  %v9520 = vld [vmem:[#allocation2 + $0x200] sm:$0xff]
  %v9521 = vld [vmem:[#allocation2 + $0x208] sm:$0xff]
  %v9522 = vld [vmem:[#allocation2 + $0x210] sm:$0xff]
  %v9523 = vld [vmem:[#allocation2 + $0x218] sm:$0xff]
  %v9524 = vld [vmem:[#allocation2 + $0x220] sm:$0xff]
  %v9525 = vld [vmem:[#allocation2 + $0x228] sm:$0xff]
  %v9526 = vld [vmem:[#allocation2 + $0x230] sm:$0xff]
  %v9527 = vld [vmem:[#allocation2 + $0x238] sm:$0xff]
  %v9528 = vld [vmem:[#allocation2 + $0x240] sm:$0xff]
  %v9529 = vld [vmem:[#allocation2 + $0x248] sm:$0xff]
  %v9530 = vld [vmem:[#allocation2 + $0x250] sm:$0xff]
  %v9531 = vld [vmem:[#allocation2 + $0x258] sm:$0xff]
  %v9532 = vld [vmem:[#allocation2 + $0x260] sm:$0xff]
  %v9533 = vld [vmem:[#allocation2 + $0x268] sm:$0xff]
  %v9534 = vld [vmem:[#allocation2 + $0x270] sm:$0xff]
  %v9535 = vld [vmem:[#allocation2 + $0x278] sm:$0xff]
  %v9536 = vld [vmem:[#allocation2 + $0x280] sm:$0xff]
  %v9537 = vld [vmem:[#allocation2 + $0x288] sm:$0xff]
  %v9538 = vld [vmem:[#allocation2 + $0x290] sm:$0xff]
  %v9539 = vld [vmem:[#allocation2 + $0x298] sm:$0xff]
  %v9540 = vld [vmem:[#allocation2 + $0x2a0] sm:$0xff]
  %v9541 = vld [vmem:[#allocation2 + $0x2a8] sm:$0xff]
  %v9542 = vld [vmem:[#allocation2 + $0x2b0] sm:$0xff]
  %v9543 = vld [vmem:[#allocation2 + $0x2b8] sm:$0xff]
  %v9544 = vld [vmem:[#allocation2 + $0x2c0] sm:$0xff]
  %v9545 = vld [vmem:[#allocation2 + $0x2c8] sm:$0xff]
  %v9606 = vunpack.c.l.b16 %v147
  %v9607 = vunpack.c.h.b16 %v147
  %v9608 = vunpack.c.l.b16 %v148
  %v9609 = vunpack.c.h.b16 %v148
  %v9610 = vunpack.c.l.b16 %v149
  %v9611 = vunpack.c.h.b16 %v149
  %v9612 = vunpack.c.l.b16 %v150
  %v9613 = vunpack.c.h.b16 %v150
  %v9614 = vunpack.c.l.b16 %v151
  %v9615 = vunpack.c.h.b16 %v151
  %v9616 = vunpack.c.l.b16 %v152
  %v9617 = vunpack.c.h.b16 %v152
  %v9618 = vunpack.c.l.b16 %v153
  %v9619 = vunpack.c.h.b16 %v153
  %v9620 = vunpack.c.l.b16 %v154
  %v9621 = vunpack.c.h.b16 %v154
  %v9622 = vunpack.c.l.b16 %v155
  %v9623 = vunpack.c.h.b16 %v155
  %v9624 = vunpack.c.l.b16 %v156
  %v9625 = vunpack.c.h.b16 %v156
  %v9626 = vunpack.c.l.b16 %v157
  %v9627 = vunpack.c.h.b16 %v157
  %v9628 = vunpack.c.l.b16 %v158
  %v9629 = vunpack.c.h.b16 %v158
  %v9630 = vunpack.c.l.b16 %v159
  %v9631 = vunpack.c.h.b16 %v159
  %v9632 = vunpack.c.l.b16 %v160
  %v9633 = vunpack.c.h.b16 %v160
  %v9634 = vunpack.c.l.b16 %v161
  %v9635 = vunpack.c.h.b16 %v161
  %v9636 = vunpack.c.l.b16 %v162
  %v9637 = vunpack.c.h.b16 %v162
  %v9638 = vunpack.c.l.b16 %v163
  %v9639 = vunpack.c.h.b16 %v163
  %v9640 = vunpack.c.l.b16 %v164
  %v9641 = vunpack.c.h.b16 %v164
  %v9642 = vunpack.c.l.b16 %v165
  %v9643 = vunpack.c.h.b16 %v165
  %v9644 = vunpack.c.l.b16 %v166
  %v9645 = vunpack.c.h.b16 %v166
  %v9646 = vunpack.c.l.b16 %v167
  %v9647 = vunpack.c.h.b16 %v167
  %v9648 = vunpack.c.l.b16 %v168
  %v9649 = vunpack.c.h.b16 %v168
  %v9650 = vunpack.c.l.b16 %v169
  %v9651 = vunpack.c.h.b16 %v169
  %v9652 = vunpack.c.l.b16 %v170
  %v9653 = vunpack.c.h.b16 %v170
  %v9654 = vunpack.c.l.b16 %v171
  %v9655 = vunpack.c.h.b16 %v171
  %v9656 = vunpack.c.l.b16 %v172
  %v9657 = vunpack.c.h.b16 %v172
  %v9658 = vunpack.c.l.b16 %v173
  %v9659 = vunpack.c.h.b16 %v173
  %v9660 = vunpack.c.l.b16 %v174
  %v9661 = vunpack.c.h.b16 %v174
  %v9662 = vunpack.c.l.b16 %v175
  %v9663 = vunpack.c.h.b16 %v175
  %v9664 = vunpack.c.l.b16 %v176
  %v9665 = vunpack.c.h.b16 %v176
  %v9666 = vunpack.c.l.b16 %v177
  %v9667 = vunpack.c.h.b16 %v177
  %v9668 = vunpack.c.l.b16 %v178
  %v9669 = vunpack.c.h.b16 %v178
  %v9670 = vunpack.c.l.b16 %v179
  %v9671 = vunpack.c.h.b16 %v179
  %v9672 = vunpack.c.l.b16 %v180
  %v9673 = vunpack.c.h.b16 %v180
  %v9674 = vunpack.c.l.b16 %v181
  %v9675 = vunpack.c.h.b16 %v181
  %v9676 = vunpack.c.l.b16 %v182
  %v9677 = vunpack.c.h.b16 %v182
  %v9678 = vunpack.c.l.b16 %v183
  %v9679 = vunpack.c.h.b16 %v183
  %v9680 = vunpack.c.l.b16 %v184
  %v9681 = vunpack.c.h.b16 %v184
  %v9682 = vunpack.c.l.b16 %v185
  %v9683 = vunpack.c.h.b16 %v185
  %v9684 = vunpack.c.l.b16 %v186
  %v9685 = vunpack.c.h.b16 %v186
  %v9686 = vunpack.c.l.b16 %v187
  %v9687 = vunpack.c.h.b16 %v187
  %v9688 = vunpack.c.l.b16 %v188
  %v9689 = vunpack.c.h.b16 %v188
  %v9690 = vunpack.c.l.b16 %v189
  %v9691 = vunpack.c.h.b16 %v189
  %v9692 = vunpack.c.l.b16 %v190
  %v9693 = vunpack.c.h.b16 %v190
  %v9694 = vunpack.c.l.b16 %v191
  %v9695 = vunpack.c.h.b16 %v191
  %v9696 = vunpack.c.l.b16 %v192
  %v9697 = vunpack.c.h.b16 %v192
  %v9698 = vunpack.c.l.b16 %v193
  %v9699 = vunpack.c.h.b16 %v193
  %v9700 = vunpack.c.l.b16 %v194
  %v9701 = vunpack.c.h.b16 %v194
  %v9702 = vunpack.c.l.b16 %v195
  %v9703 = vunpack.c.h.b16 %v195
  %v9704 = vunpack.c.l.b16 %v196
  %v9705 = vunpack.c.h.b16 %v196
  %v9706 = vunpack.c.l.b16 %v197
  %v9707 = vunpack.c.h.b16 %v197
  %v9708 = vunpack.c.l.b16 %v198
  %v9709 = vunpack.c.h.b16 %v198
  %v9710 = vunpack.c.l.b16 %v199
  %v9711 = vunpack.c.h.b16 %v199
  %v9712 = vunpack.c.l.b16 %v200
  %v9713 = vunpack.c.h.b16 %v200
  %v9714 = vunpack.c.l.b16 %v201
  %v9715 = vunpack.c.h.b16 %v201
  %v9716 = vunpack.c.l.b16 %v202
  %v9717 = vunpack.c.h.b16 %v202
  %v9718 = vunpack.c.l.b16 %v203
  %v9719 = vunpack.c.h.b16 %v203
  %v9720 = vunpack.c.l.b16 %v204
  %v9721 = vunpack.c.h.b16 %v204
  %v9722 = vunpack.c.l.b16 %v205
  %v9723 = vunpack.c.h.b16 %v205
  %v9724 = vunpack.c.l.b16 %v206
  %v9725 = vunpack.c.h.b16 %v206
  %v9726 = vpack.c.b16 %v9612, %v9606
  %v9727 = vpack.c.b16 %v9613, %v9607
  %v9728 = vpack.c.b16 %v9614, %v9608
  %v9729 = vpack.c.b16 %v9615, %v9609
  %v9730 = vpack.c.b16 %v9616, %v9610
  %v9731 = vpack.c.b16 %v9617, %v9611
  %v9732 = vpack.c.b16 %v9624, %v9618
  %v9733 = vpack.c.b16 %v9625, %v9619
  %v9734 = vpack.c.b16 %v9626, %v9620
  %v9735 = vpack.c.b16 %v9627, %v9621
  %v9736 = vpack.c.b16 %v9628, %v9622
  %v9737 = vpack.c.b16 %v9629, %v9623
  %v9738 = vpack.c.b16 %v9636, %v9630
  %v9739 = vpack.c.b16 %v9637, %v9631
  %v9740 = vpack.c.b16 %v9638, %v9632
  %v9741 = vpack.c.b16 %v9639, %v9633
  %v9742 = vpack.c.b16 %v9640, %v9634
  %v9743 = vpack.c.b16 %v9641, %v9635
  %v9744 = vpack.c.b16 %v9648, %v9642
  %v9745 = vpack.c.b16 %v9649, %v9643
  %v9746 = vpack.c.b16 %v9650, %v9644
  %v9747 = vpack.c.b16 %v9651, %v9645
  %v9748 = vpack.c.b16 %v9652, %v9646
  %v9749 = vpack.c.b16 %v9653, %v9647
  %v9750 = vpack.c.b16 %v9660, %v9654
  %v9751 = vpack.c.b16 %v9661, %v9655
  %v9752 = vpack.c.b16 %v9662, %v9656
  %v9753 = vpack.c.b16 %v9663, %v9657
  %v9754 = vpack.c.b16 %v9664, %v9658
  %v9755 = vpack.c.b16 %v9665, %v9659
  %v9756 = vpack.c.b16 %v9672, %v9666
  %v9757 = vpack.c.b16 %v9673, %v9667
  %v9758 = vpack.c.b16 %v9674, %v9668
  %v9759 = vpack.c.b16 %v9675, %v9669
  %v9760 = vpack.c.b16 %v9676, %v9670
  %v9761 = vpack.c.b16 %v9677, %v9671
  %v9762 = vpack.c.b16 %v9684, %v9678
  %v9763 = vpack.c.b16 %v9685, %v9679
  %v9764 = vpack.c.b16 %v9686, %v9680
  %v9765 = vpack.c.b16 %v9687, %v9681
  %v9766 = vpack.c.b16 %v9688, %v9682
  %v9767 = vpack.c.b16 %v9689, %v9683
  %v9768 = vpack.c.b16 %v9696, %v9690
  %v9769 = vpack.c.b16 %v9697, %v9691
  %v9770 = vpack.c.b16 %v9698, %v9692
  %v9771 = vpack.c.b16 %v9699, %v9693
  %v9772 = vpack.c.b16 %v9700, %v9694
  %v9773 = vpack.c.b16 %v9701, %v9695
  %v9774 = vpack.c.b16 %v9708, %v9702
  %v9775 = vpack.c.b16 %v9709, %v9703
  %v9776 = vpack.c.b16 %v9710, %v9704
  %v9777 = vpack.c.b16 %v9711, %v9705
  %v9778 = vpack.c.b16 %v9712, %v9706
  %v9779 = vpack.c.b16 %v9713, %v9707
  %v9780 = vpack.c.b16 %v9720, %v9714
  %v9781 = vpack.c.b16 %v9721, %v9715
  %v9782 = vpack.c.b16 %v9722, %v9716
  %v9783 = vpack.c.b16 %v9723, %v9717
  %v9784 = vpack.c.b16 %v9724, %v9718
  %v9785 = vpack.c.b16 %v9725, %v9719
  %vm9836 = vcmask 654336
  %v9838 = vsel %vm9836, %v9731, 0
  %v9841 = vsel %vm9836, %v9737, 0
  %v9844 = vsel %vm9836, %v9743, 0
  %v9847 = vsel %vm9836, %v9749, 0
  %v9850 = vsel %vm9836, %v9755, 0
  %v9853 = vsel %vm9836, %v9761, 0
  %v9856 = vsel %vm9836, %v9767, 0
  %v9859 = vsel %vm9836, %v9773, 0
  %v9862 = vsel %vm9836, %v9779, 0
  %v9865 = vsel %vm9836, %v9785, 0
  %9867 = vmatprep.subr.bf16.mxu0 %v9457
  %9868 = vmatpush1.bf16.msra.mxu0 %v9456
  %9869 = vmatprep.subr.bf16.mxu0 %v9459
  %9870 = vmatpush1.bf16.msra.mxu0 %v9458
  %9871 = vmatprep.subr.bf16.mxu0 %v9461
  %9872 = vmatpush1.bf16.msra.mxu0 %v9460
  %9873 = vmatprep.subr.bf16.mxu0 %v9463
  %9874 = vmatpush1.bf16.msra.mxu0 %v9462
  %9875 = vmatprep.subr.bf16.mxu0 %v9465
  %9876 = vmatpush1.bf16.msra.mxu0 %v9464
  %9877 = vmatprep.subr.bf16.mxu0 %v9467
  %9878 = vmatpush1.bf16.msra.mxu0 %v9466
  %9879 = vmatprep.subr.bf16.mxu0 %v9469
  %9880 = vmatpush1.bf16.msra.mxu0 %v9468
  %9881 = vmatprep.subr.bf16.mxu0 %v9471
  %9882 = vmatpush1.bf16.msra.mxu0 %v9470
  %9883 = vmatprep.subr.bf16.mxu0 %v9473
  %9884 = vmatpush1.bf16.msra.mxu0 %v9472
  %9885 = vmatprep.subr.bf16.mxu0 %v9475
  %9886 = vmatpush1.bf16.msra.mxu0 %v9474
  %9887 = vmatprep.subr.bf16.mxu0 %v9477
  %9888 = vmatpush1.bf16.msra.mxu0 %v9476
  %9889 = vmatprep.subr.bf16.mxu0 %v9479
  %9890 = vmatpush1.bf16.msra.mxu0 %v9478
  %9891 = vmatprep.subr.bf16.mxu0 %v9481
  %9892 = vmatpush1.bf16.msra.mxu0 %v9480
  %9893 = vmatprep.subr.bf16.mxu0 %v9483
  %9894 = vmatpush1.bf16.msra.mxu0 %v9482
  %9895 = vmatprep.subr.bf16.mxu0 %v9485
  %9896 = vmatpush1.bf16.msra.mxu0 %v9484
  %9897 = vmatprep.subr.bf16.mxu0 %v9487
  %9898 = vmatpush1.bf16.msra.mxu0 %v9486
  %9899 = vmatprep.mubr.bf16.mxu0 %v9727
  %9900 = vmatmul.mubr.bf16.gmra.mrb[0].mxu0 %v9726
  %v9901 = vpop.f32.mrb[0].mxu0
  %v9902 = vadd.f32 %v952, %v9901
  %v9903 = vpop.f32.mrb[0].mxu0
  %v9904 = vadd.f32 %v952, %v9903
  %v9905 = vpop.f32.mrb[0].mxu0
  %v9906 = vadd.f32 %v957, %v9905
  %v9907 = vpop.f32.mrb[0].mxu0
  %v9908 = vadd.f32 %v957, %v9907
  %9909 = vmatprep.mubr.bf16.mxu0 %v9733
  %9910 = vmatmul.mubr.bf16.gmra.mrb[0].mxu0 %v9732
  %v9911 = vpop.f32.mrb[0].mxu0
  %v9912 = vadd.f32 %v962, %v9911
  %v9913 = vpop.f32.mrb[0].mxu0
  %v9914 = vadd.f32 %v962, %v9913
  %v9915 = vpop.f32.mrb[0].mxu0
  %v9916 = vadd.f32 %v967, %v9915
  %v9917 = vpop.f32.mrb[0].mxu0
  %v9918 = vadd.f32 %v967, %v9917
  %9919 = vmatprep.mubr.bf16.mxu0 %v9739
  %9920 = vmatmul.mubr.bf16.gmra.mrb[0].mxu0 %v9738
  %v9921 = vpop.f32.mrb[0].mxu0
  %v9922 = vadd.f32 %v972, %v9921
  %v9923 = vpop.f32.mrb[0].mxu0
  %v9924 = vadd.f32 %v972, %v9923
  %v9925 = vpop.f32.mrb[0].mxu0
  %v9926 = vadd.f32 %v977, %v9925
  %v9927 = vpop.f32.mrb[0].mxu0
  %v9928 = vadd.f32 %v977, %v9927
  %9929 = vmatprep.mubr.bf16.mxu0 %v9745
  %9930 = vmatmul.mubr.bf16.gmra.mrb[0].mxu0 %v9744
  %v9931 = vpop.f32.mrb[0].mxu0
  %v9932 = vadd.f32 %v982, %v9931
  %v9933 = vpop.f32.mrb[0].mxu0
  %v9934 = vadd.f32 %v982, %v9933
  %v9935 = vpop.f32.mrb[0].mxu0
  %v9936 = vadd.f32 %v987, %v9935
  %v9937 = vpop.f32.mrb[0].mxu0
  %v9938 = vadd.f32 %v987, %v9937
  %9939 = vmatprep.mubr.bf16.mxu0 %v9751
  %9940 = vmatmul.mubr.bf16.gmra.mrb[0].mxu0 %v9750
  %v9941 = vpop.f32.mrb[0].mxu0
  %v9942 = vadd.f32 %v992, %v9941
  %v9943 = vpop.f32.mrb[0].mxu0
  %v9944 = vadd.f32 %v992, %v9943
  %v9945 = vpop.f32.mrb[0].mxu0
  %v9946 = vadd.f32 %v997, %v9945
  %v9947 = vpop.f32.mrb[0].mxu0
  %v9948 = vadd.f32 %v997, %v9947
  %9949 = vmatprep.mubr.bf16.mxu0 %v9757
  %9950 = vmatmul.mubr.bf16.gmra.mrb[0].mxu0 %v9756
  %v9951 = vpop.f32.mrb[0].mxu0
  %v9952 = vadd.f32 %v1002, %v9951
  %v9953 = vpop.f32.mrb[0].mxu0
  %v9954 = vadd.f32 %v1002, %v9953
  %v9955 = vpop.f32.mrb[0].mxu0
  %v9956 = vadd.f32 %v1007, %v9955
  %v9957 = vpop.f32.mrb[0].mxu0
  %v9958 = vadd.f32 %v1007, %v9957
  %9959 = vmatprep.mubr.bf16.mxu0 %v9763
  %9960 = vmatmul.mubr.bf16.gmra.mrb[0].mxu0 %v9762
  %v9961 = vpop.f32.mrb[0].mxu0
  %v9962 = vadd.f32 %v1012, %v9961
  %v9963 = vpop.f32.mrb[0].mxu0
  %v9964 = vadd.f32 %v1012, %v9963
  %v9965 = vpop.f32.mrb[0].mxu0
  %v9966 = vadd.f32 %v1017, %v9965
  %v9967 = vpop.f32.mrb[0].mxu0
  %v9968 = vadd.f32 %v1017, %v9967
  %9969 = vmatprep.mubr.bf16.mxu0 %v9769
  %9970 = vmatmul.mubr.bf16.gmra.mrb[0].mxu0 %v9768
  %v9971 = vpop.f32.mrb[0].mxu0
  %v9972 = vadd.f32 %v1022, %v9971
  %v9973 = vpop.f32.mrb[0].mxu0
  %v9974 = vadd.f32 %v1022, %v9973
  %v9975 = vpop.f32.mrb[0].mxu0
  %v9976 = vadd.f32 %v1027, %v9975
  %v9977 = vpop.f32.mrb[0].mxu0
  %v9978 = vadd.f32 %v1027, %v9977
  %9979 = vmatprep.mubr.bf16.mxu0 %v9775
  %9980 = vmatmul.mubr.bf16.gmra.mrb[0].mxu0 %v9774
  %v9981 = vpop.f32.mrb[0].mxu0
  %v9982 = vadd.f32 %v1032, %v9981
  %v9983 = vpop.f32.mrb[0].mxu0
  %v9984 = vadd.f32 %v1032, %v9983
  %v9985 = vpop.f32.mrb[0].mxu0
  %v9986 = vadd.f32 %v1037, %v9985
  %v9987 = vpop.f32.mrb[0].mxu0
  %v9988 = vadd.f32 %v1037, %v9987
  %9989 = vmatprep.mubr.bf16.mxu0 %v9781
  %9990 = vmatmul.mubr.bf16.gmra.mrb[0].mxu0 %v9780
  %v9991 = vpop.f32.mrb[0].mxu0
  %v9992 = vadd.f32 %v1042, %v9991
  %v9993 = vpop.f32.mrb[0].mxu0
  %v9994 = vadd.f32 %v1042, %v9993
  %v9995 = vpop.f32.mrb[0].mxu0
  %v9996 = vadd.f32 %v1047, %v9995
  %v9997 = vpop.f32.mrb[0].mxu0
  %v9998 = vadd.f32 %v1047, %v9997
  %9999 = vdwg.mxu0
  %10000 = vmatprep.subr.bf16.mxu0 %v9489
  %10001 = vmatpush1.bf16.msra.mxu0 %v9488
  %10002 = vmatprep.subr.bf16.mxu0 %v9491
  %10003 = vmatpush1.bf16.msra.mxu0 %v9490
  %10004 = vmatprep.subr.bf16.mxu0 %v9493
  %10005 = vmatpush1.bf16.msra.mxu0 %v9492
  %10006 = vmatprep.subr.bf16.mxu0 %v9495
  %10007 = vmatpush1.bf16.msra.mxu0 %v9494
  %10008 = vmatprep.subr.bf16.mxu0 %v9497
  %10009 = vmatpush1.bf16.msra.mxu0 %v9496
  %10010 = vmatprep.subr.bf16.mxu0 %v9499
  %10011 = vmatpush1.bf16.msra.mxu0 %v9498
  %10012 = vmatprep.subr.bf16.mxu0 %v9501
  %10013 = vmatpush1.bf16.msra.mxu0 %v9500
  %10014 = vmatprep.subr.bf16.mxu0 %v9503
  %10015 = vmatpush1.bf16.msra.mxu0 %v9502
  %10016 = vmatprep.subr.bf16.mxu0 %v9505
  %10017 = vmatpush1.bf16.msra.mxu0 %v9504
  %10018 = vmatprep.subr.bf16.mxu0 %v9507
  %10019 = vmatpush1.bf16.msra.mxu0 %v9506
  %10020 = vmatprep.subr.bf16.mxu0 %v9509
  %10021 = vmatpush1.bf16.msra.mxu0 %v9508
  %10022 = vmatprep.subr.bf16.mxu0 %v9511
  %10023 = vmatpush1.bf16.msra.mxu0 %v9510
  %10024 = vmatprep.subr.bf16.mxu0 %v9513
  %10025 = vmatpush1.bf16.msra.mxu0 %v9512
  %10026 = vmatprep.subr.bf16.mxu0 %v9515
  %10027 = vmatpush1.bf16.msra.mxu0 %v9514
  %10028 = vmatprep.subr.bf16.mxu0 %v9517
  %10029 = vmatpush1.bf16.msra.mxu0 %v9516
  %10030 = vmatprep.subr.bf16.mxu0 %v9519
  %10031 = vmatpush1.bf16.msra.mxu0 %v9518
  %10032 = vmatprep.mubr.bf16.mxu0 %v9729
  %10033 = vmatmul.mubr.bf16.gmra.mrb[0].mxu0 %v9728
  %v10034 = vpop.f32.mrb[0].mxu0
  %v10035 = vadd.f32 %v9902, %v10034
  %v10036 = vpop.f32.mrb[0].mxu0
  %v10037 = vadd.f32 %v9904, %v10036
  %v10038 = vpop.f32.mrb[0].mxu0
  %v10039 = vadd.f32 %v9906, %v10038
  %v10040 = vpop.f32.mrb[0].mxu0
  %v10041 = vadd.f32 %v9908, %v10040
  %10042 = vmatprep.mubr.bf16.mxu0 %v9735
  %10043 = vmatmul.mubr.bf16.gmra.mrb[0].mxu0 %v9734
  %v10044 = vpop.f32.mrb[0].mxu0
  %v10045 = vadd.f32 %v9912, %v10044
  %v10046 = vpop.f32.mrb[0].mxu0
  %v10047 = vadd.f32 %v9914, %v10046
  %v10048 = vpop.f32.mrb[0].mxu0
  %v10049 = vadd.f32 %v9916, %v10048
  %v10050 = vpop.f32.mrb[0].mxu0
  %v10051 = vadd.f32 %v9918, %v10050
  %10052 = vmatprep.mubr.bf16.mxu0 %v9741
  %10053 = vmatmul.mubr.bf16.gmra.mrb[0].mxu0 %v9740
  %v10054 = vpop.f32.mrb[0].mxu0
  %v10055 = vadd.f32 %v9922, %v10054
  %v10056 = vpop.f32.mrb[0].mxu0
  %v10057 = vadd.f32 %v9924, %v10056
  %v10058 = vpop.f32.mrb[0].mxu0
  %v10059 = vadd.f32 %v9926, %v10058
  %v10060 = vpop.f32.mrb[0].mxu0
  %v10061 = vadd.f32 %v9928, %v10060
  %10062 = vmatprep.mubr.bf16.mxu0 %v9747
  %10063 = vmatmul.mubr.bf16.gmra.mrb[0].mxu0 %v9746
  %v10064 = vpop.f32.mrb[0].mxu0
  %v10065 = vadd.f32 %v9932, %v10064
  %v10066 = vpop.f32.mrb[0].mxu0
  %v10067 = vadd.f32 %v9934, %v10066
  %v10068 = vpop.f32.mrb[0].mxu0
  %v10069 = vadd.f32 %v9936, %v10068
  %v10070 = vpop.f32.mrb[0].mxu0
  %v10071 = vadd.f32 %v9938, %v10070
  %10072 = vmatprep.mubr.bf16.mxu0 %v9753
  %10073 = vmatmul.mubr.bf16.gmra.mrb[0].mxu0 %v9752
  %v10074 = vpop.f32.mrb[0].mxu0
  %v10075 = vadd.f32 %v9942, %v10074
  %v10076 = vpop.f32.mrb[0].mxu0
  %v10077 = vadd.f32 %v9944, %v10076
  %v10078 = vpop.f32.mrb[0].mxu0
  %v10079 = vadd.f32 %v9946, %v10078
  %v10080 = vpop.f32.mrb[0].mxu0
  %v10081 = vadd.f32 %v9948, %v10080
  %10082 = vmatprep.mubr.bf16.mxu0 %v9759
  %10083 = vmatmul.mubr.bf16.gmra.mrb[0].mxu0 %v9758
  %v10084 = vpop.f32.mrb[0].mxu0
  %v10085 = vadd.f32 %v9952, %v10084
  %v10086 = vpop.f32.mrb[0].mxu0
  %v10087 = vadd.f32 %v9954, %v10086
  %v10088 = vpop.f32.mrb[0].mxu0
  %v10089 = vadd.f32 %v9956, %v10088
  %v10090 = vpop.f32.mrb[0].mxu0
  %v10091 = vadd.f32 %v9958, %v10090
  %10092 = vmatprep.mubr.bf16.mxu0 %v9765
  %10093 = vmatmul.mubr.bf16.gmra.mrb[0].mxu0 %v9764
  %v10094 = vpop.f32.mrb[0].mxu0
  %v10095 = vadd.f32 %v9962, %v10094
  %v10096 = vpop.f32.mrb[0].mxu0
  %v10097 = vadd.f32 %v9964, %v10096
  %v10098 = vpop.f32.mrb[0].mxu0
  %v10099 = vadd.f32 %v9966, %v10098
  %v10100 = vpop.f32.mrb[0].mxu0
  %v10101 = vadd.f32 %v9968, %v10100
  %10102 = vmatprep.mubr.bf16.mxu0 %v9771
  %10103 = vmatmul.mubr.bf16.gmra.mrb[0].mxu0 %v9770
  %v10104 = vpop.f32.mrb[0].mxu0
  %v10105 = vadd.f32 %v9972, %v10104
  %v10106 = vpop.f32.mrb[0].mxu0
  %v10107 = vadd.f32 %v9974, %v10106
  %v10108 = vpop.f32.mrb[0].mxu0
  %v10109 = vadd.f32 %v9976, %v10108
  %v10110 = vpop.f32.mrb[0].mxu0
  %v10111 = vadd.f32 %v9978, %v10110
  %10112 = vmatprep.mubr.bf16.mxu0 %v9777
  %10113 = vmatmul.mubr.bf16.gmra.mrb[0].mxu0 %v9776
  %v10114 = vpop.f32.mrb[0].mxu0
  %v10115 = vadd.f32 %v9982, %v10114
  %v10116 = vpop.f32.mrb[0].mxu0
  %v10117 = vadd.f32 %v9984, %v10116
  %v10118 = vpop.f32.mrb[0].mxu0
  %v10119 = vadd.f32 %v9986, %v10118
  %v10120 = vpop.f32.mrb[0].mxu0
  %v10121 = vadd.f32 %v9988, %v10120
  %10122 = vmatprep.mubr.bf16.mxu0 %v9783
  %10123 = vmatmul.mubr.bf16.gmra.mrb[0].mxu0 %v9782
  %v10124 = vpop.f32.mrb[0].mxu0
  %v10125 = vadd.f32 %v9992, %v10124
  %v10126 = vpop.f32.mrb[0].mxu0
  %v10127 = vadd.f32 %v9994, %v10126
  %v10128 = vpop.f32.mrb[0].mxu0
  %v10129 = vadd.f32 %v9996, %v10128
  %v10130 = vpop.f32.mrb[0].mxu0
  %v10131 = vadd.f32 %v9998, %v10130
  %10132 = vdwg.mxu0
  %10133 = vmatprep.subr.bf16.mxu0 %v9521
  %10134 = vmatpush1.bf16.msra.mxu0 %v9520
  %10135 = vmatprep.subr.bf16.mxu0 %v9523
  %10136 = vmatpush1.bf16.msra.mxu0 %v9522
  %10137 = vmatprep.subr.bf16.mxu0 %v9525
  %10138 = vmatpush1.bf16.msra.mxu0 %v9524
  %10139 = vmatprep.subr.bf16.mxu0 %v9527
  %10140 = vmatpush1.bf16.msra.mxu0 %v9526
  %10141 = vmatprep.subr.bf16.mxu0 %v9529
  %10142 = vmatpush1.bf16.msra.mxu0 %v9528
  %10143 = vmatprep.subr.bf16.mxu0 %v9531
  %10144 = vmatpush1.bf16.msra.mxu0 %v9530
  %10145 = vmatprep.subr.bf16.mxu0 %v9533
  %10146 = vmatpush1.bf16.msra.mxu0 %v9532
  %10147 = vmatprep.subr.bf16.mxu0 %v9535
  %10148 = vmatpush1.bf16.msra.mxu0 %v9534
  %10149 = vmatprep.subr.bf16.mxu0 %v9537
  %10150 = vmatpush1.bf16.msra.mxu0 %v9536
  %10151 = vmatprep.subr.bf16.mxu0 %v9539
  %10152 = vmatpush1.bf16.msra.mxu0 %v9538
  %10153 = vmatprep.subr.bf16.mxu0 %v9541
  %10154 = vmatpush1.bf16.msra.mxu0 %v9540
  %10155 = vmatprep.subr.bf16.mxu0 %v9543
  %10156 = vmatpush1.bf16.msra.mxu0 %v9542
  %10157 = vmatprep.subr.bf16.mxu0 %v9545
  %10158 = vmatpush1.bf16.msra.mxu0 %v9544
  %10159 = vmatprep.subr.bf16.mxu0 0
  %10160 = vmatpush1.bf16.msra.mxu0 0
  %10161 = vmatprep.subr.bf16.mxu0 0
  %10162 = vmatpush1.bf16.msra.mxu0 0
  %10163 = vmatprep.subr.bf16.mxu0 0
  %10164 = vmatpush1.bf16.msra.mxu0 0
  %10165 = vmatprep.mubr.bf16.mxu0 %v9838
  %10166 = vmatmul.mubr.bf16.gmra.mrb[0].mxu0 %v9730
  %v10167 = vpop.f32.mrb[0].mxu0
  %v10168 = vadd.f32 %v10035, %v10167
  %v10169 = vpop.f32.mrb[0].mxu0
  %v10170 = vadd.f32 %v10037, %v10169
  %v10171 = vpop.f32.mrb[0].mxu0
  %v10172 = vadd.f32 %v10039, %v10171
  %v10173 = vpop.f32.mrb[0].mxu0
  %v10174 = vadd.f32 %v10041, %v10173
  %10175 = vmatprep.mubr.bf16.mxu0 %v9841
  %10176 = vmatmul.mubr.bf16.gmra.mrb[0].mxu0 %v9736
  %v10177 = vpop.f32.mrb[0].mxu0
  %v10178 = vadd.f32 %v10045, %v10177
  %v10179 = vpop.f32.mrb[0].mxu0
  %v10180 = vadd.f32 %v10047, %v10179
  %v10181 = vpop.f32.mrb[0].mxu0
  %v10182 = vadd.f32 %v10049, %v10181
  %v10183 = vpop.f32.mrb[0].mxu0
  %v10184 = vadd.f32 %v10051, %v10183
  %10185 = vmatprep.mubr.bf16.mxu0 %v9844
  %10186 = vmatmul.mubr.bf16.gmra.mrb[0].mxu0 %v9742
  %v10187 = vpop.f32.mrb[0].mxu0
  %v10188 = vadd.f32 %v10055, %v10187
  %v10189 = vpop.f32.mrb[0].mxu0
  %v10190 = vadd.f32 %v10057, %v10189
  %v10191 = vpop.f32.mrb[0].mxu0
  %v10192 = vadd.f32 %v10059, %v10191
  %v10193 = vpop.f32.mrb[0].mxu0
  %v10194 = vadd.f32 %v10061, %v10193
  %10195 = vmatprep.mubr.bf16.mxu0 %v9847
  %10196 = vmatmul.mubr.bf16.gmra.mrb[0].mxu0 %v9748
  %v10197 = vpop.f32.mrb[0].mxu0
  %v10198 = vadd.f32 %v10065, %v10197
  %v10199 = vpop.f32.mrb[0].mxu0
  %v10200 = vadd.f32 %v10067, %v10199
  %v10201 = vpop.f32.mrb[0].mxu0
  %v10202 = vadd.f32 %v10069, %v10201
  %v10203 = vpop.f32.mrb[0].mxu0
  %v10204 = vadd.f32 %v10071, %v10203
  %10205 = vmatprep.mubr.bf16.mxu0 %v9850
  %10206 = vmatmul.mubr.bf16.gmra.mrb[0].mxu0 %v9754
  %v10207 = vpop.f32.mrb[0].mxu0
  %v10208 = vadd.f32 %v10075, %v10207
  %v10209 = vpop.f32.mrb[0].mxu0
  %v10210 = vadd.f32 %v10077, %v10209
  %v10211 = vpop.f32.mrb[0].mxu0
  %v10212 = vadd.f32 %v10079, %v10211
  %v10213 = vpop.f32.mrb[0].mxu0
  %v10214 = vadd.f32 %v10081, %v10213
  %10215 = vmatprep.mubr.bf16.mxu0 %v9853
  %10216 = vmatmul.mubr.bf16.gmra.mrb[0].mxu0 %v9760
  %v10217 = vpop.f32.mrb[0].mxu0
  %v10218 = vadd.f32 %v10085, %v10217
  %v10219 = vpop.f32.mrb[0].mxu0
  %v10220 = vadd.f32 %v10087, %v10219
  %v10221 = vpop.f32.mrb[0].mxu0
  %v10222 = vadd.f32 %v10089, %v10221
  %v10223 = vpop.f32.mrb[0].mxu0
  %v10224 = vadd.f32 %v10091, %v10223
  %10225 = vmatprep.mubr.bf16.mxu0 %v9856
  %10226 = vmatmul.mubr.bf16.gmra.mrb[0].mxu0 %v9766
  %v10227 = vpop.f32.mrb[0].mxu0
  %v10228 = vadd.f32 %v10095, %v10227
  %v10229 = vpop.f32.mrb[0].mxu0
  %v10230 = vadd.f32 %v10097, %v10229
  %v10231 = vpop.f32.mrb[0].mxu0
  %v10232 = vadd.f32 %v10099, %v10231
  %v10233 = vpop.f32.mrb[0].mxu0
  %v10234 = vadd.f32 %v10101, %v10233
  %10235 = vmatprep.mubr.bf16.mxu0 %v9859
  %10236 = vmatmul.mubr.bf16.gmra.mrb[0].mxu0 %v9772
  %v10237 = vpop.f32.mrb[0].mxu0
  %v10238 = vadd.f32 %v10105, %v10237
  %v10239 = vpop.f32.mrb[0].mxu0
  %v10240 = vadd.f32 %v10107, %v10239
  %v10241 = vpop.f32.mrb[0].mxu0
  %v10242 = vadd.f32 %v10109, %v10241
  %v10243 = vpop.f32.mrb[0].mxu0
  %v10244 = vadd.f32 %v10111, %v10243
  %10245 = vmatprep.mubr.bf16.mxu0 %v9862
  %10246 = vmatmul.mubr.bf16.gmra.mrb[0].mxu0 %v9778
  %v10247 = vpop.f32.mrb[0].mxu0
  %v10248 = vadd.f32 %v10115, %v10247
  %v10249 = vpop.f32.mrb[0].mxu0
  %v10250 = vadd.f32 %v10117, %v10249
  %v10251 = vpop.f32.mrb[0].mxu0
  %v10252 = vadd.f32 %v10119, %v10251
  %v10253 = vpop.f32.mrb[0].mxu0
  %v10254 = vadd.f32 %v10121, %v10253
  %10255 = vmatprep.mubr.bf16.mxu0 %v9865
  %10256 = vmatmul.mubr.bf16.gmra.mrb[0].mxu0 %v9784
  %v10257 = vpop.f32.mrb[0].mxu0
  %v10258 = vadd.f32 %v10125, %v10257
  %v10259 = vpop.f32.mrb[0].mxu0
  %v10260 = vadd.f32 %v10127, %v10259
  %v10261 = vpop.f32.mrb[0].mxu0
  %v10262 = vadd.f32 %v10129, %v10261
  %v10263 = vpop.f32.mrb[0].mxu0
  %v10264 = vadd.f32 %v10131, %v10263
  %10265 = vdwg.mxu0
  %v10266 = vmax.f32 %v10168, 0.0
  %v10267 = vmax.f32 %v10170, 0.0
  %v10268 = vmax.f32 %v10172, 0.0
  %v10269 = vmax.f32 %v10174, 0.0
  %v10270 = vmax.f32 %v10178, 0.0
  %v10271 = vmax.f32 %v10180, 0.0
  %v10272 = vmax.f32 %v10182, 0.0
  %v10273 = vmax.f32 %v10184, 0.0
  %v10274 = vmax.f32 %v10188, 0.0
  %v10275 = vmax.f32 %v10190, 0.0
  %v10276 = vmax.f32 %v10192, 0.0
  %v10277 = vmax.f32 %v10194, 0.0
  %v10278 = vmax.f32 %v10198, 0.0
  %v10279 = vmax.f32 %v10200, 0.0
  %v10280 = vmax.f32 %v10202, 0.0
  %v10281 = vmax.f32 %v10204, 0.0
  %v10282 = vmax.f32 %v10208, 0.0
  %v10283 = vmax.f32 %v10210, 0.0
  %v10284 = vmax.f32 %v10212, 0.0
  %v10285 = vmax.f32 %v10214, 0.0
  %v10286 = vmax.f32 %v10218, 0.0
  %v10287 = vmax.f32 %v10220, 0.0
  %v10288 = vmax.f32 %v10222, 0.0
  %v10289 = vmax.f32 %v10224, 0.0
  %v10290 = vmax.f32 %v10228, 0.0
  %v10291 = vmax.f32 %v10230, 0.0
  %v10292 = vmax.f32 %v10232, 0.0
  %v10293 = vmax.f32 %v10234, 0.0
  %v10294 = vmax.f32 %v10238, 0.0
  %v10295 = vmax.f32 %v10240, 0.0
  %v10296 = vmax.f32 %v10242, 0.0
  %v10297 = vmax.f32 %v10244, 0.0
  %v10298 = vmax.f32 %v10248, 0.0
  %v10299 = vmax.f32 %v10250, 0.0
  %v10300 = vmax.f32 %v10252, 0.0
  %v10301 = vmax.f32 %v10254, 0.0
  %v10302 = vmax.f32 %v10258, 0.0
  %v10303 = vmax.f32 %v10260, 0.0
  %v10304 = vmax.f32 %v10262, 0.0
  %v10305 = vmax.f32 %v10264, 0.0
  %v10306 = vmax.f32 %v10266, %v10276
  %v10307 = vmax.f32 %v10267, %v10277
  %v10308 = vmax.f32 %v10268, %v10278
  %v10309 = vmax.f32 %v10269, %v10279
  %v10310 = vmax.f32 %v10270, %v10280
  %v10311 = vmax.f32 %v10271, %v10281
  %v10312 = vmax.f32 %v10272, %v10282
  %v10313 = vmax.f32 %v10273, %v10283
  %v10314 = vmax.f32 %v10274, %v10284
  %v10315 = vmax.f32 %v10275, %v10285
  %v10316 = vmax.f32 %v10286, %v10296
  %v10317 = vmax.f32 %v10287, %v10297
  %v10318 = vmax.f32 %v10288, %v10298
  %v10319 = vmax.f32 %v10289, %v10299
  %v10320 = vmax.f32 %v10290, %v10300
  %v10321 = vmax.f32 %v10291, %v10301
  %v10322 = vmax.f32 %v10292, %v10302
  %v10323 = vmax.f32 %v10293, %v10303
  %v10324 = vmax.f32 %v10294, %v10304
  %v10325 = vmax.f32 %v10295, %v10305
  %v10326 = vmax.f32 %v10306, %v10316
  %v10327 = vmax.f32 %v10307, %v10317
  %v10328 = vmax.f32 %v10308, %v10318
  %v10329 = vmax.f32 %v10309, %v10319
  %v10330 = vmax.f32 %v10310, %v10320
  %v10331 = vmax.f32 %v10311, %v10321
  %v10332 = vmax.f32 %v10312, %v10322
  %v10333 = vmax.f32 %v10313, %v10323
  %v10334 = vmax.f32 %v10314, %v10324
  %v10335 = vmax.f32 %v10315, %v10325
  %v10336 = vld [vmem:[#allocation2 + $0xf0] sm:$0xff]
  %v10337 = vld [vmem:[#allocation2 + $0xf8] sm:$0xff]
  %v10338 = vld [vmem:[#allocation2 + $0x100] sm:$0xff]
  %v10339 = vld [vmem:[#allocation2 + $0x108] sm:$0xff]
  %v10340 = vld [vmem:[#allocation2 + $0x110] sm:$0xff]
  %v10341 = vld [vmem:[#allocation2 + $0x118] sm:$0xff]
  %v10342 = vld [vmem:[#allocation2 + $0x120] sm:$0xff]
  %v10343 = vld [vmem:[#allocation2 + $0x128] sm:$0xff]
  %v10344 = vld [vmem:[#allocation2 + $0x130] sm:$0xff]
  %v10345 = vld [vmem:[#allocation2 + $0x138] sm:$0xff]
  %v10346 = vld [vmem:[#allocation2 + $0x140] sm:$0xff]
  %v10347 = vld [vmem:[#allocation2 + $0x148] sm:$0xff]
  %v10348 = vld [vmem:[#allocation2 + $0x150] sm:$0xff]
  %v10349 = vld [vmem:[#allocation2 + $0x158] sm:$0xff]
  %v10350 = vld [vmem:[#allocation2 + $0x160] sm:$0xff]
  %v10351 = vld [vmem:[#allocation2 + $0x168] sm:$0xff]
  %v10352 = vld [vmem:[#allocation2 + $0x170] sm:$0xff]
  %v10353 = vld [vmem:[#allocation2 + $0x178] sm:$0xff]
  %v10354 = vld [vmem:[#allocation2 + $0x180] sm:$0xff]
  %v10355 = vld [vmem:[#allocation2 + $0x188] sm:$0xff]
  %v10356 = vld [vmem:[#allocation2 + $0x190] sm:$0xff]
  %v10357 = vld [vmem:[#allocation2 + $0x198] sm:$0xff]
  %v10358 = vld [vmem:[#allocation2 + $0x1a0] sm:$0xff]
  %v10359 = vld [vmem:[#allocation2 + $0x1a8] sm:$0xff]
  %v10360 = vld [vmem:[#allocation2 + $0x1b0] sm:$0xff]
  %v10361 = vld [vmem:[#allocation2 + $0x1b8] sm:$0xff]
  %v10362 = vld [vmem:[#allocation2 + $0x1c0] sm:$0xff]
  %v10363 = vld [vmem:[#allocation2 + $0x1c8] sm:$0xff]
  %v10364 = vld [vmem:[#allocation2 + $0x1d0] sm:$0xff]
  %v10365 = vld [vmem:[#allocation2 + $0x1d8] sm:$0xff]
  %v10366 = vld [vmem:[#allocation2 + $0x1e0] sm:$0xff]
  %v10367 = vld [vmem:[#allocation2 + $0x1e8] sm:$0xff]
  %v10368 = vld [vmem:[#allocation2 + $0x1f0] sm:$0xff]
  %v10369 = vld [vmem:[#allocation2 + $0x1f8] sm:$0xff]
  %v10370 = vld [vmem:[#allocation2 + $0x200] sm:$0xff]
  %v10371 = vld [vmem:[#allocation2 + $0x208] sm:$0xff]
  %v10372 = vld [vmem:[#allocation2 + $0x210] sm:$0xff]
  %v10373 = vld [vmem:[#allocation2 + $0x218] sm:$0xff]
  %v10374 = vld [vmem:[#allocation2 + $0x220] sm:$0xff]
  %v10375 = vld [vmem:[#allocation2 + $0x228] sm:$0xff]
  %v10376 = vld [vmem:[#allocation2 + $0x230] sm:$0xff]
  %v10377 = vld [vmem:[#allocation2 + $0x238] sm:$0xff]
  %v10378 = vld [vmem:[#allocation2 + $0x240] sm:$0xff]
  %v10379 = vld [vmem:[#allocation2 + $0x248] sm:$0xff]
  %v10380 = vld [vmem:[#allocation2 + $0x250] sm:$0xff]
  %v10381 = vld [vmem:[#allocation2 + $0x258] sm:$0xff]
  %v10382 = vld [vmem:[#allocation2 + $0x260] sm:$0xff]
  %v10383 = vld [vmem:[#allocation2 + $0x268] sm:$0xff]
  %v10384 = vld [vmem:[#allocation2 + $0x270] sm:$0xff]
  %v10385 = vld [vmem:[#allocation2 + $0x278] sm:$0xff]
  %v10386 = vld [vmem:[#allocation2 + $0x280] sm:$0xff]
  %v10387 = vld [vmem:[#allocation2 + $0x288] sm:$0xff]
  %v10388 = vld [vmem:[#allocation2 + $0x290] sm:$0xff]
  %v10389 = vld [vmem:[#allocation2 + $0x298] sm:$0xff]
  %v10390 = vld [vmem:[#allocation2 + $0x2a0] sm:$0xff]
  %v10391 = vld [vmem:[#allocation2 + $0x2a8] sm:$0xff]
  %v10392 = vld [vmem:[#allocation2 + $0x2b0] sm:$0xff]
  %v10393 = vld [vmem:[#allocation2 + $0x2b8] sm:$0xff]
  %v10394 = vld [vmem:[#allocation2 + $0x2c0] sm:$0xff]
  %v10395 = vld [vmem:[#allocation2 + $0x2c8] sm:$0xff]
  %v10396 = vld [vmem:[#allocation2 + $0x2d0] sm:$0xff]
  %v10397 = vld [vmem:[#allocation2 + $0x2d8] sm:$0xff]
  %v10398 = vld [vmem:[#allocation2 + $0x2e0] sm:$0xff]
  %v10399 = vld [vmem:[#allocation2 + $0x2e8] sm:$0xff]
  %v10400 = vld [vmem:[#allocation2 + $0x2f0] sm:$0xff]
  %v10401 = vld [vmem:[#allocation2 + $0x2f8] sm:$0xff]
  %v10402 = vld [vmem:[#allocation2 + $0x300] sm:$0xff]
  %v10403 = vld [vmem:[#allocation2 + $0x308] sm:$0xff]
  %v10404 = vld [vmem:[#allocation2 + $0x310] sm:$0xff]
  %v10405 = vld [vmem:[#allocation2 + $0x318] sm:$0xff]
  %v10406 = vld [vmem:[#allocation2 + $0x320] sm:$0xff]
  %v10407 = vld [vmem:[#allocation2 + $0x328] sm:$0xff]
  %v10408 = vld [vmem:[#allocation2 + $0x330] sm:$0xff]
  %v10409 = vld [vmem:[#allocation2 + $0x338] sm:$0xff]
  %v10410 = vld [vmem:[#allocation2 + $0x340] sm:$0xff]
  %v10411 = vld [vmem:[#allocation2 + $0x348] sm:$0xff]
  %v10412 = vld [vmem:[#allocation2 + $0x350] sm:$0xff]
  %v10413 = vld [vmem:[#allocation2 + $0x358] sm:$0xff]
  %v10414 = vld [vmem:[#allocation2 + $0x360] sm:$0xff]
  %v10415 = vld [vmem:[#allocation2 + $0x368] sm:$0xff]
  %v10416 = vld [vmem:[#allocation2 + $0x370] sm:$0xff]
  %v10417 = vld [vmem:[#allocation2 + $0x378] sm:$0xff]
  %v10418 = vld [vmem:[#allocation2 + $0x380] sm:$0xff]
  %v10419 = vld [vmem:[#allocation2 + $0x388] sm:$0xff]
  %v10420 = vld [vmem:[#allocation2 + $0x390] sm:$0xff]
  %v10421 = vld [vmem:[#allocation2 + $0x398] sm:$0xff]
  %v10422 = vld [vmem:[#allocation2 + $0x3a0] sm:$0xff]
  %v10423 = vld [vmem:[#allocation2 + $0x3a8] sm:$0xff]
  %v10424 = vld [vmem:[#allocation2 + $0x3b0] sm:$0xff]
  %v10425 = vld [vmem:[#allocation2 + $0x3b8] sm:$0xff]
  %10426 = vmatprep.subr.bf16.mxu0 %v10337
  %10427 = vmatpush1.bf16.msra.mxu0 %v10336
  %10428 = vmatprep.subr.bf16.mxu0 %v10339
  %10429 = vmatpush1.bf16.msra.mxu0 %v10338
  %10430 = vmatprep.subr.bf16.mxu0 %v10341
  %10431 = vmatpush1.bf16.msra.mxu0 %v10340
  %10432 = vmatprep.subr.bf16.mxu0 %v10343
  %10433 = vmatpush1.bf16.msra.mxu0 %v10342
  %10434 = vmatprep.subr.bf16.mxu0 %v10345
  %10435 = vmatpush1.bf16.msra.mxu0 %v10344
  %10436 = vmatprep.subr.bf16.mxu0 %v10347
  %10437 = vmatpush1.bf16.msra.mxu0 %v10346
  %10438 = vmatprep.subr.bf16.mxu0 %v10349
  %10439 = vmatpush1.bf16.msra.mxu0 %v10348
  %10440 = vmatprep.subr.bf16.mxu0 %v10351
  %10441 = vmatpush1.bf16.msra.mxu0 %v10350
  %10442 = vmatprep.subr.bf16.mxu0 %v10353
  %10443 = vmatpush1.bf16.msra.mxu0 %v10352
  %10444 = vmatprep.subr.bf16.mxu0 %v10355
  %10445 = vmatpush1.bf16.msra.mxu0 %v10354
  %10446 = vmatprep.subr.bf16.mxu0 %v10357
  %10447 = vmatpush1.bf16.msra.mxu0 %v10356
  %10448 = vmatprep.subr.bf16.mxu0 %v10359
  %10449 = vmatpush1.bf16.msra.mxu0 %v10358
  %10450 = vmatprep.subr.bf16.mxu0 %v10361
  %10451 = vmatpush1.bf16.msra.mxu0 %v10360
  %10452 = vmatprep.subr.bf16.mxu0 %v10363
  %10453 = vmatpush1.bf16.msra.mxu0 %v10362
  %10454 = vmatprep.subr.bf16.mxu0 %v10365
  %10455 = vmatpush1.bf16.msra.mxu0 %v10364
  %10456 = vmatprep.subr.bf16.mxu0 %v10367
  %10457 = vmatpush1.bf16.msra.mxu0 %v10366
  %10458 = vmatprep.mubr.bf16.mxu0 %v9727
  %10459 = vmatmul.mubr.bf16.gmra.mrb[0].mxu0 %v9726
  %v10460 = vpop.f32.mrb[0].mxu0
  %v10461 = vadd.f32 %v952, %v10460
  %v10462 = vpop.f32.mrb[0].mxu0
  %v10463 = vadd.f32 %v952, %v10462
  %v10464 = vpop.f32.mrb[0].mxu0
  %v10465 = vadd.f32 %v957, %v10464
  %v10466 = vpop.f32.mrb[0].mxu0
  %v10467 = vadd.f32 %v957, %v10466
  %10468 = vmatprep.mubr.bf16.mxu0 %v9733
  %10469 = vmatmul.mubr.bf16.gmra.mrb[0].mxu0 %v9732
  %v10470 = vpop.f32.mrb[0].mxu0
  %v10471 = vadd.f32 %v962, %v10470
  %v10472 = vpop.f32.mrb[0].mxu0
  %v10473 = vadd.f32 %v962, %v10472
  %v10474 = vpop.f32.mrb[0].mxu0
  %v10475 = vadd.f32 %v967, %v10474
  %v10476 = vpop.f32.mrb[0].mxu0
  %v10477 = vadd.f32 %v967, %v10476
  %10478 = vmatprep.mubr.bf16.mxu0 %v9739
  %10479 = vmatmul.mubr.bf16.gmra.mrb[0].mxu0 %v9738
  %v10480 = vpop.f32.mrb[0].mxu0
  %v10481 = vadd.f32 %v972, %v10480
  %v10482 = vpop.f32.mrb[0].mxu0
  %v10483 = vadd.f32 %v972, %v10482
  %v10484 = vpop.f32.mrb[0].mxu0
  %v10485 = vadd.f32 %v977, %v10484
  %v10486 = vpop.f32.mrb[0].mxu0
  %v10487 = vadd.f32 %v977, %v10486
  %10488 = vmatprep.mubr.bf16.mxu0 %v9745
  %10489 = vmatmul.mubr.bf16.gmra.mrb[0].mxu0 %v9744
  %v10490 = vpop.f32.mrb[0].mxu0
  %v10491 = vadd.f32 %v982, %v10490
  %v10492 = vpop.f32.mrb[0].mxu0
  %v10493 = vadd.f32 %v982, %v10492
  %v10494 = vpop.f32.mrb[0].mxu0
  %v10495 = vadd.f32 %v987, %v10494
  %v10496 = vpop.f32.mrb[0].mxu0
  %v10497 = vadd.f32 %v987, %v10496
  %10498 = vmatprep.mubr.bf16.mxu0 %v9751
  %10499 = vmatmul.mubr.bf16.gmra.mrb[0].mxu0 %v9750
  %v10500 = vpop.f32.mrb[0].mxu0
  %v10501 = vadd.f32 %v992, %v10500
  %v10502 = vpop.f32.mrb[0].mxu0
  %v10503 = vadd.f32 %v992, %v10502
  %v10504 = vpop.f32.mrb[0].mxu0
  %v10505 = vadd.f32 %v997, %v10504
  %v10506 = vpop.f32.mrb[0].mxu0
  %v10507 = vadd.f32 %v997, %v10506
  %10508 = vmatprep.mubr.bf16.mxu0 %v9757
  %10509 = vmatmul.mubr.bf16.gmra.mrb[0].mxu0 %v9756
  %v10510 = vpop.f32.mrb[0].mxu0
  %v10511 = vadd.f32 %v1002, %v10510
  %v10512 = vpop.f32.mrb[0].mxu0
  %v10513 = vadd.f32 %v1002, %v10512
  %v10514 = vpop.f32.mrb[0].mxu0
  %v10515 = vadd.f32 %v1007, %v10514
  %v10516 = vpop.f32.mrb[0].mxu0
  %v10517 = vadd.f32 %v1007, %v10516
  %10518 = vmatprep.mubr.bf16.mxu0 %v9763
  %10519 = vmatmul.mubr.bf16.gmra.mrb[0].mxu0 %v9762
  %v10520 = vpop.f32.mrb[0].mxu0
  %v10521 = vadd.f32 %v1012, %v10520
  %v10522 = vpop.f32.mrb[0].mxu0
  %v10523 = vadd.f32 %v1012, %v10522
  %v10524 = vpop.f32.mrb[0].mxu0
  %v10525 = vadd.f32 %v1017, %v10524
  %v10526 = vpop.f32.mrb[0].mxu0
  %v10527 = vadd.f32 %v1017, %v10526
  %10528 = vmatprep.mubr.bf16.mxu0 %v9769
  %10529 = vmatmul.mubr.bf16.gmra.mrb[0].mxu0 %v9768
  %v10530 = vpop.f32.mrb[0].mxu0
  %v10531 = vadd.f32 %v1022, %v10530
  %v10532 = vpop.f32.mrb[0].mxu0
  %v10533 = vadd.f32 %v1022, %v10532
  %v10534 = vpop.f32.mrb[0].mxu0
  %v10535 = vadd.f32 %v1027, %v10534
  %v10536 = vpop.f32.mrb[0].mxu0
  %v10537 = vadd.f32 %v1027, %v10536
  %10538 = vmatprep.mubr.bf16.mxu0 %v9775
  %10539 = vmatmul.mubr.bf16.gmra.mrb[0].mxu0 %v9774
  %v10540 = vpop.f32.mrb[0].mxu0
  %v10541 = vadd.f32 %v1032, %v10540
  %v10542 = vpop.f32.mrb[0].mxu0
  %v10543 = vadd.f32 %v1032, %v10542
  %v10544 = vpop.f32.mrb[0].mxu0
  %v10545 = vadd.f32 %v1037, %v10544
  %v10546 = vpop.f32.mrb[0].mxu0
  %v10547 = vadd.f32 %v1037, %v10546
  %10548 = vmatprep.mubr.bf16.mxu0 %v9781
  %10549 = vmatmul.mubr.bf16.gmra.mrb[0].mxu0 %v9780
  %v10550 = vpop.f32.mrb[0].mxu0
  %v10551 = vadd.f32 %v1042, %v10550
  %v10552 = vpop.f32.mrb[0].mxu0
  %v10553 = vadd.f32 %v1042, %v10552
  %v10554 = vpop.f32.mrb[0].mxu0
  %v10555 = vadd.f32 %v1047, %v10554
  %v10556 = vpop.f32.mrb[0].mxu0
  %v10557 = vadd.f32 %v1047, %v10556
  %10558 = vdwg.mxu0
  %10559 = vmatprep.subr.bf16.mxu0 %v10369
  %10560 = vmatpush1.bf16.msra.mxu0 %v10368
  %10561 = vmatprep.subr.bf16.mxu0 %v10371
  %10562 = vmatpush1.bf16.msra.mxu0 %v10370
  %10563 = vmatprep.subr.bf16.mxu0 %v10373
  %10564 = vmatpush1.bf16.msra.mxu0 %v10372
  %10565 = vmatprep.subr.bf16.mxu0 %v10375
  %10566 = vmatpush1.bf16.msra.mxu0 %v10374
  %10567 = vmatprep.subr.bf16.mxu0 %v10377
  %10568 = vmatpush1.bf16.msra.mxu0 %v10376
  %10569 = vmatprep.subr.bf16.mxu0 %v10379
  %10570 = vmatpush1.bf16.msra.mxu0 %v10378
  %10571 = vmatprep.subr.bf16.mxu0 %v10381
  %10572 = vmatpush1.bf16.msra.mxu0 %v10380
  %10573 = vmatprep.subr.bf16.mxu0 %v10383
  %10574 = vmatpush1.bf16.msra.mxu0 %v10382
  %10575 = vmatprep.subr.bf16.mxu0 %v10385
  %10576 = vmatpush1.bf16.msra.mxu0 %v10384
  %10577 = vmatprep.subr.bf16.mxu0 %v10387
  %10578 = vmatpush1.bf16.msra.mxu0 %v10386
  %10579 = vmatprep.subr.bf16.mxu0 %v10389
  %10580 = vmatpush1.bf16.msra.mxu0 %v10388
  %10581 = vmatprep.subr.bf16.mxu0 %v10391
  %10582 = vmatpush1.bf16.msra.mxu0 %v10390
  %10583 = vmatprep.subr.bf16.mxu0 %v10393
  %10584 = vmatpush1.bf16.msra.mxu0 %v10392
  %10585 = vmatprep.subr.bf16.mxu0 %v10395
  %10586 = vmatpush1.bf16.msra.mxu0 %v10394
  %10587 = vmatprep.subr.bf16.mxu0 %v10397
  %10588 = vmatpush1.bf16.msra.mxu0 %v10396
  %10589 = vmatprep.subr.bf16.mxu0 %v10399
  %10590 = vmatpush1.bf16.msra.mxu0 %v10398
  %10591 = vmatprep.mubr.bf16.mxu0 %v9729
  %10592 = vmatmul.mubr.bf16.gmra.mrb[0].mxu0 %v9728
  %v10593 = vpop.f32.mrb[0].mxu0
  %v10594 = vadd.f32 %v10461, %v10593
  %v10595 = vpop.f32.mrb[0].mxu0
  %v10596 = vadd.f32 %v10463, %v10595
  %v10597 = vpop.f32.mrb[0].mxu0
  %v10598 = vadd.f32 %v10465, %v10597
  %v10599 = vpop.f32.mrb[0].mxu0
  %v10600 = vadd.f32 %v10467, %v10599
  %10601 = vmatprep.mubr.bf16.mxu0 %v9735
  %10602 = vmatmul.mubr.bf16.gmra.mrb[0].mxu0 %v9734
  %v10603 = vpop.f32.mrb[0].mxu0
  %v10604 = vadd.f32 %v10471, %v10603
  %v10605 = vpop.f32.mrb[0].mxu0
  %v10606 = vadd.f32 %v10473, %v10605
  %v10607 = vpop.f32.mrb[0].mxu0
  %v10608 = vadd.f32 %v10475, %v10607
  %v10609 = vpop.f32.mrb[0].mxu0
  %v10610 = vadd.f32 %v10477, %v10609
  %10611 = vmatprep.mubr.bf16.mxu0 %v9741
  %10612 = vmatmul.mubr.bf16.gmra.mrb[0].mxu0 %v9740
  %v10613 = vpop.f32.mrb[0].mxu0
  %v10614 = vadd.f32 %v10481, %v10613
  %v10615 = vpop.f32.mrb[0].mxu0
  %v10616 = vadd.f32 %v10483, %v10615
  %v10617 = vpop.f32.mrb[0].mxu0
  %v10618 = vadd.f32 %v10485, %v10617
  %v10619 = vpop.f32.mrb[0].mxu0
  %v10620 = vadd.f32 %v10487, %v10619
  %10621 = vmatprep.mubr.bf16.mxu0 %v9747
  %10622 = vmatmul.mubr.bf16.gmra.mrb[0].mxu0 %v9746
  %v10623 = vpop.f32.mrb[0].mxu0
  %v10624 = vadd.f32 %v10491, %v10623
  %v10625 = vpop.f32.mrb[0].mxu0
  %v10626 = vadd.f32 %v10493, %v10625
  %v10627 = vpop.f32.mrb[0].mxu0
  %v10628 = vadd.f32 %v10495, %v10627
  %v10629 = vpop.f32.mrb[0].mxu0
  %v10630 = vadd.f32 %v10497, %v10629
  %10631 = vmatprep.mubr.bf16.mxu0 %v9753
  %10632 = vmatmul.mubr.bf16.gmra.mrb[0].mxu0 %v9752
  %v10633 = vpop.f32.mrb[0].mxu0
  %v10634 = vadd.f32 %v10501, %v10633
  %v10635 = vpop.f32.mrb[0].mxu0
  %v10636 = vadd.f32 %v10503, %v10635
  %v10637 = vpop.f32.mrb[0].mxu0
  %v10638 = vadd.f32 %v10505, %v10637
  %v10639 = vpop.f32.mrb[0].mxu0
  %v10640 = vadd.f32 %v10507, %v10639
  %10641 = vmatprep.mubr.bf16.mxu0 %v9759
  %10642 = vmatmul.mubr.bf16.gmra.mrb[0].mxu0 %v9758
  %v10643 = vpop.f32.mrb[0].mxu0
  %v10644 = vadd.f32 %v10511, %v10643
  %v10645 = vpop.f32.mrb[0].mxu0
  %v10646 = vadd.f32 %v10513, %v10645
  %v10647 = vpop.f32.mrb[0].mxu0
  %v10648 = vadd.f32 %v10515, %v10647
  %v10649 = vpop.f32.mrb[0].mxu0
  %v10650 = vadd.f32 %v10517, %v10649
  %10651 = vmatprep.mubr.bf16.mxu0 %v9765
  %10652 = vmatmul.mubr.bf16.gmra.mrb[0].mxu0 %v9764
  %v10653 = vpop.f32.mrb[0].mxu0
  %v10654 = vadd.f32 %v10521, %v10653
  %v10655 = vpop.f32.mrb[0].mxu0
  %v10656 = vadd.f32 %v10523, %v10655
  %v10657 = vpop.f32.mrb[0].mxu0
  %v10658 = vadd.f32 %v10525, %v10657
  %v10659 = vpop.f32.mrb[0].mxu0
  %v10660 = vadd.f32 %v10527, %v10659
  %10661 = vmatprep.mubr.bf16.mxu0 %v9771
  %10662 = vmatmul.mubr.bf16.gmra.mrb[0].mxu0 %v9770
  %v10663 = vpop.f32.mrb[0].mxu0
  %v10664 = vadd.f32 %v10531, %v10663
  %v10665 = vpop.f32.mrb[0].mxu0
  %v10666 = vadd.f32 %v10533, %v10665
  %v10667 = vpop.f32.mrb[0].mxu0
  %v10668 = vadd.f32 %v10535, %v10667
  %v10669 = vpop.f32.mrb[0].mxu0
  %v10670 = vadd.f32 %v10537, %v10669
  %10671 = vmatprep.mubr.bf16.mxu0 %v9777
  %10672 = vmatmul.mubr.bf16.gmra.mrb[0].mxu0 %v9776
  %v10673 = vpop.f32.mrb[0].mxu0
  %v10674 = vadd.f32 %v10541, %v10673
  %v10675 = vpop.f32.mrb[0].mxu0
  %v10676 = vadd.f32 %v10543, %v10675
  %v10677 = vpop.f32.mrb[0].mxu0
  %v10678 = vadd.f32 %v10545, %v10677
  %v10679 = vpop.f32.mrb[0].mxu0
  %v10680 = vadd.f32 %v10547, %v10679
  %10681 = vmatprep.mubr.bf16.mxu0 %v9783
  %10682 = vmatmul.mubr.bf16.gmra.mrb[0].mxu0 %v9782
  %v10683 = vpop.f32.mrb[0].mxu0
  %v10684 = vadd.f32 %v10551, %v10683
  %v10685 = vpop.f32.mrb[0].mxu0
  %v10686 = vadd.f32 %v10553, %v10685
  %v10687 = vpop.f32.mrb[0].mxu0
  %v10688 = vadd.f32 %v10555, %v10687
  %v10689 = vpop.f32.mrb[0].mxu0
  %v10690 = vadd.f32 %v10557, %v10689
  %10691 = vdwg.mxu0
  %10692 = vmatprep.subr.bf16.mxu0 %v10401
  %10693 = vmatpush1.bf16.msra.mxu0 %v10400
  %10694 = vmatprep.subr.bf16.mxu0 %v10403
  %10695 = vmatpush1.bf16.msra.mxu0 %v10402
  %10696 = vmatprep.subr.bf16.mxu0 %v10405
  %10697 = vmatpush1.bf16.msra.mxu0 %v10404
  %10698 = vmatprep.subr.bf16.mxu0 %v10407
  %10699 = vmatpush1.bf16.msra.mxu0 %v10406
  %10700 = vmatprep.subr.bf16.mxu0 %v10409
  %10701 = vmatpush1.bf16.msra.mxu0 %v10408
  %10702 = vmatprep.subr.bf16.mxu0 %v10411
  %10703 = vmatpush1.bf16.msra.mxu0 %v10410
  %10704 = vmatprep.subr.bf16.mxu0 %v10413
  %10705 = vmatpush1.bf16.msra.mxu0 %v10412
  %10706 = vmatprep.subr.bf16.mxu0 %v10415
  %10707 = vmatpush1.bf16.msra.mxu0 %v10414
  %10708 = vmatprep.subr.bf16.mxu0 %v10417
  %10709 = vmatpush1.bf16.msra.mxu0 %v10416
  %10710 = vmatprep.subr.bf16.mxu0 %v10419
  %10711 = vmatpush1.bf16.msra.mxu0 %v10418
  %10712 = vmatprep.subr.bf16.mxu0 %v10421
  %10713 = vmatpush1.bf16.msra.mxu0 %v10420
  %10714 = vmatprep.subr.bf16.mxu0 %v10423
  %10715 = vmatpush1.bf16.msra.mxu0 %v10422
  %10716 = vmatprep.subr.bf16.mxu0 %v10425
  %10717 = vmatpush1.bf16.msra.mxu0 %v10424
  %10718 = vmatprep.subr.bf16.mxu0 0
  %10719 = vmatpush1.bf16.msra.mxu0 0
  %10720 = vmatprep.subr.bf16.mxu0 0
  %10721 = vmatpush1.bf16.msra.mxu0 0
  %10722 = vmatprep.subr.bf16.mxu0 0
  %10723 = vmatpush1.bf16.msra.mxu0 0
  %10724 = vmatprep.mubr.bf16.mxu0 %v9838
  %10725 = vmatmul.mubr.bf16.gmra.mrb[0].mxu0 %v9730
  %v10726 = vpop.f32.mrb[0].mxu0
  %v10727 = vadd.f32 %v10594, %v10726
  %v10728 = vpop.f32.mrb[0].mxu0
  %v10729 = vadd.f32 %v10596, %v10728
  %v10730 = vpop.f32.mrb[0].mxu0
  %v10731 = vadd.f32 %v10598, %v10730
  %v10732 = vpop.f32.mrb[0].mxu0
  %v10733 = vadd.f32 %v10600, %v10732
  %10734 = vmatprep.mubr.bf16.mxu0 %v9841
  %10735 = vmatmul.mubr.bf16.gmra.mrb[0].mxu0 %v9736
  %v10736 = vpop.f32.mrb[0].mxu0
  %v10737 = vadd.f32 %v10604, %v10736
  %v10738 = vpop.f32.mrb[0].mxu0
  %v10739 = vadd.f32 %v10606, %v10738
  %v10740 = vpop.f32.mrb[0].mxu0
  %v10741 = vadd.f32 %v10608, %v10740
  %v10742 = vpop.f32.mrb[0].mxu0
  %v10743 = vadd.f32 %v10610, %v10742
  %10744 = vmatprep.mubr.bf16.mxu0 %v9844
  %10745 = vmatmul.mubr.bf16.gmra.mrb[0].mxu0 %v9742
  %v10746 = vpop.f32.mrb[0].mxu0
  %v10747 = vadd.f32 %v10614, %v10746
  %v10748 = vpop.f32.mrb[0].mxu0
  %v10749 = vadd.f32 %v10616, %v10748
  %v10750 = vpop.f32.mrb[0].mxu0
  %v10751 = vadd.f32 %v10618, %v10750
  %v10752 = vpop.f32.mrb[0].mxu0
  %v10753 = vadd.f32 %v10620, %v10752
  %10754 = vmatprep.mubr.bf16.mxu0 %v9847
  %10755 = vmatmul.mubr.bf16.gmra.mrb[0].mxu0 %v9748
  %v10756 = vpop.f32.mrb[0].mxu0
  %v10757 = vadd.f32 %v10624, %v10756
  %v10758 = vpop.f32.mrb[0].mxu0
  %v10759 = vadd.f32 %v10626, %v10758
  %v10760 = vpop.f32.mrb[0].mxu0
  %v10761 = vadd.f32 %v10628, %v10760
  %v10762 = vpop.f32.mrb[0].mxu0
  %v10763 = vadd.f32 %v10630, %v10762
  %10764 = vmatprep.mubr.bf16.mxu0 %v9850
  %10765 = vmatmul.mubr.bf16.gmra.mrb[0].mxu0 %v9754
  %v10766 = vpop.f32.mrb[0].mxu0
  %v10767 = vadd.f32 %v10634, %v10766
  %v10768 = vpop.f32.mrb[0].mxu0
  %v10769 = vadd.f32 %v10636, %v10768
  %v10770 = vpop.f32.mrb[0].mxu0
  %v10771 = vadd.f32 %v10638, %v10770
  %v10772 = vpop.f32.mrb[0].mxu0
  %v10773 = vadd.f32 %v10640, %v10772
  %10774 = vmatprep.mubr.bf16.mxu0 %v9853
  %10775 = vmatmul.mubr.bf16.gmra.mrb[0].mxu0 %v9760
  %v10776 = vpop.f32.mrb[0].mxu0
  %v10777 = vadd.f32 %v10644, %v10776
  %v10778 = vpop.f32.mrb[0].mxu0
  %v10779 = vadd.f32 %v10646, %v10778
  %v10780 = vpop.f32.mrb[0].mxu0
  %v10781 = vadd.f32 %v10648, %v10780
  %v10782 = vpop.f32.mrb[0].mxu0
  %v10783 = vadd.f32 %v10650, %v10782
  %10784 = vmatprep.mubr.bf16.mxu0 %v9856
  %10785 = vmatmul.mubr.bf16.gmra.mrb[0].mxu0 %v9766
  %v10786 = vpop.f32.mrb[0].mxu0
  %v10787 = vadd.f32 %v10654, %v10786
  %v10788 = vpop.f32.mrb[0].mxu0
  %v10789 = vadd.f32 %v10656, %v10788
  %v10790 = vpop.f32.mrb[0].mxu0
  %v10791 = vadd.f32 %v10658, %v10790
  %v10792 = vpop.f32.mrb[0].mxu0
  %v10793 = vadd.f32 %v10660, %v10792
  %10794 = vmatprep.mubr.bf16.mxu0 %v9859
  %10795 = vmatmul.mubr.bf16.gmra.mrb[0].mxu0 %v9772
  %v10796 = vpop.f32.mrb[0].mxu0
  %v10797 = vadd.f32 %v10664, %v10796
  %v10798 = vpop.f32.mrb[0].mxu0
  %v10799 = vadd.f32 %v10666, %v10798
  %v10800 = vpop.f32.mrb[0].mxu0
  %v10801 = vadd.f32 %v10668, %v10800
  %v10802 = vpop.f32.mrb[0].mxu0
  %v10803 = vadd.f32 %v10670, %v10802
  %10804 = vmatprep.mubr.bf16.mxu0 %v9862
  %10805 = vmatmul.mubr.bf16.gmra.mrb[0].mxu0 %v9778
  %v10806 = vpop.f32.mrb[0].mxu0
  %v10807 = vadd.f32 %v10674, %v10806
  %v10808 = vpop.f32.mrb[0].mxu0
  %v10809 = vadd.f32 %v10676, %v10808
  %v10810 = vpop.f32.mrb[0].mxu0
  %v10811 = vadd.f32 %v10678, %v10810
  %v10812 = vpop.f32.mrb[0].mxu0
  %v10813 = vadd.f32 %v10680, %v10812
  %10814 = vmatprep.mubr.bf16.mxu0 %v9865
  %10815 = vmatmul.mubr.bf16.gmra.mrb[0].mxu0 %v9784
  %v10816 = vpop.f32.mrb[0].mxu0
  %v10817 = vadd.f32 %v10684, %v10816
  %v10818 = vpop.f32.mrb[0].mxu0
  %v10819 = vadd.f32 %v10686, %v10818
  %v10820 = vpop.f32.mrb[0].mxu0
  %v10821 = vadd.f32 %v10688, %v10820
  %v10822 = vpop.f32.mrb[0].mxu0
  %v10823 = vadd.f32 %v10690, %v10822
  %10824 = vdwg.mxu0
  %v10825 = vmax.f32 %v10727, 0.0
  %v10826 = vmax.f32 %v10729, 0.0
  %v10827 = vmax.f32 %v10731, 0.0
  %v10828 = vmax.f32 %v10733, 0.0
  %v10829 = vmax.f32 %v10737, 0.0
  %v10830 = vmax.f32 %v10739, 0.0
  %v10831 = vmax.f32 %v10741, 0.0
  %v10832 = vmax.f32 %v10743, 0.0
  %v10833 = vmax.f32 %v10747, 0.0
  %v10834 = vmax.f32 %v10749, 0.0
  %v10835 = vmax.f32 %v10751, 0.0
  %v10836 = vmax.f32 %v10753, 0.0
  %v10837 = vmax.f32 %v10757, 0.0
  %v10838 = vmax.f32 %v10759, 0.0
  %v10839 = vmax.f32 %v10761, 0.0
  %v10840 = vmax.f32 %v10763, 0.0
  %v10841 = vmax.f32 %v10767, 0.0
  %v10842 = vmax.f32 %v10769, 0.0
  %v10843 = vmax.f32 %v10771, 0.0
  %v10844 = vmax.f32 %v10773, 0.0
  %v10845 = vmax.f32 %v10777, 0.0
  %v10846 = vmax.f32 %v10779, 0.0
  %v10847 = vmax.f32 %v10781, 0.0
  %v10848 = vmax.f32 %v10783, 0.0
  %v10849 = vmax.f32 %v10787, 0.0
  %v10850 = vmax.f32 %v10789, 0.0
  %v10851 = vmax.f32 %v10791, 0.0
  %v10852 = vmax.f32 %v10793, 0.0
  %v10853 = vmax.f32 %v10797, 0.0
  %v10854 = vmax.f32 %v10799, 0.0
  %v10855 = vmax.f32 %v10801, 0.0
  %v10856 = vmax.f32 %v10803, 0.0
  %v10857 = vmax.f32 %v10807, 0.0
  %v10858 = vmax.f32 %v10809, 0.0
  %v10859 = vmax.f32 %v10811, 0.0
  %v10860 = vmax.f32 %v10813, 0.0
  %v10861 = vmax.f32 %v10817, 0.0
  %v10862 = vmax.f32 %v10819, 0.0
  %v10863 = vmax.f32 %v10821, 0.0
  %v10864 = vmax.f32 %v10823, 0.0
  %v10865 = vmax.f32 %v10825, %v10835
  %v10866 = vmax.f32 %v10826, %v10836
  %v10867 = vmax.f32 %v10827, %v10837
  %v10868 = vmax.f32 %v10828, %v10838
  %v10869 = vmax.f32 %v10829, %v10839
  %v10870 = vmax.f32 %v10830, %v10840
  %v10871 = vmax.f32 %v10831, %v10841
  %v10872 = vmax.f32 %v10832, %v10842
  %v10873 = vmax.f32 %v10833, %v10843
  %v10874 = vmax.f32 %v10834, %v10844
  %v10875 = vmax.f32 %v10845, %v10855
  %v10876 = vmax.f32 %v10846, %v10856
  %v10877 = vmax.f32 %v10847, %v10857
  %v10878 = vmax.f32 %v10848, %v10858
  %v10879 = vmax.f32 %v10849, %v10859
  %v10880 = vmax.f32 %v10850, %v10860
  %v10881 = vmax.f32 %v10851, %v10861
  %v10882 = vmax.f32 %v10852, %v10862
  %v10883 = vmax.f32 %v10853, %v10863
  %v10884 = vmax.f32 %v10854, %v10864
  %v10885 = vmax.f32 %v10865, %v10875
  %v10886 = vmax.f32 %v10866, %v10876
  %v10887 = vmax.f32 %v10867, %v10877
  %v10888 = vmax.f32 %v10868, %v10878
  %v10889 = vmax.f32 %v10869, %v10879
  %v10890 = vmax.f32 %v10870, %v10880
  %v10891 = vmax.f32 %v10871, %v10881
  %v10892 = vmax.f32 %v10872, %v10882
  %v10893 = vmax.f32 %v10873, %v10883
  %v10894 = vmax.f32 %v10874, %v10884
  %v10895 = vld [vmem:[#allocation2 + $0x1e0] sm:$0xff]
  %v10896 = vld [vmem:[#allocation2 + $0x1e8] sm:$0xff]
  %v10897 = vld [vmem:[#allocation2 + $0x1f0] sm:$0xff]
  %v10898 = vld [vmem:[#allocation2 + $0x1f8] sm:$0xff]
  %v10899 = vld [vmem:[#allocation2 + $0x200] sm:$0xff]
  %v10900 = vld [vmem:[#allocation2 + $0x208] sm:$0xff]
  %v10901 = vld [vmem:[#allocation2 + $0x210] sm:$0xff]
  %v10902 = vld [vmem:[#allocation2 + $0x218] sm:$0xff]
  %v10903 = vld [vmem:[#allocation2 + $0x220] sm:$0xff]
  %v10904 = vld [vmem:[#allocation2 + $0x228] sm:$0xff]
  %v10905 = vld [vmem:[#allocation2 + $0x230] sm:$0xff]
  %v10906 = vld [vmem:[#allocation2 + $0x238] sm:$0xff]
  %v10907 = vld [vmem:[#allocation2 + $0x240] sm:$0xff]
  %v10908 = vld [vmem:[#allocation2 + $0x248] sm:$0xff]
  %v10909 = vld [vmem:[#allocation2 + $0x250] sm:$0xff]
  %v10910 = vld [vmem:[#allocation2 + $0x258] sm:$0xff]
  %v10911 = vld [vmem:[#allocation2 + $0x260] sm:$0xff]
  %v10912 = vld [vmem:[#allocation2 + $0x268] sm:$0xff]
  %v10913 = vld [vmem:[#allocation2 + $0x270] sm:$0xff]
  %v10914 = vld [vmem:[#allocation2 + $0x278] sm:$0xff]
  %v10915 = vld [vmem:[#allocation2 + $0x280] sm:$0xff]
  %v10916 = vld [vmem:[#allocation2 + $0x288] sm:$0xff]
  %v10917 = vld [vmem:[#allocation2 + $0x290] sm:$0xff]
  %v10918 = vld [vmem:[#allocation2 + $0x298] sm:$0xff]
  %v10919 = vld [vmem:[#allocation2 + $0x2a0] sm:$0xff]
  %v10920 = vld [vmem:[#allocation2 + $0x2a8] sm:$0xff]
  %v10921 = vld [vmem:[#allocation2 + $0x2b0] sm:$0xff]
  %v10922 = vld [vmem:[#allocation2 + $0x2b8] sm:$0xff]
  %v10923 = vld [vmem:[#allocation2 + $0x2c0] sm:$0xff]
  %v10924 = vld [vmem:[#allocation2 + $0x2c8] sm:$0xff]
  %v10925 = vld [vmem:[#allocation2 + $0x2d0] sm:$0xff]
  %v10926 = vld [vmem:[#allocation2 + $0x2d8] sm:$0xff]
  %v10927 = vld [vmem:[#allocation2 + $0x2e0] sm:$0xff]
  %v10928 = vld [vmem:[#allocation2 + $0x2e8] sm:$0xff]
  %v10929 = vld [vmem:[#allocation2 + $0x2f0] sm:$0xff]
  %v10930 = vld [vmem:[#allocation2 + $0x2f8] sm:$0xff]
  %v10931 = vld [vmem:[#allocation2 + $0x300] sm:$0xff]
  %v10932 = vld [vmem:[#allocation2 + $0x308] sm:$0xff]
  %v10933 = vld [vmem:[#allocation2 + $0x310] sm:$0xff]
  %v10934 = vld [vmem:[#allocation2 + $0x318] sm:$0xff]
  %v10935 = vld [vmem:[#allocation2 + $0x320] sm:$0xff]
  %v10936 = vld [vmem:[#allocation2 + $0x328] sm:$0xff]
  %v10937 = vld [vmem:[#allocation2 + $0x330] sm:$0xff]
  %v10938 = vld [vmem:[#allocation2 + $0x338] sm:$0xff]
  %v10939 = vld [vmem:[#allocation2 + $0x340] sm:$0xff]
  %v10940 = vld [vmem:[#allocation2 + $0x348] sm:$0xff]
  %v10941 = vld [vmem:[#allocation2 + $0x350] sm:$0xff]
  %v10942 = vld [vmem:[#allocation2 + $0x358] sm:$0xff]
  %v10943 = vld [vmem:[#allocation2 + $0x360] sm:$0xff]
  %v10944 = vld [vmem:[#allocation2 + $0x368] sm:$0xff]
  %v10945 = vld [vmem:[#allocation2 + $0x370] sm:$0xff]
  %v10946 = vld [vmem:[#allocation2 + $0x378] sm:$0xff]
  %v10947 = vld [vmem:[#allocation2 + $0x380] sm:$0xff]
  %v10948 = vld [vmem:[#allocation2 + $0x388] sm:$0xff]
  %v10949 = vld [vmem:[#allocation2 + $0x390] sm:$0xff]
  %v10950 = vld [vmem:[#allocation2 + $0x398] sm:$0xff]
  %v10951 = vld [vmem:[#allocation2 + $0x3a0] sm:$0xff]
  %v10952 = vld [vmem:[#allocation2 + $0x3a8] sm:$0xff]
  %v10953 = vld [vmem:[#allocation2 + $0x3b0] sm:$0xff]
  %v10954 = vld [vmem:[#allocation2 + $0x3b8] sm:$0xff]
  %v10955 = vld [vmem:[#allocation2 + $0x3c0] sm:$0xff]
  %v10956 = vld [vmem:[#allocation2 + $0x3c8] sm:$0xff]
  %v10957 = vld [vmem:[#allocation2 + $0x3d0] sm:$0xff]
  %v10958 = vld [vmem:[#allocation2 + $0x3d8] sm:$0xff]
  %v10959 = vld [vmem:[#allocation2 + $0x3e0] sm:$0xff]
  %v10960 = vld [vmem:[#allocation2 + $0x3e8] sm:$0xff]
  %v10961 = vld [vmem:[#allocation2 + $0x3f0] sm:$0xff]
  %v10962 = vld [vmem:[#allocation2 + $0x3f8] sm:$0xff]
  %v10963 = vld [vmem:[#allocation2 + $0x400] sm:$0xff]
  %v10964 = vld [vmem:[#allocation2 + $0x408] sm:$0xff]
  %v10965 = vld [vmem:[#allocation2 + $0x410] sm:$0xff]
  %v10966 = vld [vmem:[#allocation2 + $0x418] sm:$0xff]
  %v10967 = vld [vmem:[#allocation2 + $0x420] sm:$0xff]
  %v10968 = vld [vmem:[#allocation2 + $0x428] sm:$0xff]
  %v10969 = vld [vmem:[#allocation2 + $0x430] sm:$0xff]
  %v10970 = vld [vmem:[#allocation2 + $0x438] sm:$0xff]
  %v10971 = vld [vmem:[#allocation2 + $0x440] sm:$0xff]
  %v10972 = vld [vmem:[#allocation2 + $0x448] sm:$0xff]
  %v10973 = vld [vmem:[#allocation2 + $0x450] sm:$0xff]
  %v10974 = vld [vmem:[#allocation2 + $0x458] sm:$0xff]
  %v10975 = vld [vmem:[#allocation2 + $0x460] sm:$0xff]
  %v10976 = vld [vmem:[#allocation2 + $0x468] sm:$0xff]
  %v10977 = vld [vmem:[#allocation2 + $0x470] sm:$0xff]
  %v10978 = vld [vmem:[#allocation2 + $0x478] sm:$0xff]
  %v10979 = vld [vmem:[#allocation2 + $0x480] sm:$0xff]
  %v10980 = vld [vmem:[#allocation2 + $0x488] sm:$0xff]
  %v10981 = vld [vmem:[#allocation2 + $0x490] sm:$0xff]
  %v10982 = vld [vmem:[#allocation2 + $0x498] sm:$0xff]
  %v10983 = vld [vmem:[#allocation2 + $0x4a0] sm:$0xff]
  %v10984 = vld [vmem:[#allocation2 + $0x4a8] sm:$0xff]
  %10985 = vmatprep.subr.bf16.mxu0 %v10896
  %10986 = vmatpush1.bf16.msra.mxu0 %v10895
  %10987 = vmatprep.subr.bf16.mxu0 %v10898
  %10988 = vmatpush1.bf16.msra.mxu0 %v10897
  %10989 = vmatprep.subr.bf16.mxu0 %v10900
  %10990 = vmatpush1.bf16.msra.mxu0 %v10899
  %10991 = vmatprep.subr.bf16.mxu0 %v10902
  %10992 = vmatpush1.bf16.msra.mxu0 %v10901
  %10993 = vmatprep.subr.bf16.mxu0 %v10904
  %10994 = vmatpush1.bf16.msra.mxu0 %v10903
  %10995 = vmatprep.subr.bf16.mxu0 %v10906
  %10996 = vmatpush1.bf16.msra.mxu0 %v10905
  %10997 = vmatprep.subr.bf16.mxu0 %v10908
  %10998 = vmatpush1.bf16.msra.mxu0 %v10907
  %10999 = vmatprep.subr.bf16.mxu0 %v10910
  %11000 = vmatpush1.bf16.msra.mxu0 %v10909
  %11001 = vmatprep.subr.bf16.mxu0 %v10912
  %11002 = vmatpush1.bf16.msra.mxu0 %v10911
  %11003 = vmatprep.subr.bf16.mxu0 %v10914
  %11004 = vmatpush1.bf16.msra.mxu0 %v10913
  %11005 = vmatprep.subr.bf16.mxu0 %v10916
  %11006 = vmatpush1.bf16.msra.mxu0 %v10915
  %11007 = vmatprep.subr.bf16.mxu0 %v10918
  %11008 = vmatpush1.bf16.msra.mxu0 %v10917
  %11009 = vmatprep.subr.bf16.mxu0 %v10920
  %11010 = vmatpush1.bf16.msra.mxu0 %v10919
  %11011 = vmatprep.subr.bf16.mxu0 %v10922
  %11012 = vmatpush1.bf16.msra.mxu0 %v10921
  %11013 = vmatprep.subr.bf16.mxu0 %v10924
  %11014 = vmatpush1.bf16.msra.mxu0 %v10923
  %11015 = vmatprep.subr.bf16.mxu0 %v10926
  %11016 = vmatpush1.bf16.msra.mxu0 %v10925
  %11017 = vmatprep.mubr.bf16.mxu0 %v9727
  %11018 = vmatmul.mubr.bf16.gmra.mrb[0].mxu0 %v9726
  %v11019 = vpop.f32.mrb[0].mxu0
  %v11020 = vadd.f32 %v952, %v11019
  %v11021 = vpop.f32.mrb[0].mxu0
  %v11022 = vadd.f32 %v952, %v11021
  %v11023 = vpop.f32.mrb[0].mxu0
  %v11024 = vadd.f32 %v957, %v11023
  %v11025 = vpop.f32.mrb[0].mxu0
  %v11026 = vadd.f32 %v957, %v11025
  %11027 = vmatprep.mubr.bf16.mxu0 %v9733
  %11028 = vmatmul.mubr.bf16.gmra.mrb[0].mxu0 %v9732
  %v11029 = vpop.f32.mrb[0].mxu0
  %v11030 = vadd.f32 %v962, %v11029
  %v11031 = vpop.f32.mrb[0].mxu0
  %v11032 = vadd.f32 %v962, %v11031
  %v11033 = vpop.f32.mrb[0].mxu0
  %v11034 = vadd.f32 %v967, %v11033
  %v11035 = vpop.f32.mrb[0].mxu0
  %v11036 = vadd.f32 %v967, %v11035
  %11037 = vmatprep.mubr.bf16.mxu0 %v9739
  %11038 = vmatmul.mubr.bf16.gmra.mrb[0].mxu0 %v9738
  %v11039 = vpop.f32.mrb[0].mxu0
  %v11040 = vadd.f32 %v972, %v11039
  %v11041 = vpop.f32.mrb[0].mxu0
  %v11042 = vadd.f32 %v972, %v11041
  %v11043 = vpop.f32.mrb[0].mxu0
  %v11044 = vadd.f32 %v977, %v11043
  %v11045 = vpop.f32.mrb[0].mxu0
  %v11046 = vadd.f32 %v977, %v11045
  %11047 = vmatprep.mubr.bf16.mxu0 %v9745
  %11048 = vmatmul.mubr.bf16.gmra.mrb[0].mxu0 %v9744
  %v11049 = vpop.f32.mrb[0].mxu0
  %v11050 = vadd.f32 %v982, %v11049
  %v11051 = vpop.f32.mrb[0].mxu0
  %v11052 = vadd.f32 %v982, %v11051
  %v11053 = vpop.f32.mrb[0].mxu0
  %v11054 = vadd.f32 %v987, %v11053
  %v11055 = vpop.f32.mrb[0].mxu0
  %v11056 = vadd.f32 %v987, %v11055
  %11057 = vmatprep.mubr.bf16.mxu0 %v9751
  %11058 = vmatmul.mubr.bf16.gmra.mrb[0].mxu0 %v9750
  %v11059 = vpop.f32.mrb[0].mxu0
  %v11060 = vadd.f32 %v992, %v11059
  %v11061 = vpop.f32.mrb[0].mxu0
  %v11062 = vadd.f32 %v992, %v11061
  %v11063 = vpop.f32.mrb[0].mxu0
  %v11064 = vadd.f32 %v997, %v11063
  %v11065 = vpop.f32.mrb[0].mxu0
  %v11066 = vadd.f32 %v997, %v11065
  %11067 = vmatprep.mubr.bf16.mxu0 %v9757
  %11068 = vmatmul.mubr.bf16.gmra.mrb[0].mxu0 %v9756
  %v11069 = vpop.f32.mrb[0].mxu0
  %v11070 = vadd.f32 %v1002, %v11069
  %v11071 = vpop.f32.mrb[0].mxu0
  %v11072 = vadd.f32 %v1002, %v11071
  %v11073 = vpop.f32.mrb[0].mxu0
  %v11074 = vadd.f32 %v1007, %v11073
  %v11075 = vpop.f32.mrb[0].mxu0
  %v11076 = vadd.f32 %v1007, %v11075
  %11077 = vmatprep.mubr.bf16.mxu0 %v9763
  %11078 = vmatmul.mubr.bf16.gmra.mrb[0].mxu0 %v9762
  %v11079 = vpop.f32.mrb[0].mxu0
  %v11080 = vadd.f32 %v1012, %v11079
  %v11081 = vpop.f32.mrb[0].mxu0
  %v11082 = vadd.f32 %v1012, %v11081
  %v11083 = vpop.f32.mrb[0].mxu0
  %v11084 = vadd.f32 %v1017, %v11083
  %v11085 = vpop.f32.mrb[0].mxu0
  %v11086 = vadd.f32 %v1017, %v11085
  %11087 = vmatprep.mubr.bf16.mxu0 %v9769
  %11088 = vmatmul.mubr.bf16.gmra.mrb[0].mxu0 %v9768
  %v11089 = vpop.f32.mrb[0].mxu0
  %v11090 = vadd.f32 %v1022, %v11089
  %v11091 = vpop.f32.mrb[0].mxu0
  %v11092 = vadd.f32 %v1022, %v11091
  %v11093 = vpop.f32.mrb[0].mxu0
  %v11094 = vadd.f32 %v1027, %v11093
  %v11095 = vpop.f32.mrb[0].mxu0
  %v11096 = vadd.f32 %v1027, %v11095
  %11097 = vmatprep.mubr.bf16.mxu0 %v9775
  %11098 = vmatmul.mubr.bf16.gmra.mrb[0].mxu0 %v9774
  %v11099 = vpop.f32.mrb[0].mxu0
  %v11100 = vadd.f32 %v1032, %v11099
  %v11101 = vpop.f32.mrb[0].mxu0
  %v11102 = vadd.f32 %v1032, %v11101
  %v11103 = vpop.f32.mrb[0].mxu0
  %v11104 = vadd.f32 %v1037, %v11103
  %v11105 = vpop.f32.mrb[0].mxu0
  %v11106 = vadd.f32 %v1037, %v11105
  %11107 = vmatprep.mubr.bf16.mxu0 %v9781
  %11108 = vmatmul.mubr.bf16.gmra.mrb[0].mxu0 %v9780
  %v11109 = vpop.f32.mrb[0].mxu0
  %v11110 = vadd.f32 %v1042, %v11109
  %v11111 = vpop.f32.mrb[0].mxu0
  %v11112 = vadd.f32 %v1042, %v11111
  %v11113 = vpop.f32.mrb[0].mxu0
  %v11114 = vadd.f32 %v1047, %v11113
  %v11115 = vpop.f32.mrb[0].mxu0
  %v11116 = vadd.f32 %v1047, %v11115
  %11117 = vdwg.mxu0
  %11118 = vmatprep.subr.bf16.mxu0 %v10928
  %11119 = vmatpush1.bf16.msra.mxu0 %v10927
  %11120 = vmatprep.subr.bf16.mxu0 %v10930
  %11121 = vmatpush1.bf16.msra.mxu0 %v10929
  %11122 = vmatprep.subr.bf16.mxu0 %v10932
  %11123 = vmatpush1.bf16.msra.mxu0 %v10931
  %11124 = vmatprep.subr.bf16.mxu0 %v10934
  %11125 = vmatpush1.bf16.msra.mxu0 %v10933
  %11126 = vmatprep.subr.bf16.mxu0 %v10936
  %11127 = vmatpush1.bf16.msra.mxu0 %v10935
  %11128 = vmatprep.subr.bf16.mxu0 %v10938
  %11129 = vmatpush1.bf16.msra.mxu0 %v10937
  %11130 = vmatprep.subr.bf16.mxu0 %v10940
  %11131 = vmatpush1.bf16.msra.mxu0 %v10939
  %11132 = vmatprep.subr.bf16.mxu0 %v10942
  %11133 = vmatpush1.bf16.msra.mxu0 %v10941
  %11134 = vmatprep.subr.bf16.mxu0 %v10944
  %11135 = vmatpush1.bf16.msra.mxu0 %v10943
  %11136 = vmatprep.subr.bf16.mxu0 %v10946
  %11137 = vmatpush1.bf16.msra.mxu0 %v10945
  %11138 = vmatprep.subr.bf16.mxu0 %v10948
  %11139 = vmatpush1.bf16.msra.mxu0 %v10947
  %11140 = vmatprep.subr.bf16.mxu0 %v10950
  %11141 = vmatpush1.bf16.msra.mxu0 %v10949
  %11142 = vmatprep.subr.bf16.mxu0 %v10952
  %11143 = vmatpush1.bf16.msra.mxu0 %v10951
  %11144 = vmatprep.subr.bf16.mxu0 %v10954
  %11145 = vmatpush1.bf16.msra.mxu0 %v10953
  %11146 = vmatprep.subr.bf16.mxu0 %v10956
  %11147 = vmatpush1.bf16.msra.mxu0 %v10955
  %11148 = vmatprep.subr.bf16.mxu0 %v10958
  %11149 = vmatpush1.bf16.msra.mxu0 %v10957
  %11150 = vmatprep.mubr.bf16.mxu0 %v9729
  %11151 = vmatmul.mubr.bf16.gmra.mrb[0].mxu0 %v9728
  %v11152 = vpop.f32.mrb[0].mxu0
  %v11153 = vadd.f32 %v11020, %v11152
  %v11154 = vpop.f32.mrb[0].mxu0
  %v11155 = vadd.f32 %v11022, %v11154
  %v11156 = vpop.f32.mrb[0].mxu0
  %v11157 = vadd.f32 %v11024, %v11156
  %v11158 = vpop.f32.mrb[0].mxu0
  %v11159 = vadd.f32 %v11026, %v11158
  %11160 = vmatprep.mubr.bf16.mxu0 %v9735
  %11161 = vmatmul.mubr.bf16.gmra.mrb[0].mxu0 %v9734
  %v11162 = vpop.f32.mrb[0].mxu0
  %v11163 = vadd.f32 %v11030, %v11162
  %v11164 = vpop.f32.mrb[0].mxu0
  %v11165 = vadd.f32 %v11032, %v11164
  %v11166 = vpop.f32.mrb[0].mxu0
  %v11167 = vadd.f32 %v11034, %v11166
  %v11168 = vpop.f32.mrb[0].mxu0
  %v11169 = vadd.f32 %v11036, %v11168
  %11170 = vmatprep.mubr.bf16.mxu0 %v9741
  %11171 = vmatmul.mubr.bf16.gmra.mrb[0].mxu0 %v9740
  %v11172 = vpop.f32.mrb[0].mxu0
  %v11173 = vadd.f32 %v11040, %v11172
  %v11174 = vpop.f32.mrb[0].mxu0
  %v11175 = vadd.f32 %v11042, %v11174
  %v11176 = vpop.f32.mrb[0].mxu0
  %v11177 = vadd.f32 %v11044, %v11176
  %v11178 = vpop.f32.mrb[0].mxu0
  %v11179 = vadd.f32 %v11046, %v11178
  %11180 = vmatprep.mubr.bf16.mxu0 %v9747
  %11181 = vmatmul.mubr.bf16.gmra.mrb[0].mxu0 %v9746
  %v11182 = vpop.f32.mrb[0].mxu0
  %v11183 = vadd.f32 %v11050, %v11182
  %v11184 = vpop.f32.mrb[0].mxu0
  %v11185 = vadd.f32 %v11052, %v11184
  %v11186 = vpop.f32.mrb[0].mxu0
  %v11187 = vadd.f32 %v11054, %v11186
  %v11188 = vpop.f32.mrb[0].mxu0
  %v11189 = vadd.f32 %v11056, %v11188
  %11190 = vmatprep.mubr.bf16.mxu0 %v9753
  %11191 = vmatmul.mubr.bf16.gmra.mrb[0].mxu0 %v9752
  %v11192 = vpop.f32.mrb[0].mxu0
  %v11193 = vadd.f32 %v11060, %v11192
  %v11194 = vpop.f32.mrb[0].mxu0
  %v11195 = vadd.f32 %v11062, %v11194
  %v11196 = vpop.f32.mrb[0].mxu0
  %v11197 = vadd.f32 %v11064, %v11196
  %v11198 = vpop.f32.mrb[0].mxu0
  %v11199 = vadd.f32 %v11066, %v11198
  %11200 = vmatprep.mubr.bf16.mxu0 %v9759
  %11201 = vmatmul.mubr.bf16.gmra.mrb[0].mxu0 %v9758
  %v11202 = vpop.f32.mrb[0].mxu0
  %v11203 = vadd.f32 %v11070, %v11202
  %v11204 = vpop.f32.mrb[0].mxu0
  %v11205 = vadd.f32 %v11072, %v11204
  %v11206 = vpop.f32.mrb[0].mxu0
  %v11207 = vadd.f32 %v11074, %v11206
  %v11208 = vpop.f32.mrb[0].mxu0
  %v11209 = vadd.f32 %v11076, %v11208
  %11210 = vmatprep.mubr.bf16.mxu0 %v9765
  %11211 = vmatmul.mubr.bf16.gmra.mrb[0].mxu0 %v9764
  %v11212 = vpop.f32.mrb[0].mxu0
  %v11213 = vadd.f32 %v11080, %v11212
  %v11214 = vpop.f32.mrb[0].mxu0
  %v11215 = vadd.f32 %v11082, %v11214
  %v11216 = vpop.f32.mrb[0].mxu0
  %v11217 = vadd.f32 %v11084, %v11216
  %v11218 = vpop.f32.mrb[0].mxu0
  %v11219 = vadd.f32 %v11086, %v11218
  %11220 = vmatprep.mubr.bf16.mxu0 %v9771
  %11221 = vmatmul.mubr.bf16.gmra.mrb[0].mxu0 %v9770
  %v11222 = vpop.f32.mrb[0].mxu0
  %v11223 = vadd.f32 %v11090, %v11222
  %v11224 = vpop.f32.mrb[0].mxu0
  %v11225 = vadd.f32 %v11092, %v11224
  %v11226 = vpop.f32.mrb[0].mxu0
  %v11227 = vadd.f32 %v11094, %v11226
  %v11228 = vpop.f32.mrb[0].mxu0
  %v11229 = vadd.f32 %v11096, %v11228
  %11230 = vmatprep.mubr.bf16.mxu0 %v9777
  %11231 = vmatmul.mubr.bf16.gmra.mrb[0].mxu0 %v9776
  %v11232 = vpop.f32.mrb[0].mxu0
  %v11233 = vadd.f32 %v11100, %v11232
  %v11234 = vpop.f32.mrb[0].mxu0
  %v11235 = vadd.f32 %v11102, %v11234
  %v11236 = vpop.f32.mrb[0].mxu0
  %v11237 = vadd.f32 %v11104, %v11236
  %v11238 = vpop.f32.mrb[0].mxu0
  %v11239 = vadd.f32 %v11106, %v11238
  %11240 = vmatprep.mubr.bf16.mxu0 %v9783
  %11241 = vmatmul.mubr.bf16.gmra.mrb[0].mxu0 %v9782
  %v11242 = vpop.f32.mrb[0].mxu0
  %v11243 = vadd.f32 %v11110, %v11242
  %v11244 = vpop.f32.mrb[0].mxu0
  %v11245 = vadd.f32 %v11112, %v11244
  %v11246 = vpop.f32.mrb[0].mxu0
  %v11247 = vadd.f32 %v11114, %v11246
  %v11248 = vpop.f32.mrb[0].mxu0
  %v11249 = vadd.f32 %v11116, %v11248
  %11250 = vdwg.mxu0
  %11251 = vmatprep.subr.bf16.mxu0 %v10960
  %11252 = vmatpush1.bf16.msra.mxu0 %v10959
  %11253 = vmatprep.subr.bf16.mxu0 %v10962
  %11254 = vmatpush1.bf16.msra.mxu0 %v10961
  %11255 = vmatprep.subr.bf16.mxu0 %v10964
  %11256 = vmatpush1.bf16.msra.mxu0 %v10963
  %11257 = vmatprep.subr.bf16.mxu0 %v10966
  %11258 = vmatpush1.bf16.msra.mxu0 %v10965
  %11259 = vmatprep.subr.bf16.mxu0 %v10968
  %11260 = vmatpush1.bf16.msra.mxu0 %v10967
  %11261 = vmatprep.subr.bf16.mxu0 %v10970
  %11262 = vmatpush1.bf16.msra.mxu0 %v10969
  %11263 = vmatprep.subr.bf16.mxu0 %v10972
  %11264 = vmatpush1.bf16.msra.mxu0 %v10971
  %11265 = vmatprep.subr.bf16.mxu0 %v10974
  %11266 = vmatpush1.bf16.msra.mxu0 %v10973
  %11267 = vmatprep.subr.bf16.mxu0 %v10976
  %11268 = vmatpush1.bf16.msra.mxu0 %v10975
  %11269 = vmatprep.subr.bf16.mxu0 %v10978
  %11270 = vmatpush1.bf16.msra.mxu0 %v10977
  %11271 = vmatprep.subr.bf16.mxu0 %v10980
  %11272 = vmatpush1.bf16.msra.mxu0 %v10979
  %11273 = vmatprep.subr.bf16.mxu0 %v10982
  %11274 = vmatpush1.bf16.msra.mxu0 %v10981
  %11275 = vmatprep.subr.bf16.mxu0 %v10984
  %11276 = vmatpush1.bf16.msra.mxu0 %v10983
  %11277 = vmatprep.subr.bf16.mxu0 0
  %11278 = vmatpush1.bf16.msra.mxu0 0
  %11279 = vmatprep.subr.bf16.mxu0 0
  %11280 = vmatpush1.bf16.msra.mxu0 0
  %11281 = vmatprep.subr.bf16.mxu0 0
  %11282 = vmatpush1.bf16.msra.mxu0 0
  %11283 = vmatprep.mubr.bf16.mxu0 %v9838
  %11284 = vmatmul.mubr.bf16.gmra.mrb[0].mxu0 %v9730
  %v11285 = vpop.f32.mrb[0].mxu0
  %v11286 = vadd.f32 %v11153, %v11285
  %v11287 = vpop.f32.mrb[0].mxu0
  %v11288 = vadd.f32 %v11155, %v11287
  %v11289 = vpop.f32.mrb[0].mxu0
  %v11290 = vadd.f32 %v11157, %v11289
  %v11291 = vpop.f32.mrb[0].mxu0
  %v11292 = vadd.f32 %v11159, %v11291
  %11293 = vmatprep.mubr.bf16.mxu0 %v9841
  %11294 = vmatmul.mubr.bf16.gmra.mrb[0].mxu0 %v9736
  %v11295 = vpop.f32.mrb[0].mxu0
  %v11296 = vadd.f32 %v11163, %v11295
  %v11297 = vpop.f32.mrb[0].mxu0
  %v11298 = vadd.f32 %v11165, %v11297
  %v11299 = vpop.f32.mrb[0].mxu0
  %v11300 = vadd.f32 %v11167, %v11299
  %v11301 = vpop.f32.mrb[0].mxu0
  %v11302 = vadd.f32 %v11169, %v11301
  %11303 = vmatprep.mubr.bf16.mxu0 %v9844
  %11304 = vmatmul.mubr.bf16.gmra.mrb[0].mxu0 %v9742
  %v11305 = vpop.f32.mrb[0].mxu0
  %v11306 = vadd.f32 %v11173, %v11305
  %v11307 = vpop.f32.mrb[0].mxu0
  %v11308 = vadd.f32 %v11175, %v11307
  %v11309 = vpop.f32.mrb[0].mxu0
  %v11310 = vadd.f32 %v11177, %v11309
  %v11311 = vpop.f32.mrb[0].mxu0
  %v11312 = vadd.f32 %v11179, %v11311
  %11313 = vmatprep.mubr.bf16.mxu0 %v9847
  %11314 = vmatmul.mubr.bf16.gmra.mrb[0].mxu0 %v9748
  %v11315 = vpop.f32.mrb[0].mxu0
  %v11316 = vadd.f32 %v11183, %v11315
  %v11317 = vpop.f32.mrb[0].mxu0
  %v11318 = vadd.f32 %v11185, %v11317
  %v11319 = vpop.f32.mrb[0].mxu0
  %v11320 = vadd.f32 %v11187, %v11319
  %v11321 = vpop.f32.mrb[0].mxu0
  %v11322 = vadd.f32 %v11189, %v11321
  %11323 = vmatprep.mubr.bf16.mxu0 %v9850
  %11324 = vmatmul.mubr.bf16.gmra.mrb[0].mxu0 %v9754
  %v11325 = vpop.f32.mrb[0].mxu0
  %v11326 = vadd.f32 %v11193, %v11325
  %v11327 = vpop.f32.mrb[0].mxu0
  %v11328 = vadd.f32 %v11195, %v11327
  %v11329 = vpop.f32.mrb[0].mxu0
  %v11330 = vadd.f32 %v11197, %v11329
  %v11331 = vpop.f32.mrb[0].mxu0
  %v11332 = vadd.f32 %v11199, %v11331
  %11333 = vmatprep.mubr.bf16.mxu0 %v9853
  %11334 = vmatmul.mubr.bf16.gmra.mrb[0].mxu0 %v9760
  %v11335 = vpop.f32.mrb[0].mxu0
  %v11336 = vadd.f32 %v11203, %v11335
  %v11337 = vpop.f32.mrb[0].mxu0
  %v11338 = vadd.f32 %v11205, %v11337
  %v11339 = vpop.f32.mrb[0].mxu0
  %v11340 = vadd.f32 %v11207, %v11339
  %v11341 = vpop.f32.mrb[0].mxu0
  %v11342 = vadd.f32 %v11209, %v11341
  %11343 = vmatprep.mubr.bf16.mxu0 %v9856
  %11344 = vmatmul.mubr.bf16.gmra.mrb[0].mxu0 %v9766
  %v11345 = vpop.f32.mrb[0].mxu0
  %v11346 = vadd.f32 %v11213, %v11345
  %v11347 = vpop.f32.mrb[0].mxu0
  %v11348 = vadd.f32 %v11215, %v11347
  %v11349 = vpop.f32.mrb[0].mxu0
  %v11350 = vadd.f32 %v11217, %v11349
  %v11351 = vpop.f32.mrb[0].mxu0
  %v11352 = vadd.f32 %v11219, %v11351
  %11353 = vmatprep.mubr.bf16.mxu0 %v9859
  %11354 = vmatmul.mubr.bf16.gmra.mrb[0].mxu0 %v9772
  %v11355 = vpop.f32.mrb[0].mxu0
  %v11356 = vadd.f32 %v11223, %v11355
  %v11357 = vpop.f32.mrb[0].mxu0
  %v11358 = vadd.f32 %v11225, %v11357
  %v11359 = vpop.f32.mrb[0].mxu0
  %v11360 = vadd.f32 %v11227, %v11359
  %v11361 = vpop.f32.mrb[0].mxu0
  %v11362 = vadd.f32 %v11229, %v11361
  %11363 = vmatprep.mubr.bf16.mxu0 %v9862
  %11364 = vmatmul.mubr.bf16.gmra.mrb[0].mxu0 %v9778
  %v11365 = vpop.f32.mrb[0].mxu0
  %v11366 = vadd.f32 %v11233, %v11365
  %v11367 = vpop.f32.mrb[0].mxu0
  %v11368 = vadd.f32 %v11235, %v11367
  %v11369 = vpop.f32.mrb[0].mxu0
  %v11370 = vadd.f32 %v11237, %v11369
  %v11371 = vpop.f32.mrb[0].mxu0
  %v11372 = vadd.f32 %v11239, %v11371
  %11373 = vmatprep.mubr.bf16.mxu0 %v9865
  %11374 = vmatmul.mubr.bf16.gmra.mrb[0].mxu0 %v9784
  %v11375 = vpop.f32.mrb[0].mxu0
  %v11376 = vadd.f32 %v11243, %v11375
  %v11377 = vpop.f32.mrb[0].mxu0
  %v11378 = vadd.f32 %v11245, %v11377
  %v11379 = vpop.f32.mrb[0].mxu0
  %v11380 = vadd.f32 %v11247, %v11379
  %v11381 = vpop.f32.mrb[0].mxu0
  %v11382 = vadd.f32 %v11249, %v11381
  %11383 = vdwg.mxu0
  %v11384 = vmax.f32 %v11286, 0.0
  %v11385 = vmax.f32 %v11288, 0.0
  %v11386 = vmax.f32 %v11290, 0.0
  %v11387 = vmax.f32 %v11292, 0.0
  %v11388 = vmax.f32 %v11296, 0.0
  %v11389 = vmax.f32 %v11298, 0.0
  %v11390 = vmax.f32 %v11300, 0.0
  %v11391 = vmax.f32 %v11302, 0.0
  %v11392 = vmax.f32 %v11306, 0.0
  %v11393 = vmax.f32 %v11308, 0.0
  %v11394 = vmax.f32 %v11310, 0.0
  %v11395 = vmax.f32 %v11312, 0.0
  %v11396 = vmax.f32 %v11316, 0.0
  %v11397 = vmax.f32 %v11318, 0.0
  %v11398 = vmax.f32 %v11320, 0.0
  %v11399 = vmax.f32 %v11322, 0.0
  %v11400 = vmax.f32 %v11326, 0.0
  %v11401 = vmax.f32 %v11328, 0.0
  %v11402 = vmax.f32 %v11330, 0.0
  %v11403 = vmax.f32 %v11332, 0.0
  %v11404 = vmax.f32 %v11336, 0.0
  %v11405 = vmax.f32 %v11338, 0.0
  %v11406 = vmax.f32 %v11340, 0.0
  %v11407 = vmax.f32 %v11342, 0.0
  %v11408 = vmax.f32 %v11346, 0.0
  %v11409 = vmax.f32 %v11348, 0.0
  %v11410 = vmax.f32 %v11350, 0.0
  %v11411 = vmax.f32 %v11352, 0.0
  %v11412 = vmax.f32 %v11356, 0.0
  %v11413 = vmax.f32 %v11358, 0.0
  %v11414 = vmax.f32 %v11360, 0.0
  %v11415 = vmax.f32 %v11362, 0.0
  %v11416 = vmax.f32 %v11366, 0.0
  %v11417 = vmax.f32 %v11368, 0.0
  %v11418 = vmax.f32 %v11370, 0.0
  %v11419 = vmax.f32 %v11372, 0.0
  %v11420 = vmax.f32 %v11376, 0.0
  %v11421 = vmax.f32 %v11378, 0.0
  %v11422 = vmax.f32 %v11380, 0.0
  %v11423 = vmax.f32 %v11382, 0.0
  %v11424 = vmax.f32 %v11384, %v11394
  %v11425 = vmax.f32 %v11385, %v11395
  %v11426 = vmax.f32 %v11386, %v11396
  %v11427 = vmax.f32 %v11387, %v11397
  %v11428 = vmax.f32 %v11388, %v11398
  %v11429 = vmax.f32 %v11389, %v11399
  %v11430 = vmax.f32 %v11390, %v11400
  %v11431 = vmax.f32 %v11391, %v11401
  %v11432 = vmax.f32 %v11392, %v11402
  %v11433 = vmax.f32 %v11393, %v11403
  %v11434 = vmax.f32 %v11404, %v11414
  %v11435 = vmax.f32 %v11405, %v11415
  %v11436 = vmax.f32 %v11406, %v11416
  %v11437 = vmax.f32 %v11407, %v11417
  %v11438 = vmax.f32 %v11408, %v11418
  %v11439 = vmax.f32 %v11409, %v11419
  %v11440 = vmax.f32 %v11410, %v11420
  %v11441 = vmax.f32 %v11411, %v11421
  %v11442 = vmax.f32 %v11412, %v11422
  %v11443 = vmax.f32 %v11413, %v11423
  %v11444 = vmax.f32 %v11424, %v11434
  %v11445 = vmax.f32 %v11425, %v11435
  %v11446 = vmax.f32 %v11426, %v11436
  %v11447 = vmax.f32 %v11427, %v11437
  %v11448 = vmax.f32 %v11428, %v11438
  %v11449 = vmax.f32 %v11429, %v11439
  %v11450 = vmax.f32 %v11430, %v11440
  %v11451 = vmax.f32 %v11431, %v11441
  %v11452 = vmax.f32 %v11432, %v11442
  %v11453 = vmax.f32 %v11433, %v11443
  %v11454 = vld [vmem:[#allocation2 + $0x2d0] sm:$0xff]
  %v11455 = vld [vmem:[#allocation2 + $0x2d8] sm:$0xff]
  %v11456 = vld [vmem:[#allocation2 + $0x2e0] sm:$0xff]
  %v11457 = vld [vmem:[#allocation2 + $0x2e8] sm:$0xff]
  %v11458 = vld [vmem:[#allocation2 + $0x2f0] sm:$0xff]
  %v11459 = vld [vmem:[#allocation2 + $0x2f8] sm:$0xff]
  %v11460 = vld [vmem:[#allocation2 + $0x300] sm:$0xff]
  %v11461 = vld [vmem:[#allocation2 + $0x308] sm:$0xff]
  %v11462 = vld [vmem:[#allocation2 + $0x310] sm:$0xff]
  %v11463 = vld [vmem:[#allocation2 + $0x318] sm:$0xff]
  %v11464 = vld [vmem:[#allocation2 + $0x320] sm:$0xff]
  %v11465 = vld [vmem:[#allocation2 + $0x328] sm:$0xff]
  %v11466 = vld [vmem:[#allocation2 + $0x330] sm:$0xff]
  %v11467 = vld [vmem:[#allocation2 + $0x338] sm:$0xff]
  %v11468 = vld [vmem:[#allocation2 + $0x340] sm:$0xff]
  %v11469 = vld [vmem:[#allocation2 + $0x348] sm:$0xff]
  %v11470 = vld [vmem:[#allocation2 + $0x350] sm:$0xff]
  %v11471 = vld [vmem:[#allocation2 + $0x358] sm:$0xff]
  %v11472 = vld [vmem:[#allocation2 + $0x360] sm:$0xff]
  %v11473 = vld [vmem:[#allocation2 + $0x368] sm:$0xff]
  %v11474 = vld [vmem:[#allocation2 + $0x370] sm:$0xff]
  %v11475 = vld [vmem:[#allocation2 + $0x378] sm:$0xff]
  %v11476 = vld [vmem:[#allocation2 + $0x380] sm:$0xff]
  %v11477 = vld [vmem:[#allocation2 + $0x388] sm:$0xff]
  %v11478 = vld [vmem:[#allocation2 + $0x390] sm:$0xff]
  %v11479 = vld [vmem:[#allocation2 + $0x398] sm:$0xff]
  %v11480 = vld [vmem:[#allocation2 + $0x3a0] sm:$0xff]
  %v11481 = vld [vmem:[#allocation2 + $0x3a8] sm:$0xff]
  %v11482 = vld [vmem:[#allocation2 + $0x3b0] sm:$0xff]
  %v11483 = vld [vmem:[#allocation2 + $0x3b8] sm:$0xff]
  %v11484 = vld [vmem:[#allocation2 + $0x3c0] sm:$0xff]
  %v11485 = vld [vmem:[#allocation2 + $0x3c8] sm:$0xff]
  %v11486 = vld [vmem:[#allocation2 + $0x3d0] sm:$0xff]
  %v11487 = vld [vmem:[#allocation2 + $0x3d8] sm:$0xff]
  %v11488 = vld [vmem:[#allocation2 + $0x3e0] sm:$0xff]
  %v11489 = vld [vmem:[#allocation2 + $0x3e8] sm:$0xff]
  %v11490 = vld [vmem:[#allocation2 + $0x3f0] sm:$0xff]
  %v11491 = vld [vmem:[#allocation2 + $0x3f8] sm:$0xff]
  %v11492 = vld [vmem:[#allocation2 + $0x400] sm:$0xff]
  %v11493 = vld [vmem:[#allocation2 + $0x408] sm:$0xff]
  %v11494 = vld [vmem:[#allocation2 + $0x410] sm:$0xff]
  %v11495 = vld [vmem:[#allocation2 + $0x418] sm:$0xff]
  %v11496 = vld [vmem:[#allocation2 + $0x420] sm:$0xff]
  %v11497 = vld [vmem:[#allocation2 + $0x428] sm:$0xff]
  %v11498 = vld [vmem:[#allocation2 + $0x430] sm:$0xff]
  %v11499 = vld [vmem:[#allocation2 + $0x438] sm:$0xff]
  %v11500 = vld [vmem:[#allocation2 + $0x440] sm:$0xff]
  %v11501 = vld [vmem:[#allocation2 + $0x448] sm:$0xff]
  %v11502 = vld [vmem:[#allocation2 + $0x450] sm:$0xff]
  %v11503 = vld [vmem:[#allocation2 + $0x458] sm:$0xff]
  %v11504 = vld [vmem:[#allocation2 + $0x460] sm:$0xff]
  %v11505 = vld [vmem:[#allocation2 + $0x468] sm:$0xff]
  %v11506 = vld [vmem:[#allocation2 + $0x470] sm:$0xff]
  %v11507 = vld [vmem:[#allocation2 + $0x478] sm:$0xff]
  %v11508 = vld [vmem:[#allocation2 + $0x480] sm:$0xff]
  %v11509 = vld [vmem:[#allocation2 + $0x488] sm:$0xff]
  %v11510 = vld [vmem:[#allocation2 + $0x490] sm:$0xff]
  %v11511 = vld [vmem:[#allocation2 + $0x498] sm:$0xff]
  %v11512 = vld [vmem:[#allocation2 + $0x4a0] sm:$0xff]
  %v11513 = vld [vmem:[#allocation2 + $0x4a8] sm:$0xff]
  %v11514 = vld [vmem:[#allocation2 + $0x4b0] sm:$0xff]
  %v11515 = vld [vmem:[#allocation2 + $0x4b8] sm:$0xff]
  %v11516 = vld [vmem:[#allocation2 + $0x4c0] sm:$0xff]
  %v11517 = vld [vmem:[#allocation2 + $0x4c8] sm:$0xff]
  %v11518 = vld [vmem:[#allocation2 + $0x4d0] sm:$0xff]
  %v11519 = vld [vmem:[#allocation2 + $0x4d8] sm:$0xff]
  %v11520 = vld [vmem:[#allocation2 + $0x4e0] sm:$0xff]
  %v11521 = vld [vmem:[#allocation2 + $0x4e8] sm:$0xff]
  %v11522 = vld [vmem:[#allocation2 + $0x4f0] sm:$0xff]
  %v11523 = vld [vmem:[#allocation2 + $0x4f8] sm:$0xff]
  %v11524 = vld [vmem:[#allocation2 + $0x500] sm:$0xff]
  %v11525 = vld [vmem:[#allocation2 + $0x508] sm:$0xff]
  %v11526 = vld [vmem:[#allocation2 + $0x510] sm:$0xff]
  %v11527 = vld [vmem:[#allocation2 + $0x518] sm:$0xff]
  %v11528 = vld [vmem:[#allocation2 + $0x520] sm:$0xff]
  %v11529 = vld [vmem:[#allocation2 + $0x528] sm:$0xff]
  %v11530 = vld [vmem:[#allocation2 + $0x530] sm:$0xff]
  %v11531 = vld [vmem:[#allocation2 + $0x538] sm:$0xff]
  %v11532 = vld [vmem:[#allocation2 + $0x540] sm:$0xff]
  %v11533 = vld [vmem:[#allocation2 + $0x548] sm:$0xff]
  %v11534 = vld [vmem:[#allocation2 + $0x550] sm:$0xff]
  %v11535 = vld [vmem:[#allocation2 + $0x558] sm:$0xff]
  %v11536 = vld [vmem:[#allocation2 + $0x560] sm:$0xff]
  %v11537 = vld [vmem:[#allocation2 + $0x568] sm:$0xff]
  %v11538 = vld [vmem:[#allocation2 + $0x570] sm:$0xff]
  %v11539 = vld [vmem:[#allocation2 + $0x578] sm:$0xff]
  %v11540 = vld [vmem:[#allocation2 + $0x580] sm:$0xff]
  %v11541 = vld [vmem:[#allocation2 + $0x588] sm:$0xff]
  %v11542 = vld [vmem:[#allocation2 + $0x590] sm:$0xff]
  %v11543 = vld [vmem:[#allocation2 + $0x598] sm:$0xff]
  %11544 = vmatprep.subr.bf16.mxu0 %v11455
  %11545 = vmatpush1.bf16.msra.mxu0 %v11454
  %11546 = vmatprep.subr.bf16.mxu0 %v11457
  %11547 = vmatpush1.bf16.msra.mxu0 %v11456
  %11548 = vmatprep.subr.bf16.mxu0 %v11459
  %11549 = vmatpush1.bf16.msra.mxu0 %v11458
  %11550 = vmatprep.subr.bf16.mxu0 %v11461
  %11551 = vmatpush1.bf16.msra.mxu0 %v11460
  %11552 = vmatprep.subr.bf16.mxu0 %v11463
  %11553 = vmatpush1.bf16.msra.mxu0 %v11462
  %11554 = vmatprep.subr.bf16.mxu0 %v11465
  %11555 = vmatpush1.bf16.msra.mxu0 %v11464
  %11556 = vmatprep.subr.bf16.mxu0 %v11467
  %11557 = vmatpush1.bf16.msra.mxu0 %v11466
  %11558 = vmatprep.subr.bf16.mxu0 %v11469
  %11559 = vmatpush1.bf16.msra.mxu0 %v11468
  %11560 = vmatprep.subr.bf16.mxu0 %v11471
  %11561 = vmatpush1.bf16.msra.mxu0 %v11470
  %11562 = vmatprep.subr.bf16.mxu0 %v11473
  %11563 = vmatpush1.bf16.msra.mxu0 %v11472
  %11564 = vmatprep.subr.bf16.mxu0 %v11475
  %11565 = vmatpush1.bf16.msra.mxu0 %v11474
  %11566 = vmatprep.subr.bf16.mxu0 %v11477
  %11567 = vmatpush1.bf16.msra.mxu0 %v11476
  %11568 = vmatprep.subr.bf16.mxu0 %v11479
  %11569 = vmatpush1.bf16.msra.mxu0 %v11478
  %11570 = vmatprep.subr.bf16.mxu0 %v11481
  %11571 = vmatpush1.bf16.msra.mxu0 %v11480
  %11572 = vmatprep.subr.bf16.mxu0 %v11483
  %11573 = vmatpush1.bf16.msra.mxu0 %v11482
  %11574 = vmatprep.subr.bf16.mxu0 %v11485
  %11575 = vmatpush1.bf16.msra.mxu0 %v11484
  %11576 = vmatprep.mubr.bf16.mxu0 %v9727
  %11577 = vmatmul.mubr.bf16.gmra.mrb[0].mxu0 %v9726
  %v11578 = vpop.f32.mrb[0].mxu0
  %v11579 = vadd.f32 %v952, %v11578
  %v11580 = vpop.f32.mrb[0].mxu0
  %v11581 = vadd.f32 %v952, %v11580
  %v11582 = vpop.f32.mrb[0].mxu0
  %v11583 = vadd.f32 %v957, %v11582
  %v11584 = vpop.f32.mrb[0].mxu0
  %v11585 = vadd.f32 %v957, %v11584
  %11586 = vmatprep.mubr.bf16.mxu0 %v9733
  %11587 = vmatmul.mubr.bf16.gmra.mrb[0].mxu0 %v9732
  %v11588 = vpop.f32.mrb[0].mxu0
  %v11589 = vadd.f32 %v962, %v11588
  %v11590 = vpop.f32.mrb[0].mxu0
  %v11591 = vadd.f32 %v962, %v11590
  %v11592 = vpop.f32.mrb[0].mxu0
  %v11593 = vadd.f32 %v967, %v11592
  %v11594 = vpop.f32.mrb[0].mxu0
  %v11595 = vadd.f32 %v967, %v11594
  %11596 = vmatprep.mubr.bf16.mxu0 %v9739
  %11597 = vmatmul.mubr.bf16.gmra.mrb[0].mxu0 %v9738
  %v11598 = vpop.f32.mrb[0].mxu0
  %v11599 = vadd.f32 %v972, %v11598
  %v11600 = vpop.f32.mrb[0].mxu0
  %v11601 = vadd.f32 %v972, %v11600
  %v11602 = vpop.f32.mrb[0].mxu0
  %v11603 = vadd.f32 %v977, %v11602
  %v11604 = vpop.f32.mrb[0].mxu0
  %v11605 = vadd.f32 %v977, %v11604
  %11606 = vmatprep.mubr.bf16.mxu0 %v9745
  %11607 = vmatmul.mubr.bf16.gmra.mrb[0].mxu0 %v9744
  %v11608 = vpop.f32.mrb[0].mxu0
  %v11609 = vadd.f32 %v982, %v11608
  %v11610 = vpop.f32.mrb[0].mxu0
  %v11611 = vadd.f32 %v982, %v11610
  %v11612 = vpop.f32.mrb[0].mxu0
  %v11613 = vadd.f32 %v987, %v11612
  %v11614 = vpop.f32.mrb[0].mxu0
  %v11615 = vadd.f32 %v987, %v11614
  %11616 = vmatprep.mubr.bf16.mxu0 %v9751
  %11617 = vmatmul.mubr.bf16.gmra.mrb[0].mxu0 %v9750
  %v11618 = vpop.f32.mrb[0].mxu0
  %v11619 = vadd.f32 %v992, %v11618
  %v11620 = vpop.f32.mrb[0].mxu0
  %v11621 = vadd.f32 %v992, %v11620
  %v11622 = vpop.f32.mrb[0].mxu0
  %v11623 = vadd.f32 %v997, %v11622
  %v11624 = vpop.f32.mrb[0].mxu0
  %v11625 = vadd.f32 %v997, %v11624
  %11626 = vmatprep.mubr.bf16.mxu0 %v9757
  %11627 = vmatmul.mubr.bf16.gmra.mrb[0].mxu0 %v9756
  %v11628 = vpop.f32.mrb[0].mxu0
  %v11629 = vadd.f32 %v1002, %v11628
  %v11630 = vpop.f32.mrb[0].mxu0
  %v11631 = vadd.f32 %v1002, %v11630
  %v11632 = vpop.f32.mrb[0].mxu0
  %v11633 = vadd.f32 %v1007, %v11632
  %v11634 = vpop.f32.mrb[0].mxu0
  %v11635 = vadd.f32 %v1007, %v11634
  %11636 = vmatprep.mubr.bf16.mxu0 %v9763
  %11637 = vmatmul.mubr.bf16.gmra.mrb[0].mxu0 %v9762
  %v11638 = vpop.f32.mrb[0].mxu0
  %v11639 = vadd.f32 %v1012, %v11638
  %v11640 = vpop.f32.mrb[0].mxu0
  %v11641 = vadd.f32 %v1012, %v11640
  %v11642 = vpop.f32.mrb[0].mxu0
  %v11643 = vadd.f32 %v1017, %v11642
  %v11644 = vpop.f32.mrb[0].mxu0
  %v11645 = vadd.f32 %v1017, %v11644
  %11646 = vmatprep.mubr.bf16.mxu0 %v9769
  %11647 = vmatmul.mubr.bf16.gmra.mrb[0].mxu0 %v9768
  %v11648 = vpop.f32.mrb[0].mxu0
  %v11649 = vadd.f32 %v1022, %v11648
  %v11650 = vpop.f32.mrb[0].mxu0
  %v11651 = vadd.f32 %v1022, %v11650
  %v11652 = vpop.f32.mrb[0].mxu0
  %v11653 = vadd.f32 %v1027, %v11652
  %v11654 = vpop.f32.mrb[0].mxu0
  %v11655 = vadd.f32 %v1027, %v11654
  %11656 = vmatprep.mubr.bf16.mxu0 %v9775
  %11657 = vmatmul.mubr.bf16.gmra.mrb[0].mxu0 %v9774
  %v11658 = vpop.f32.mrb[0].mxu0
  %v11659 = vadd.f32 %v1032, %v11658
  %v11660 = vpop.f32.mrb[0].mxu0
  %v11661 = vadd.f32 %v1032, %v11660
  %v11662 = vpop.f32.mrb[0].mxu0
  %v11663 = vadd.f32 %v1037, %v11662
  %v11664 = vpop.f32.mrb[0].mxu0
  %v11665 = vadd.f32 %v1037, %v11664
  %11666 = vmatprep.mubr.bf16.mxu0 %v9781
  %11667 = vmatmul.mubr.bf16.gmra.mrb[0].mxu0 %v9780
  %v11668 = vpop.f32.mrb[0].mxu0
  %v11669 = vadd.f32 %v1042, %v11668
  %v11670 = vpop.f32.mrb[0].mxu0
  %v11671 = vadd.f32 %v1042, %v11670
  %v11672 = vpop.f32.mrb[0].mxu0
  %v11673 = vadd.f32 %v1047, %v11672
  %v11674 = vpop.f32.mrb[0].mxu0
  %v11675 = vadd.f32 %v1047, %v11674
  %11676 = vdwg.mxu0
  %11677 = vmatprep.subr.bf16.mxu0 %v11487
  %11678 = vmatpush1.bf16.msra.mxu0 %v11486
  %11679 = vmatprep.subr.bf16.mxu0 %v11489
  %11680 = vmatpush1.bf16.msra.mxu0 %v11488
  %11681 = vmatprep.subr.bf16.mxu0 %v11491
  %11682 = vmatpush1.bf16.msra.mxu0 %v11490
  %11683 = vmatprep.subr.bf16.mxu0 %v11493
  %11684 = vmatpush1.bf16.msra.mxu0 %v11492
  %11685 = vmatprep.subr.bf16.mxu0 %v11495
  %11686 = vmatpush1.bf16.msra.mxu0 %v11494
  %11687 = vmatprep.subr.bf16.mxu0 %v11497
  %11688 = vmatpush1.bf16.msra.mxu0 %v11496
  %11689 = vmatprep.subr.bf16.mxu0 %v11499
  %11690 = vmatpush1.bf16.msra.mxu0 %v11498
  %11691 = vmatprep.subr.bf16.mxu0 %v11501
  %11692 = vmatpush1.bf16.msra.mxu0 %v11500
  %11693 = vmatprep.subr.bf16.mxu0 %v11503
  %11694 = vmatpush1.bf16.msra.mxu0 %v11502
  %11695 = vmatprep.subr.bf16.mxu0 %v11505
  %11696 = vmatpush1.bf16.msra.mxu0 %v11504
  %11697 = vmatprep.subr.bf16.mxu0 %v11507
  %11698 = vmatpush1.bf16.msra.mxu0 %v11506
  %11699 = vmatprep.subr.bf16.mxu0 %v11509
  %11700 = vmatpush1.bf16.msra.mxu0 %v11508
  %11701 = vmatprep.subr.bf16.mxu0 %v11511
  %11702 = vmatpush1.bf16.msra.mxu0 %v11510
  %11703 = vmatprep.subr.bf16.mxu0 %v11513
  %11704 = vmatpush1.bf16.msra.mxu0 %v11512
  %11705 = vmatprep.subr.bf16.mxu0 %v11515
  %11706 = vmatpush1.bf16.msra.mxu0 %v11514
  %11707 = vmatprep.subr.bf16.mxu0 %v11517
  %11708 = vmatpush1.bf16.msra.mxu0 %v11516
  %11709 = vmatprep.mubr.bf16.mxu0 %v9729
  %11710 = vmatmul.mubr.bf16.gmra.mrb[0].mxu0 %v9728
  %v11711 = vpop.f32.mrb[0].mxu0
  %v11712 = vadd.f32 %v11579, %v11711
  %v11713 = vpop.f32.mrb[0].mxu0
  %v11714 = vadd.f32 %v11581, %v11713
  %v11715 = vpop.f32.mrb[0].mxu0
  %v11716 = vadd.f32 %v11583, %v11715
  %v11717 = vpop.f32.mrb[0].mxu0
  %v11718 = vadd.f32 %v11585, %v11717
  %11719 = vmatprep.mubr.bf16.mxu0 %v9735
  %11720 = vmatmul.mubr.bf16.gmra.mrb[0].mxu0 %v9734
  %v11721 = vpop.f32.mrb[0].mxu0
  %v11722 = vadd.f32 %v11589, %v11721
  %v11723 = vpop.f32.mrb[0].mxu0
  %v11724 = vadd.f32 %v11591, %v11723
  %v11725 = vpop.f32.mrb[0].mxu0
  %v11726 = vadd.f32 %v11593, %v11725
  %v11727 = vpop.f32.mrb[0].mxu0
  %v11728 = vadd.f32 %v11595, %v11727
  %11729 = vmatprep.mubr.bf16.mxu0 %v9741
  %11730 = vmatmul.mubr.bf16.gmra.mrb[0].mxu0 %v9740
  %v11731 = vpop.f32.mrb[0].mxu0
  %v11732 = vadd.f32 %v11599, %v11731
  %v11733 = vpop.f32.mrb[0].mxu0
  %v11734 = vadd.f32 %v11601, %v11733
  %v11735 = vpop.f32.mrb[0].mxu0
  %v11736 = vadd.f32 %v11603, %v11735
  %v11737 = vpop.f32.mrb[0].mxu0
  %v11738 = vadd.f32 %v11605, %v11737
  %11739 = vmatprep.mubr.bf16.mxu0 %v9747
  %11740 = vmatmul.mubr.bf16.gmra.mrb[0].mxu0 %v9746
  %v11741 = vpop.f32.mrb[0].mxu0
  %v11742 = vadd.f32 %v11609, %v11741
  %v11743 = vpop.f32.mrb[0].mxu0
  %v11744 = vadd.f32 %v11611, %v11743
  %v11745 = vpop.f32.mrb[0].mxu0
  %v11746 = vadd.f32 %v11613, %v11745
  %v11747 = vpop.f32.mrb[0].mxu0
  %v11748 = vadd.f32 %v11615, %v11747
  %11749 = vmatprep.mubr.bf16.mxu0 %v9753
  %11750 = vmatmul.mubr.bf16.gmra.mrb[0].mxu0 %v9752
  %v11751 = vpop.f32.mrb[0].mxu0
  %v11752 = vadd.f32 %v11619, %v11751
  %v11753 = vpop.f32.mrb[0].mxu0
  %v11754 = vadd.f32 %v11621, %v11753
  %v11755 = vpop.f32.mrb[0].mxu0
  %v11756 = vadd.f32 %v11623, %v11755
  %v11757 = vpop.f32.mrb[0].mxu0
  %v11758 = vadd.f32 %v11625, %v11757
  %11759 = vmatprep.mubr.bf16.mxu0 %v9759
  %11760 = vmatmul.mubr.bf16.gmra.mrb[0].mxu0 %v9758
  %v11761 = vpop.f32.mrb[0].mxu0
  %v11762 = vadd.f32 %v11629, %v11761
  %v11763 = vpop.f32.mrb[0].mxu0
  %v11764 = vadd.f32 %v11631, %v11763
  %v11765 = vpop.f32.mrb[0].mxu0
  %v11766 = vadd.f32 %v11633, %v11765
  %v11767 = vpop.f32.mrb[0].mxu0
  %v11768 = vadd.f32 %v11635, %v11767
  %11769 = vmatprep.mubr.bf16.mxu0 %v9765
  %11770 = vmatmul.mubr.bf16.gmra.mrb[0].mxu0 %v9764
  %v11771 = vpop.f32.mrb[0].mxu0
  %v11772 = vadd.f32 %v11639, %v11771
  %v11773 = vpop.f32.mrb[0].mxu0
  %v11774 = vadd.f32 %v11641, %v11773
  %v11775 = vpop.f32.mrb[0].mxu0
  %v11776 = vadd.f32 %v11643, %v11775
  %v11777 = vpop.f32.mrb[0].mxu0
  %v11778 = vadd.f32 %v11645, %v11777
  %11779 = vmatprep.mubr.bf16.mxu0 %v9771
  %11780 = vmatmul.mubr.bf16.gmra.mrb[0].mxu0 %v9770
  %v11781 = vpop.f32.mrb[0].mxu0
  %v11782 = vadd.f32 %v11649, %v11781
  %v11783 = vpop.f32.mrb[0].mxu0
  %v11784 = vadd.f32 %v11651, %v11783
  %v11785 = vpop.f32.mrb[0].mxu0
  %v11786 = vadd.f32 %v11653, %v11785
  %v11787 = vpop.f32.mrb[0].mxu0
  %v11788 = vadd.f32 %v11655, %v11787
  %11789 = vmatprep.mubr.bf16.mxu0 %v9777
  %11790 = vmatmul.mubr.bf16.gmra.mrb[0].mxu0 %v9776
  %v11791 = vpop.f32.mrb[0].mxu0
  %v11792 = vadd.f32 %v11659, %v11791
  %v11793 = vpop.f32.mrb[0].mxu0
  %v11794 = vadd.f32 %v11661, %v11793
  %v11795 = vpop.f32.mrb[0].mxu0
  %v11796 = vadd.f32 %v11663, %v11795
  %v11797 = vpop.f32.mrb[0].mxu0
  %v11798 = vadd.f32 %v11665, %v11797
  %11799 = vmatprep.mubr.bf16.mxu0 %v9783
  %11800 = vmatmul.mubr.bf16.gmra.mrb[0].mxu0 %v9782
  %v11801 = vpop.f32.mrb[0].mxu0
  %v11802 = vadd.f32 %v11669, %v11801
  %v11803 = vpop.f32.mrb[0].mxu0
  %v11804 = vadd.f32 %v11671, %v11803
  %v11805 = vpop.f32.mrb[0].mxu0
  %v11806 = vadd.f32 %v11673, %v11805
  %v11807 = vpop.f32.mrb[0].mxu0
  %v11808 = vadd.f32 %v11675, %v11807
  %11809 = vdwg.mxu0
  %11810 = vmatprep.subr.bf16.mxu0 %v11519
  %11811 = vmatpush1.bf16.msra.mxu0 %v11518
  %11812 = vmatprep.subr.bf16.mxu0 %v11521
  %11813 = vmatpush1.bf16.msra.mxu0 %v11520
  %11814 = vmatprep.subr.bf16.mxu0 %v11523
  %11815 = vmatpush1.bf16.msra.mxu0 %v11522
  %11816 = vmatprep.subr.bf16.mxu0 %v11525
  %11817 = vmatpush1.bf16.msra.mxu0 %v11524
  %11818 = vmatprep.subr.bf16.mxu0 %v11527
  %11819 = vmatpush1.bf16.msra.mxu0 %v11526
  %11820 = vmatprep.subr.bf16.mxu0 %v11529
  %11821 = vmatpush1.bf16.msra.mxu0 %v11528
  %11822 = vmatprep.subr.bf16.mxu0 %v11531
  %11823 = vmatpush1.bf16.msra.mxu0 %v11530
  %11824 = vmatprep.subr.bf16.mxu0 %v11533
  %11825 = vmatpush1.bf16.msra.mxu0 %v11532
  %11826 = vmatprep.subr.bf16.mxu0 %v11535
  %11827 = vmatpush1.bf16.msra.mxu0 %v11534
  %11828 = vmatprep.subr.bf16.mxu0 %v11537
  %11829 = vmatpush1.bf16.msra.mxu0 %v11536
  %11830 = vmatprep.subr.bf16.mxu0 %v11539
  %11831 = vmatpush1.bf16.msra.mxu0 %v11538
  %11832 = vmatprep.subr.bf16.mxu0 %v11541
  %11833 = vmatpush1.bf16.msra.mxu0 %v11540
  %11834 = vmatprep.subr.bf16.mxu0 %v11543
  %11835 = vmatpush1.bf16.msra.mxu0 %v11542
  %11836 = vmatprep.subr.bf16.mxu0 0
  %11837 = vmatpush1.bf16.msra.mxu0 0
  %11838 = vmatprep.subr.bf16.mxu0 0
  %11839 = vmatpush1.bf16.msra.mxu0 0
  %11840 = vmatprep.subr.bf16.mxu0 0
  %11841 = vmatpush1.bf16.msra.mxu0 0
  %11842 = vmatprep.mubr.bf16.mxu0 %v9838
  %11843 = vmatmul.mubr.bf16.gmra.mrb[0].mxu0 %v9730
  %v11844 = vpop.f32.mrb[0].mxu0
  %v11845 = vadd.f32 %v11712, %v11844
  %v11846 = vpop.f32.mrb[0].mxu0
  %v11847 = vadd.f32 %v11714, %v11846
  %v11848 = vpop.f32.mrb[0].mxu0
  %v11849 = vadd.f32 %v11716, %v11848
  %v11850 = vpop.f32.mrb[0].mxu0
  %v11851 = vadd.f32 %v11718, %v11850
  %11852 = vmatprep.mubr.bf16.mxu0 %v9841
  %11853 = vmatmul.mubr.bf16.gmra.mrb[0].mxu0 %v9736
  %v11854 = vpop.f32.mrb[0].mxu0
  %v11855 = vadd.f32 %v11722, %v11854
  %v11856 = vpop.f32.mrb[0].mxu0
  %v11857 = vadd.f32 %v11724, %v11856
  %v11858 = vpop.f32.mrb[0].mxu0
  %v11859 = vadd.f32 %v11726, %v11858
  %v11860 = vpop.f32.mrb[0].mxu0
  %v11861 = vadd.f32 %v11728, %v11860
  %11862 = vmatprep.mubr.bf16.mxu0 %v9844
  %11863 = vmatmul.mubr.bf16.gmra.mrb[0].mxu0 %v9742
  %v11864 = vpop.f32.mrb[0].mxu0
  %v11865 = vadd.f32 %v11732, %v11864
  %v11866 = vpop.f32.mrb[0].mxu0
  %v11867 = vadd.f32 %v11734, %v11866
  %v11868 = vpop.f32.mrb[0].mxu0
  %v11869 = vadd.f32 %v11736, %v11868
  %v11870 = vpop.f32.mrb[0].mxu0
  %v11871 = vadd.f32 %v11738, %v11870
  %11872 = vmatprep.mubr.bf16.mxu0 %v9847
  %11873 = vmatmul.mubr.bf16.gmra.mrb[0].mxu0 %v9748
  %v11874 = vpop.f32.mrb[0].mxu0
  %v11875 = vadd.f32 %v11742, %v11874
  %v11876 = vpop.f32.mrb[0].mxu0
  %v11877 = vadd.f32 %v11744, %v11876
  %v11878 = vpop.f32.mrb[0].mxu0
  %v11879 = vadd.f32 %v11746, %v11878
  %v11880 = vpop.f32.mrb[0].mxu0
  %v11881 = vadd.f32 %v11748, %v11880
  %11882 = vmatprep.mubr.bf16.mxu0 %v9850
  %11883 = vmatmul.mubr.bf16.gmra.mrb[0].mxu0 %v9754
  %v11884 = vpop.f32.mrb[0].mxu0
  %v11885 = vadd.f32 %v11752, %v11884
  %v11886 = vpop.f32.mrb[0].mxu0
  %v11887 = vadd.f32 %v11754, %v11886
  %v11888 = vpop.f32.mrb[0].mxu0
  %v11889 = vadd.f32 %v11756, %v11888
  %v11890 = vpop.f32.mrb[0].mxu0
  %v11891 = vadd.f32 %v11758, %v11890
  %11892 = vmatprep.mubr.bf16.mxu0 %v9853
  %11893 = vmatmul.mubr.bf16.gmra.mrb[0].mxu0 %v9760
  %v11894 = vpop.f32.mrb[0].mxu0
  %v11895 = vadd.f32 %v11762, %v11894
  %v11896 = vpop.f32.mrb[0].mxu0
  %v11897 = vadd.f32 %v11764, %v11896
  %v11898 = vpop.f32.mrb[0].mxu0
  %v11899 = vadd.f32 %v11766, %v11898
  %v11900 = vpop.f32.mrb[0].mxu0
  %v11901 = vadd.f32 %v11768, %v11900
  %11902 = vmatprep.mubr.bf16.mxu0 %v9856
  %11903 = vmatmul.mubr.bf16.gmra.mrb[0].mxu0 %v9766
  %v11904 = vpop.f32.mrb[0].mxu0
  %v11905 = vadd.f32 %v11772, %v11904
  %v11906 = vpop.f32.mrb[0].mxu0
  %v11907 = vadd.f32 %v11774, %v11906
  %v11908 = vpop.f32.mrb[0].mxu0
  %v11909 = vadd.f32 %v11776, %v11908
  %v11910 = vpop.f32.mrb[0].mxu0
  %v11911 = vadd.f32 %v11778, %v11910
  %11912 = vmatprep.mubr.bf16.mxu0 %v9859
  %11913 = vmatmul.mubr.bf16.gmra.mrb[0].mxu0 %v9772
  %v11914 = vpop.f32.mrb[0].mxu0
  %v11915 = vadd.f32 %v11782, %v11914
  %v11916 = vpop.f32.mrb[0].mxu0
  %v11917 = vadd.f32 %v11784, %v11916
  %v11918 = vpop.f32.mrb[0].mxu0
  %v11919 = vadd.f32 %v11786, %v11918
  %v11920 = vpop.f32.mrb[0].mxu0
  %v11921 = vadd.f32 %v11788, %v11920
  %11922 = vmatprep.mubr.bf16.mxu0 %v9862
  %11923 = vmatmul.mubr.bf16.gmra.mrb[0].mxu0 %v9778
  %v11924 = vpop.f32.mrb[0].mxu0
  %v11925 = vadd.f32 %v11792, %v11924
  %v11926 = vpop.f32.mrb[0].mxu0
  %v11927 = vadd.f32 %v11794, %v11926
  %v11928 = vpop.f32.mrb[0].mxu0
  %v11929 = vadd.f32 %v11796, %v11928
  %v11930 = vpop.f32.mrb[0].mxu0
  %v11931 = vadd.f32 %v11798, %v11930
  %11932 = vmatprep.mubr.bf16.mxu0 %v9865
  %11933 = vmatmul.mubr.bf16.gmra.mrb[0].mxu0 %v9784
  %v11934 = vpop.f32.mrb[0].mxu0
  %v11935 = vadd.f32 %v11802, %v11934
  %v11936 = vpop.f32.mrb[0].mxu0
  %v11937 = vadd.f32 %v11804, %v11936
  %v11938 = vpop.f32.mrb[0].mxu0
  %v11939 = vadd.f32 %v11806, %v11938
  %v11940 = vpop.f32.mrb[0].mxu0
  %v11941 = vadd.f32 %v11808, %v11940
  %11942 = vdwg.mxu0
  %v11943 = vmax.f32 %v11845, 0.0
  %v11944 = vmax.f32 %v11847, 0.0
  %v11945 = vmax.f32 %v11849, 0.0
  %v11946 = vmax.f32 %v11851, 0.0
  %v11947 = vmax.f32 %v11855, 0.0
  %v11948 = vmax.f32 %v11857, 0.0
  %v11949 = vmax.f32 %v11859, 0.0
  %v11950 = vmax.f32 %v11861, 0.0
  %v11951 = vmax.f32 %v11865, 0.0
  %v11952 = vmax.f32 %v11867, 0.0
  %v11953 = vmax.f32 %v11869, 0.0
  %v11954 = vmax.f32 %v11871, 0.0
  %v11955 = vmax.f32 %v11875, 0.0
  %v11956 = vmax.f32 %v11877, 0.0
  %v11957 = vmax.f32 %v11879, 0.0
  %v11958 = vmax.f32 %v11881, 0.0
  %v11959 = vmax.f32 %v11885, 0.0
  %v11960 = vmax.f32 %v11887, 0.0
  %v11961 = vmax.f32 %v11889, 0.0
  %v11962 = vmax.f32 %v11891, 0.0
  %v11963 = vmax.f32 %v11895, 0.0
  %v11964 = vmax.f32 %v11897, 0.0
  %v11965 = vmax.f32 %v11899, 0.0
  %v11966 = vmax.f32 %v11901, 0.0
  %v11967 = vmax.f32 %v11905, 0.0
  %v11968 = vmax.f32 %v11907, 0.0
  %v11969 = vmax.f32 %v11909, 0.0
  %v11970 = vmax.f32 %v11911, 0.0
  %v11971 = vmax.f32 %v11915, 0.0
  %v11972 = vmax.f32 %v11917, 0.0
  %v11973 = vmax.f32 %v11919, 0.0
  %v11974 = vmax.f32 %v11921, 0.0
  %v11975 = vmax.f32 %v11925, 0.0
  %v11976 = vmax.f32 %v11927, 0.0
  %v11977 = vmax.f32 %v11929, 0.0
  %v11978 = vmax.f32 %v11931, 0.0
  %v11979 = vmax.f32 %v11935, 0.0
  %v11980 = vmax.f32 %v11937, 0.0
  %v11981 = vmax.f32 %v11939, 0.0
  %v11982 = vmax.f32 %v11941, 0.0
  %v11983 = vmax.f32 %v11943, %v11953
  %v11984 = vmax.f32 %v11944, %v11954
  %v11985 = vmax.f32 %v11945, %v11955
  %v11986 = vmax.f32 %v11946, %v11956
  %v11987 = vmax.f32 %v11947, %v11957
  %v11988 = vmax.f32 %v11948, %v11958
  %v11989 = vmax.f32 %v11949, %v11959
  %v11990 = vmax.f32 %v11950, %v11960
  %v11991 = vmax.f32 %v11951, %v11961
  %v11992 = vmax.f32 %v11952, %v11962
  %v11993 = vmax.f32 %v11963, %v11973
  %v11994 = vmax.f32 %v11964, %v11974
  %v11995 = vmax.f32 %v11965, %v11975
  %v11996 = vmax.f32 %v11966, %v11976
  %v11997 = vmax.f32 %v11967, %v11977
  %v11998 = vmax.f32 %v11968, %v11978
  %v11999 = vmax.f32 %v11969, %v11979
  %v12000 = vmax.f32 %v11970, %v11980
  %v12001 = vmax.f32 %v11971, %v11981
  %v12002 = vmax.f32 %v11972, %v11982
  %v12003 = vmax.f32 %v11983, %v11993
  %v12004 = vmax.f32 %v11984, %v11994
  %v12005 = vmax.f32 %v11985, %v11995
  %v12006 = vmax.f32 %v11986, %v11996
  %v12007 = vmax.f32 %v11987, %v11997
  %v12008 = vmax.f32 %v11988, %v11998
  %v12009 = vmax.f32 %v11989, %v11999
  %v12010 = vmax.f32 %v11990, %v12000
  %v12011 = vmax.f32 %v11991, %v12001
  %v12012 = vmax.f32 %v11992, %v12002
  %v12013 = vpack.c.bf16 %v10328, %v10326
  %v12014 = vpack.c.bf16 %v10329, %v10327
  %v12015 = vpack.c.bf16 %v10332, %v10330
  %v12016 = vpack.c.bf16 %v10333, %v10331
  %v12017 = vpack.c.bf16 %v10885, %v10334
  %v12018 = vpack.c.bf16 %v10886, %v10335
  %v12019 = vpack.c.bf16 %v10889, %v10887
  %v12020 = vpack.c.bf16 %v10890, %v10888
  %v12021 = vpack.c.bf16 %v10893, %v10891
  %v12022 = vpack.c.bf16 %v10894, %v10892
  %v12023 = vpack.c.bf16 %v11446, %v11444
  %v12024 = vpack.c.bf16 %v11447, %v11445
  %v12025 = vpack.c.bf16 %v11450, %v11448
  %v12026 = vpack.c.bf16 %v11451, %v11449
  %v12027 = vpack.c.bf16 %v12003, %v11452
  %v12028 = vpack.c.bf16 %v12004, %v11453
  %v12029 = vpack.c.bf16 %v12007, %v12005
  %v12030 = vpack.c.bf16 %v12008, %v12006
  %v12031 = vpack.c.bf16 %v12011, %v12009
  %v12032 = vpack.c.bf16 %v12012, %v12010
  %v12033 = vld [vmem:[%s6] sm:$0xff]
  %v12034 = vld [vmem:[%s6 + $0x8] sm:$0x3]
  %12036 = vset.pattern.permute.xlu0 0
  %12037 = vperm.xlu0 %12036, %v12033
  %v12038 = vpop.permute.xlu0 %12037
  %12041 = vset.pattern.permute.xlu0 0
  %12042 = vperm.xlu0 %12041, %v12034
  %v12043 = vpop.permute.xlu0 %12042
  %v12047 = vunpack.c.l.b16 %v207
  %v12048 = vunpack.c.h.b16 %v207
  %v12049 = vunpack.c.l.b16 %v208
  %v12050 = vunpack.c.h.b16 %v208
  %v12051 = vpack.c.b16 %v12049, %v12047
  %v12052 = vpack.c.b16 %v12050, %v12048
  %vm12054 = vcmask 261120
  %v12056 = vsel %vm12054, %v12052, 0
  %12058 = vmatprep.subr.bf16.mxu0 %v12014
  %12059 = vmatpush1.bf16.msra.mxu0 %v12013
  %12060 = vmatprep.subr.bf16.mxu0 %v12016
  %12061 = vmatpush1.bf16.msra.mxu0 %v12015
  %12062 = vmatprep.subr.bf16.mxu0 %v12018
  %12063 = vmatpush1.bf16.msra.mxu0 %v12017
  %12064 = vmatprep.subr.bf16.mxu0 %v12020
  %12065 = vmatpush1.bf16.msra.mxu0 %v12019
  %12066 = vmatprep.subr.bf16.mxu0 %v12022
  %12067 = vmatpush1.bf16.msra.mxu0 %v12021
  %12068 = vmatprep.subr.bf16.mxu0 %v12024
  %12069 = vmatpush1.bf16.msra.mxu0 %v12023
  %12070 = vmatprep.subr.bf16.mxu0 %v12026
  %12071 = vmatpush1.bf16.msra.mxu0 %v12025
  %12072 = vmatprep.subr.bf16.mxu0 %v12028
  %12073 = vmatpush1.bf16.msra.mxu0 %v12027
  %12074 = vmatprep.subr.bf16.mxu0 %v12030
  %12075 = vmatpush1.bf16.msra.mxu0 %v12029
  %12076 = vmatprep.subr.bf16.mxu0 %v12032
  %12077 = vmatpush1.bf16.msra.mxu0 %v12031
  %12078 = vmatprep.subr.bf16.mxu0 0
  %12079 = vmatpush1.bf16.msra.mxu0 0
  %12080 = vmatprep.subr.bf16.mxu0 0
  %12081 = vmatpush1.bf16.msra.mxu0 0
  %12082 = vmatprep.subr.bf16.mxu0 0
  %12083 = vmatpush1.bf16.msra.mxu0 0
  %12084 = vmatprep.subr.bf16.mxu0 0
  %12085 = vmatpush1.bf16.msra.mxu0 0
  %12086 = vmatprep.subr.bf16.mxu0 0
  %12087 = vmatpush1.bf16.msra.mxu0 0
  %12088 = vmatprep.subr.bf16.mxu0 0
  %12089 = vmatpush1.bf16.msra.mxu0 0
  %12090 = vmatprep.mubr.bf16.mxu0 %v12056
  %12091 = vmatmul.mubr.bf16.gmra.mrb[0].mxu0 %v12051
  %v12092 = vpop.f32.mrb[0].mxu0
  %v12093 = vadd.f32 %v12038, %v12092
  %v12094 = vpop.f32.mrb[0].mxu0
  %v12095 = vadd.f32 %v12038, %v12094
  %v12096 = vpop.f32.mrb[0].mxu0
  %v12097 = vadd.f32 %v12043, %v12096
  %v12098 = vpop.f32.mrb[0].mxu0
  %v12099 = vadd.f32 %v12043, %v12098
  %12100 = vdwg.mxu0
  %12101 = vst [vmem:[%s7] sm:$0xff] %v12093
  %12102 = vst [vmem:[%s7 + $0x8] sm:$0xff] %v12095
  %12103 = vst [vmem:[%s7 + $0x10] sm:$0x3] %v12097
  %12104 = vst [vmem:[%s7 + $0x18] sm:$0x3] %v12099
  // Predicated region
  $region30: #{convnet_forward.1} parent=0 // pred_check
    _
  $region31: #{convnet_forward.1} parent=0 // pred_check_branch
    %12106 = sbr.rel (0) target = $region33
  $region32: #{convnet_forward.1} parent=0 // pred_region
    _
  $region33: #{convnet_forward.1} parent=0 // pred_fallthru
    _
  // Predicated region
  $region34: #{convnet_forward.1} parent=0 // pred_check
    _
  $region35: #{convnet_forward.1} parent=0 // pred_check_branch
    %12108 = sbr.rel (0) target = $region37
  $region36: #{convnet_forward.1} parent=0 // pred_region
    _
  $region37: #{convnet_forward.1} parent=0 // pred_fallthru
    _

</llo_original>
